<compile_context>
chip_gen: v7x
topology: tpu7x:2x2x1
jax: 0.10.0
libtpu: 0.0.40
codegen_flags: <defaults>
</compile_context>

<pallas_src>
import functools

import numpy as np

import jax
import jax.numpy as jnp
from jax.experimental import pallas as pl
from jax.experimental.pallas import tpu as pltpu

F32 = jnp.float32

# Parameter-ref ordering of one FGMLFA block inside the fused kernel.
BLOCK_KEYS = (
    "ln_g", "ln_b",
    "c1_w", "c1_b",
    "c2_wa", "c2_wb", "c2_b",
    "c3_wa", "c3_wb", "c3_b",
    "sp_w", "sp_b",
    "ch_w", "ch_b",
    "c11_wa", "c11_wb", "c11_b",
    "cf_w1", "cf_w2", "cf_w3", "cf_w4", "cf_s", "cf_b",
)


# ---------------------------------------------------------------------------
# elementwise helpers (VPU / EUP only)
# ---------------------------------------------------------------------------
def _sigmoid(x):
    # divide on the EUP (approx reciprocal) instead of the VALU
    return pl.reciprocal(1.0 + jnp.exp(-x), approx=True)


def _silu(x):
    return x * _sigmoid(x)


_SQRT_HALF = 0.7071067811865476


def _erf(z):
    # Abramowitz & Stegun 7.1.26 rational approximation, |err| < 1.5e-7.
    # TODO(synk): switch to a native erf (or a validated single-tanh GELU).
    a1, a2, a3, a4, a5 = 0.254829592, -0.284496736, 1.421413741, -1.453152027, 1.061405429
    p = 0.3275911
    az = jnp.abs(z)
    t = 1.0 / (1.0 + p * az)
    poly = ((((a5 * t + a4) * t + a3) * t + a2) * t + a1) * t
    e = 1.0 - poly * jnp.exp(-az * az)
    return jnp.where(z >= 0, e, -e)


def _gelu(x):
    # torch.nn.GELU default (exact erf form), approximated in-kernel.
    return 0.5 * x * (1.0 + _erf(x * _SQRT_HALF))


def _row_sum(x):
    """Sum over the (tiny, static) channel/sublane axis via explicit row adds —
    avoids relying on cross-sublane multi_reduction lowering."""
    acc = x[0:1, :]
    for r in range(1, x.shape[0]):
        acc = acc + x[r:r + 1, :]
    return acc


def _mm(a, x):
    """(M, K) @ (K, L) -> (M, L) f32.  K <= 4 (the tiny per-tap convs) runs as
    VPU broadcast-FMA over the lane-dense rows; larger K uses the MXU.
    TODO(synk): cast operands to bf16 on v6e/v7x at production widths."""
    _, k = a.shape
    if k <= 4:
        acc = a[:, 0:1] * x[0:1, :]
        for ci in range(1, k):
            acc = acc + a[:, ci:ci + 1] * x[ci:ci + 1, :]
        return acc
    return jnp.dot(a, x, preferred_element_type=F32)


# ---------------------------------------------------------------------------
# conv / attention building blocks, all in (channels, H*W) layout
# ---------------------------------------------------------------------------
def _conv3x3(pieces, mask9, d, W, L, cout):
    """'Same' zero-padded dilated 3x3 conv in (channels, H*W) layout.

    pieces : [(x (cin_j, L), w (9*cout, cin_j)), ...]  — the torch.cat along
             Cin is folded into per-piece weight slices (no concat).
    mask9  : (9, L) per-tap destination-validity masks for this dilation —
             these implement the zero padding, so no padded buffer exists.
    Each tap's spatial shift is a single lane roll (XLU) of the flattened
    image; out-of-image / wrapped lanes are masked to zero after the FMA.
    """
    out = None
    for t in range(9):
        ky, kx = divmod(t, 3)
        s = d * ((ky - 1) * W + (kx - 1))        # flat source shift of this tap
        part = None
        for xv, wv in pieces:
            xt = xv if s == 0 else pltpu.roll(xv, shift=(-s) % L, axis=1)
            contrib = _mm(wv[t * cout:(t + 1) * cout, :], xt)
            part = contrib if part is None else part + contrib
        part = part * mask9[t:t + 1, :]
        out = part if out is None else out + part
    return out


def _channel_attn(x3, mask1, ch_w, ch_b, L):
    """Channel_aifengheguai: sigmoid(avgpool(dwconv3x3(x3) + bias)) -> (c_, 1).
    Uses linearity of the global pool: per-tap masked window sums of x3, so no
    (H, W, C) temporary is ever formed.  mask1[8 - t] is the source-validity
    mask of tap t at dilation 1."""
    acc = None
    for t in range(9):
        wsum = jnp.sum(x3 * mask1[8 - t:9 - t, :], axis=1, keepdims=True)  # (c_, 1)
        term = ch_w[:, t:t + 1] * wsum
        acc = term if acc is None else acc + term
    return _sigmoid(acc * (1.0 / L) + ch_b)


def _fgmlfa(src, p, m1, m3, m5, *, H, W, c, add):
    """One FGMLFA block on one image; activations as (channels, H*W)."""
    L = H * W
    c_ = c // 4

    # LayerNorm2D over channels (per spatial position), unbiased=False.
    mean = _row_sum(src) * (1.0 / c)
    diff = src - mean
    var = _row_sum(diff * diff) * (1.0 / c)
    xn = diff * jax.lax.rsqrt(var + 1e-5) * p["ln_g"] + p["ln_b"]

    x1n = xn[0 * c_:1 * c_, :]
    x2n = xn[1 * c_:2 * c_, :]
    x3n = xn[2 * c_:3 * c_, :]
    x4n = xn[3 * c_:4 * c_, :]

    x1 = _conv3x3([(x1n, p["c1_w"])], m1, 1, W, L, c_) + p["c1_b"]
    x2 = _conv3x3([(x1, p["c2_wa"]), (x2n, p["c2_wb"])], m3, 3, W, L, c_) + p["c2_b"]
    x3 = _conv3x3([(x2, p["c3_wa"]), (x3n, p["c3_wb"])], m5, 5, W, L, c_) + p["c3_b"]

    # Spatial_aifengheguai on x4: 1x1 conv + folded BN + sigmoid -> (1, L)
    s = _sigmoid(_mm(p["sp_w"], x4n) + p["sp_b"])
    # Channel_aifengheguai on x3 -> (c_, 1)
    ca = _channel_attn(x3, m1, p["ch_w"], p["ch_b"], L)

    x33 = s * x3
    x44 = ca * x4n
    x4 = _mm(p["c11_wa"], x33) + _mm(p["c11_wb"], x44) + p["c11_b"]

    out = _conv3x3(
        [(x1, p["cf_w1"]), (x2, p["cf_w2"]), (x3, p["cf_w3"]), (x4, p["cf_w4"])],
        m1, 1, W, L, c)
    out = _gelu(out * p["cf_s"] + p["cf_b"])      # folded conv-bias + BN, then GELU
    if add:
        out = out + src
    return out


# ---------------------------------------------------------------------------
# the single fused kernel
# ---------------------------------------------------------------------------
def _perception_kernel(*refs, H, W, c, n, add):
    it = iter(refs)
    x_ref = next(it)
    m1 = next(it)[...]
    m3 = next(it)[...]
    m5 = next(it)[...]
    cv1_w = next(it)[...]
    cv1_s = next(it)[...]
    cv1_b = next(it)[...]
    blocks = [{k: next(it)[...] for k in BLOCK_KEYS} for _ in range(n)]
    cv2_wy = next(it)[...]
    cv2_wm = [next(it)[...] for _ in range(n)]
    cv2_s = next(it)[...]
    cv2_b = next(it)[...]
    o_ref = next(it)
    assert next(it, None) is None

    # cv1: 1x1 conv + folded BN + SiLU (MXU matmul, lane-dense rows)
    y = _silu(_mm(cv1_w, x_ref[...]) * cv1_s + cv1_b)            # (2c, L)

    feats = [y]
    src = y[c:2 * c, :]                 # cv1(x).split((c, c)): second half feeds m
    for p in blocks:
        src = _fgmlfa(src, p, m1, m3, m5, H=H, W=W, c=c, add=add)
        feats.append(src)

    # cv2 over cat(y1, y2, m1, ...): the concat is folded into per-piece weights.
    acc = _mm(cv2_wy, feats[0])
    for wp, fb in zip(cv2_wm, feats[1:]):
        acc = acc + _mm(wp, fb)
    o_ref[...] = _silu(acc * cv2_s + cv2_b)


# ---------------------------------------------------------------------------
# wrapper
# ---------------------------------------------------------------------------
def _build_masks(H, W, d):
    """(9, H*W) f32 destination-validity masks of a dilated 3x3 'same' conv."""
    yy, xx = np.meshgrid(np.arange(H), np.arange(W), indexing="ij")
    yy = yy.reshape(-1)
    xx = xx.reshape(-1)
    m = np.zeros((9, H * W), np.float32)
    for t in range(9):
        ky, kx = divmod(t, 3)
        dy, dx = (ky - 1) * d, (kx - 1) * d
        ok = (yy + dy >= 0) & (yy + dy < H) & (xx + dx >= 0) & (xx + dx < W)
        m[t] = ok.astype(np.float32)
    return jnp.asarray(m)


def perception_block(x_nchw, params):
    """Perception_block forward.  NCHW in, NCHW out (like the PyTorch module)."""
    B, C1, H, W = x_nchw.shape
    c, c2, n = params["c"], params["c2"], params["n"]
    L = H * W
    R = B * L
    # Lane-dense layout: channels on sublanes, flattened spatial on lanes.
    assert L % 128 == 0, "H*W must be a multiple of 128 for the lane-dense layout"
    # TODO(synk): for ragged H*W, pad L to a multiple of 128 and mask the tail.
    x2d = jnp.transpose(x_nchw, (1, 0, 2, 3)).reshape(C1, R)

    m1, m3, m5 = (_build_masks(H, W, d) for d in (1, 3, 5))

    args = [x2d, m1, m3, m5, params["cv1_w"], params["cv1_s"], params["cv1_b"]]
    for mp in params["m"]:
        args += [mp[k] for k in BLOCK_KEYS]
    args += [params["cv2_wy"], *params["cv2_wm"], params["cv2_s"], params["cv2_b"]]

    in_specs = [pl.BlockSpec((C1, L), lambda b: (0, b))]          # one image / step
    in_specs += [pl.BlockSpec(a.shape, lambda b: (0, 0)) for a in args[1:]]

    out2d = pl.pallas_call(
        functools.partial(_perception_kernel, H=H, W=W, c=c, n=n, add=params["add"]),
        out_shape=jax.ShapeDtypeStruct((c2, R), F32),
        grid=(B,),
        in_specs=in_specs,
        out_specs=pl.BlockSpec((c2, L), lambda b: (0, b)),
        compiler_params=pltpu.CompilerParams(
            # TODO(synk): try pltpu.CORE_PARALLEL / pl.core_map on v7x so the
            # batch grid provably splits across the 2 TensorCores.
            dimension_semantics=("parallel",)),
    )(*args)

    return jnp.transpose(out2d.reshape(c2, B, H, W), (1, 0, 2, 3))


# ---------------------------------------------------------------------------
# deterministic synthetic parameters (torch-layout weights -> kernel layout)
# ---------------------------------------------------------------------------
def _fold_bn(gamma, beta, rmean, rvar, eps=1e-5, conv_bias=None):
    s = gamma / jnp.sqrt(rvar + eps)
    b = beta - rmean * s
    if conv_bias is not None:
        b = b + conv_bias * s
    return s.reshape(-1, 1).astype(F32), b.reshape(-1, 1).astype(F32)


def _taps_from_torch(w):
    """(cout, cin, 3, 3) torch conv weight -> (9*cout, cin):
    rows ordered [tap t = ky*3+kx][cout], matching the kernel's per-tap slice."""
    cout, cin = w.shape[0], w.shape[1]
    return jnp.transpose(w, (2, 3, 0, 1)).reshape(9 * cout, cin).astype(F32)


def init_params(key, c1, c2, n=1, shortcut=False, e=0.5):
    c = int(c2 * e)
    c_ = c // 4
    assert c % 4 == 0 and c_ >= 1
    keys = iter(jax.random.split(key, 256))

    def w(shape, scale=0.2):
        return (scale * jax.random.normal(next(keys), shape)).astype(F32)

    def bn(ch):
        gamma = (1.0 + 0.1 * jax.random.normal(next(keys), (ch,))).astype(F32)
        beta = (0.05 * jax.random.normal(next(keys), (ch,))).astype(F32)
        return gamma, beta, jnp.zeros((ch,), F32), jnp.ones((ch,), F32)

    params = {"c": c, "c2": c2, "n": n, "add": bool(shortcut)}

    # cv1: Conv2d(c1, 2c, 1, bias=False) + BN + SiLU
    params["cv1_w"] = w((2 * c, c1))
    params["cv1_s"], params["cv1_b"] = _fold_bn(*bn(2 * c))
    # cv2: Conv2d((2+n)c, c2, 1, bias=False) + BN + SiLU  (cat folded into splits)
    w2 = w((c2, (2 + n) * c))
    params["cv2_wy"] = w2[:, :2 * c]
    params["cv2_wm"] = [w2[:, 2 * c + i * c: 2 * c + (i + 1) * c] for i in range(n)]
    params["cv2_s"], params["cv2_b"] = _fold_bn(*bn(c2))

    blocks = []
    for _ in range(n):
        m = {}
        m["ln_g"] = (1.0 + 0.1 * jax.random.normal(next(keys), (c, 1))).astype(F32)
        m["ln_b"] = (0.05 * jax.random.normal(next(keys), (c, 1))).astype(F32)
        # c1: Conv2d(c_, c_, 3, pad=1, dil=1) + bias
        m["c1_w"] = _taps_from_torch(w((c_, c_, 3, 3)))
        m["c1_b"] = w((c_, 1), 0.05)
        # c2: Conv2d(2c_, c_, 3, pad=3, dil=3) + bias   (input = cat[x1, x2])
        wc2 = w((c_, 2 * c_, 3, 3))
        m["c2_wa"] = _taps_from_torch(wc2[:, :c_])
        m["c2_wb"] = _taps_from_torch(wc2[:, c_:])
        m["c2_b"] = w((c_, 1), 0.05)
        # c3: Conv2d(2c_, c_, 3, pad=5, dil=5) + bias   (input = cat[x2, x3])
        wc3 = w((c_, 2 * c_, 3, 3))
        m["c3_wa"] = _taps_from_torch(wc3[:, :c_])
        m["c3_wb"] = _taps_from_torch(wc3[:, c_:])
        m["c3_b"] = w((c_, 1), 0.05)
        # Spatial_aifengheguai: Conv2d(c_, 1, 1) + bias, BN(1), sigmoid (folded)
        sp_conv_w = w((1, c_))
        sp_conv_b = w((1,), 0.05)
        g, b_, rm, rv = bn(1)
        sps, spb = _fold_bn(g, b_, rm, rv, conv_bias=sp_conv_b)
        m["sp_w"] = (sp_conv_w * sps).astype(F32)      # (1, c_) pre-scaled
        m["sp_b"] = spb                                 # (1, 1)
        # Channel_aifengheguai: depthwise Conv2d(c_, c_, 3, groups=c_) + bias
        m["ch_w"] = w((c_, 1, 3, 3)).reshape(c_, 9)
        m["ch_b"] = w((c_, 1), 0.05)
        # c11: Conv2d(2c_, c_, 1) + bias                (input = cat[x33, x44])
        wc11 = w((c_, 2 * c_))
        m["c11_wa"] = wc11[:, :c_]
        m["c11_wb"] = wc11[:, c_:]
        m["c11_b"] = w((c_, 1), 0.05)
        # c: Conv2d(c, c, 3, pad=1) + bias, BN(c), GELU  (input = cat[x1..x4])
        wcf = w((c, c, 3, 3))
        for i in range(4):
            m[f"cf_w{i + 1}"] = _taps_from_torch(wcf[:, i * c_:(i + 1) * c_])
        cf_bias = w((c,), 0.05)
        g, b_, rm, rv = bn(c)
        m["cf_s"], m["cf_b"] = _fold_bn(g, b_, rm, rv, conv_bias=cf_bias)
        blocks.append(m)
    params["m"] = blocks
    return params


# ---------------------------------------------------------------------------
if __name__ == "__main__":
    key = jax.random.PRNGKey(0)
    kx_, kp = jax.random.split(key)

    B, C1, C2, H, W = 2, 8, 16, 16, 16          # -> c = 8, c_ = 2
    x_nchw = jax.random.normal(kx_, (B, C1, H, W), dtype=F32)   # PyTorch-style input

    params = init_params(kp, C1, C2, n=1, shortcut=False, e=0.5)

    fwd = jax.jit(lambda xx: perception_block(xx, params))
    out = jax.block_until_ready(fwd(x_nchw))

    assert out.shape == (B, C2, H, W), out.shape
    assert bool(jnp.all(jnp.isfinite(out)))
    print("KERNEL_OK")
</pallas_src>

<mosaic_0001>
module attributes {stable_mosaic.version = 11 : i64} {
  func.func @_perception_kernel(%arg0: i32, %arg1: memref<8x256xf32, #tpu.memory_space<vmem>>, %arg2: memref<9x256xf32, #tpu.memory_space<vmem>>, %arg3: memref<9x256xf32, #tpu.memory_space<vmem>>, %arg4: memref<9x256xf32, #tpu.memory_space<vmem>>, %arg5: memref<16x8xf32, #tpu.memory_space<vmem>>, %arg6: memref<16x1xf32, #tpu.memory_space<vmem>>, %arg7: memref<16x1xf32, #tpu.memory_space<vmem>>, %arg8: memref<8x1xf32, #tpu.memory_space<vmem>>, %arg9: memref<8x1xf32, #tpu.memory_space<vmem>>, %arg10: memref<18x2xf32, #tpu.memory_space<vmem>>, %arg11: memref<2x1xf32, #tpu.memory_space<vmem>>, %arg12: memref<18x2xf32, #tpu.memory_space<vmem>>, %arg13: memref<18x2xf32, #tpu.memory_space<vmem>>, %arg14: memref<2x1xf32, #tpu.memory_space<vmem>>, %arg15: memref<18x2xf32, #tpu.memory_space<vmem>>, %arg16: memref<18x2xf32, #tpu.memory_space<vmem>>, %arg17: memref<2x1xf32, #tpu.memory_space<vmem>>, %arg18: memref<1x2xf32, #tpu.memory_space<vmem>>, %arg19: memref<1x1xf32, #tpu.memory_space<vmem>>, %arg20: memref<2x9xf32, #tpu.memory_space<vmem>>, %arg21: memref<2x1xf32, #tpu.memory_space<vmem>>, %arg22: memref<2x2xf32, #tpu.memory_space<vmem>>, %arg23: memref<2x2xf32, #tpu.memory_space<vmem>>, %arg24: memref<2x1xf32, #tpu.memory_space<vmem>>, %arg25: memref<72x2xf32, #tpu.memory_space<vmem>>, %arg26: memref<72x2xf32, #tpu.memory_space<vmem>>, %arg27: memref<72x2xf32, #tpu.memory_space<vmem>>, %arg28: memref<72x2xf32, #tpu.memory_space<vmem>>, %arg29: memref<8x1xf32, #tpu.memory_space<vmem>>, %arg30: memref<8x1xf32, #tpu.memory_space<vmem>>, %arg31: memref<16x16xf32, #tpu.memory_space<vmem>>, %arg32: memref<16x8xf32, #tpu.memory_space<vmem>>, %arg33: memref<16x1xf32, #tpu.memory_space<vmem>>, %arg34: memref<16x1xf32, #tpu.memory_space<vmem>>, %arg35: memref<16x256xf32, #tpu.memory_space<vmem>>) attributes {dimension_semantics = [#tpu.dimension_semantics<parallel>], iteration_bounds = array<i64: 2>, scalar_prefetch = 0 : i64, scratch_operands = 0 : i64, tpu.core_type = #tpu.core_type<tc>, window_params = [{transform_indices = @transform_0, window_bounds = array<i64: 8, 256>}, {pipeline_mode = #tpu.pipeline_mode<synchronous>, transform_indices = @transform_1, window_bounds = array<i64: 9, 256>}, {pipeline_mode = #tpu.pipeline_mode<synchronous>, transform_indices = @transform_2, window_bounds = array<i64: 9, 256>}, {pipeline_mode = #tpu.pipeline_mode<synchronous>, transform_indices = @transform_3, window_bounds = array<i64: 9, 256>}, {pipeline_mode = #tpu.pipeline_mode<synchronous>, transform_indices = @transform_4, window_bounds = array<i64: 16, 8>}, {pipeline_mode = #tpu.pipeline_mode<synchronous>, transform_indices = @transform_5, window_bounds = array<i64: 16, 1>}, {pipeline_mode = #tpu.pipeline_mode<synchronous>, transform_indices = @transform_6, window_bounds = array<i64: 16, 1>}, {pipeline_mode = #tpu.pipeline_mode<synchronous>, transform_indices = @transform_7, window_bounds = array<i64: 8, 1>}, {pipeline_mode = #tpu.pipeline_mode<synchronous>, transform_indices = @transform_8, window_bounds = array<i64: 8, 1>}, {pipeline_mode = #tpu.pipeline_mode<synchronous>, transform_indices = @transform_9, window_bounds = array<i64: 18, 2>}, {pipeline_mode = #tpu.pipeline_mode<synchronous>, transform_indices = @transform_10, window_bounds = array<i64: 2, 1>}, {pipeline_mode = #tpu.pipeline_mode<synchronous>, transform_indices = @transform_11, window_bounds = array<i64: 18, 2>}, {pipeline_mode = #tpu.pipeline_mode<synchronous>, transform_indices = @transform_12, window_bounds = array<i64: 18, 2>}, {pipeline_mode = #tpu.pipeline_mode<synchronous>, transform_indices = @transform_13, window_bounds = array<i64: 2, 1>}, {pipeline_mode = #tpu.pipeline_mode<synchronous>, transform_indices = @transform_14, window_bounds = array<i64: 18, 2>}, {pipeline_mode = #tpu.pipeline_mode<synchronous>, transform_indices = @transform_15, window_bounds = array<i64: 18, 2>}, {pipeline_mode = #tpu.pipeline_mode<synchronous>, transform_indices = @transform_16, window_bounds = array<i64: 2, 1>}, {pipeline_mode = #tpu.pipeline_mode<synchronous>, transform_indices = @transform_17, window_bounds = array<i64: 1, 2>}, {pipeline_mode = #tpu.pipeline_mode<synchronous>, transform_indices = @transform_18, window_bounds = array<i64: 1, 1>}, {pipeline_mode = #tpu.pipeline_mode<synchronous>, transform_indices = @transform_19, window_bounds = array<i64: 2, 9>}, {pipeline_mode = #tpu.pipeline_mode<synchronous>, transform_indices = @transform_20, window_bounds = array<i64: 2, 1>}, {pipeline_mode = #tpu.pipeline_mode<synchronous>, transform_indices = @transform_21, window_bounds = array<i64: 2, 2>}, {pipeline_mode = #tpu.pipeline_mode<synchronous>, transform_indices = @transform_22, window_bounds = array<i64: 2, 2>}, {pipeline_mode = #tpu.pipeline_mode<synchronous>, transform_indices = @transform_23, window_bounds = array<i64: 2, 1>}, {pipeline_mode = #tpu.pipeline_mode<synchronous>, transform_indices = @transform_24, window_bounds = array<i64: 72, 2>}, {pipeline_mode = #tpu.pipeline_mode<synchronous>, transform_indices = @transform_25, window_bounds = array<i64: 72, 2>}, {pipeline_mode = #tpu.pipeline_mode<synchronous>, transform_indices = @transform_26, window_bounds = array<i64: 72, 2>}, {pipeline_mode = #tpu.pipeline_mode<synchronous>, transform_indices = @transform_27, window_bounds = array<i64: 72, 2>}, {pipeline_mode = #tpu.pipeline_mode<synchronous>, transform_indices = @transform_28, window_bounds = array<i64: 8, 1>}, {pipeline_mode = #tpu.pipeline_mode<synchronous>, transform_indices = @transform_29, window_bounds = array<i64: 8, 1>}, {pipeline_mode = #tpu.pipeline_mode<synchronous>, transform_indices = @transform_30, window_bounds = array<i64: 16, 16>}, {pipeline_mode = #tpu.pipeline_mode<synchronous>, transform_indices = @transform_31, window_bounds = array<i64: 16, 8>}, {pipeline_mode = #tpu.pipeline_mode<synchronous>, transform_indices = @transform_32, window_bounds = array<i64: 16, 1>}, {pipeline_mode = #tpu.pipeline_mode<synchronous>, transform_indices = @transform_33, window_bounds = array<i64: 16, 1>}, {transform_indices = @transform_34, window_bounds = array<i64: 16, 256>}]} {
    %c0 = arith.constant 0 : index
    %c0_0 = arith.constant 0 : index
    %0 = vector.load %arg2[%c0, %c0_0] : memref<9x256xf32, #tpu.memory_space<vmem>>, vector<9x256xf32>
    %c0_1 = arith.constant 0 : index
    %c0_2 = arith.constant 0 : index
    %1 = vector.load %arg3[%c0_1, %c0_2] : memref<9x256xf32, #tpu.memory_space<vmem>>, vector<9x256xf32>
    %c0_3 = arith.constant 0 : index
    %c0_4 = arith.constant 0 : index
    %2 = vector.load %arg4[%c0_3, %c0_4] : memref<9x256xf32, #tpu.memory_space<vmem>>, vector<9x256xf32>
    %c0_5 = arith.constant 0 : index
    %c0_6 = arith.constant 0 : index
    %3 = vector.load %arg5[%c0_5, %c0_6] : memref<16x8xf32, #tpu.memory_space<vmem>>, vector<16x8xf32>
    %c0_7 = arith.constant 0 : index
    %c0_8 = arith.constant 0 : index
    %4 = vector.load %arg6[%c0_7, %c0_8] : memref<16x1xf32, #tpu.memory_space<vmem>>, vector<16x1xf32>
    %c0_9 = arith.constant 0 : index
    %c0_10 = arith.constant 0 : index
    %5 = vector.load %arg7[%c0_9, %c0_10] : memref<16x1xf32, #tpu.memory_space<vmem>>, vector<16x1xf32>
    %c0_11 = arith.constant 0 : index
    %c0_12 = arith.constant 0 : index
    %6 = vector.load %arg8[%c0_11, %c0_12] : memref<8x1xf32, #tpu.memory_space<vmem>>, vector<8x1xf32>
    %c0_13 = arith.constant 0 : index
    %c0_14 = arith.constant 0 : index
    %7 = vector.load %arg9[%c0_13, %c0_14] : memref<8x1xf32, #tpu.memory_space<vmem>>, vector<8x1xf32>
    %c0_15 = arith.constant 0 : index
    %c0_16 = arith.constant 0 : index
    %8 = vector.load %arg10[%c0_15, %c0_16] : memref<18x2xf32, #tpu.memory_space<vmem>>, vector<18x2xf32>
    %c0_17 = arith.constant 0 : index
    %c0_18 = arith.constant 0 : index
    %9 = vector.load %arg11[%c0_17, %c0_18] : memref<2x1xf32, #tpu.memory_space<vmem>>, vector<2x1xf32>
    %c0_19 = arith.constant 0 : index
    %c0_20 = arith.constant 0 : index
    %10 = vector.load %arg12[%c0_19, %c0_20] : memref<18x2xf32, #tpu.memory_space<vmem>>, vector<18x2xf32>
    %c0_21 = arith.constant 0 : index
    %c0_22 = arith.constant 0 : index
    %11 = vector.load %arg13[%c0_21, %c0_22] : memref<18x2xf32, #tpu.memory_space<vmem>>, vector<18x2xf32>
    %c0_23 = arith.constant 0 : index
    %c0_24 = arith.constant 0 : index
    %12 = vector.load %arg14[%c0_23, %c0_24] : memref<2x1xf32, #tpu.memory_space<vmem>>, vector<2x1xf32>
    %c0_25 = arith.constant 0 : index
    %c0_26 = arith.constant 0 : index
    %13 = vector.load %arg15[%c0_25, %c0_26] : memref<18x2xf32, #tpu.memory_space<vmem>>, vector<18x2xf32>
    %c0_27 = arith.constant 0 : index
    %c0_28 = arith.constant 0 : index
    %14 = vector.load %arg16[%c0_27, %c0_28] : memref<18x2xf32, #tpu.memory_space<vmem>>, vector<18x2xf32>
    %c0_29 = arith.constant 0 : index
    %c0_30 = arith.constant 0 : index
    %15 = vector.load %arg17[%c0_29, %c0_30] : memref<2x1xf32, #tpu.memory_space<vmem>>, vector<2x1xf32>
    %c0_31 = arith.constant 0 : index
    %c0_32 = arith.constant 0 : index
    %16 = vector.load %arg18[%c0_31, %c0_32] : memref<1x2xf32, #tpu.memory_space<vmem>>, vector<1x2xf32>
    %c0_33 = arith.constant 0 : index
    %c0_34 = arith.constant 0 : index
    %17 = vector.load %arg19[%c0_33, %c0_34] : memref<1x1xf32, #tpu.memory_space<vmem>>, vector<1x1xf32>
    %c0_35 = arith.constant 0 : index
    %c0_36 = arith.constant 0 : index
    %18 = vector.load %arg20[%c0_35, %c0_36] : memref<2x9xf32, #tpu.memory_space<vmem>>, vector<2x9xf32>
    %c0_37 = arith.constant 0 : index
    %c0_38 = arith.constant 0 : index
    %19 = vector.load %arg21[%c0_37, %c0_38] : memref<2x1xf32, #tpu.memory_space<vmem>>, vector<2x1xf32>
    %c0_39 = arith.constant 0 : index
    %c0_40 = arith.constant 0 : index
    %20 = vector.load %arg22[%c0_39, %c0_40] : memref<2x2xf32, #tpu.memory_space<vmem>>, vector<2x2xf32>
    %c0_41 = arith.constant 0 : index
    %c0_42 = arith.constant 0 : index
    %21 = vector.load %arg23[%c0_41, %c0_42] : memref<2x2xf32, #tpu.memory_space<vmem>>, vector<2x2xf32>
    %c0_43 = arith.constant 0 : index
    %c0_44 = arith.constant 0 : index
    %22 = vector.load %arg24[%c0_43, %c0_44] : memref<2x1xf32, #tpu.memory_space<vmem>>, vector<2x1xf32>
    %c0_45 = arith.constant 0 : index
    %c0_46 = arith.constant 0 : index
    %23 = vector.load %arg25[%c0_45, %c0_46] : memref<72x2xf32, #tpu.memory_space<vmem>>, vector<72x2xf32>
    %c0_47 = arith.constant 0 : index
    %c0_48 = arith.constant 0 : index
    %24 = vector.load %arg26[%c0_47, %c0_48] : memref<72x2xf32, #tpu.memory_space<vmem>>, vector<72x2xf32>
    %c0_49 = arith.constant 0 : index
    %c0_50 = arith.constant 0 : index
    %25 = vector.load %arg27[%c0_49, %c0_50] : memref<72x2xf32, #tpu.memory_space<vmem>>, vector<72x2xf32>
    %c0_51 = arith.constant 0 : index
    %c0_52 = arith.constant 0 : index
    %26 = vector.load %arg28[%c0_51, %c0_52] : memref<72x2xf32, #tpu.memory_space<vmem>>, vector<72x2xf32>
    %c0_53 = arith.constant 0 : index
    %c0_54 = arith.constant 0 : index
    %27 = vector.load %arg29[%c0_53, %c0_54] : memref<8x1xf32, #tpu.memory_space<vmem>>, vector<8x1xf32>
    %c0_55 = arith.constant 0 : index
    %c0_56 = arith.constant 0 : index
    %28 = vector.load %arg30[%c0_55, %c0_56] : memref<8x1xf32, #tpu.memory_space<vmem>>, vector<8x1xf32>
    %c0_57 = arith.constant 0 : index
    %c0_58 = arith.constant 0 : index
    %29 = vector.load %arg31[%c0_57, %c0_58] : memref<16x16xf32, #tpu.memory_space<vmem>>, vector<16x16xf32>
    %c0_59 = arith.constant 0 : index
    %c0_60 = arith.constant 0 : index
    %30 = vector.load %arg32[%c0_59, %c0_60] : memref<16x8xf32, #tpu.memory_space<vmem>>, vector<16x8xf32>
    %c0_61 = arith.constant 0 : index
    %c0_62 = arith.constant 0 : index
    %31 = vector.load %arg33[%c0_61, %c0_62] : memref<16x1xf32, #tpu.memory_space<vmem>>, vector<16x1xf32>
    %c0_63 = arith.constant 0 : index
    %c0_64 = arith.constant 0 : index
    %32 = vector.load %arg34[%c0_63, %c0_64] : memref<16x1xf32, #tpu.memory_space<vmem>>, vector<16x1xf32>
    %c0_65 = arith.constant 0 : index
    %c0_66 = arith.constant 0 : index
    %33 = vector.load %arg1[%c0_65, %c0_66] : memref<8x256xf32, #tpu.memory_space<vmem>>, vector<8x256xf32>
    %cst = arith.constant dense<0.000000e+00> : vector<16x256xf32>
    %34 = tpu.matmul %3, %33, %cst {dimension_numbers = #tpu.dot_dimension_numbers<[1], [0], [0], [1], [0, 0, 1, 1], [], []>} : vector<16x8xf32>, vector<8x256xf32>, vector<16x256xf32> -> vector<16x256xf32>
    %35 = vector.broadcast %4 : vector<16x1xf32> to vector<16x256xf32>
    %36 = arith.mulf %34, %35 : vector<16x256xf32>
    %37 = vector.broadcast %5 : vector<16x1xf32> to vector<16x256xf32>
    %38 = arith.addf %36, %37 : vector<16x256xf32>
    %cst_67 = arith.constant 0.000000e+00 : f32
    %39 = vector.broadcast %cst_67 : f32 to vector<16x256xf32>
    %40 = arith.subf %39, %38 : vector<16x256xf32>
    %41 = math.exp %40 : vector<16x256xf32>
    %cst_68 = arith.constant 1.000000e+00 : f32
    %42 = vector.broadcast %cst_68 : f32 to vector<16x256xf32>
    %43 = arith.addf %42, %41 : vector<16x256xf32>
    %44 = tpu.reciprocal %43 {approx = true} : vector<16x256xf32> -> vector<16x256xf32>
    %45 = arith.mulf %38, %44 : vector<16x256xf32>
    %46 = vector.extract_strided_slice %45 {offsets = [8, 0], sizes = [8, 256], strides = [1, 1]} : vector<16x256xf32> to vector<8x256xf32>
    %47 = vector.extract_strided_slice %46 {offsets = [0, 0], sizes = [1, 256], strides = [1, 1]} : vector<8x256xf32> to vector<1x256xf32>
    %48 = vector.extract_strided_slice %46 {offsets = [1, 0], sizes = [1, 256], strides = [1, 1]} : vector<8x256xf32> to vector<1x256xf32>
    %49 = arith.addf %47, %48 : vector<1x256xf32>
    %50 = vector.extract_strided_slice %46 {offsets = [2, 0], sizes = [1, 256], strides = [1, 1]} : vector<8x256xf32> to vector<1x256xf32>
    %51 = arith.addf %49, %50 : vector<1x256xf32>
    %52 = vector.extract_strided_slice %46 {offsets = [3, 0], sizes = [1, 256], strides = [1, 1]} : vector<8x256xf32> to vector<1x256xf32>
    %53 = arith.addf %51, %52 : vector<1x256xf32>
    %54 = vector.extract_strided_slice %46 {offsets = [4, 0], sizes = [1, 256], strides = [1, 1]} : vector<8x256xf32> to vector<1x256xf32>
    %55 = arith.addf %53, %54 : vector<1x256xf32>
    %56 = vector.extract_strided_slice %46 {offsets = [5, 0], sizes = [1, 256], strides = [1, 1]} : vector<8x256xf32> to vector<1x256xf32>
    %57 = arith.addf %55, %56 : vector<1x256xf32>
    %58 = vector.extract_strided_slice %46 {offsets = [6, 0], sizes = [1, 256], strides = [1, 1]} : vector<8x256xf32> to vector<1x256xf32>
    %59 = arith.addf %57, %58 : vector<1x256xf32>
    %60 = vector.extract_strided_slice %46 {offsets = [7, 0], sizes = [1, 256], strides = [1, 1]} : vector<8x256xf32> to vector<1x256xf32>
    %61 = arith.addf %59, %60 : vector<1x256xf32>
    %cst_69 = arith.constant 1.250000e-01 : f32
    %62 = vector.broadcast %cst_69 : f32 to vector<1x256xf32>
    %63 = arith.mulf %61, %62 : vector<1x256xf32>
    %64 = vector.broadcast %63 : vector<1x256xf32> to vector<8x256xf32>
    %65 = arith.subf %46, %64 : vector<8x256xf32>
    %66 = arith.mulf %65, %65 : vector<8x256xf32>
    %67 = vector.extract_strided_slice %66 {offsets = [0, 0], sizes = [1, 256], strides = [1, 1]} : vector<8x256xf32> to vector<1x256xf32>
    %68 = vector.extract_strided_slice %66 {offsets = [1, 0], sizes = [1, 256], strides = [1, 1]} : vector<8x256xf32> to vector<1x256xf32>
    %69 = arith.addf %67, %68 : vector<1x256xf32>
    %70 = vector.extract_strided_slice %66 {offsets = [2, 0], sizes = [1, 256], strides = [1, 1]} : vector<8x256xf32> to vector<1x256xf32>
    %71 = arith.addf %69, %70 : vector<1x256xf32>
    %72 = vector.extract_strided_slice %66 {offsets = [3, 0], sizes = [1, 256], strides = [1, 1]} : vector<8x256xf32> to vector<1x256xf32>
    %73 = arith.addf %71, %72 : vector<1x256xf32>
    %74 = vector.extract_strided_slice %66 {offsets = [4, 0], sizes = [1, 256], strides = [1, 1]} : vector<8x256xf32> to vector<1x256xf32>
    %75 = arith.addf %73, %74 : vector<1x256xf32>
    %76 = vector.extract_strided_slice %66 {offsets = [5, 0], sizes = [1, 256], strides = [1, 1]} : vector<8x256xf32> to vector<1x256xf32>
    %77 = arith.addf %75, %76 : vector<1x256xf32>
    %78 = vector.extract_strided_slice %66 {offsets = [6, 0], sizes = [1, 256], strides = [1, 1]} : vector<8x256xf32> to vector<1x256xf32>
    %79 = arith.addf %77, %78 : vector<1x256xf32>
    %80 = vector.extract_strided_slice %66 {offsets = [7, 0], sizes = [1, 256], strides = [1, 1]} : vector<8x256xf32> to vector<1x256xf32>
    %81 = arith.addf %79, %80 : vector<1x256xf32>
    %cst_70 = arith.constant 1.250000e-01 : f32
    %82 = vector.broadcast %cst_70 : f32 to vector<1x256xf32>
    %83 = arith.mulf %81, %82 : vector<1x256xf32>
    %cst_71 = arith.constant 9.99999974E-6 : f32
    %84 = vector.broadcast %cst_71 : f32 to vector<1x256xf32>
    %85 = arith.addf %83, %84 : vector<1x256xf32>
    %86 = math.rsqrt %85 : vector<1x256xf32>
    %87 = vector.broadcast %86 : vector<1x256xf32> to vector<8x256xf32>
    %88 = arith.mulf %65, %87 : vector<8x256xf32>
    %89 = vector.broadcast %6 : vector<8x1xf32> to vector<8x256xf32>
    %90 = arith.mulf %88, %89 : vector<8x256xf32>
    %91 = vector.broadcast %7 : vector<8x1xf32> to vector<8x256xf32>
    %92 = arith.addf %90, %91 : vector<8x256xf32>
    %93 = vector.extract_strided_slice %92 {offsets = [0, 0], sizes = [2, 256], strides = [1, 1]} : vector<8x256xf32> to vector<2x256xf32>
    %94 = vector.extract_strided_slice %92 {offsets = [2, 0], sizes = [2, 256], strides = [1, 1]} : vector<8x256xf32> to vector<2x256xf32>
    %95 = vector.extract_strided_slice %92 {offsets = [4, 0], sizes = [2, 256], strides = [1, 1]} : vector<8x256xf32> to vector<2x256xf32>
    %96 = vector.extract_strided_slice %92 {offsets = [6, 0], sizes = [2, 256], strides = [1, 1]} : vector<8x256xf32> to vector<2x256xf32>
    %c17_i32 = arith.constant 17 : i32
    %97 = tpu.dynamic_rotate %93 by %c17_i32 dim 1 : vector<2x256xf32>, i32 -> vector<2x256xf32>
    %98 = vector.extract_strided_slice %8 {offsets = [0, 0], sizes = [2, 2], strides = [1, 1]} : vector<18x2xf32> to vector<2x2xf32>
    %99 = vector.extract_strided_slice %98 {offsets = [0, 0], sizes = [2, 1], strides = [1, 1]} : vector<2x2xf32> to vector<2x1xf32>
    %100 = vector.extract_strided_slice %97 {offsets = [0, 0], sizes = [1, 256], strides = [1, 1]} : vector<2x256xf32> to vector<1x256xf32>
    %101 = vector.broadcast %99 : vector<2x1xf32> to vector<2x256xf32>
    %102 = vector.broadcast %100 : vector<1x256xf32> to vector<2x256xf32>
    %103 = arith.mulf %101, %102 : vector<2x256xf32>
    %104 = vector.extract_strided_slice %98 {offsets = [0, 1], sizes = [2, 1], strides = [1, 1]} : vector<2x2xf32> to vector<2x1xf32>
    %105 = vector.extract_strided_slice %97 {offsets = [1, 0], sizes = [1, 256], strides = [1, 1]} : vector<2x256xf32> to vector<1x256xf32>
    %106 = vector.broadcast %104 : vector<2x1xf32> to vector<2x256xf32>
    %107 = vector.broadcast %105 : vector<1x256xf32> to vector<2x256xf32>
    %108 = arith.mulf %106, %107 : vector<2x256xf32>
    %109 = arith.addf %103, %108 : vector<2x256xf32>
    %110 = vector.extract_strided_slice %0 {offsets = [0, 0], sizes = [1, 256], strides = [1, 1]} : vector<9x256xf32> to vector<1x256xf32>
    %111 = vector.broadcast %110 : vector<1x256xf32> to vector<2x256xf32>
    %112 = arith.mulf %109, %111 : vector<2x256xf32>
    %c16_i32 = arith.constant 16 : i32
    %113 = tpu.dynamic_rotate %93 by %c16_i32 dim 1 : vector<2x256xf32>, i32 -> vector<2x256xf32>
    %114 = vector.extract_strided_slice %8 {offsets = [2, 0], sizes = [2, 2], strides = [1, 1]} : vector<18x2xf32> to vector<2x2xf32>
    %115 = vector.extract_strided_slice %114 {offsets = [0, 0], sizes = [2, 1], strides = [1, 1]} : vector<2x2xf32> to vector<2x1xf32>
    %116 = vector.extract_strided_slice %113 {offsets = [0, 0], sizes = [1, 256], strides = [1, 1]} : vector<2x256xf32> to vector<1x256xf32>
    %117 = vector.broadcast %115 : vector<2x1xf32> to vector<2x256xf32>
    %118 = vector.broadcast %116 : vector<1x256xf32> to vector<2x256xf32>
    %119 = arith.mulf %117, %118 : vector<2x256xf32>
    %120 = vector.extract_strided_slice %114 {offsets = [0, 1], sizes = [2, 1], strides = [1, 1]} : vector<2x2xf32> to vector<2x1xf32>
    %121 = vector.extract_strided_slice %113 {offsets = [1, 0], sizes = [1, 256], strides = [1, 1]} : vector<2x256xf32> to vector<1x256xf32>
    %122 = vector.broadcast %120 : vector<2x1xf32> to vector<2x256xf32>
    %123 = vector.broadcast %121 : vector<1x256xf32> to vector<2x256xf32>
    %124 = arith.mulf %122, %123 : vector<2x256xf32>
    %125 = arith.addf %119, %124 : vector<2x256xf32>
    %126 = vector.extract_strided_slice %0 {offsets = [1, 0], sizes = [1, 256], strides = [1, 1]} : vector<9x256xf32> to vector<1x256xf32>
    %127 = vector.broadcast %126 : vector<1x256xf32> to vector<2x256xf32>
    %128 = arith.mulf %125, %127 : vector<2x256xf32>
    %129 = arith.addf %112, %128 : vector<2x256xf32>
    %c15_i32 = arith.constant 15 : i32
    %130 = tpu.dynamic_rotate %93 by %c15_i32 dim 1 : vector<2x256xf32>, i32 -> vector<2x256xf32>
    %131 = vector.extract_strided_slice %8 {offsets = [4, 0], sizes = [2, 2], strides = [1, 1]} : vector<18x2xf32> to vector<2x2xf32>
    %132 = vector.extract_strided_slice %131 {offsets = [0, 0], sizes = [2, 1], strides = [1, 1]} : vector<2x2xf32> to vector<2x1xf32>
    %133 = vector.extract_strided_slice %130 {offsets = [0, 0], sizes = [1, 256], strides = [1, 1]} : vector<2x256xf32> to vector<1x256xf32>
    %134 = vector.broadcast %132 : vector<2x1xf32> to vector<2x256xf32>
    %135 = vector.broadcast %133 : vector<1x256xf32> to vector<2x256xf32>
    %136 = arith.mulf %134, %135 : vector<2x256xf32>
    %137 = vector.extract_strided_slice %131 {offsets = [0, 1], sizes = [2, 1], strides = [1, 1]} : vector<2x2xf32> to vector<2x1xf32>
    %138 = vector.extract_strided_slice %130 {offsets = [1, 0], sizes = [1, 256], strides = [1, 1]} : vector<2x256xf32> to vector<1x256xf32>
    %139 = vector.broadcast %137 : vector<2x1xf32> to vector<2x256xf32>
    %140 = vector.broadcast %138 : vector<1x256xf32> to vector<2x256xf32>
    %141 = arith.mulf %139, %140 : vector<2x256xf32>
    %142 = arith.addf %136, %141 : vector<2x256xf32>
    %143 = vector.extract_strided_slice %0 {offsets = [2, 0], sizes = [1, 256], strides = [1, 1]} : vector<9x256xf32> to vector<1x256xf32>
    %144 = vector.broadcast %143 : vector<1x256xf32> to vector<2x256xf32>
    %145 = arith.mulf %142, %144 : vector<2x256xf32>
    %146 = arith.addf %129, %145 : vector<2x256xf32>
    %c1_i32 = arith.constant 1 : i32
    %147 = tpu.dynamic_rotate %93 by %c1_i32 dim 1 : vector<2x256xf32>, i32 -> vector<2x256xf32>
    %148 = vector.extract_strided_slice %8 {offsets = [6, 0], sizes = [2, 2], strides = [1, 1]} : vector<18x2xf32> to vector<2x2xf32>
    %149 = vector.extract_strided_slice %148 {offsets = [0, 0], sizes = [2, 1], strides = [1, 1]} : vector<2x2xf32> to vector<2x1xf32>
    %150 = vector.extract_strided_slice %147 {offsets = [0, 0], sizes = [1, 256], strides = [1, 1]} : vector<2x256xf32> to vector<1x256xf32>
    %151 = vector.broadcast %149 : vector<2x1xf32> to vector<2x256xf32>
    %152 = vector.broadcast %150 : vector<1x256xf32> to vector<2x256xf32>
    %153 = arith.mulf %151, %152 : vector<2x256xf32>
    %154 = vector.extract_strided_slice %148 {offsets = [0, 1], sizes = [2, 1], strides = [1, 1]} : vector<2x2xf32> to vector<2x1xf32>
    %155 = vector.extract_strided_slice %147 {offsets = [1, 0], sizes = [1, 256], strides = [1, 1]} : vector<2x256xf32> to vector<1x256xf32>
    %156 = vector.broadcast %154 : vector<2x1xf32> to vector<2x256xf32>
    %157 = vector.broadcast %155 : vector<1x256xf32> to vector<2x256xf32>
    %158 = arith.mulf %156, %157 : vector<2x256xf32>
    %159 = arith.addf %153, %158 : vector<2x256xf32>
    %160 = vector.extract_strided_slice %0 {offsets = [3, 0], sizes = [1, 256], strides = [1, 1]} : vector<9x256xf32> to vector<1x256xf32>
    %161 = vector.broadcast %160 : vector<1x256xf32> to vector<2x256xf32>
    %162 = arith.mulf %159, %161 : vector<2x256xf32>
    %163 = arith.addf %146, %162 : vector<2x256xf32>
    %164 = vector.extract_strided_slice %8 {offsets = [8, 0], sizes = [2, 2], strides = [1, 1]} : vector<18x2xf32> to vector<2x2xf32>
    %165 = vector.extract_strided_slice %164 {offsets = [0, 0], sizes = [2, 1], strides = [1, 1]} : vector<2x2xf32> to vector<2x1xf32>
    %166 = vector.extract_strided_slice %93 {offsets = [0, 0], sizes = [1, 256], strides = [1, 1]} : vector<2x256xf32> to vector<1x256xf32>
    %167 = vector.broadcast %165 : vector<2x1xf32> to vector<2x256xf32>
    %168 = vector.broadcast %166 : vector<1x256xf32> to vector<2x256xf32>
    %169 = arith.mulf %167, %168 : vector<2x256xf32>
    %170 = vector.extract_strided_slice %164 {offsets = [0, 1], sizes = [2, 1], strides = [1, 1]} : vector<2x2xf32> to vector<2x1xf32>
    %171 = vector.extract_strided_slice %93 {offsets = [1, 0], sizes = [1, 256], strides = [1, 1]} : vector<2x256xf32> to vector<1x256xf32>
    %172 = vector.broadcast %170 : vector<2x1xf32> to vector<2x256xf32>
    %173 = vector.broadcast %171 : vector<1x256xf32> to vector<2x256xf32>
    %174 = arith.mulf %172, %173 : vector<2x256xf32>
    %175 = arith.addf %169, %174 : vector<2x256xf32>
    %176 = vector.extract_strided_slice %0 {offsets = [4, 0], sizes = [1, 256], strides = [1, 1]} : vector<9x256xf32> to vector<1x256xf32>
    %177 = vector.broadcast %176 : vector<1x256xf32> to vector<2x256xf32>
    %178 = arith.mulf %175, %177 : vector<2x256xf32>
    %179 = arith.addf %163, %178 : vector<2x256xf32>
    %c255_i32 = arith.constant 255 : i32
    %180 = tpu.dynamic_rotate %93 by %c255_i32 dim 1 : vector<2x256xf32>, i32 -> vector<2x256xf32>
    %181 = vector.extract_strided_slice %8 {offsets = [10, 0], sizes = [2, 2], strides = [1, 1]} : vector<18x2xf32> to vector<2x2xf32>
    %182 = vector.extract_strided_slice %181 {offsets = [0, 0], sizes = [2, 1], strides = [1, 1]} : vector<2x2xf32> to vector<2x1xf32>
    %183 = vector.extract_strided_slice %180 {offsets = [0, 0], sizes = [1, 256], strides = [1, 1]} : vector<2x256xf32> to vector<1x256xf32>
    %184 = vector.broadcast %182 : vector<2x1xf32> to vector<2x256xf32>
    %185 = vector.broadcast %183 : vector<1x256xf32> to vector<2x256xf32>
    %186 = arith.mulf %184, %185 : vector<2x256xf32>
    %187 = vector.extract_strided_slice %181 {offsets = [0, 1], sizes = [2, 1], strides = [1, 1]} : vector<2x2xf32> to vector<2x1xf32>
    %188 = vector.extract_strided_slice %180 {offsets = [1, 0], sizes = [1, 256], strides = [1, 1]} : vector<2x256xf32> to vector<1x256xf32>
    %189 = vector.broadcast %187 : vector<2x1xf32> to vector<2x256xf32>
    %190 = vector.broadcast %188 : vector<1x256xf32> to vector<2x256xf32>
    %191 = arith.mulf %189, %190 : vector<2x256xf32>
    %192 = arith.addf %186, %191 : vector<2x256xf32>
    %193 = vector.extract_strided_slice %0 {offsets = [5, 0], sizes = [1, 256], strides = [1, 1]} : vector<9x256xf32> to vector<1x256xf32>
    %194 = vector.broadcast %193 : vector<1x256xf32> to vector<2x256xf32>
    %195 = arith.mulf %192, %194 : vector<2x256xf32>
    %196 = arith.addf %179, %195 : vector<2x256xf32>
    %c241_i32 = arith.constant 241 : i32
    %197 = tpu.dynamic_rotate %93 by %c241_i32 dim 1 : vector<2x256xf32>, i32 -> vector<2x256xf32>
    %198 = vector.extract_strided_slice %8 {offsets = [12, 0], sizes = [2, 2], strides = [1, 1]} : vector<18x2xf32> to vector<2x2xf32>
    %199 = vector.extract_strided_slice %198 {offsets = [0, 0], sizes = [2, 1], strides = [1, 1]} : vector<2x2xf32> to vector<2x1xf32>
    %200 = vector.extract_strided_slice %197 {offsets = [0, 0], sizes = [1, 256], strides = [1, 1]} : vector<2x256xf32> to vector<1x256xf32>
    %201 = vector.broadcast %199 : vector<2x1xf32> to vector<2x256xf32>
    %202 = vector.broadcast %200 : vector<1x256xf32> to vector<2x256xf32>
    %203 = arith.mulf %201, %202 : vector<2x256xf32>
    %204 = vector.extract_strided_slice %198 {offsets = [0, 1], sizes = [2, 1], strides = [1, 1]} : vector<2x2xf32> to vector<2x1xf32>
    %205 = vector.extract_strided_slice %197 {offsets = [1, 0], sizes = [1, 256], strides = [1, 1]} : vector<2x256xf32> to vector<1x256xf32>
    %206 = vector.broadcast %204 : vector<2x1xf32> to vector<2x256xf32>
    %207 = vector.broadcast %205 : vector<1x256xf32> to vector<2x256xf32>
    %208 = arith.mulf %206, %207 : vector<2x256xf32>
    %209 = arith.addf %203, %208 : vector<2x256xf32>
    %210 = vector.extract_strided_slice %0 {offsets = [6, 0], sizes = [1, 256], strides = [1, 1]} : vector<9x256xf32> to vector<1x256xf32>
    %211 = vector.broadcast %210 : vector<1x256xf32> to vector<2x256xf32>
    %212 = arith.mulf %209, %211 : vector<2x256xf32>
    %213 = arith.addf %196, %212 : vector<2x256xf32>
    %c240_i32 = arith.constant 240 : i32
    %214 = tpu.dynamic_rotate %93 by %c240_i32 dim 1 : vector<2x256xf32>, i32 -> vector<2x256xf32>
    %215 = vector.extract_strided_slice %8 {offsets = [14, 0], sizes = [2, 2], strides = [1, 1]} : vector<18x2xf32> to vector<2x2xf32>
    %216 = vector.extract_strided_slice %215 {offsets = [0, 0], sizes = [2, 1], strides = [1, 1]} : vector<2x2xf32> to vector<2x1xf32>
    %217 = vector.extract_strided_slice %214 {offsets = [0, 0], sizes = [1, 256], strides = [1, 1]} : vector<2x256xf32> to vector<1x256xf32>
    %218 = vector.broadcast %216 : vector<2x1xf32> to vector<2x256xf32>
    %219 = vector.broadcast %217 : vector<1x256xf32> to vector<2x256xf32>
    %220 = arith.mulf %218, %219 : vector<2x256xf32>
    %221 = vector.extract_strided_slice %215 {offsets = [0, 1], sizes = [2, 1], strides = [1, 1]} : vector<2x2xf32> to vector<2x1xf32>
    %222 = vector.extract_strided_slice %214 {offsets = [1, 0], sizes = [1, 256], strides = [1, 1]} : vector<2x256xf32> to vector<1x256xf32>
    %223 = vector.broadcast %221 : vector<2x1xf32> to vector<2x256xf32>
    %224 = vector.broadcast %222 : vector<1x256xf32> to vector<2x256xf32>
    %225 = arith.mulf %223, %224 : vector<2x256xf32>
    %226 = arith.addf %220, %225 : vector<2x256xf32>
    %227 = vector.extract_strided_slice %0 {offsets = [7, 0], sizes = [1, 256], strides = [1, 1]} : vector<9x256xf32> to vector<1x256xf32>
    %228 = vector.broadcast %227 : vector<1x256xf32> to vector<2x256xf32>
    %229 = arith.mulf %226, %228 : vector<2x256xf32>
    %230 = arith.addf %213, %229 : vector<2x256xf32>
    %c239_i32 = arith.constant 239 : i32
    %231 = tpu.dynamic_rotate %93 by %c239_i32 dim 1 : vector<2x256xf32>, i32 -> vector<2x256xf32>
    %232 = vector.extract_strided_slice %8 {offsets = [16, 0], sizes = [2, 2], strides = [1, 1]} : vector<18x2xf32> to vector<2x2xf32>
    %233 = vector.extract_strided_slice %232 {offsets = [0, 0], sizes = [2, 1], strides = [1, 1]} : vector<2x2xf32> to vector<2x1xf32>
    %234 = vector.extract_strided_slice %231 {offsets = [0, 0], sizes = [1, 256], strides = [1, 1]} : vector<2x256xf32> to vector<1x256xf32>
    %235 = vector.broadcast %233 : vector<2x1xf32> to vector<2x256xf32>
    %236 = vector.broadcast %234 : vector<1x256xf32> to vector<2x256xf32>
    %237 = arith.mulf %235, %236 : vector<2x256xf32>
    %238 = vector.extract_strided_slice %232 {offsets = [0, 1], sizes = [2, 1], strides = [1, 1]} : vector<2x2xf32> to vector<2x1xf32>
    %239 = vector.extract_strided_slice %231 {offsets = [1, 0], sizes = [1, 256], strides = [1, 1]} : vector<2x256xf32> to vector<1x256xf32>
    %240 = vector.broadcast %238 : vector<2x1xf32> to vector<2x256xf32>
    %241 = vector.broadcast %239 : vector<1x256xf32> to vector<2x256xf32>
    %242 = arith.mulf %240, %241 : vector<2x256xf32>
    %243 = arith.addf %237, %242 : vector<2x256xf32>
    %244 = vector.extract_strided_slice %0 {offsets = [8, 0], sizes = [1, 256], strides = [1, 1]} : vector<9x256xf32> to vector<1x256xf32>
    %245 = vector.broadcast %244 : vector<1x256xf32> to vector<2x256xf32>
    %246 = arith.mulf %243, %245 : vector<2x256xf32>
    %247 = arith.addf %230, %246 : vector<2x256xf32>
    %248 = vector.broadcast %9 : vector<2x1xf32> to vector<2x256xf32>
    %249 = arith.addf %247, %248 : vector<2x256xf32>
    %c51_i32 = arith.constant 51 : i32
    %250 = tpu.dynamic_rotate %249 by %c51_i32 dim 1 : vector<2x256xf32>, i32 -> vector<2x256xf32>
    %251 = vector.extract_strided_slice %10 {offsets = [0, 0], sizes = [2, 2], strides = [1, 1]} : vector<18x2xf32> to vector<2x2xf32>
    %252 = vector.extract_strided_slice %251 {offsets = [0, 0], sizes = [2, 1], strides = [1, 1]} : vector<2x2xf32> to vector<2x1xf32>
    %253 = vector.extract_strided_slice %250 {offsets = [0, 0], sizes = [1, 256], strides = [1, 1]} : vector<2x256xf32> to vector<1x256xf32>
    %254 = vector.broadcast %252 : vector<2x1xf32> to vector<2x256xf32>
    %255 = vector.broadcast %253 : vector<1x256xf32> to vector<2x256xf32>
    %256 = arith.mulf %254, %255 : vector<2x256xf32>
    %257 = vector.extract_strided_slice %251 {offsets = [0, 1], sizes = [2, 1], strides = [1, 1]} : vector<2x2xf32> to vector<2x1xf32>
    %258 = vector.extract_strided_slice %250 {offsets = [1, 0], sizes = [1, 256], strides = [1, 1]} : vector<2x256xf32> to vector<1x256xf32>
    %259 = vector.broadcast %257 : vector<2x1xf32> to vector<2x256xf32>
    %260 = vector.broadcast %258 : vector<1x256xf32> to vector<2x256xf32>
    %261 = arith.mulf %259, %260 : vector<2x256xf32>
    %262 = arith.addf %256, %261 : vector<2x256xf32>
    %c51_i32_72 = arith.constant 51 : i32
    %263 = tpu.dynamic_rotate %94 by %c51_i32_72 dim 1 : vector<2x256xf32>, i32 -> vector<2x256xf32>
    %264 = vector.extract_strided_slice %11 {offsets = [0, 0], sizes = [2, 2], strides = [1, 1]} : vector<18x2xf32> to vector<2x2xf32>
    %265 = vector.extract_strided_slice %264 {offsets = [0, 0], sizes = [2, 1], strides = [1, 1]} : vector<2x2xf32> to vector<2x1xf32>
    %266 = vector.extract_strided_slice %263 {offsets = [0, 0], sizes = [1, 256], strides = [1, 1]} : vector<2x256xf32> to vector<1x256xf32>
    %267 = vector.broadcast %265 : vector<2x1xf32> to vector<2x256xf32>
    %268 = vector.broadcast %266 : vector<1x256xf32> to vector<2x256xf32>
    %269 = arith.mulf %267, %268 : vector<2x256xf32>
    %270 = vector.extract_strided_slice %264 {offsets = [0, 1], sizes = [2, 1], strides = [1, 1]} : vector<2x2xf32> to vector<2x1xf32>
    %271 = vector.extract_strided_slice %263 {offsets = [1, 0], sizes = [1, 256], strides = [1, 1]} : vector<2x256xf32> to vector<1x256xf32>
    %272 = vector.broadcast %270 : vector<2x1xf32> to vector<2x256xf32>
    %273 = vector.broadcast %271 : vector<1x256xf32> to vector<2x256xf32>
    %274 = arith.mulf %272, %273 : vector<2x256xf32>
    %275 = arith.addf %269, %274 : vector<2x256xf32>
    %276 = arith.addf %262, %275 : vector<2x256xf32>
    %277 = vector.extract_strided_slice %1 {offsets = [0, 0], sizes = [1, 256], strides = [1, 1]} : vector<9x256xf32> to vector<1x256xf32>
    %278 = vector.broadcast %277 : vector<1x256xf32> to vector<2x256xf32>
    %279 = arith.mulf %276, %278 : vector<2x256xf32>
    %c48_i32 = arith.constant 48 : i32
    %280 = tpu.dynamic_rotate %249 by %c48_i32 dim 1 : vector<2x256xf32>, i32 -> vector<2x256xf32>
    %281 = vector.extract_strided_slice %10 {offsets = [2, 0], sizes = [2, 2], strides = [1, 1]} : vector<18x2xf32> to vector<2x2xf32>
    %282 = vector.extract_strided_slice %281 {offsets = [0, 0], sizes = [2, 1], strides = [1, 1]} : vector<2x2xf32> to vector<2x1xf32>
    %283 = vector.extract_strided_slice %280 {offsets = [0, 0], sizes = [1, 256], strides = [1, 1]} : vector<2x256xf32> to vector<1x256xf32>
    %284 = vector.broadcast %282 : vector<2x1xf32> to vector<2x256xf32>
    %285 = vector.broadcast %283 : vector<1x256xf32> to vector<2x256xf32>
    %286 = arith.mulf %284, %285 : vector<2x256xf32>
    %287 = vector.extract_strided_slice %281 {offsets = [0, 1], sizes = [2, 1], strides = [1, 1]} : vector<2x2xf32> to vector<2x1xf32>
    %288 = vector.extract_strided_slice %280 {offsets = [1, 0], sizes = [1, 256], strides = [1, 1]} : vector<2x256xf32> to vector<1x256xf32>
    %289 = vector.broadcast %287 : vector<2x1xf32> to vector<2x256xf32>
    %290 = vector.broadcast %288 : vector<1x256xf32> to vector<2x256xf32>
    %291 = arith.mulf %289, %290 : vector<2x256xf32>
    %292 = arith.addf %286, %291 : vector<2x256xf32>
    %c48_i32_73 = arith.constant 48 : i32
    %293 = tpu.dynamic_rotate %94 by %c48_i32_73 dim 1 : vector<2x256xf32>, i32 -> vector<2x256xf32>
    %294 = vector.extract_strided_slice %11 {offsets = [2, 0], sizes = [2, 2], strides = [1, 1]} : vector<18x2xf32> to vector<2x2xf32>
    %295 = vector.extract_strided_slice %294 {offsets = [0, 0], sizes = [2, 1], strides = [1, 1]} : vector<2x2xf32> to vector<2x1xf32>
    %296 = vector.extract_strided_slice %293 {offsets = [0, 0], sizes = [1, 256], strides = [1, 1]} : vector<2x256xf32> to vector<1x256xf32>
    %297 = vector.broadcast %295 : vector<2x1xf32> to vector<2x256xf32>
    %298 = vector.broadcast %296 : vector<1x256xf32> to vector<2x256xf32>
    %299 = arith.mulf %297, %298 : vector<2x256xf32>
    %300 = vector.extract_strided_slice %294 {offsets = [0, 1], sizes = [2, 1], strides = [1, 1]} : vector<2x2xf32> to vector<2x1xf32>
    %301 = vector.extract_strided_slice %293 {offsets = [1, 0], sizes = [1, 256], strides = [1, 1]} : vector<2x256xf32> to vector<1x256xf32>
    %302 = vector.broadcast %300 : vector<2x1xf32> to vector<2x256xf32>
    %303 = vector.broadcast %301 : vector<1x256xf32> to vector<2x256xf32>
    %304 = arith.mulf %302, %303 : vector<2x256xf32>
    %305 = arith.addf %299, %304 : vector<2x256xf32>
    %306 = arith.addf %292, %305 : vector<2x256xf32>
    %307 = vector.extract_strided_slice %1 {offsets = [1, 0], sizes = [1, 256], strides = [1, 1]} : vector<9x256xf32> to vector<1x256xf32>
    %308 = vector.broadcast %307 : vector<1x256xf32> to vector<2x256xf32>
    %309 = arith.mulf %306, %308 : vector<2x256xf32>
    %310 = arith.addf %279, %309 : vector<2x256xf32>
    %c45_i32 = arith.constant 45 : i32
    %311 = tpu.dynamic_rotate %249 by %c45_i32 dim 1 : vector<2x256xf32>, i32 -> vector<2x256xf32>
    %312 = vector.extract_strided_slice %10 {offsets = [4, 0], sizes = [2, 2], strides = [1, 1]} : vector<18x2xf32> to vector<2x2xf32>
    %313 = vector.extract_strided_slice %312 {offsets = [0, 0], sizes = [2, 1], strides = [1, 1]} : vector<2x2xf32> to vector<2x1xf32>
    %314 = vector.extract_strided_slice %311 {offsets = [0, 0], sizes = [1, 256], strides = [1, 1]} : vector<2x256xf32> to vector<1x256xf32>
    %315 = vector.broadcast %313 : vector<2x1xf32> to vector<2x256xf32>
    %316 = vector.broadcast %314 : vector<1x256xf32> to vector<2x256xf32>
    %317 = arith.mulf %315, %316 : vector<2x256xf32>
    %318 = vector.extract_strided_slice %312 {offsets = [0, 1], sizes = [2, 1], strides = [1, 1]} : vector<2x2xf32> to vector<2x1xf32>
    %319 = vector.extract_strided_slice %311 {offsets = [1, 0], sizes = [1, 256], strides = [1, 1]} : vector<2x256xf32> to vector<1x256xf32>
    %320 = vector.broadcast %318 : vector<2x1xf32> to vector<2x256xf32>
    %321 = vector.broadcast %319 : vector<1x256xf32> to vector<2x256xf32>
    %322 = arith.mulf %320, %321 : vector<2x256xf32>
    %323 = arith.addf %317, %322 : vector<2x256xf32>
    %c45_i32_74 = arith.constant 45 : i32
    %324 = tpu.dynamic_rotate %94 by %c45_i32_74 dim 1 : vector<2x256xf32>, i32 -> vector<2x256xf32>
    %325 = vector.extract_strided_slice %11 {offsets = [4, 0], sizes = [2, 2], strides = [1, 1]} : vector<18x2xf32> to vector<2x2xf32>
    %326 = vector.extract_strided_slice %325 {offsets = [0, 0], sizes = [2, 1], strides = [1, 1]} : vector<2x2xf32> to vector<2x1xf32>
    %327 = vector.extract_strided_slice %324 {offsets = [0, 0], sizes = [1, 256], strides = [1, 1]} : vector<2x256xf32> to vector<1x256xf32>
    %328 = vector.broadcast %326 : vector<2x1xf32> to vector<2x256xf32>
    %329 = vector.broadcast %327 : vector<1x256xf32> to vector<2x256xf32>
    %330 = arith.mulf %328, %329 : vector<2x256xf32>
    %331 = vector.extract_strided_slice %325 {offsets = [0, 1], sizes = [2, 1], strides = [1, 1]} : vector<2x2xf32> to vector<2x1xf32>
    %332 = vector.extract_strided_slice %324 {offsets = [1, 0], sizes = [1, 256], strides = [1, 1]} : vector<2x256xf32> to vector<1x256xf32>
    %333 = vector.broadcast %331 : vector<2x1xf32> to vector<2x256xf32>
    %334 = vector.broadcast %332 : vector<1x256xf32> to vector<2x256xf32>
    %335 = arith.mulf %333, %334 : vector<2x256xf32>
    %336 = arith.addf %330, %335 : vector<2x256xf32>
    %337 = arith.addf %323, %336 : vector<2x256xf32>
    %338 = vector.extract_strided_slice %1 {offsets = [2, 0], sizes = [1, 256], strides = [1, 1]} : vector<9x256xf32> to vector<1x256xf32>
    %339 = vector.broadcast %338 : vector<1x256xf32> to vector<2x256xf32>
    %340 = arith.mulf %337, %339 : vector<2x256xf32>
    %341 = arith.addf %310, %340 : vector<2x256xf32>
    %c3_i32 = arith.constant 3 : i32
    %342 = tpu.dynamic_rotate %249 by %c3_i32 dim 1 : vector<2x256xf32>, i32 -> vector<2x256xf32>
    %343 = vector.extract_strided_slice %10 {offsets = [6, 0], sizes = [2, 2], strides = [1, 1]} : vector<18x2xf32> to vector<2x2xf32>
    %344 = vector.extract_strided_slice %343 {offsets = [0, 0], sizes = [2, 1], strides = [1, 1]} : vector<2x2xf32> to vector<2x1xf32>
    %345 = vector.extract_strided_slice %342 {offsets = [0, 0], sizes = [1, 256], strides = [1, 1]} : vector<2x256xf32> to vector<1x256xf32>
    %346 = vector.broadcast %344 : vector<2x1xf32> to vector<2x256xf32>
    %347 = vector.broadcast %345 : vector<1x256xf32> to vector<2x256xf32>
    %348 = arith.mulf %346, %347 : vector<2x256xf32>
    %349 = vector.extract_strided_slice %343 {offsets = [0, 1], sizes = [2, 1], strides = [1, 1]} : vector<2x2xf32> to vector<2x1xf32>
    %350 = vector.extract_strided_slice %342 {offsets = [1, 0], sizes = [1, 256], strides = [1, 1]} : vector<2x256xf32> to vector<1x256xf32>
    %351 = vector.broadcast %349 : vector<2x1xf32> to vector<2x256xf32>
    %352 = vector.broadcast %350 : vector<1x256xf32> to vector<2x256xf32>
    %353 = arith.mulf %351, %352 : vector<2x256xf32>
    %354 = arith.addf %348, %353 : vector<2x256xf32>
    %c3_i32_75 = arith.constant 3 : i32
    %355 = tpu.dynamic_rotate %94 by %c3_i32_75 dim 1 : vector<2x256xf32>, i32 -> vector<2x256xf32>
    %356 = vector.extract_strided_slice %11 {offsets = [6, 0], sizes = [2, 2], strides = [1, 1]} : vector<18x2xf32> to vector<2x2xf32>
    %357 = vector.extract_strided_slice %356 {offsets = [0, 0], sizes = [2, 1], strides = [1, 1]} : vector<2x2xf32> to vector<2x1xf32>
    %358 = vector.extract_strided_slice %355 {offsets = [0, 0], sizes = [1, 256], strides = [1, 1]} : vector<2x256xf32> to vector<1x256xf32>
    %359 = vector.broadcast %357 : vector<2x1xf32> to vector<2x256xf32>
    %360 = vector.broadcast %358 : vector<1x256xf32> to vector<2x256xf32>
    %361 = arith.mulf %359, %360 : vector<2x256xf32>
    %362 = vector.extract_strided_slice %356 {offsets = [0, 1], sizes = [2, 1], strides = [1, 1]} : vector<2x2xf32> to vector<2x1xf32>
    %363 = vector.extract_strided_slice %355 {offsets = [1, 0], sizes = [1, 256], strides = [1, 1]} : vector<2x256xf32> to vector<1x256xf32>
    %364 = vector.broadcast %362 : vector<2x1xf32> to vector<2x256xf32>
    %365 = vector.broadcast %363 : vector<1x256xf32> to vector<2x256xf32>
    %366 = arith.mulf %364, %365 : vector<2x256xf32>
    %367 = arith.addf %361, %366 : vector<2x256xf32>
    %368 = arith.addf %354, %367 : vector<2x256xf32>
    %369 = vector.extract_strided_slice %1 {offsets = [3, 0], sizes = [1, 256], strides = [1, 1]} : vector<9x256xf32> to vector<1x256xf32>
    %370 = vector.broadcast %369 : vector<1x256xf32> to vector<2x256xf32>
    %371 = arith.mulf %368, %370 : vector<2x256xf32>
    %372 = arith.addf %341, %371 : vector<2x256xf32>
    %373 = vector.extract_strided_slice %10 {offsets = [8, 0], sizes = [2, 2], strides = [1, 1]} : vector<18x2xf32> to vector<2x2xf32>
    %374 = vector.extract_strided_slice %373 {offsets = [0, 0], sizes = [2, 1], strides = [1, 1]} : vector<2x2xf32> to vector<2x1xf32>
    %375 = vector.extract_strided_slice %249 {offsets = [0, 0], sizes = [1, 256], strides = [1, 1]} : vector<2x256xf32> to vector<1x256xf32>
    %376 = vector.broadcast %374 : vector<2x1xf32> to vector<2x256xf32>
    %377 = vector.broadcast %375 : vector<1x256xf32> to vector<2x256xf32>
    %378 = arith.mulf %376, %377 : vector<2x256xf32>
    %379 = vector.extract_strided_slice %373 {offsets = [0, 1], sizes = [2, 1], strides = [1, 1]} : vector<2x2xf32> to vector<2x1xf32>
    %380 = vector.extract_strided_slice %249 {offsets = [1, 0], sizes = [1, 256], strides = [1, 1]} : vector<2x256xf32> to vector<1x256xf32>
    %381 = vector.broadcast %379 : vector<2x1xf32> to vector<2x256xf32>
    %382 = vector.broadcast %380 : vector<1x256xf32> to vector<2x256xf32>
    %383 = arith.mulf %381, %382 : vector<2x256xf32>
    %384 = arith.addf %378, %383 : vector<2x256xf32>
    %385 = vector.extract_strided_slice %11 {offsets = [8, 0], sizes = [2, 2], strides = [1, 1]} : vector<18x2xf32> to vector<2x2xf32>
    %386 = vector.extract_strided_slice %385 {offsets = [0, 0], sizes = [2, 1], strides = [1, 1]} : vector<2x2xf32> to vector<2x1xf32>
    %387 = vector.extract_strided_slice %94 {offsets = [0, 0], sizes = [1, 256], strides = [1, 1]} : vector<2x256xf32> to vector<1x256xf32>
    %388 = vector.broadcast %386 : vector<2x1xf32> to vector<2x256xf32>
    %389 = vector.broadcast %387 : vector<1x256xf32> to vector<2x256xf32>
    %390 = arith.mulf %388, %389 : vector<2x256xf32>
    %391 = vector.extract_strided_slice %385 {offsets = [0, 1], sizes = [2, 1], strides = [1, 1]} : vector<2x2xf32> to vector<2x1xf32>
    %392 = vector.extract_strided_slice %94 {offsets = [1, 0], sizes = [1, 256], strides = [1, 1]} : vector<2x256xf32> to vector<1x256xf32>
    %393 = vector.broadcast %391 : vector<2x1xf32> to vector<2x256xf32>
    %394 = vector.broadcast %392 : vector<1x256xf32> to vector<2x256xf32>
    %395 = arith.mulf %393, %394 : vector<2x256xf32>
    %396 = arith.addf %390, %395 : vector<2x256xf32>
    %397 = arith.addf %384, %396 : vector<2x256xf32>
    %398 = vector.extract_strided_slice %1 {offsets = [4, 0], sizes = [1, 256], strides = [1, 1]} : vector<9x256xf32> to vector<1x256xf32>
    %399 = vector.broadcast %398 : vector<1x256xf32> to vector<2x256xf32>
    %400 = arith.mulf %397, %399 : vector<2x256xf32>
    %401 = arith.addf %372, %400 : vector<2x256xf32>
    %c253_i32 = arith.constant 253 : i32
    %402 = tpu.dynamic_rotate %249 by %c253_i32 dim 1 : vector<2x256xf32>, i32 -> vector<2x256xf32>
    %403 = vector.extract_strided_slice %10 {offsets = [10, 0], sizes = [2, 2], strides = [1, 1]} : vector<18x2xf32> to vector<2x2xf32>
    %404 = vector.extract_strided_slice %403 {offsets = [0, 0], sizes = [2, 1], strides = [1, 1]} : vector<2x2xf32> to vector<2x1xf32>
    %405 = vector.extract_strided_slice %402 {offsets = [0, 0], sizes = [1, 256], strides = [1, 1]} : vector<2x256xf32> to vector<1x256xf32>
    %406 = vector.broadcast %404 : vector<2x1xf32> to vector<2x256xf32>
    %407 = vector.broadcast %405 : vector<1x256xf32> to vector<2x256xf32>
    %408 = arith.mulf %406, %407 : vector<2x256xf32>
    %409 = vector.extract_strided_slice %403 {offsets = [0, 1], sizes = [2, 1], strides = [1, 1]} : vector<2x2xf32> to vector<2x1xf32>
    %410 = vector.extract_strided_slice %402 {offsets = [1, 0], sizes = [1, 256], strides = [1, 1]} : vector<2x256xf32> to vector<1x256xf32>
    %411 = vector.broadcast %409 : vector<2x1xf32> to vector<2x256xf32>
    %412 = vector.broadcast %410 : vector<1x256xf32> to vector<2x256xf32>
    %413 = arith.mulf %411, %412 : vector<2x256xf32>
    %414 = arith.addf %408, %413 : vector<2x256xf32>
    %c253_i32_76 = arith.constant 253 : i32
    %415 = tpu.dynamic_rotate %94 by %c253_i32_76 dim 1 : vector<2x256xf32>, i32 -> vector<2x256xf32>
    %416 = vector.extract_strided_slice %11 {offsets = [10, 0], sizes = [2, 2], strides = [1, 1]} : vector<18x2xf32> to vector<2x2xf32>
    %417 = vector.extract_strided_slice %416 {offsets = [0, 0], sizes = [2, 1], strides = [1, 1]} : vector<2x2xf32> to vector<2x1xf32>
    %418 = vector.extract_strided_slice %415 {offsets = [0, 0], sizes = [1, 256], strides = [1, 1]} : vector<2x256xf32> to vector<1x256xf32>
    %419 = vector.broadcast %417 : vector<2x1xf32> to vector<2x256xf32>
    %420 = vector.broadcast %418 : vector<1x256xf32> to vector<2x256xf32>
    %421 = arith.mulf %419, %420 : vector<2x256xf32>
    %422 = vector.extract_strided_slice %416 {offsets = [0, 1], sizes = [2, 1], strides = [1, 1]} : vector<2x2xf32> to vector<2x1xf32>
    %423 = vector.extract_strided_slice %415 {offsets = [1, 0], sizes = [1, 256], strides = [1, 1]} : vector<2x256xf32> to vector<1x256xf32>
    %424 = vector.broadcast %422 : vector<2x1xf32> to vector<2x256xf32>
    %425 = vector.broadcast %423 : vector<1x256xf32> to vector<2x256xf32>
    %426 = arith.mulf %424, %425 : vector<2x256xf32>
    %427 = arith.addf %421, %426 : vector<2x256xf32>
    %428 = arith.addf %414, %427 : vector<2x256xf32>
    %429 = vector.extract_strided_slice %1 {offsets = [5, 0], sizes = [1, 256], strides = [1, 1]} : vector<9x256xf32> to vector<1x256xf32>
    %430 = vector.broadcast %429 : vector<1x256xf32> to vector<2x256xf32>
    %431 = arith.mulf %428, %430 : vector<2x256xf32>
    %432 = arith.addf %401, %431 : vector<2x256xf32>
    %c211_i32 = arith.constant 211 : i32
    %433 = tpu.dynamic_rotate %249 by %c211_i32 dim 1 : vector<2x256xf32>, i32 -> vector<2x256xf32>
    %434 = vector.extract_strided_slice %10 {offsets = [12, 0], sizes = [2, 2], strides = [1, 1]} : vector<18x2xf32> to vector<2x2xf32>
    %435 = vector.extract_strided_slice %434 {offsets = [0, 0], sizes = [2, 1], strides = [1, 1]} : vector<2x2xf32> to vector<2x1xf32>
    %436 = vector.extract_strided_slice %433 {offsets = [0, 0], sizes = [1, 256], strides = [1, 1]} : vector<2x256xf32> to vector<1x256xf32>
    %437 = vector.broadcast %435 : vector<2x1xf32> to vector<2x256xf32>
    %438 = vector.broadcast %436 : vector<1x256xf32> to vector<2x256xf32>
    %439 = arith.mulf %437, %438 : vector<2x256xf32>
    %440 = vector.extract_strided_slice %434 {offsets = [0, 1], sizes = [2, 1], strides = [1, 1]} : vector<2x2xf32> to vector<2x1xf32>
    %441 = vector.extract_strided_slice %433 {offsets = [1, 0], sizes = [1, 256], strides = [1, 1]} : vector<2x256xf32> to vector<1x256xf32>
    %442 = vector.broadcast %440 : vector<2x1xf32> to vector<2x256xf32>
    %443 = vector.broadcast %441 : vector<1x256xf32> to vector<2x256xf32>
    %444 = arith.mulf %442, %443 : vector<2x256xf32>
    %445 = arith.addf %439, %444 : vector<2x256xf32>
    %c211_i32_77 = arith.constant 211 : i32
    %446 = tpu.dynamic_rotate %94 by %c211_i32_77 dim 1 : vector<2x256xf32>, i32 -> vector<2x256xf32>
    %447 = vector.extract_strided_slice %11 {offsets = [12, 0], sizes = [2, 2], strides = [1, 1]} : vector<18x2xf32> to vector<2x2xf32>
    %448 = vector.extract_strided_slice %447 {offsets = [0, 0], sizes = [2, 1], strides = [1, 1]} : vector<2x2xf32> to vector<2x1xf32>
    %449 = vector.extract_strided_slice %446 {offsets = [0, 0], sizes = [1, 256], strides = [1, 1]} : vector<2x256xf32> to vector<1x256xf32>
    %450 = vector.broadcast %448 : vector<2x1xf32> to vector<2x256xf32>
    %451 = vector.broadcast %449 : vector<1x256xf32> to vector<2x256xf32>
    %452 = arith.mulf %450, %451 : vector<2x256xf32>
    %453 = vector.extract_strided_slice %447 {offsets = [0, 1], sizes = [2, 1], strides = [1, 1]} : vector<2x2xf32> to vector<2x1xf32>
    %454 = vector.extract_strided_slice %446 {offsets = [1, 0], sizes = [1, 256], strides = [1, 1]} : vector<2x256xf32> to vector<1x256xf32>
    %455 = vector.broadcast %453 : vector<2x1xf32> to vector<2x256xf32>
    %456 = vector.broadcast %454 : vector<1x256xf32> to vector<2x256xf32>
    %457 = arith.mulf %455, %456 : vector<2x256xf32>
    %458 = arith.addf %452, %457 : vector<2x256xf32>
    %459 = arith.addf %445, %458 : vector<2x256xf32>
    %460 = vector.extract_strided_slice %1 {offsets = [6, 0], sizes = [1, 256], strides = [1, 1]} : vector<9x256xf32> to vector<1x256xf32>
    %461 = vector.broadcast %460 : vector<1x256xf32> to vector<2x256xf32>
    %462 = arith.mulf %459, %461 : vector<2x256xf32>
    %463 = arith.addf %432, %462 : vector<2x256xf32>
    %c208_i32 = arith.constant 208 : i32
    %464 = tpu.dynamic_rotate %249 by %c208_i32 dim 1 : vector<2x256xf32>, i32 -> vector<2x256xf32>
    %465 = vector.extract_strided_slice %10 {offsets = [14, 0], sizes = [2, 2], strides = [1, 1]} : vector<18x2xf32> to vector<2x2xf32>
    %466 = vector.extract_strided_slice %465 {offsets = [0, 0], sizes = [2, 1], strides = [1, 1]} : vector<2x2xf32> to vector<2x1xf32>
    %467 = vector.extract_strided_slice %464 {offsets = [0, 0], sizes = [1, 256], strides = [1, 1]} : vector<2x256xf32> to vector<1x256xf32>
    %468 = vector.broadcast %466 : vector<2x1xf32> to vector<2x256xf32>
    %469 = vector.broadcast %467 : vector<1x256xf32> to vector<2x256xf32>
    %470 = arith.mulf %468, %469 : vector<2x256xf32>
    %471 = vector.extract_strided_slice %465 {offsets = [0, 1], sizes = [2, 1], strides = [1, 1]} : vector<2x2xf32> to vector<2x1xf32>
    %472 = vector.extract_strided_slice %464 {offsets = [1, 0], sizes = [1, 256], strides = [1, 1]} : vector<2x256xf32> to vector<1x256xf32>
    %473 = vector.broadcast %471 : vector<2x1xf32> to vector<2x256xf32>
    %474 = vector.broadcast %472 : vector<1x256xf32> to vector<2x256xf32>
    %475 = arith.mulf %473, %474 : vector<2x256xf32>
    %476 = arith.addf %470, %475 : vector<2x256xf32>
    %c208_i32_78 = arith.constant 208 : i32
    %477 = tpu.dynamic_rotate %94 by %c208_i32_78 dim 1 : vector<2x256xf32>, i32 -> vector<2x256xf32>
    %478 = vector.extract_strided_slice %11 {offsets = [14, 0], sizes = [2, 2], strides = [1, 1]} : vector<18x2xf32> to vector<2x2xf32>
    %479 = vector.extract_strided_slice %478 {offsets = [0, 0], sizes = [2, 1], strides = [1, 1]} : vector<2x2xf32> to vector<2x1xf32>
    %480 = vector.extract_strided_slice %477 {offsets = [0, 0], sizes = [1, 256], strides = [1, 1]} : vector<2x256xf32> to vector<1x256xf32>
    %481 = vector.broadcast %479 : vector<2x1xf32> to vector<2x256xf32>
    %482 = vector.broadcast %480 : vector<1x256xf32> to vector<2x256xf32>
    %483 = arith.mulf %481, %482 : vector<2x256xf32>
    %484 = vector.extract_strided_slice %478 {offsets = [0, 1], sizes = [2, 1], strides = [1, 1]} : vector<2x2xf32> to vector<2x1xf32>
    %485 = vector.extract_strided_slice %477 {offsets = [1, 0], sizes = [1, 256], strides = [1, 1]} : vector<2x256xf32> to vector<1x256xf32>
    %486 = vector.broadcast %484 : vector<2x1xf32> to vector<2x256xf32>
    %487 = vector.broadcast %485 : vector<1x256xf32> to vector<2x256xf32>
    %488 = arith.mulf %486, %487 : vector<2x256xf32>
    %489 = arith.addf %483, %488 : vector<2x256xf32>
    %490 = arith.addf %476, %489 : vector<2x256xf32>
    %491 = vector.extract_strided_slice %1 {offsets = [7, 0], sizes = [1, 256], strides = [1, 1]} : vector<9x256xf32> to vector<1x256xf32>
    %492 = vector.broadcast %491 : vector<1x256xf32> to vector<2x256xf32>
    %493 = arith.mulf %490, %492 : vector<2x256xf32>
    %494 = arith.addf %463, %493 : vector<2x256xf32>
    %c205_i32 = arith.constant 205 : i32
    %495 = tpu.dynamic_rotate %249 by %c205_i32 dim 1 : vector<2x256xf32>, i32 -> vector<2x256xf32>
    %496 = vector.extract_strided_slice %10 {offsets = [16, 0], sizes = [2, 2], strides = [1, 1]} : vector<18x2xf32> to vector<2x2xf32>
    %497 = vector.extract_strided_slice %496 {offsets = [0, 0], sizes = [2, 1], strides = [1, 1]} : vector<2x2xf32> to vector<2x1xf32>
    %498 = vector.extract_strided_slice %495 {offsets = [0, 0], sizes = [1, 256], strides = [1, 1]} : vector<2x256xf32> to vector<1x256xf32>
    %499 = vector.broadcast %497 : vector<2x1xf32> to vector<2x256xf32>
    %500 = vector.broadcast %498 : vector<1x256xf32> to vector<2x256xf32>
    %501 = arith.mulf %499, %500 : vector<2x256xf32>
    %502 = vector.extract_strided_slice %496 {offsets = [0, 1], sizes = [2, 1], strides = [1, 1]} : vector<2x2xf32> to vector<2x1xf32>
    %503 = vector.extract_strided_slice %495 {offsets = [1, 0], sizes = [1, 256], strides = [1, 1]} : vector<2x256xf32> to vector<1x256xf32>
    %504 = vector.broadcast %502 : vector<2x1xf32> to vector<2x256xf32>
    %505 = vector.broadcast %503 : vector<1x256xf32> to vector<2x256xf32>
    %506 = arith.mulf %504, %505 : vector<2x256xf32>
    %507 = arith.addf %501, %506 : vector<2x256xf32>
    %c205_i32_79 = arith.constant 205 : i32
    %508 = tpu.dynamic_rotate %94 by %c205_i32_79 dim 1 : vector<2x256xf32>, i32 -> vector<2x256xf32>
    %509 = vector.extract_strided_slice %11 {offsets = [16, 0], sizes = [2, 2], strides = [1, 1]} : vector<18x2xf32> to vector<2x2xf32>
    %510 = vector.extract_strided_slice %509 {offsets = [0, 0], sizes = [2, 1], strides = [1, 1]} : vector<2x2xf32> to vector<2x1xf32>
    %511 = vector.extract_strided_slice %508 {offsets = [0, 0], sizes = [1, 256], strides = [1, 1]} : vector<2x256xf32> to vector<1x256xf32>
    %512 = vector.broadcast %510 : vector<2x1xf32> to vector<2x256xf32>
    %513 = vector.broadcast %511 : vector<1x256xf32> to vector<2x256xf32>
    %514 = arith.mulf %512, %513 : vector<2x256xf32>
    %515 = vector.extract_strided_slice %509 {offsets = [0, 1], sizes = [2, 1], strides = [1, 1]} : vector<2x2xf32> to vector<2x1xf32>
    %516 = vector.extract_strided_slice %508 {offsets = [1, 0], sizes = [1, 256], strides = [1, 1]} : vector<2x256xf32> to vector<1x256xf32>
    %517 = vector.broadcast %515 : vector<2x1xf32> to vector<2x256xf32>
    %518 = vector.broadcast %516 : vector<1x256xf32> to vector<2x256xf32>
    %519 = arith.mulf %517, %518 : vector<2x256xf32>
    %520 = arith.addf %514, %519 : vector<2x256xf32>
    %521 = arith.addf %507, %520 : vector<2x256xf32>
    %522 = vector.extract_strided_slice %1 {offsets = [8, 0], sizes = [1, 256], strides = [1, 1]} : vector<9x256xf32> to vector<1x256xf32>
    %523 = vector.broadcast %522 : vector<1x256xf32> to vector<2x256xf32>
    %524 = arith.mulf %521, %523 : vector<2x256xf32>
    %525 = arith.addf %494, %524 : vector<2x256xf32>
    %526 = vector.broadcast %12 : vector<2x1xf32> to vector<2x256xf32>
    %527 = arith.addf %525, %526 : vector<2x256xf32>
    %c85_i32 = arith.constant 85 : i32
    %528 = tpu.dynamic_rotate %527 by %c85_i32 dim 1 : vector<2x256xf32>, i32 -> vector<2x256xf32>
    %529 = vector.extract_strided_slice %13 {offsets = [0, 0], sizes = [2, 2], strides = [1, 1]} : vector<18x2xf32> to vector<2x2xf32>
    %530 = vector.extract_strided_slice %529 {offsets = [0, 0], sizes = [2, 1], strides = [1, 1]} : vector<2x2xf32> to vector<2x1xf32>
    %531 = vector.extract_strided_slice %528 {offsets = [0, 0], sizes = [1, 256], strides = [1, 1]} : vector<2x256xf32> to vector<1x256xf32>
    %532 = vector.broadcast %530 : vector<2x1xf32> to vector<2x256xf32>
    %533 = vector.broadcast %531 : vector<1x256xf32> to vector<2x256xf32>
    %534 = arith.mulf %532, %533 : vector<2x256xf32>
    %535 = vector.extract_strided_slice %529 {offsets = [0, 1], sizes = [2, 1], strides = [1, 1]} : vector<2x2xf32> to vector<2x1xf32>
    %536 = vector.extract_strided_slice %528 {offsets = [1, 0], sizes = [1, 256], strides = [1, 1]} : vector<2x256xf32> to vector<1x256xf32>
    %537 = vector.broadcast %535 : vector<2x1xf32> to vector<2x256xf32>
    %538 = vector.broadcast %536 : vector<1x256xf32> to vector<2x256xf32>
    %539 = arith.mulf %537, %538 : vector<2x256xf32>
    %540 = arith.addf %534, %539 : vector<2x256xf32>
    %c85_i32_80 = arith.constant 85 : i32
    %541 = tpu.dynamic_rotate %95 by %c85_i32_80 dim 1 : vector<2x256xf32>, i32 -> vector<2x256xf32>
    %542 = vector.extract_strided_slice %14 {offsets = [0, 0], sizes = [2, 2], strides = [1, 1]} : vector<18x2xf32> to vector<2x2xf32>
    %543 = vector.extract_strided_slice %542 {offsets = [0, 0], sizes = [2, 1], strides = [1, 1]} : vector<2x2xf32> to vector<2x1xf32>
    %544 = vector.extract_strided_slice %541 {offsets = [0, 0], sizes = [1, 256], strides = [1, 1]} : vector<2x256xf32> to vector<1x256xf32>
    %545 = vector.broadcast %543 : vector<2x1xf32> to vector<2x256xf32>
    %546 = vector.broadcast %544 : vector<1x256xf32> to vector<2x256xf32>
    %547 = arith.mulf %545, %546 : vector<2x256xf32>
    %548 = vector.extract_strided_slice %542 {offsets = [0, 1], sizes = [2, 1], strides = [1, 1]} : vector<2x2xf32> to vector<2x1xf32>
    %549 = vector.extract_strided_slice %541 {offsets = [1, 0], sizes = [1, 256], strides = [1, 1]} : vector<2x256xf32> to vector<1x256xf32>
    %550 = vector.broadcast %548 : vector<2x1xf32> to vector<2x256xf32>
    %551 = vector.broadcast %549 : vector<1x256xf32> to vector<2x256xf32>
    %552 = arith.mulf %550, %551 : vector<2x256xf32>
    %553 = arith.addf %547, %552 : vector<2x256xf32>
    %554 = arith.addf %540, %553 : vector<2x256xf32>
    %555 = vector.extract_strided_slice %2 {offsets = [0, 0], sizes = [1, 256], strides = [1, 1]} : vector<9x256xf32> to vector<1x256xf32>
    %556 = vector.broadcast %555 : vector<1x256xf32> to vector<2x256xf32>
    %557 = arith.mulf %554, %556 : vector<2x256xf32>
    %c80_i32 = arith.constant 80 : i32
    %558 = tpu.dynamic_rotate %527 by %c80_i32 dim 1 : vector<2x256xf32>, i32 -> vector<2x256xf32>
    %559 = vector.extract_strided_slice %13 {offsets = [2, 0], sizes = [2, 2], strides = [1, 1]} : vector<18x2xf32> to vector<2x2xf32>
    %560 = vector.extract_strided_slice %559 {offsets = [0, 0], sizes = [2, 1], strides = [1, 1]} : vector<2x2xf32> to vector<2x1xf32>
    %561 = vector.extract_strided_slice %558 {offsets = [0, 0], sizes = [1, 256], strides = [1, 1]} : vector<2x256xf32> to vector<1x256xf32>
    %562 = vector.broadcast %560 : vector<2x1xf32> to vector<2x256xf32>
    %563 = vector.broadcast %561 : vector<1x256xf32> to vector<2x256xf32>
    %564 = arith.mulf %562, %563 : vector<2x256xf32>
    %565 = vector.extract_strided_slice %559 {offsets = [0, 1], sizes = [2, 1], strides = [1, 1]} : vector<2x2xf32> to vector<2x1xf32>
    %566 = vector.extract_strided_slice %558 {offsets = [1, 0], sizes = [1, 256], strides = [1, 1]} : vector<2x256xf32> to vector<1x256xf32>
    %567 = vector.broadcast %565 : vector<2x1xf32> to vector<2x256xf32>
    %568 = vector.broadcast %566 : vector<1x256xf32> to vector<2x256xf32>
    %569 = arith.mulf %567, %568 : vector<2x256xf32>
    %570 = arith.addf %564, %569 : vector<2x256xf32>
    %c80_i32_81 = arith.constant 80 : i32
    %571 = tpu.dynamic_rotate %95 by %c80_i32_81 dim 1 : vector<2x256xf32>, i32 -> vector<2x256xf32>
    %572 = vector.extract_strided_slice %14 {offsets = [2, 0], sizes = [2, 2], strides = [1, 1]} : vector<18x2xf32> to vector<2x2xf32>
    %573 = vector.extract_strided_slice %572 {offsets = [0, 0], sizes = [2, 1], strides = [1, 1]} : vector<2x2xf32> to vector<2x1xf32>
    %574 = vector.extract_strided_slice %571 {offsets = [0, 0], sizes = [1, 256], strides = [1, 1]} : vector<2x256xf32> to vector<1x256xf32>
    %575 = vector.broadcast %573 : vector<2x1xf32> to vector<2x256xf32>
    %576 = vector.broadcast %574 : vector<1x256xf32> to vector<2x256xf32>
    %577 = arith.mulf %575, %576 : vector<2x256xf32>
    %578 = vector.extract_strided_slice %572 {offsets = [0, 1], sizes = [2, 1], strides = [1, 1]} : vector<2x2xf32> to vector<2x1xf32>
    %579 = vector.extract_strided_slice %571 {offsets = [1, 0], sizes = [1, 256], strides = [1, 1]} : vector<2x256xf32> to vector<1x256xf32>
    %580 = vector.broadcast %578 : vector<2x1xf32> to vector<2x256xf32>
    %581 = vector.broadcast %579 : vector<1x256xf32> to vector<2x256xf32>
    %582 = arith.mulf %580, %581 : vector<2x256xf32>
    %583 = arith.addf %577, %582 : vector<2x256xf32>
    %584 = arith.addf %570, %583 : vector<2x256xf32>
    %585 = vector.extract_strided_slice %2 {offsets = [1, 0], sizes = [1, 256], strides = [1, 1]} : vector<9x256xf32> to vector<1x256xf32>
    %586 = vector.broadcast %585 : vector<1x256xf32> to vector<2x256xf32>
    %587 = arith.mulf %584, %586 : vector<2x256xf32>
    %588 = arith.addf %557, %587 : vector<2x256xf32>
    %c75_i32 = arith.constant 75 : i32
    %589 = tpu.dynamic_rotate %527 by %c75_i32 dim 1 : vector<2x256xf32>, i32 -> vector<2x256xf32>
    %590 = vector.extract_strided_slice %13 {offsets = [4, 0], sizes = [2, 2], strides = [1, 1]} : vector<18x2xf32> to vector<2x2xf32>
    %591 = vector.extract_strided_slice %590 {offsets = [0, 0], sizes = [2, 1], strides = [1, 1]} : vector<2x2xf32> to vector<2x1xf32>
    %592 = vector.extract_strided_slice %589 {offsets = [0, 0], sizes = [1, 256], strides = [1, 1]} : vector<2x256xf32> to vector<1x256xf32>
    %593 = vector.broadcast %591 : vector<2x1xf32> to vector<2x256xf32>
    %594 = vector.broadcast %592 : vector<1x256xf32> to vector<2x256xf32>
    %595 = arith.mulf %593, %594 : vector<2x256xf32>
    %596 = vector.extract_strided_slice %590 {offsets = [0, 1], sizes = [2, 1], strides = [1, 1]} : vector<2x2xf32> to vector<2x1xf32>
    %597 = vector.extract_strided_slice %589 {offsets = [1, 0], sizes = [1, 256], strides = [1, 1]} : vector<2x256xf32> to vector<1x256xf32>
    %598 = vector.broadcast %596 : vector<2x1xf32> to vector<2x256xf32>
    %599 = vector.broadcast %597 : vector<1x256xf32> to vector<2x256xf32>
    %600 = arith.mulf %598, %599 : vector<2x256xf32>
    %601 = arith.addf %595, %600 : vector<2x256xf32>
    %c75_i32_82 = arith.constant 75 : i32
    %602 = tpu.dynamic_rotate %95 by %c75_i32_82 dim 1 : vector<2x256xf32>, i32 -> vector<2x256xf32>
    %603 = vector.extract_strided_slice %14 {offsets = [4, 0], sizes = [2, 2], strides = [1, 1]} : vector<18x2xf32> to vector<2x2xf32>
    %604 = vector.extract_strided_slice %603 {offsets = [0, 0], sizes = [2, 1], strides = [1, 1]} : vector<2x2xf32> to vector<2x1xf32>
    %605 = vector.extract_strided_slice %602 {offsets = [0, 0], sizes = [1, 256], strides = [1, 1]} : vector<2x256xf32> to vector<1x256xf32>
    %606 = vector.broadcast %604 : vector<2x1xf32> to vector<2x256xf32>
    %607 = vector.broadcast %605 : vector<1x256xf32> to vector<2x256xf32>
    %608 = arith.mulf %606, %607 : vector<2x256xf32>
    %609 = vector.extract_strided_slice %603 {offsets = [0, 1], sizes = [2, 1], strides = [1, 1]} : vector<2x2xf32> to vector<2x1xf32>
    %610 = vector.extract_strided_slice %602 {offsets = [1, 0], sizes = [1, 256], strides = [1, 1]} : vector<2x256xf32> to vector<1x256xf32>
    %611 = vector.broadcast %609 : vector<2x1xf32> to vector<2x256xf32>
    %612 = vector.broadcast %610 : vector<1x256xf32> to vector<2x256xf32>
    %613 = arith.mulf %611, %612 : vector<2x256xf32>
    %614 = arith.addf %608, %613 : vector<2x256xf32>
    %615 = arith.addf %601, %614 : vector<2x256xf32>
    %616 = vector.extract_strided_slice %2 {offsets = [2, 0], sizes = [1, 256], strides = [1, 1]} : vector<9x256xf32> to vector<1x256xf32>
    %617 = vector.broadcast %616 : vector<1x256xf32> to vector<2x256xf32>
    %618 = arith.mulf %615, %617 : vector<2x256xf32>
    %619 = arith.addf %588, %618 : vector<2x256xf32>
    %c5_i32 = arith.constant 5 : i32
    %620 = tpu.dynamic_rotate %527 by %c5_i32 dim 1 : vector<2x256xf32>, i32 -> vector<2x256xf32>
    %621 = vector.extract_strided_slice %13 {offsets = [6, 0], sizes = [2, 2], strides = [1, 1]} : vector<18x2xf32> to vector<2x2xf32>
    %622 = vector.extract_strided_slice %621 {offsets = [0, 0], sizes = [2, 1], strides = [1, 1]} : vector<2x2xf32> to vector<2x1xf32>
    %623 = vector.extract_strided_slice %620 {offsets = [0, 0], sizes = [1, 256], strides = [1, 1]} : vector<2x256xf32> to vector<1x256xf32>
    %624 = vector.broadcast %622 : vector<2x1xf32> to vector<2x256xf32>
    %625 = vector.broadcast %623 : vector<1x256xf32> to vector<2x256xf32>
    %626 = arith.mulf %624, %625 : vector<2x256xf32>
    %627 = vector.extract_strided_slice %621 {offsets = [0, 1], sizes = [2, 1], strides = [1, 1]} : vector<2x2xf32> to vector<2x1xf32>
    %628 = vector.extract_strided_slice %620 {offsets = [1, 0], sizes = [1, 256], strides = [1, 1]} : vector<2x256xf32> to vector<1x256xf32>
    %629 = vector.broadcast %627 : vector<2x1xf32> to vector<2x256xf32>
    %630 = vector.broadcast %628 : vector<1x256xf32> to vector<2x256xf32>
    %631 = arith.mulf %629, %630 : vector<2x256xf32>
    %632 = arith.addf %626, %631 : vector<2x256xf32>
    %c5_i32_83 = arith.constant 5 : i32
    %633 = tpu.dynamic_rotate %95 by %c5_i32_83 dim 1 : vector<2x256xf32>, i32 -> vector<2x256xf32>
    %634 = vector.extract_strided_slice %14 {offsets = [6, 0], sizes = [2, 2], strides = [1, 1]} : vector<18x2xf32> to vector<2x2xf32>
    %635 = vector.extract_strided_slice %634 {offsets = [0, 0], sizes = [2, 1], strides = [1, 1]} : vector<2x2xf32> to vector<2x1xf32>
    %636 = vector.extract_strided_slice %633 {offsets = [0, 0], sizes = [1, 256], strides = [1, 1]} : vector<2x256xf32> to vector<1x256xf32>
    %637 = vector.broadcast %635 : vector<2x1xf32> to vector<2x256xf32>
    %638 = vector.broadcast %636 : vector<1x256xf32> to vector<2x256xf32>
    %639 = arith.mulf %637, %638 : vector<2x256xf32>
    %640 = vector.extract_strided_slice %634 {offsets = [0, 1], sizes = [2, 1], strides = [1, 1]} : vector<2x2xf32> to vector<2x1xf32>
    %641 = vector.extract_strided_slice %633 {offsets = [1, 0], sizes = [1, 256], strides = [1, 1]} : vector<2x256xf32> to vector<1x256xf32>
    %642 = vector.broadcast %640 : vector<2x1xf32> to vector<2x256xf32>
    %643 = vector.broadcast %641 : vector<1x256xf32> to vector<2x256xf32>
    %644 = arith.mulf %642, %643 : vector<2x256xf32>
    %645 = arith.addf %639, %644 : vector<2x256xf32>
    %646 = arith.addf %632, %645 : vector<2x256xf32>
    %647 = vector.extract_strided_slice %2 {offsets = [3, 0], sizes = [1, 256], strides = [1, 1]} : vector<9x256xf32> to vector<1x256xf32>
    %648 = vector.broadcast %647 : vector<1x256xf32> to vector<2x256xf32>
    %649 = arith.mulf %646, %648 : vector<2x256xf32>
    %650 = arith.addf %619, %649 : vector<2x256xf32>
    %651 = vector.extract_strided_slice %13 {offsets = [8, 0], sizes = [2, 2], strides = [1, 1]} : vector<18x2xf32> to vector<2x2xf32>
    %652 = vector.extract_strided_slice %651 {offsets = [0, 0], sizes = [2, 1], strides = [1, 1]} : vector<2x2xf32> to vector<2x1xf32>
    %653 = vector.extract_strided_slice %527 {offsets = [0, 0], sizes = [1, 256], strides = [1, 1]} : vector<2x256xf32> to vector<1x256xf32>
    %654 = vector.broadcast %652 : vector<2x1xf32> to vector<2x256xf32>
    %655 = vector.broadcast %653 : vector<1x256xf32> to vector<2x256xf32>
    %656 = arith.mulf %654, %655 : vector<2x256xf32>
    %657 = vector.extract_strided_slice %651 {offsets = [0, 1], sizes = [2, 1], strides = [1, 1]} : vector<2x2xf32> to vector<2x1xf32>
    %658 = vector.extract_strided_slice %527 {offsets = [1, 0], sizes = [1, 256], strides = [1, 1]} : vector<2x256xf32> to vector<1x256xf32>
    %659 = vector.broadcast %657 : vector<2x1xf32> to vector<2x256xf32>
    %660 = vector.broadcast %658 : vector<1x256xf32> to vector<2x256xf32>
    %661 = arith.mulf %659, %660 : vector<2x256xf32>
    %662 = arith.addf %656, %661 : vector<2x256xf32>
    %663 = vector.extract_strided_slice %14 {offsets = [8, 0], sizes = [2, 2], strides = [1, 1]} : vector<18x2xf32> to vector<2x2xf32>
    %664 = vector.extract_strided_slice %663 {offsets = [0, 0], sizes = [2, 1], strides = [1, 1]} : vector<2x2xf32> to vector<2x1xf32>
    %665 = vector.extract_strided_slice %95 {offsets = [0, 0], sizes = [1, 256], strides = [1, 1]} : vector<2x256xf32> to vector<1x256xf32>
    %666 = vector.broadcast %664 : vector<2x1xf32> to vector<2x256xf32>
    %667 = vector.broadcast %665 : vector<1x256xf32> to vector<2x256xf32>
    %668 = arith.mulf %666, %667 : vector<2x256xf32>
    %669 = vector.extract_strided_slice %663 {offsets = [0, 1], sizes = [2, 1], strides = [1, 1]} : vector<2x2xf32> to vector<2x1xf32>
    %670 = vector.extract_strided_slice %95 {offsets = [1, 0], sizes = [1, 256], strides = [1, 1]} : vector<2x256xf32> to vector<1x256xf32>
    %671 = vector.broadcast %669 : vector<2x1xf32> to vector<2x256xf32>
    %672 = vector.broadcast %670 : vector<1x256xf32> to vector<2x256xf32>
    %673 = arith.mulf %671, %672 : vector<2x256xf32>
    %674 = arith.addf %668, %673 : vector<2x256xf32>
    %675 = arith.addf %662, %674 : vector<2x256xf32>
    %676 = vector.extract_strided_slice %2 {offsets = [4, 0], sizes = [1, 256], strides = [1, 1]} : vector<9x256xf32> to vector<1x256xf32>
    %677 = vector.broadcast %676 : vector<1x256xf32> to vector<2x256xf32>
    %678 = arith.mulf %675, %677 : vector<2x256xf32>
    %679 = arith.addf %650, %678 : vector<2x256xf32>
    %c251_i32 = arith.constant 251 : i32
    %680 = tpu.dynamic_rotate %527 by %c251_i32 dim 1 : vector<2x256xf32>, i32 -> vector<2x256xf32>
    %681 = vector.extract_strided_slice %13 {offsets = [10, 0], sizes = [2, 2], strides = [1, 1]} : vector<18x2xf32> to vector<2x2xf32>
    %682 = vector.extract_strided_slice %681 {offsets = [0, 0], sizes = [2, 1], strides = [1, 1]} : vector<2x2xf32> to vector<2x1xf32>
    %683 = vector.extract_strided_slice %680 {offsets = [0, 0], sizes = [1, 256], strides = [1, 1]} : vector<2x256xf32> to vector<1x256xf32>
    %684 = vector.broadcast %682 : vector<2x1xf32> to vector<2x256xf32>
    %685 = vector.broadcast %683 : vector<1x256xf32> to vector<2x256xf32>
    %686 = arith.mulf %684, %685 : vector<2x256xf32>
    %687 = vector.extract_strided_slice %681 {offsets = [0, 1], sizes = [2, 1], strides = [1, 1]} : vector<2x2xf32> to vector<2x1xf32>
    %688 = vector.extract_strided_slice %680 {offsets = [1, 0], sizes = [1, 256], strides = [1, 1]} : vector<2x256xf32> to vector<1x256xf32>
    %689 = vector.broadcast %687 : vector<2x1xf32> to vector<2x256xf32>
    %690 = vector.broadcast %688 : vector<1x256xf32> to vector<2x256xf32>
    %691 = arith.mulf %689, %690 : vector<2x256xf32>
    %692 = arith.addf %686, %691 : vector<2x256xf32>
    %c251_i32_84 = arith.constant 251 : i32
    %693 = tpu.dynamic_rotate %95 by %c251_i32_84 dim 1 : vector<2x256xf32>, i32 -> vector<2x256xf32>
    %694 = vector.extract_strided_slice %14 {offsets = [10, 0], sizes = [2, 2], strides = [1, 1]} : vector<18x2xf32> to vector<2x2xf32>
    %695 = vector.extract_strided_slice %694 {offsets = [0, 0], sizes = [2, 1], strides = [1, 1]} : vector<2x2xf32> to vector<2x1xf32>
    %696 = vector.extract_strided_slice %693 {offsets = [0, 0], sizes = [1, 256], strides = [1, 1]} : vector<2x256xf32> to vector<1x256xf32>
    %697 = vector.broadcast %695 : vector<2x1xf32> to vector<2x256xf32>
    %698 = vector.broadcast %696 : vector<1x256xf32> to vector<2x256xf32>
    %699 = arith.mulf %697, %698 : vector<2x256xf32>
    %700 = vector.extract_strided_slice %694 {offsets = [0, 1], sizes = [2, 1], strides = [1, 1]} : vector<2x2xf32> to vector<2x1xf32>
    %701 = vector.extract_strided_slice %693 {offsets = [1, 0], sizes = [1, 256], strides = [1, 1]} : vector<2x256xf32> to vector<1x256xf32>
    %702 = vector.broadcast %700 : vector<2x1xf32> to vector<2x256xf32>
    %703 = vector.broadcast %701 : vector<1x256xf32> to vector<2x256xf32>
    %704 = arith.mulf %702, %703 : vector<2x256xf32>
    %705 = arith.addf %699, %704 : vector<2x256xf32>
    %706 = arith.addf %692, %705 : vector<2x256xf32>
    %707 = vector.extract_strided_slice %2 {offsets = [5, 0], sizes = [1, 256], strides = [1, 1]} : vector<9x256xf32> to vector<1x256xf32>
    %708 = vector.broadcast %707 : vector<1x256xf32> to vector<2x256xf32>
    %709 = arith.mulf %706, %708 : vector<2x256xf32>
    %710 = arith.addf %679, %709 : vector<2x256xf32>
    %c181_i32 = arith.constant 181 : i32
    %711 = tpu.dynamic_rotate %527 by %c181_i32 dim 1 : vector<2x256xf32>, i32 -> vector<2x256xf32>
    %712 = vector.extract_strided_slice %13 {offsets = [12, 0], sizes = [2, 2], strides = [1, 1]} : vector<18x2xf32> to vector<2x2xf32>
    %713 = vector.extract_strided_slice %712 {offsets = [0, 0], sizes = [2, 1], strides = [1, 1]} : vector<2x2xf32> to vector<2x1xf32>
    %714 = vector.extract_strided_slice %711 {offsets = [0, 0], sizes = [1, 256], strides = [1, 1]} : vector<2x256xf32> to vector<1x256xf32>
    %715 = vector.broadcast %713 : vector<2x1xf32> to vector<2x256xf32>
    %716 = vector.broadcast %714 : vector<1x256xf32> to vector<2x256xf32>
    %717 = arith.mulf %715, %716 : vector<2x256xf32>
    %718 = vector.extract_strided_slice %712 {offsets = [0, 1], sizes = [2, 1], strides = [1, 1]} : vector<2x2xf32> to vector<2x1xf32>
    %719 = vector.extract_strided_slice %711 {offsets = [1, 0], sizes = [1, 256], strides = [1, 1]} : vector<2x256xf32> to vector<1x256xf32>
    %720 = vector.broadcast %718 : vector<2x1xf32> to vector<2x256xf32>
    %721 = vector.broadcast %719 : vector<1x256xf32> to vector<2x256xf32>
    %722 = arith.mulf %720, %721 : vector<2x256xf32>
    %723 = arith.addf %717, %722 : vector<2x256xf32>
    %c181_i32_85 = arith.constant 181 : i32
    %724 = tpu.dynamic_rotate %95 by %c181_i32_85 dim 1 : vector<2x256xf32>, i32 -> vector<2x256xf32>
    %725 = vector.extract_strided_slice %14 {offsets = [12, 0], sizes = [2, 2], strides = [1, 1]} : vector<18x2xf32> to vector<2x2xf32>
    %726 = vector.extract_strided_slice %725 {offsets = [0, 0], sizes = [2, 1], strides = [1, 1]} : vector<2x2xf32> to vector<2x1xf32>
    %727 = vector.extract_strided_slice %724 {offsets = [0, 0], sizes = [1, 256], strides = [1, 1]} : vector<2x256xf32> to vector<1x256xf32>
    %728 = vector.broadcast %726 : vector<2x1xf32> to vector<2x256xf32>
    %729 = vector.broadcast %727 : vector<1x256xf32> to vector<2x256xf32>
    %730 = arith.mulf %728, %729 : vector<2x256xf32>
    %731 = vector.extract_strided_slice %725 {offsets = [0, 1], sizes = [2, 1], strides = [1, 1]} : vector<2x2xf32> to vector<2x1xf32>
    %732 = vector.extract_strided_slice %724 {offsets = [1, 0], sizes = [1, 256], strides = [1, 1]} : vector<2x256xf32> to vector<1x256xf32>
    %733 = vector.broadcast %731 : vector<2x1xf32> to vector<2x256xf32>
    %734 = vector.broadcast %732 : vector<1x256xf32> to vector<2x256xf32>
    %735 = arith.mulf %733, %734 : vector<2x256xf32>
    %736 = arith.addf %730, %735 : vector<2x256xf32>
    %737 = arith.addf %723, %736 : vector<2x256xf32>
    %738 = vector.extract_strided_slice %2 {offsets = [6, 0], sizes = [1, 256], strides = [1, 1]} : vector<9x256xf32> to vector<1x256xf32>
    %739 = vector.broadcast %738 : vector<1x256xf32> to vector<2x256xf32>
    %740 = arith.mulf %737, %739 : vector<2x256xf32>
    %741 = arith.addf %710, %740 : vector<2x256xf32>
    %c176_i32 = arith.constant 176 : i32
    %742 = tpu.dynamic_rotate %527 by %c176_i32 dim 1 : vector<2x256xf32>, i32 -> vector<2x256xf32>
    %743 = vector.extract_strided_slice %13 {offsets = [14, 0], sizes = [2, 2], strides = [1, 1]} : vector<18x2xf32> to vector<2x2xf32>
    %744 = vector.extract_strided_slice %743 {offsets = [0, 0], sizes = [2, 1], strides = [1, 1]} : vector<2x2xf32> to vector<2x1xf32>
    %745 = vector.extract_strided_slice %742 {offsets = [0, 0], sizes = [1, 256], strides = [1, 1]} : vector<2x256xf32> to vector<1x256xf32>
    %746 = vector.broadcast %744 : vector<2x1xf32> to vector<2x256xf32>
    %747 = vector.broadcast %745 : vector<1x256xf32> to vector<2x256xf32>
    %748 = arith.mulf %746, %747 : vector<2x256xf32>
    %749 = vector.extract_strided_slice %743 {offsets = [0, 1], sizes = [2, 1], strides = [1, 1]} : vector<2x2xf32> to vector<2x1xf32>
    %750 = vector.extract_strided_slice %742 {offsets = [1, 0], sizes = [1, 256], strides = [1, 1]} : vector<2x256xf32> to vector<1x256xf32>
    %751 = vector.broadcast %749 : vector<2x1xf32> to vector<2x256xf32>
    %752 = vector.broadcast %750 : vector<1x256xf32> to vector<2x256xf32>
    %753 = arith.mulf %751, %752 : vector<2x256xf32>
    %754 = arith.addf %748, %753 : vector<2x256xf32>
    %c176_i32_86 = arith.constant 176 : i32
    %755 = tpu.dynamic_rotate %95 by %c176_i32_86 dim 1 : vector<2x256xf32>, i32 -> vector<2x256xf32>
    %756 = vector.extract_strided_slice %14 {offsets = [14, 0], sizes = [2, 2], strides = [1, 1]} : vector<18x2xf32> to vector<2x2xf32>
    %757 = vector.extract_strided_slice %756 {offsets = [0, 0], sizes = [2, 1], strides = [1, 1]} : vector<2x2xf32> to vector<2x1xf32>
    %758 = vector.extract_strided_slice %755 {offsets = [0, 0], sizes = [1, 256], strides = [1, 1]} : vector<2x256xf32> to vector<1x256xf32>
    %759 = vector.broadcast %757 : vector<2x1xf32> to vector<2x256xf32>
    %760 = vector.broadcast %758 : vector<1x256xf32> to vector<2x256xf32>
    %761 = arith.mulf %759, %760 : vector<2x256xf32>
    %762 = vector.extract_strided_slice %756 {offsets = [0, 1], sizes = [2, 1], strides = [1, 1]} : vector<2x2xf32> to vector<2x1xf32>
    %763 = vector.extract_strided_slice %755 {offsets = [1, 0], sizes = [1, 256], strides = [1, 1]} : vector<2x256xf32> to vector<1x256xf32>
    %764 = vector.broadcast %762 : vector<2x1xf32> to vector<2x256xf32>
    %765 = vector.broadcast %763 : vector<1x256xf32> to vector<2x256xf32>
    %766 = arith.mulf %764, %765 : vector<2x256xf32>
    %767 = arith.addf %761, %766 : vector<2x256xf32>
    %768 = arith.addf %754, %767 : vector<2x256xf32>
    %769 = vector.extract_strided_slice %2 {offsets = [7, 0], sizes = [1, 256], strides = [1, 1]} : vector<9x256xf32> to vector<1x256xf32>
    %770 = vector.broadcast %769 : vector<1x256xf32> to vector<2x256xf32>
    %771 = arith.mulf %768, %770 : vector<2x256xf32>
    %772 = arith.addf %741, %771 : vector<2x256xf32>
    %c171_i32 = arith.constant 171 : i32
    %773 = tpu.dynamic_rotate %527 by %c171_i32 dim 1 : vector<2x256xf32>, i32 -> vector<2x256xf32>
    %774 = vector.extract_strided_slice %13 {offsets = [16, 0], sizes = [2, 2], strides = [1, 1]} : vector<18x2xf32> to vector<2x2xf32>
    %775 = vector.extract_strided_slice %774 {offsets = [0, 0], sizes = [2, 1], strides = [1, 1]} : vector<2x2xf32> to vector<2x1xf32>
    %776 = vector.extract_strided_slice %773 {offsets = [0, 0], sizes = [1, 256], strides = [1, 1]} : vector<2x256xf32> to vector<1x256xf32>
    %777 = vector.broadcast %775 : vector<2x1xf32> to vector<2x256xf32>
    %778 = vector.broadcast %776 : vector<1x256xf32> to vector<2x256xf32>
    %779 = arith.mulf %777, %778 : vector<2x256xf32>
    %780 = vector.extract_strided_slice %774 {offsets = [0, 1], sizes = [2, 1], strides = [1, 1]} : vector<2x2xf32> to vector<2x1xf32>
    %781 = vector.extract_strided_slice %773 {offsets = [1, 0], sizes = [1, 256], strides = [1, 1]} : vector<2x256xf32> to vector<1x256xf32>
    %782 = vector.broadcast %780 : vector<2x1xf32> to vector<2x256xf32>
    %783 = vector.broadcast %781 : vector<1x256xf32> to vector<2x256xf32>
    %784 = arith.mulf %782, %783 : vector<2x256xf32>
    %785 = arith.addf %779, %784 : vector<2x256xf32>
    %c171_i32_87 = arith.constant 171 : i32
    %786 = tpu.dynamic_rotate %95 by %c171_i32_87 dim 1 : vector<2x256xf32>, i32 -> vector<2x256xf32>
    %787 = vector.extract_strided_slice %14 {offsets = [16, 0], sizes = [2, 2], strides = [1, 1]} : vector<18x2xf32> to vector<2x2xf32>
    %788 = vector.extract_strided_slice %787 {offsets = [0, 0], sizes = [2, 1], strides = [1, 1]} : vector<2x2xf32> to vector<2x1xf32>
    %789 = vector.extract_strided_slice %786 {offsets = [0, 0], sizes = [1, 256], strides = [1, 1]} : vector<2x256xf32> to vector<1x256xf32>
    %790 = vector.broadcast %788 : vector<2x1xf32> to vector<2x256xf32>
    %791 = vector.broadcast %789 : vector<1x256xf32> to vector<2x256xf32>
    %792 = arith.mulf %790, %791 : vector<2x256xf32>
    %793 = vector.extract_strided_slice %787 {offsets = [0, 1], sizes = [2, 1], strides = [1, 1]} : vector<2x2xf32> to vector<2x1xf32>
    %794 = vector.extract_strided_slice %786 {offsets = [1, 0], sizes = [1, 256], strides = [1, 1]} : vector<2x256xf32> to vector<1x256xf32>
    %795 = vector.broadcast %793 : vector<2x1xf32> to vector<2x256xf32>
    %796 = vector.broadcast %794 : vector<1x256xf32> to vector<2x256xf32>
    %797 = arith.mulf %795, %796 : vector<2x256xf32>
    %798 = arith.addf %792, %797 : vector<2x256xf32>
    %799 = arith.addf %785, %798 : vector<2x256xf32>
    %800 = vector.extract_strided_slice %2 {offsets = [8, 0], sizes = [1, 256], strides = [1, 1]} : vector<9x256xf32> to vector<1x256xf32>
    %801 = vector.broadcast %800 : vector<1x256xf32> to vector<2x256xf32>
    %802 = arith.mulf %799, %801 : vector<2x256xf32>
    %803 = arith.addf %772, %802 : vector<2x256xf32>
    %804 = vector.broadcast %15 : vector<2x1xf32> to vector<2x256xf32>
    %805 = arith.addf %803, %804 : vector<2x256xf32>
    %806 = vector.extract_strided_slice %16 {offsets = [0, 0], sizes = [1, 1], strides = [1, 1]} : vector<1x2xf32> to vector<1x1xf32>
    %807 = vector.extract_strided_slice %96 {offsets = [0, 0], sizes = [1, 256], strides = [1, 1]} : vector<2x256xf32> to vector<1x256xf32>
    %808 = vector.broadcast %806 : vector<1x1xf32> to vector<1x256xf32>
    %809 = arith.mulf %808, %807 : vector<1x256xf32>
    %810 = vector.extract_strided_slice %16 {offsets = [0, 1], sizes = [1, 1], strides = [1, 1]} : vector<1x2xf32> to vector<1x1xf32>
    %811 = vector.extract_strided_slice %96 {offsets = [1, 0], sizes = [1, 256], strides = [1, 1]} : vector<2x256xf32> to vector<1x256xf32>
    %812 = vector.broadcast %810 : vector<1x1xf32> to vector<1x256xf32>
    %813 = arith.mulf %812, %811 : vector<1x256xf32>
    %814 = arith.addf %809, %813 : vector<1x256xf32>
    %815 = vector.broadcast %17 : vector<1x1xf32> to vector<1x256xf32>
    %816 = arith.addf %814, %815 : vector<1x256xf32>
    %cst_88 = arith.constant 0.000000e+00 : f32
    %817 = vector.broadcast %cst_88 : f32 to vector<1x256xf32>
    %818 = arith.subf %817, %816 : vector<1x256xf32>
    %819 = math.exp %818 : vector<1x256xf32>
    %cst_89 = arith.constant 1.000000e+00 : f32
    %820 = vector.broadcast %cst_89 : f32 to vector<1x256xf32>
    %821 = arith.addf %820, %819 : vector<1x256xf32>
    %822 = tpu.reciprocal %821 {approx = true} : vector<1x256xf32> -> vector<1x256xf32>
    %823 = vector.extract_strided_slice %0 {offsets = [8, 0], sizes = [1, 256], strides = [1, 1]} : vector<9x256xf32> to vector<1x256xf32>
    %824 = vector.broadcast %823 : vector<1x256xf32> to vector<2x256xf32>
    %825 = arith.mulf %805, %824 : vector<2x256xf32>
    %cst_90 = arith.constant dense<0.000000e+00> : vector<2xf32>
    %826 = vector.multi_reduction <add>, %825, %cst_90 [1] : vector<2x256xf32> to vector<2xf32>
    %827 = vector.shape_cast %826 : vector<2xf32> to vector<2x1xf32>
    %828 = vector.extract_strided_slice %18 {offsets = [0, 0], sizes = [2, 1], strides = [1, 1]} : vector<2x9xf32> to vector<2x1xf32>
    %829 = arith.mulf %828, %827 : vector<2x1xf32>
    %830 = vector.extract_strided_slice %0 {offsets = [7, 0], sizes = [1, 256], strides = [1, 1]} : vector<9x256xf32> to vector<1x256xf32>
    %831 = vector.broadcast %830 : vector<1x256xf32> to vector<2x256xf32>
    %832 = arith.mulf %805, %831 : vector<2x256xf32>
    %cst_91 = arith.constant dense<0.000000e+00> : vector<2xf32>
    %833 = vector.multi_reduction <add>, %832, %cst_91 [1] : vector<2x256xf32> to vector<2xf32>
    %834 = vector.shape_cast %833 : vector<2xf32> to vector<2x1xf32>
    %835 = vector.extract_strided_slice %18 {offsets = [0, 1], sizes = [2, 1], strides = [1, 1]} : vector<2x9xf32> to vector<2x1xf32>
    %836 = arith.mulf %835, %834 : vector<2x1xf32>
    %837 = arith.addf %829, %836 : vector<2x1xf32>
    %838 = vector.extract_strided_slice %0 {offsets = [6, 0], sizes = [1, 256], strides = [1, 1]} : vector<9x256xf32> to vector<1x256xf32>
    %839 = vector.broadcast %838 : vector<1x256xf32> to vector<2x256xf32>
    %840 = arith.mulf %805, %839 : vector<2x256xf32>
    %cst_92 = arith.constant dense<0.000000e+00> : vector<2xf32>
    %841 = vector.multi_reduction <add>, %840, %cst_92 [1] : vector<2x256xf32> to vector<2xf32>
    %842 = vector.shape_cast %841 : vector<2xf32> to vector<2x1xf32>
    %843 = vector.extract_strided_slice %18 {offsets = [0, 2], sizes = [2, 1], strides = [1, 1]} : vector<2x9xf32> to vector<2x1xf32>
    %844 = arith.mulf %843, %842 : vector<2x1xf32>
    %845 = arith.addf %837, %844 : vector<2x1xf32>
    %846 = vector.extract_strided_slice %0 {offsets = [5, 0], sizes = [1, 256], strides = [1, 1]} : vector<9x256xf32> to vector<1x256xf32>
    %847 = vector.broadcast %846 : vector<1x256xf32> to vector<2x256xf32>
    %848 = arith.mulf %805, %847 : vector<2x256xf32>
    %cst_93 = arith.constant dense<0.000000e+00> : vector<2xf32>
    %849 = vector.multi_reduction <add>, %848, %cst_93 [1] : vector<2x256xf32> to vector<2xf32>
    %850 = vector.shape_cast %849 : vector<2xf32> to vector<2x1xf32>
    %851 = vector.extract_strided_slice %18 {offsets = [0, 3], sizes = [2, 1], strides = [1, 1]} : vector<2x9xf32> to vector<2x1xf32>
    %852 = arith.mulf %851, %850 : vector<2x1xf32>
    %853 = arith.addf %845, %852 : vector<2x1xf32>
    %854 = vector.extract_strided_slice %0 {offsets = [4, 0], sizes = [1, 256], strides = [1, 1]} : vector<9x256xf32> to vector<1x256xf32>
    %855 = vector.broadcast %854 : vector<1x256xf32> to vector<2x256xf32>
    %856 = arith.mulf %805, %855 : vector<2x256xf32>
    %cst_94 = arith.constant dense<0.000000e+00> : vector<2xf32>
    %857 = vector.multi_reduction <add>, %856, %cst_94 [1] : vector<2x256xf32> to vector<2xf32>
    %858 = vector.shape_cast %857 : vector<2xf32> to vector<2x1xf32>
    %859 = vector.extract_strided_slice %18 {offsets = [0, 4], sizes = [2, 1], strides = [1, 1]} : vector<2x9xf32> to vector<2x1xf32>
    %860 = arith.mulf %859, %858 : vector<2x1xf32>
    %861 = arith.addf %853, %860 : vector<2x1xf32>
    %862 = vector.extract_strided_slice %0 {offsets = [3, 0], sizes = [1, 256], strides = [1, 1]} : vector<9x256xf32> to vector<1x256xf32>
    %863 = vector.broadcast %862 : vector<1x256xf32> to vector<2x256xf32>
    %864 = arith.mulf %805, %863 : vector<2x256xf32>
    %cst_95 = arith.constant dense<0.000000e+00> : vector<2xf32>
    %865 = vector.multi_reduction <add>, %864, %cst_95 [1] : vector<2x256xf32> to vector<2xf32>
    %866 = vector.shape_cast %865 : vector<2xf32> to vector<2x1xf32>
    %867 = vector.extract_strided_slice %18 {offsets = [0, 5], sizes = [2, 1], strides = [1, 1]} : vector<2x9xf32> to vector<2x1xf32>
    %868 = arith.mulf %867, %866 : vector<2x1xf32>
    %869 = arith.addf %861, %868 : vector<2x1xf32>
    %870 = vector.extract_strided_slice %0 {offsets = [2, 0], sizes = [1, 256], strides = [1, 1]} : vector<9x256xf32> to vector<1x256xf32>
    %871 = vector.broadcast %870 : vector<1x256xf32> to vector<2x256xf32>
    %872 = arith.mulf %805, %871 : vector<2x256xf32>
    %cst_96 = arith.constant dense<0.000000e+00> : vector<2xf32>
    %873 = vector.multi_reduction <add>, %872, %cst_96 [1] : vector<2x256xf32> to vector<2xf32>
    %874 = vector.shape_cast %873 : vector<2xf32> to vector<2x1xf32>
    %875 = vector.extract_strided_slice %18 {offsets = [0, 6], sizes = [2, 1], strides = [1, 1]} : vector<2x9xf32> to vector<2x1xf32>
    %876 = arith.mulf %875, %874 : vector<2x1xf32>
    %877 = arith.addf %869, %876 : vector<2x1xf32>
    %878 = vector.extract_strided_slice %0 {offsets = [1, 0], sizes = [1, 256], strides = [1, 1]} : vector<9x256xf32> to vector<1x256xf32>
    %879 = vector.broadcast %878 : vector<1x256xf32> to vector<2x256xf32>
    %880 = arith.mulf %805, %879 : vector<2x256xf32>
    %cst_97 = arith.constant dense<0.000000e+00> : vector<2xf32>
    %881 = vector.multi_reduction <add>, %880, %cst_97 [1] : vector<2x256xf32> to vector<2xf32>
    %882 = vector.shape_cast %881 : vector<2xf32> to vector<2x1xf32>
    %883 = vector.extract_strided_slice %18 {offsets = [0, 7], sizes = [2, 1], strides = [1, 1]} : vector<2x9xf32> to vector<2x1xf32>
    %884 = arith.mulf %883, %882 : vector<2x1xf32>
    %885 = arith.addf %877, %884 : vector<2x1xf32>
    %886 = vector.extract_strided_slice %0 {offsets = [0, 0], sizes = [1, 256], strides = [1, 1]} : vector<9x256xf32> to vector<1x256xf32>
    %887 = vector.broadcast %886 : vector<1x256xf32> to vector<2x256xf32>
    %888 = arith.mulf %805, %887 : vector<2x256xf32>
    %cst_98 = arith.constant dense<0.000000e+00> : vector<2xf32>
    %889 = vector.multi_reduction <add>, %888, %cst_98 [1] : vector<2x256xf32> to vector<2xf32>
    %890 = vector.shape_cast %889 : vector<2xf32> to vector<2x1xf32>
    %891 = vector.extract_strided_slice %18 {offsets = [0, 8], sizes = [2, 1], strides = [1, 1]} : vector<2x9xf32> to vector<2x1xf32>
    %892 = arith.mulf %891, %890 : vector<2x1xf32>
    %893 = arith.addf %885, %892 : vector<2x1xf32>
    %cst_99 = arith.constant 3.906250e-03 : f32
    %894 = vector.broadcast %cst_99 : f32 to vector<2x1xf32>
    %895 = arith.mulf %893, %894 : vector<2x1xf32>
    %896 = arith.addf %895, %19 : vector<2x1xf32>
    %cst_100 = arith.constant 0.000000e+00 : f32
    %897 = vector.broadcast %cst_100 : f32 to vector<2x1xf32>
    %898 = arith.subf %897, %896 : vector<2x1xf32>
    %899 = math.exp %898 : vector<2x1xf32>
    %cst_101 = arith.constant 1.000000e+00 : f32
    %900 = vector.broadcast %cst_101 : f32 to vector<2x1xf32>
    %901 = arith.addf %900, %899 : vector<2x1xf32>
    %902 = tpu.reciprocal %901 {approx = true} : vector<2x1xf32> -> vector<2x1xf32>
    %903 = vector.broadcast %822 : vector<1x256xf32> to vector<2x256xf32>
    %904 = arith.mulf %903, %805 : vector<2x256xf32>
    %905 = vector.broadcast %902 : vector<2x1xf32> to vector<2x256xf32>
    %906 = arith.mulf %905, %96 : vector<2x256xf32>
    %907 = vector.extract_strided_slice %20 {offsets = [0, 0], sizes = [2, 1], strides = [1, 1]} : vector<2x2xf32> to vector<2x1xf32>
    %908 = vector.extract_strided_slice %904 {offsets = [0, 0], sizes = [1, 256], strides = [1, 1]} : vector<2x256xf32> to vector<1x256xf32>
    %909 = vector.broadcast %907 : vector<2x1xf32> to vector<2x256xf32>
    %910 = vector.broadcast %908 : vector<1x256xf32> to vector<2x256xf32>
    %911 = arith.mulf %909, %910 : vector<2x256xf32>
    %912 = vector.extract_strided_slice %20 {offsets = [0, 1], sizes = [2, 1], strides = [1, 1]} : vector<2x2xf32> to vector<2x1xf32>
    %913 = vector.extract_strided_slice %904 {offsets = [1, 0], sizes = [1, 256], strides = [1, 1]} : vector<2x256xf32> to vector<1x256xf32>
    %914 = vector.broadcast %912 : vector<2x1xf32> to vector<2x256xf32>
    %915 = vector.broadcast %913 : vector<1x256xf32> to vector<2x256xf32>
    %916 = arith.mulf %914, %915 : vector<2x256xf32>
    %917 = arith.addf %911, %916 : vector<2x256xf32>
    %918 = vector.extract_strided_slice %21 {offsets = [0, 0], sizes = [2, 1], strides = [1, 1]} : vector<2x2xf32> to vector<2x1xf32>
    %919 = vector.extract_strided_slice %906 {offsets = [0, 0], sizes = [1, 256], strides = [1, 1]} : vector<2x256xf32> to vector<1x256xf32>
    %920 = vector.broadcast %918 : vector<2x1xf32> to vector<2x256xf32>
    %921 = vector.broadcast %919 : vector<1x256xf32> to vector<2x256xf32>
    %922 = arith.mulf %920, %921 : vector<2x256xf32>
    %923 = vector.extract_strided_slice %21 {offsets = [0, 1], sizes = [2, 1], strides = [1, 1]} : vector<2x2xf32> to vector<2x1xf32>
    %924 = vector.extract_strided_slice %906 {offsets = [1, 0], sizes = [1, 256], strides = [1, 1]} : vector<2x256xf32> to vector<1x256xf32>
    %925 = vector.broadcast %923 : vector<2x1xf32> to vector<2x256xf32>
    %926 = vector.broadcast %924 : vector<1x256xf32> to vector<2x256xf32>
    %927 = arith.mulf %925, %926 : vector<2x256xf32>
    %928 = arith.addf %922, %927 : vector<2x256xf32>
    %929 = arith.addf %917, %928 : vector<2x256xf32>
    %930 = vector.broadcast %22 : vector<2x1xf32> to vector<2x256xf32>
    %931 = arith.addf %929, %930 : vector<2x256xf32>
    %c17_i32_102 = arith.constant 17 : i32
    %932 = tpu.dynamic_rotate %249 by %c17_i32_102 dim 1 : vector<2x256xf32>, i32 -> vector<2x256xf32>
    %933 = vector.extract_strided_slice %23 {offsets = [0, 0], sizes = [8, 2], strides = [1, 1]} : vector<72x2xf32> to vector<8x2xf32>
    %934 = vector.extract_strided_slice %933 {offsets = [0, 0], sizes = [8, 1], strides = [1, 1]} : vector<8x2xf32> to vector<8x1xf32>
    %935 = vector.extract_strided_slice %932 {offsets = [0, 0], sizes = [1, 256], strides = [1, 1]} : vector<2x256xf32> to vector<1x256xf32>
    %936 = vector.broadcast %934 : vector<8x1xf32> to vector<8x256xf32>
    %937 = vector.broadcast %935 : vector<1x256xf32> to vector<8x256xf32>
    %938 = arith.mulf %936, %937 : vector<8x256xf32>
    %939 = vector.extract_strided_slice %933 {offsets = [0, 1], sizes = [8, 1], strides = [1, 1]} : vector<8x2xf32> to vector<8x1xf32>
    %940 = vector.extract_strided_slice %932 {offsets = [1, 0], sizes = [1, 256], strides = [1, 1]} : vector<2x256xf32> to vector<1x256xf32>
    %941 = vector.broadcast %939 : vector<8x1xf32> to vector<8x256xf32>
    %942 = vector.broadcast %940 : vector<1x256xf32> to vector<8x256xf32>
    %943 = arith.mulf %941, %942 : vector<8x256xf32>
    %944 = arith.addf %938, %943 : vector<8x256xf32>
    %c17_i32_103 = arith.constant 17 : i32
    %945 = tpu.dynamic_rotate %527 by %c17_i32_103 dim 1 : vector<2x256xf32>, i32 -> vector<2x256xf32>
    %946 = vector.extract_strided_slice %24 {offsets = [0, 0], sizes = [8, 2], strides = [1, 1]} : vector<72x2xf32> to vector<8x2xf32>
    %947 = vector.extract_strided_slice %946 {offsets = [0, 0], sizes = [8, 1], strides = [1, 1]} : vector<8x2xf32> to vector<8x1xf32>
    %948 = vector.extract_strided_slice %945 {offsets = [0, 0], sizes = [1, 256], strides = [1, 1]} : vector<2x256xf32> to vector<1x256xf32>
    %949 = vector.broadcast %947 : vector<8x1xf32> to vector<8x256xf32>
    %950 = vector.broadcast %948 : vector<1x256xf32> to vector<8x256xf32>
    %951 = arith.mulf %949, %950 : vector<8x256xf32>
    %952 = vector.extract_strided_slice %946 {offsets = [0, 1], sizes = [8, 1], strides = [1, 1]} : vector<8x2xf32> to vector<8x1xf32>
    %953 = vector.extract_strided_slice %945 {offsets = [1, 0], sizes = [1, 256], strides = [1, 1]} : vector<2x256xf32> to vector<1x256xf32>
    %954 = vector.broadcast %952 : vector<8x1xf32> to vector<8x256xf32>
    %955 = vector.broadcast %953 : vector<1x256xf32> to vector<8x256xf32>
    %956 = arith.mulf %954, %955 : vector<8x256xf32>
    %957 = arith.addf %951, %956 : vector<8x256xf32>
    %958 = arith.addf %944, %957 : vector<8x256xf32>
    %c17_i32_104 = arith.constant 17 : i32
    %959 = tpu.dynamic_rotate %805 by %c17_i32_104 dim 1 : vector<2x256xf32>, i32 -> vector<2x256xf32>
    %960 = vector.extract_strided_slice %25 {offsets = [0, 0], sizes = [8, 2], strides = [1, 1]} : vector<72x2xf32> to vector<8x2xf32>
    %961 = vector.extract_strided_slice %960 {offsets = [0, 0], sizes = [8, 1], strides = [1, 1]} : vector<8x2xf32> to vector<8x1xf32>
    %962 = vector.extract_strided_slice %959 {offsets = [0, 0], sizes = [1, 256], strides = [1, 1]} : vector<2x256xf32> to vector<1x256xf32>
    %963 = vector.broadcast %961 : vector<8x1xf32> to vector<8x256xf32>
    %964 = vector.broadcast %962 : vector<1x256xf32> to vector<8x256xf32>
    %965 = arith.mulf %963, %964 : vector<8x256xf32>
    %966 = vector.extract_strided_slice %960 {offsets = [0, 1], sizes = [8, 1], strides = [1, 1]} : vector<8x2xf32> to vector<8x1xf32>
    %967 = vector.extract_strided_slice %959 {offsets = [1, 0], sizes = [1, 256], strides = [1, 1]} : vector<2x256xf32> to vector<1x256xf32>
    %968 = vector.broadcast %966 : vector<8x1xf32> to vector<8x256xf32>
    %969 = vector.broadcast %967 : vector<1x256xf32> to vector<8x256xf32>
    %970 = arith.mulf %968, %969 : vector<8x256xf32>
    %971 = arith.addf %965, %970 : vector<8x256xf32>
    %972 = arith.addf %958, %971 : vector<8x256xf32>
    %c17_i32_105 = arith.constant 17 : i32
    %973 = tpu.dynamic_rotate %931 by %c17_i32_105 dim 1 : vector<2x256xf32>, i32 -> vector<2x256xf32>
    %974 = vector.extract_strided_slice %26 {offsets = [0, 0], sizes = [8, 2], strides = [1, 1]} : vector<72x2xf32> to vector<8x2xf32>
    %975 = vector.extract_strided_slice %974 {offsets = [0, 0], sizes = [8, 1], strides = [1, 1]} : vector<8x2xf32> to vector<8x1xf32>
    %976 = vector.extract_strided_slice %973 {offsets = [0, 0], sizes = [1, 256], strides = [1, 1]} : vector<2x256xf32> to vector<1x256xf32>
    %977 = vector.broadcast %975 : vector<8x1xf32> to vector<8x256xf32>
    %978 = vector.broadcast %976 : vector<1x256xf32> to vector<8x256xf32>
    %979 = arith.mulf %977, %978 : vector<8x256xf32>
    %980 = vector.extract_strided_slice %974 {offsets = [0, 1], sizes = [8, 1], strides = [1, 1]} : vector<8x2xf32> to vector<8x1xf32>
    %981 = vector.extract_strided_slice %973 {offsets = [1, 0], sizes = [1, 256], strides = [1, 1]} : vector<2x256xf32> to vector<1x256xf32>
    %982 = vector.broadcast %980 : vector<8x1xf32> to vector<8x256xf32>
    %983 = vector.broadcast %981 : vector<1x256xf32> to vector<8x256xf32>
    %984 = arith.mulf %982, %983 : vector<8x256xf32>
    %985 = arith.addf %979, %984 : vector<8x256xf32>
    %986 = arith.addf %972, %985 : vector<8x256xf32>
    %987 = vector.extract_strided_slice %0 {offsets = [0, 0], sizes = [1, 256], strides = [1, 1]} : vector<9x256xf32> to vector<1x256xf32>
    %988 = vector.broadcast %987 : vector<1x256xf32> to vector<8x256xf32>
    %989 = arith.mulf %986, %988 : vector<8x256xf32>
    %c16_i32_106 = arith.constant 16 : i32
    %990 = tpu.dynamic_rotate %249 by %c16_i32_106 dim 1 : vector<2x256xf32>, i32 -> vector<2x256xf32>
    %991 = vector.extract_strided_slice %23 {offsets = [8, 0], sizes = [8, 2], strides = [1, 1]} : vector<72x2xf32> to vector<8x2xf32>
    %992 = vector.extract_strided_slice %991 {offsets = [0, 0], sizes = [8, 1], strides = [1, 1]} : vector<8x2xf32> to vector<8x1xf32>
    %993 = vector.extract_strided_slice %990 {offsets = [0, 0], sizes = [1, 256], strides = [1, 1]} : vector<2x256xf32> to vector<1x256xf32>
    %994 = vector.broadcast %992 : vector<8x1xf32> to vector<8x256xf32>
    %995 = vector.broadcast %993 : vector<1x256xf32> to vector<8x256xf32>
    %996 = arith.mulf %994, %995 : vector<8x256xf32>
    %997 = vector.extract_strided_slice %991 {offsets = [0, 1], sizes = [8, 1], strides = [1, 1]} : vector<8x2xf32> to vector<8x1xf32>
    %998 = vector.extract_strided_slice %990 {offsets = [1, 0], sizes = [1, 256], strides = [1, 1]} : vector<2x256xf32> to vector<1x256xf32>
    %999 = vector.broadcast %997 : vector<8x1xf32> to vector<8x256xf32>
    %1000 = vector.broadcast %998 : vector<1x256xf32> to vector<8x256xf32>
    %1001 = arith.mulf %999, %1000 : vector<8x256xf32>
    %1002 = arith.addf %996, %1001 : vector<8x256xf32>
    %c16_i32_107 = arith.constant 16 : i32
    %1003 = tpu.dynamic_rotate %527 by %c16_i32_107 dim 1 : vector<2x256xf32>, i32 -> vector<2x256xf32>
    %1004 = vector.extract_strided_slice %24 {offsets = [8, 0], sizes = [8, 2], strides = [1, 1]} : vector<72x2xf32> to vector<8x2xf32>
    %1005 = vector.extract_strided_slice %1004 {offsets = [0, 0], sizes = [8, 1], strides = [1, 1]} : vector<8x2xf32> to vector<8x1xf32>
    %1006 = vector.extract_strided_slice %1003 {offsets = [0, 0], sizes = [1, 256], strides = [1, 1]} : vector<2x256xf32> to vector<1x256xf32>
    %1007 = vector.broadcast %1005 : vector<8x1xf32> to vector<8x256xf32>
    %1008 = vector.broadcast %1006 : vector<1x256xf32> to vector<8x256xf32>
    %1009 = arith.mulf %1007, %1008 : vector<8x256xf32>
    %1010 = vector.extract_strided_slice %1004 {offsets = [0, 1], sizes = [8, 1], strides = [1, 1]} : vector<8x2xf32> to vector<8x1xf32>
    %1011 = vector.extract_strided_slice %1003 {offsets = [1, 0], sizes = [1, 256], strides = [1, 1]} : vector<2x256xf32> to vector<1x256xf32>
    %1012 = vector.broadcast %1010 : vector<8x1xf32> to vector<8x256xf32>
    %1013 = vector.broadcast %1011 : vector<1x256xf32> to vector<8x256xf32>
    %1014 = arith.mulf %1012, %1013 : vector<8x256xf32>
    %1015 = arith.addf %1009, %1014 : vector<8x256xf32>
    %1016 = arith.addf %1002, %1015 : vector<8x256xf32>
    %c16_i32_108 = arith.constant 16 : i32
    %1017 = tpu.dynamic_rotate %805 by %c16_i32_108 dim 1 : vector<2x256xf32>, i32 -> vector<2x256xf32>
    %1018 = vector.extract_strided_slice %25 {offsets = [8, 0], sizes = [8, 2], strides = [1, 1]} : vector<72x2xf32> to vector<8x2xf32>
    %1019 = vector.extract_strided_slice %1018 {offsets = [0, 0], sizes = [8, 1], strides = [1, 1]} : vector<8x2xf32> to vector<8x1xf32>
    %1020 = vector.extract_strided_slice %1017 {offsets = [0, 0], sizes = [1, 256], strides = [1, 1]} : vector<2x256xf32> to vector<1x256xf32>
    %1021 = vector.broadcast %1019 : vector<8x1xf32> to vector<8x256xf32>
    %1022 = vector.broadcast %1020 : vector<1x256xf32> to vector<8x256xf32>
    %1023 = arith.mulf %1021, %1022 : vector<8x256xf32>
    %1024 = vector.extract_strided_slice %1018 {offsets = [0, 1], sizes = [8, 1], strides = [1, 1]} : vector<8x2xf32> to vector<8x1xf32>
    %1025 = vector.extract_strided_slice %1017 {offsets = [1, 0], sizes = [1, 256], strides = [1, 1]} : vector<2x256xf32> to vector<1x256xf32>
    %1026 = vector.broadcast %1024 : vector<8x1xf32> to vector<8x256xf32>
    %1027 = vector.broadcast %1025 : vector<1x256xf32> to vector<8x256xf32>
    %1028 = arith.mulf %1026, %1027 : vector<8x256xf32>
    %1029 = arith.addf %1023, %1028 : vector<8x256xf32>
    %1030 = arith.addf %1016, %1029 : vector<8x256xf32>
    %c16_i32_109 = arith.constant 16 : i32
    %1031 = tpu.dynamic_rotate %931 by %c16_i32_109 dim 1 : vector<2x256xf32>, i32 -> vector<2x256xf32>
    %1032 = vector.extract_strided_slice %26 {offsets = [8, 0], sizes = [8, 2], strides = [1, 1]} : vector<72x2xf32> to vector<8x2xf32>
    %1033 = vector.extract_strided_slice %1032 {offsets = [0, 0], sizes = [8, 1], strides = [1, 1]} : vector<8x2xf32> to vector<8x1xf32>
    %1034 = vector.extract_strided_slice %1031 {offsets = [0, 0], sizes = [1, 256], strides = [1, 1]} : vector<2x256xf32> to vector<1x256xf32>
    %1035 = vector.broadcast %1033 : vector<8x1xf32> to vector<8x256xf32>
    %1036 = vector.broadcast %1034 : vector<1x256xf32> to vector<8x256xf32>
    %1037 = arith.mulf %1035, %1036 : vector<8x256xf32>
    %1038 = vector.extract_strided_slice %1032 {offsets = [0, 1], sizes = [8, 1], strides = [1, 1]} : vector<8x2xf32> to vector<8x1xf32>
    %1039 = vector.extract_strided_slice %1031 {offsets = [1, 0], sizes = [1, 256], strides = [1, 1]} : vector<2x256xf32> to vector<1x256xf32>
    %1040 = vector.broadcast %1038 : vector<8x1xf32> to vector<8x256xf32>
    %1041 = vector.broadcast %1039 : vector<1x256xf32> to vector<8x256xf32>
    %1042 = arith.mulf %1040, %1041 : vector<8x256xf32>
    %1043 = arith.addf %1037, %1042 : vector<8x256xf32>
    %1044 = arith.addf %1030, %1043 : vector<8x256xf32>
    %1045 = vector.extract_strided_slice %0 {offsets = [1, 0], sizes = [1, 256], strides = [1, 1]} : vector<9x256xf32> to vector<1x256xf32>
    %1046 = vector.broadcast %1045 : vector<1x256xf32> to vector<8x256xf32>
    %1047 = arith.mulf %1044, %1046 : vector<8x256xf32>
    %1048 = arith.addf %989, %1047 : vector<8x256xf32>
    %c15_i32_110 = arith.constant 15 : i32
    %1049 = tpu.dynamic_rotate %249 by %c15_i32_110 dim 1 : vector<2x256xf32>, i32 -> vector<2x256xf32>
    %1050 = vector.extract_strided_slice %23 {offsets = [16, 0], sizes = [8, 2], strides = [1, 1]} : vector<72x2xf32> to vector<8x2xf32>
    %1051 = vector.extract_strided_slice %1050 {offsets = [0, 0], sizes = [8, 1], strides = [1, 1]} : vector<8x2xf32> to vector<8x1xf32>
    %1052 = vector.extract_strided_slice %1049 {offsets = [0, 0], sizes = [1, 256], strides = [1, 1]} : vector<2x256xf32> to vector<1x256xf32>
    %1053 = vector.broadcast %1051 : vector<8x1xf32> to vector<8x256xf32>
    %1054 = vector.broadcast %1052 : vector<1x256xf32> to vector<8x256xf32>
    %1055 = arith.mulf %1053, %1054 : vector<8x256xf32>
    %1056 = vector.extract_strided_slice %1050 {offsets = [0, 1], sizes = [8, 1], strides = [1, 1]} : vector<8x2xf32> to vector<8x1xf32>
    %1057 = vector.extract_strided_slice %1049 {offsets = [1, 0], sizes = [1, 256], strides = [1, 1]} : vector<2x256xf32> to vector<1x256xf32>
    %1058 = vector.broadcast %1056 : vector<8x1xf32> to vector<8x256xf32>
    %1059 = vector.broadcast %1057 : vector<1x256xf32> to vector<8x256xf32>
    %1060 = arith.mulf %1058, %1059 : vector<8x256xf32>
    %1061 = arith.addf %1055, %1060 : vector<8x256xf32>
    %c15_i32_111 = arith.constant 15 : i32
    %1062 = tpu.dynamic_rotate %527 by %c15_i32_111 dim 1 : vector<2x256xf32>, i32 -> vector<2x256xf32>
    %1063 = vector.extract_strided_slice %24 {offsets = [16, 0], sizes = [8, 2], strides = [1, 1]} : vector<72x2xf32> to vector<8x2xf32>
    %1064 = vector.extract_strided_slice %1063 {offsets = [0, 0], sizes = [8, 1], strides = [1, 1]} : vector<8x2xf32> to vector<8x1xf32>
    %1065 = vector.extract_strided_slice %1062 {offsets = [0, 0], sizes = [1, 256], strides = [1, 1]} : vector<2x256xf32> to vector<1x256xf32>
    %1066 = vector.broadcast %1064 : vector<8x1xf32> to vector<8x256xf32>
    %1067 = vector.broadcast %1065 : vector<1x256xf32> to vector<8x256xf32>
    %1068 = arith.mulf %1066, %1067 : vector<8x256xf32>
    %1069 = vector.extract_strided_slice %1063 {offsets = [0, 1], sizes = [8, 1], strides = [1, 1]} : vector<8x2xf32> to vector<8x1xf32>
    %1070 = vector.extract_strided_slice %1062 {offsets = [1, 0], sizes = [1, 256], strides = [1, 1]} : vector<2x256xf32> to vector<1x256xf32>
    %1071 = vector.broadcast %1069 : vector<8x1xf32> to vector<8x256xf32>
    %1072 = vector.broadcast %1070 : vector<1x256xf32> to vector<8x256xf32>
    %1073 = arith.mulf %1071, %1072 : vector<8x256xf32>
    %1074 = arith.addf %1068, %1073 : vector<8x256xf32>
    %1075 = arith.addf %1061, %1074 : vector<8x256xf32>
    %c15_i32_112 = arith.constant 15 : i32
    %1076 = tpu.dynamic_rotate %805 by %c15_i32_112 dim 1 : vector<2x256xf32>, i32 -> vector<2x256xf32>
    %1077 = vector.extract_strided_slice %25 {offsets = [16, 0], sizes = [8, 2], strides = [1, 1]} : vector<72x2xf32> to vector<8x2xf32>
    %1078 = vector.extract_strided_slice %1077 {offsets = [0, 0], sizes = [8, 1], strides = [1, 1]} : vector<8x2xf32> to vector<8x1xf32>
    %1079 = vector.extract_strided_slice %1076 {offsets = [0, 0], sizes = [1, 256], strides = [1, 1]} : vector<2x256xf32> to vector<1x256xf32>
    %1080 = vector.broadcast %1078 : vector<8x1xf32> to vector<8x256xf32>
    %1081 = vector.broadcast %1079 : vector<1x256xf32> to vector<8x256xf32>
    %1082 = arith.mulf %1080, %1081 : vector<8x256xf32>
    %1083 = vector.extract_strided_slice %1077 {offsets = [0, 1], sizes = [8, 1], strides = [1, 1]} : vector<8x2xf32> to vector<8x1xf32>
    %1084 = vector.extract_strided_slice %1076 {offsets = [1, 0], sizes = [1, 256], strides = [1, 1]} : vector<2x256xf32> to vector<1x256xf32>
    %1085 = vector.broadcast %1083 : vector<8x1xf32> to vector<8x256xf32>
    %1086 = vector.broadcast %1084 : vector<1x256xf32> to vector<8x256xf32>
    %1087 = arith.mulf %1085, %1086 : vector<8x256xf32>
    %1088 = arith.addf %1082, %1087 : vector<8x256xf32>
    %1089 = arith.addf %1075, %1088 : vector<8x256xf32>
    %c15_i32_113 = arith.constant 15 : i32
    %1090 = tpu.dynamic_rotate %931 by %c15_i32_113 dim 1 : vector<2x256xf32>, i32 -> vector<2x256xf32>
    %1091 = vector.extract_strided_slice %26 {offsets = [16, 0], sizes = [8, 2], strides = [1, 1]} : vector<72x2xf32> to vector<8x2xf32>
    %1092 = vector.extract_strided_slice %1091 {offsets = [0, 0], sizes = [8, 1], strides = [1, 1]} : vector<8x2xf32> to vector<8x1xf32>
    %1093 = vector.extract_strided_slice %1090 {offsets = [0, 0], sizes = [1, 256], strides = [1, 1]} : vector<2x256xf32> to vector<1x256xf32>
    %1094 = vector.broadcast %1092 : vector<8x1xf32> to vector<8x256xf32>
    %1095 = vector.broadcast %1093 : vector<1x256xf32> to vector<8x256xf32>
    %1096 = arith.mulf %1094, %1095 : vector<8x256xf32>
    %1097 = vector.extract_strided_slice %1091 {offsets = [0, 1], sizes = [8, 1], strides = [1, 1]} : vector<8x2xf32> to vector<8x1xf32>
    %1098 = vector.extract_strided_slice %1090 {offsets = [1, 0], sizes = [1, 256], strides = [1, 1]} : vector<2x256xf32> to vector<1x256xf32>
    %1099 = vector.broadcast %1097 : vector<8x1xf32> to vector<8x256xf32>
    %1100 = vector.broadcast %1098 : vector<1x256xf32> to vector<8x256xf32>
    %1101 = arith.mulf %1099, %1100 : vector<8x256xf32>
    %1102 = arith.addf %1096, %1101 : vector<8x256xf32>
    %1103 = arith.addf %1089, %1102 : vector<8x256xf32>
    %1104 = vector.extract_strided_slice %0 {offsets = [2, 0], sizes = [1, 256], strides = [1, 1]} : vector<9x256xf32> to vector<1x256xf32>
    %1105 = vector.broadcast %1104 : vector<1x256xf32> to vector<8x256xf32>
    %1106 = arith.mulf %1103, %1105 : vector<8x256xf32>
    %1107 = arith.addf %1048, %1106 : vector<8x256xf32>
    %c1_i32_114 = arith.constant 1 : i32
    %1108 = tpu.dynamic_rotate %249 by %c1_i32_114 dim 1 : vector<2x256xf32>, i32 -> vector<2x256xf32>
    %1109 = vector.extract_strided_slice %23 {offsets = [24, 0], sizes = [8, 2], strides = [1, 1]} : vector<72x2xf32> to vector<8x2xf32>
    %1110 = vector.extract_strided_slice %1109 {offsets = [0, 0], sizes = [8, 1], strides = [1, 1]} : vector<8x2xf32> to vector<8x1xf32>
    %1111 = vector.extract_strided_slice %1108 {offsets = [0, 0], sizes = [1, 256], strides = [1, 1]} : vector<2x256xf32> to vector<1x256xf32>
    %1112 = vector.broadcast %1110 : vector<8x1xf32> to vector<8x256xf32>
    %1113 = vector.broadcast %1111 : vector<1x256xf32> to vector<8x256xf32>
    %1114 = arith.mulf %1112, %1113 : vector<8x256xf32>
    %1115 = vector.extract_strided_slice %1109 {offsets = [0, 1], sizes = [8, 1], strides = [1, 1]} : vector<8x2xf32> to vector<8x1xf32>
    %1116 = vector.extract_strided_slice %1108 {offsets = [1, 0], sizes = [1, 256], strides = [1, 1]} : vector<2x256xf32> to vector<1x256xf32>
    %1117 = vector.broadcast %1115 : vector<8x1xf32> to vector<8x256xf32>
    %1118 = vector.broadcast %1116 : vector<1x256xf32> to vector<8x256xf32>
    %1119 = arith.mulf %1117, %1118 : vector<8x256xf32>
    %1120 = arith.addf %1114, %1119 : vector<8x256xf32>
    %c1_i32_115 = arith.constant 1 : i32
    %1121 = tpu.dynamic_rotate %527 by %c1_i32_115 dim 1 : vector<2x256xf32>, i32 -> vector<2x256xf32>
    %1122 = vector.extract_strided_slice %24 {offsets = [24, 0], sizes = [8, 2], strides = [1, 1]} : vector<72x2xf32> to vector<8x2xf32>
    %1123 = vector.extract_strided_slice %1122 {offsets = [0, 0], sizes = [8, 1], strides = [1, 1]} : vector<8x2xf32> to vector<8x1xf32>
    %1124 = vector.extract_strided_slice %1121 {offsets = [0, 0], sizes = [1, 256], strides = [1, 1]} : vector<2x256xf32> to vector<1x256xf32>
    %1125 = vector.broadcast %1123 : vector<8x1xf32> to vector<8x256xf32>
    %1126 = vector.broadcast %1124 : vector<1x256xf32> to vector<8x256xf32>
    %1127 = arith.mulf %1125, %1126 : vector<8x256xf32>
    %1128 = vector.extract_strided_slice %1122 {offsets = [0, 1], sizes = [8, 1], strides = [1, 1]} : vector<8x2xf32> to vector<8x1xf32>
    %1129 = vector.extract_strided_slice %1121 {offsets = [1, 0], sizes = [1, 256], strides = [1, 1]} : vector<2x256xf32> to vector<1x256xf32>
    %1130 = vector.broadcast %1128 : vector<8x1xf32> to vector<8x256xf32>
    %1131 = vector.broadcast %1129 : vector<1x256xf32> to vector<8x256xf32>
    %1132 = arith.mulf %1130, %1131 : vector<8x256xf32>
    %1133 = arith.addf %1127, %1132 : vector<8x256xf32>
    %1134 = arith.addf %1120, %1133 : vector<8x256xf32>
    %c1_i32_116 = arith.constant 1 : i32
    %1135 = tpu.dynamic_rotate %805 by %c1_i32_116 dim 1 : vector<2x256xf32>, i32 -> vector<2x256xf32>
    %1136 = vector.extract_strided_slice %25 {offsets = [24, 0], sizes = [8, 2], strides = [1, 1]} : vector<72x2xf32> to vector<8x2xf32>
    %1137 = vector.extract_strided_slice %1136 {offsets = [0, 0], sizes = [8, 1], strides = [1, 1]} : vector<8x2xf32> to vector<8x1xf32>
    %1138 = vector.extract_strided_slice %1135 {offsets = [0, 0], sizes = [1, 256], strides = [1, 1]} : vector<2x256xf32> to vector<1x256xf32>
    %1139 = vector.broadcast %1137 : vector<8x1xf32> to vector<8x256xf32>
    %1140 = vector.broadcast %1138 : vector<1x256xf32> to vector<8x256xf32>
    %1141 = arith.mulf %1139, %1140 : vector<8x256xf32>
    %1142 = vector.extract_strided_slice %1136 {offsets = [0, 1], sizes = [8, 1], strides = [1, 1]} : vector<8x2xf32> to vector<8x1xf32>
    %1143 = vector.extract_strided_slice %1135 {offsets = [1, 0], sizes = [1, 256], strides = [1, 1]} : vector<2x256xf32> to vector<1x256xf32>
    %1144 = vector.broadcast %1142 : vector<8x1xf32> to vector<8x256xf32>
    %1145 = vector.broadcast %1143 : vector<1x256xf32> to vector<8x256xf32>
    %1146 = arith.mulf %1144, %1145 : vector<8x256xf32>
    %1147 = arith.addf %1141, %1146 : vector<8x256xf32>
    %1148 = arith.addf %1134, %1147 : vector<8x256xf32>
    %c1_i32_117 = arith.constant 1 : i32
    %1149 = tpu.dynamic_rotate %931 by %c1_i32_117 dim 1 : vector<2x256xf32>, i32 -> vector<2x256xf32>
    %1150 = vector.extract_strided_slice %26 {offsets = [24, 0], sizes = [8, 2], strides = [1, 1]} : vector<72x2xf32> to vector<8x2xf32>
    %1151 = vector.extract_strided_slice %1150 {offsets = [0, 0], sizes = [8, 1], strides = [1, 1]} : vector<8x2xf32> to vector<8x1xf32>
    %1152 = vector.extract_strided_slice %1149 {offsets = [0, 0], sizes = [1, 256], strides = [1, 1]} : vector<2x256xf32> to vector<1x256xf32>
    %1153 = vector.broadcast %1151 : vector<8x1xf32> to vector<8x256xf32>
    %1154 = vector.broadcast %1152 : vector<1x256xf32> to vector<8x256xf32>
    %1155 = arith.mulf %1153, %1154 : vector<8x256xf32>
    %1156 = vector.extract_strided_slice %1150 {offsets = [0, 1], sizes = [8, 1], strides = [1, 1]} : vector<8x2xf32> to vector<8x1xf32>
    %1157 = vector.extract_strided_slice %1149 {offsets = [1, 0], sizes = [1, 256], strides = [1, 1]} : vector<2x256xf32> to vector<1x256xf32>
    %1158 = vector.broadcast %1156 : vector<8x1xf32> to vector<8x256xf32>
    %1159 = vector.broadcast %1157 : vector<1x256xf32> to vector<8x256xf32>
    %1160 = arith.mulf %1158, %1159 : vector<8x256xf32>
    %1161 = arith.addf %1155, %1160 : vector<8x256xf32>
    %1162 = arith.addf %1148, %1161 : vector<8x256xf32>
    %1163 = vector.extract_strided_slice %0 {offsets = [3, 0], sizes = [1, 256], strides = [1, 1]} : vector<9x256xf32> to vector<1x256xf32>
    %1164 = vector.broadcast %1163 : vector<1x256xf32> to vector<8x256xf32>
    %1165 = arith.mulf %1162, %1164 : vector<8x256xf32>
    %1166 = arith.addf %1107, %1165 : vector<8x256xf32>
    %1167 = vector.extract_strided_slice %23 {offsets = [32, 0], sizes = [8, 2], strides = [1, 1]} : vector<72x2xf32> to vector<8x2xf32>
    %1168 = vector.extract_strided_slice %1167 {offsets = [0, 0], sizes = [8, 1], strides = [1, 1]} : vector<8x2xf32> to vector<8x1xf32>
    %1169 = vector.extract_strided_slice %249 {offsets = [0, 0], sizes = [1, 256], strides = [1, 1]} : vector<2x256xf32> to vector<1x256xf32>
    %1170 = vector.broadcast %1168 : vector<8x1xf32> to vector<8x256xf32>
    %1171 = vector.broadcast %1169 : vector<1x256xf32> to vector<8x256xf32>
    %1172 = arith.mulf %1170, %1171 : vector<8x256xf32>
    %1173 = vector.extract_strided_slice %1167 {offsets = [0, 1], sizes = [8, 1], strides = [1, 1]} : vector<8x2xf32> to vector<8x1xf32>
    %1174 = vector.extract_strided_slice %249 {offsets = [1, 0], sizes = [1, 256], strides = [1, 1]} : vector<2x256xf32> to vector<1x256xf32>
    %1175 = vector.broadcast %1173 : vector<8x1xf32> to vector<8x256xf32>
    %1176 = vector.broadcast %1174 : vector<1x256xf32> to vector<8x256xf32>
    %1177 = arith.mulf %1175, %1176 : vector<8x256xf32>
    %1178 = arith.addf %1172, %1177 : vector<8x256xf32>
    %1179 = vector.extract_strided_slice %24 {offsets = [32, 0], sizes = [8, 2], strides = [1, 1]} : vector<72x2xf32> to vector<8x2xf32>
    %1180 = vector.extract_strided_slice %1179 {offsets = [0, 0], sizes = [8, 1], strides = [1, 1]} : vector<8x2xf32> to vector<8x1xf32>
    %1181 = vector.extract_strided_slice %527 {offsets = [0, 0], sizes = [1, 256], strides = [1, 1]} : vector<2x256xf32> to vector<1x256xf32>
    %1182 = vector.broadcast %1180 : vector<8x1xf32> to vector<8x256xf32>
    %1183 = vector.broadcast %1181 : vector<1x256xf32> to vector<8x256xf32>
    %1184 = arith.mulf %1182, %1183 : vector<8x256xf32>
    %1185 = vector.extract_strided_slice %1179 {offsets = [0, 1], sizes = [8, 1], strides = [1, 1]} : vector<8x2xf32> to vector<8x1xf32>
    %1186 = vector.extract_strided_slice %527 {offsets = [1, 0], sizes = [1, 256], strides = [1, 1]} : vector<2x256xf32> to vector<1x256xf32>
    %1187 = vector.broadcast %1185 : vector<8x1xf32> to vector<8x256xf32>
    %1188 = vector.broadcast %1186 : vector<1x256xf32> to vector<8x256xf32>
    %1189 = arith.mulf %1187, %1188 : vector<8x256xf32>
    %1190 = arith.addf %1184, %1189 : vector<8x256xf32>
    %1191 = arith.addf %1178, %1190 : vector<8x256xf32>
    %1192 = vector.extract_strided_slice %25 {offsets = [32, 0], sizes = [8, 2], strides = [1, 1]} : vector<72x2xf32> to vector<8x2xf32>
    %1193 = vector.extract_strided_slice %1192 {offsets = [0, 0], sizes = [8, 1], strides = [1, 1]} : vector<8x2xf32> to vector<8x1xf32>
    %1194 = vector.extract_strided_slice %805 {offsets = [0, 0], sizes = [1, 256], strides = [1, 1]} : vector<2x256xf32> to vector<1x256xf32>
    %1195 = vector.broadcast %1193 : vector<8x1xf32> to vector<8x256xf32>
    %1196 = vector.broadcast %1194 : vector<1x256xf32> to vector<8x256xf32>
    %1197 = arith.mulf %1195, %1196 : vector<8x256xf32>
    %1198 = vector.extract_strided_slice %1192 {offsets = [0, 1], sizes = [8, 1], strides = [1, 1]} : vector<8x2xf32> to vector<8x1xf32>
    %1199 = vector.extract_strided_slice %805 {offsets = [1, 0], sizes = [1, 256], strides = [1, 1]} : vector<2x256xf32> to vector<1x256xf32>
    %1200 = vector.broadcast %1198 : vector<8x1xf32> to vector<8x256xf32>
    %1201 = vector.broadcast %1199 : vector<1x256xf32> to vector<8x256xf32>
    %1202 = arith.mulf %1200, %1201 : vector<8x256xf32>
    %1203 = arith.addf %1197, %1202 : vector<8x256xf32>
    %1204 = arith.addf %1191, %1203 : vector<8x256xf32>
    %1205 = vector.extract_strided_slice %26 {offsets = [32, 0], sizes = [8, 2], strides = [1, 1]} : vector<72x2xf32> to vector<8x2xf32>
    %1206 = vector.extract_strided_slice %1205 {offsets = [0, 0], sizes = [8, 1], strides = [1, 1]} : vector<8x2xf32> to vector<8x1xf32>
    %1207 = vector.extract_strided_slice %931 {offsets = [0, 0], sizes = [1, 256], strides = [1, 1]} : vector<2x256xf32> to vector<1x256xf32>
    %1208 = vector.broadcast %1206 : vector<8x1xf32> to vector<8x256xf32>
    %1209 = vector.broadcast %1207 : vector<1x256xf32> to vector<8x256xf32>
    %1210 = arith.mulf %1208, %1209 : vector<8x256xf32>
    %1211 = vector.extract_strided_slice %1205 {offsets = [0, 1], sizes = [8, 1], strides = [1, 1]} : vector<8x2xf32> to vector<8x1xf32>
    %1212 = vector.extract_strided_slice %931 {offsets = [1, 0], sizes = [1, 256], strides = [1, 1]} : vector<2x256xf32> to vector<1x256xf32>
    %1213 = vector.broadcast %1211 : vector<8x1xf32> to vector<8x256xf32>
    %1214 = vector.broadcast %1212 : vector<1x256xf32> to vector<8x256xf32>
    %1215 = arith.mulf %1213, %1214 : vector<8x256xf32>
    %1216 = arith.addf %1210, %1215 : vector<8x256xf32>
    %1217 = arith.addf %1204, %1216 : vector<8x256xf32>
    %1218 = vector.extract_strided_slice %0 {offsets = [4, 0], sizes = [1, 256], strides = [1, 1]} : vector<9x256xf32> to vector<1x256xf32>
    %1219 = vector.broadcast %1218 : vector<1x256xf32> to vector<8x256xf32>
    %1220 = arith.mulf %1217, %1219 : vector<8x256xf32>
    %1221 = arith.addf %1166, %1220 : vector<8x256xf32>
    %c255_i32_118 = arith.constant 255 : i32
    %1222 = tpu.dynamic_rotate %249 by %c255_i32_118 dim 1 : vector<2x256xf32>, i32 -> vector<2x256xf32>
    %1223 = vector.extract_strided_slice %23 {offsets = [40, 0], sizes = [8, 2], strides = [1, 1]} : vector<72x2xf32> to vector<8x2xf32>
    %1224 = vector.extract_strided_slice %1223 {offsets = [0, 0], sizes = [8, 1], strides = [1, 1]} : vector<8x2xf32> to vector<8x1xf32>
    %1225 = vector.extract_strided_slice %1222 {offsets = [0, 0], sizes = [1, 256], strides = [1, 1]} : vector<2x256xf32> to vector<1x256xf32>
    %1226 = vector.broadcast %1224 : vector<8x1xf32> to vector<8x256xf32>
    %1227 = vector.broadcast %1225 : vector<1x256xf32> to vector<8x256xf32>
    %1228 = arith.mulf %1226, %1227 : vector<8x256xf32>
    %1229 = vector.extract_strided_slice %1223 {offsets = [0, 1], sizes = [8, 1], strides = [1, 1]} : vector<8x2xf32> to vector<8x1xf32>
    %1230 = vector.extract_strided_slice %1222 {offsets = [1, 0], sizes = [1, 256], strides = [1, 1]} : vector<2x256xf32> to vector<1x256xf32>
    %1231 = vector.broadcast %1229 : vector<8x1xf32> to vector<8x256xf32>
    %1232 = vector.broadcast %1230 : vector<1x256xf32> to vector<8x256xf32>
    %1233 = arith.mulf %1231, %1232 : vector<8x256xf32>
    %1234 = arith.addf %1228, %1233 : vector<8x256xf32>
    %c255_i32_119 = arith.constant 255 : i32
    %1235 = tpu.dynamic_rotate %527 by %c255_i32_119 dim 1 : vector<2x256xf32>, i32 -> vector<2x256xf32>
    %1236 = vector.extract_strided_slice %24 {offsets = [40, 0], sizes = [8, 2], strides = [1, 1]} : vector<72x2xf32> to vector<8x2xf32>
    %1237 = vector.extract_strided_slice %1236 {offsets = [0, 0], sizes = [8, 1], strides = [1, 1]} : vector<8x2xf32> to vector<8x1xf32>
    %1238 = vector.extract_strided_slice %1235 {offsets = [0, 0], sizes = [1, 256], strides = [1, 1]} : vector<2x256xf32> to vector<1x256xf32>
    %1239 = vector.broadcast %1237 : vector<8x1xf32> to vector<8x256xf32>
    %1240 = vector.broadcast %1238 : vector<1x256xf32> to vector<8x256xf32>
    %1241 = arith.mulf %1239, %1240 : vector<8x256xf32>
    %1242 = vector.extract_strided_slice %1236 {offsets = [0, 1], sizes = [8, 1], strides = [1, 1]} : vector<8x2xf32> to vector<8x1xf32>
    %1243 = vector.extract_strided_slice %1235 {offsets = [1, 0], sizes = [1, 256], strides = [1, 1]} : vector<2x256xf32> to vector<1x256xf32>
    %1244 = vector.broadcast %1242 : vector<8x1xf32> to vector<8x256xf32>
    %1245 = vector.broadcast %1243 : vector<1x256xf32> to vector<8x256xf32>
    %1246 = arith.mulf %1244, %1245 : vector<8x256xf32>
    %1247 = arith.addf %1241, %1246 : vector<8x256xf32>
    %1248 = arith.addf %1234, %1247 : vector<8x256xf32>
    %c255_i32_120 = arith.constant 255 : i32
    %1249 = tpu.dynamic_rotate %805 by %c255_i32_120 dim 1 : vector<2x256xf32>, i32 -> vector<2x256xf32>
    %1250 = vector.extract_strided_slice %25 {offsets = [40, 0], sizes = [8, 2], strides = [1, 1]} : vector<72x2xf32> to vector<8x2xf32>
    %1251 = vector.extract_strided_slice %1250 {offsets = [0, 0], sizes = [8, 1], strides = [1, 1]} : vector<8x2xf32> to vector<8x1xf32>
    %1252 = vector.extract_strided_slice %1249 {offsets = [0, 0], sizes = [1, 256], strides = [1, 1]} : vector<2x256xf32> to vector<1x256xf32>
    %1253 = vector.broadcast %1251 : vector<8x1xf32> to vector<8x256xf32>
    %1254 = vector.broadcast %1252 : vector<1x256xf32> to vector<8x256xf32>
    %1255 = arith.mulf %1253, %1254 : vector<8x256xf32>
    %1256 = vector.extract_strided_slice %1250 {offsets = [0, 1], sizes = [8, 1], strides = [1, 1]} : vector<8x2xf32> to vector<8x1xf32>
    %1257 = vector.extract_strided_slice %1249 {offsets = [1, 0], sizes = [1, 256], strides = [1, 1]} : vector<2x256xf32> to vector<1x256xf32>
    %1258 = vector.broadcast %1256 : vector<8x1xf32> to vector<8x256xf32>
    %1259 = vector.broadcast %1257 : vector<1x256xf32> to vector<8x256xf32>
    %1260 = arith.mulf %1258, %1259 : vector<8x256xf32>
    %1261 = arith.addf %1255, %1260 : vector<8x256xf32>
    %1262 = arith.addf %1248, %1261 : vector<8x256xf32>
    %c255_i32_121 = arith.constant 255 : i32
    %1263 = tpu.dynamic_rotate %931 by %c255_i32_121 dim 1 : vector<2x256xf32>, i32 -> vector<2x256xf32>
    %1264 = vector.extract_strided_slice %26 {offsets = [40, 0], sizes = [8, 2], strides = [1, 1]} : vector<72x2xf32> to vector<8x2xf32>
    %1265 = vector.extract_strided_slice %1264 {offsets = [0, 0], sizes = [8, 1], strides = [1, 1]} : vector<8x2xf32> to vector<8x1xf32>
    %1266 = vector.extract_strided_slice %1263 {offsets = [0, 0], sizes = [1, 256], strides = [1, 1]} : vector<2x256xf32> to vector<1x256xf32>
    %1267 = vector.broadcast %1265 : vector<8x1xf32> to vector<8x256xf32>
    %1268 = vector.broadcast %1266 : vector<1x256xf32> to vector<8x256xf32>
    %1269 = arith.mulf %1267, %1268 : vector<8x256xf32>
    %1270 = vector.extract_strided_slice %1264 {offsets = [0, 1], sizes = [8, 1], strides = [1, 1]} : vector<8x2xf32> to vector<8x1xf32>
    %1271 = vector.extract_strided_slice %1263 {offsets = [1, 0], sizes = [1, 256], strides = [1, 1]} : vector<2x256xf32> to vector<1x256xf32>
    %1272 = vector.broadcast %1270 : vector<8x1xf32> to vector<8x256xf32>
    %1273 = vector.broadcast %1271 : vector<1x256xf32> to vector<8x256xf32>
    %1274 = arith.mulf %1272, %1273 : vector<8x256xf32>
    %1275 = arith.addf %1269, %1274 : vector<8x256xf32>
    %1276 = arith.addf %1262, %1275 : vector<8x256xf32>
    %1277 = vector.extract_strided_slice %0 {offsets = [5, 0], sizes = [1, 256], strides = [1, 1]} : vector<9x256xf32> to vector<1x256xf32>
    %1278 = vector.broadcast %1277 : vector<1x256xf32> to vector<8x256xf32>
    %1279 = arith.mulf %1276, %1278 : vector<8x256xf32>
    %1280 = arith.addf %1221, %1279 : vector<8x256xf32>
    %c241_i32_122 = arith.constant 241 : i32
    %1281 = tpu.dynamic_rotate %249 by %c241_i32_122 dim 1 : vector<2x256xf32>, i32 -> vector<2x256xf32>
    %1282 = vector.extract_strided_slice %23 {offsets = [48, 0], sizes = [8, 2], strides = [1, 1]} : vector<72x2xf32> to vector<8x2xf32>
    %1283 = vector.extract_strided_slice %1282 {offsets = [0, 0], sizes = [8, 1], strides = [1, 1]} : vector<8x2xf32> to vector<8x1xf32>
    %1284 = vector.extract_strided_slice %1281 {offsets = [0, 0], sizes = [1, 256], strides = [1, 1]} : vector<2x256xf32> to vector<1x256xf32>
    %1285 = vector.broadcast %1283 : vector<8x1xf32> to vector<8x256xf32>
    %1286 = vector.broadcast %1284 : vector<1x256xf32> to vector<8x256xf32>
    %1287 = arith.mulf %1285, %1286 : vector<8x256xf32>
    %1288 = vector.extract_strided_slice %1282 {offsets = [0, 1], sizes = [8, 1], strides = [1, 1]} : vector<8x2xf32> to vector<8x1xf32>
    %1289 = vector.extract_strided_slice %1281 {offsets = [1, 0], sizes = [1, 256], strides = [1, 1]} : vector<2x256xf32> to vector<1x256xf32>
    %1290 = vector.broadcast %1288 : vector<8x1xf32> to vector<8x256xf32>
    %1291 = vector.broadcast %1289 : vector<1x256xf32> to vector<8x256xf32>
    %1292 = arith.mulf %1290, %1291 : vector<8x256xf32>
    %1293 = arith.addf %1287, %1292 : vector<8x256xf32>
    %c241_i32_123 = arith.constant 241 : i32
    %1294 = tpu.dynamic_rotate %527 by %c241_i32_123 dim 1 : vector<2x256xf32>, i32 -> vector<2x256xf32>
    %1295 = vector.extract_strided_slice %24 {offsets = [48, 0], sizes = [8, 2], strides = [1, 1]} : vector<72x2xf32> to vector<8x2xf32>
    %1296 = vector.extract_strided_slice %1295 {offsets = [0, 0], sizes = [8, 1], strides = [1, 1]} : vector<8x2xf32> to vector<8x1xf32>
    %1297 = vector.extract_strided_slice %1294 {offsets = [0, 0], sizes = [1, 256], strides = [1, 1]} : vector<2x256xf32> to vector<1x256xf32>
    %1298 = vector.broadcast %1296 : vector<8x1xf32> to vector<8x256xf32>
    %1299 = vector.broadcast %1297 : vector<1x256xf32> to vector<8x256xf32>
    %1300 = arith.mulf %1298, %1299 : vector<8x256xf32>
    %1301 = vector.extract_strided_slice %1295 {offsets = [0, 1], sizes = [8, 1], strides = [1, 1]} : vector<8x2xf32> to vector<8x1xf32>
    %1302 = vector.extract_strided_slice %1294 {offsets = [1, 0], sizes = [1, 256], strides = [1, 1]} : vector<2x256xf32> to vector<1x256xf32>
    %1303 = vector.broadcast %1301 : vector<8x1xf32> to vector<8x256xf32>
    %1304 = vector.broadcast %1302 : vector<1x256xf32> to vector<8x256xf32>
    %1305 = arith.mulf %1303, %1304 : vector<8x256xf32>
    %1306 = arith.addf %1300, %1305 : vector<8x256xf32>
    %1307 = arith.addf %1293, %1306 : vector<8x256xf32>
    %c241_i32_124 = arith.constant 241 : i32
    %1308 = tpu.dynamic_rotate %805 by %c241_i32_124 dim 1 : vector<2x256xf32>, i32 -> vector<2x256xf32>
    %1309 = vector.extract_strided_slice %25 {offsets = [48, 0], sizes = [8, 2], strides = [1, 1]} : vector<72x2xf32> to vector<8x2xf32>
    %1310 = vector.extract_strided_slice %1309 {offsets = [0, 0], sizes = [8, 1], strides = [1, 1]} : vector<8x2xf32> to vector<8x1xf32>
    %1311 = vector.extract_strided_slice %1308 {offsets = [0, 0], sizes = [1, 256], strides = [1, 1]} : vector<2x256xf32> to vector<1x256xf32>
    %1312 = vector.broadcast %1310 : vector<8x1xf32> to vector<8x256xf32>
    %1313 = vector.broadcast %1311 : vector<1x256xf32> to vector<8x256xf32>
    %1314 = arith.mulf %1312, %1313 : vector<8x256xf32>
    %1315 = vector.extract_strided_slice %1309 {offsets = [0, 1], sizes = [8, 1], strides = [1, 1]} : vector<8x2xf32> to vector<8x1xf32>
    %1316 = vector.extract_strided_slice %1308 {offsets = [1, 0], sizes = [1, 256], strides = [1, 1]} : vector<2x256xf32> to vector<1x256xf32>
    %1317 = vector.broadcast %1315 : vector<8x1xf32> to vector<8x256xf32>
    %1318 = vector.broadcast %1316 : vector<1x256xf32> to vector<8x256xf32>
    %1319 = arith.mulf %1317, %1318 : vector<8x256xf32>
    %1320 = arith.addf %1314, %1319 : vector<8x256xf32>
    %1321 = arith.addf %1307, %1320 : vector<8x256xf32>
    %c241_i32_125 = arith.constant 241 : i32
    %1322 = tpu.dynamic_rotate %931 by %c241_i32_125 dim 1 : vector<2x256xf32>, i32 -> vector<2x256xf32>
    %1323 = vector.extract_strided_slice %26 {offsets = [48, 0], sizes = [8, 2], strides = [1, 1]} : vector<72x2xf32> to vector<8x2xf32>
    %1324 = vector.extract_strided_slice %1323 {offsets = [0, 0], sizes = [8, 1], strides = [1, 1]} : vector<8x2xf32> to vector<8x1xf32>
    %1325 = vector.extract_strided_slice %1322 {offsets = [0, 0], sizes = [1, 256], strides = [1, 1]} : vector<2x256xf32> to vector<1x256xf32>
    %1326 = vector.broadcast %1324 : vector<8x1xf32> to vector<8x256xf32>
    %1327 = vector.broadcast %1325 : vector<1x256xf32> to vector<8x256xf32>
    %1328 = arith.mulf %1326, %1327 : vector<8x256xf32>
    %1329 = vector.extract_strided_slice %1323 {offsets = [0, 1], sizes = [8, 1], strides = [1, 1]} : vector<8x2xf32> to vector<8x1xf32>
    %1330 = vector.extract_strided_slice %1322 {offsets = [1, 0], sizes = [1, 256], strides = [1, 1]} : vector<2x256xf32> to vector<1x256xf32>
    %1331 = vector.broadcast %1329 : vector<8x1xf32> to vector<8x256xf32>
    %1332 = vector.broadcast %1330 : vector<1x256xf32> to vector<8x256xf32>
    %1333 = arith.mulf %1331, %1332 : vector<8x256xf32>
    %1334 = arith.addf %1328, %1333 : vector<8x256xf32>
    %1335 = arith.addf %1321, %1334 : vector<8x256xf32>
    %1336 = vector.extract_strided_slice %0 {offsets = [6, 0], sizes = [1, 256], strides = [1, 1]} : vector<9x256xf32> to vector<1x256xf32>
    %1337 = vector.broadcast %1336 : vector<1x256xf32> to vector<8x256xf32>
    %1338 = arith.mulf %1335, %1337 : vector<8x256xf32>
    %1339 = arith.addf %1280, %1338 : vector<8x256xf32>
    %c240_i32_126 = arith.constant 240 : i32
    %1340 = tpu.dynamic_rotate %249 by %c240_i32_126 dim 1 : vector<2x256xf32>, i32 -> vector<2x256xf32>
    %1341 = vector.extract_strided_slice %23 {offsets = [56, 0], sizes = [8, 2], strides = [1, 1]} : vector<72x2xf32> to vector<8x2xf32>
    %1342 = vector.extract_strided_slice %1341 {offsets = [0, 0], sizes = [8, 1], strides = [1, 1]} : vector<8x2xf32> to vector<8x1xf32>
    %1343 = vector.extract_strided_slice %1340 {offsets = [0, 0], sizes = [1, 256], strides = [1, 1]} : vector<2x256xf32> to vector<1x256xf32>
    %1344 = vector.broadcast %1342 : vector<8x1xf32> to vector<8x256xf32>
    %1345 = vector.broadcast %1343 : vector<1x256xf32> to vector<8x256xf32>
    %1346 = arith.mulf %1344, %1345 : vector<8x256xf32>
    %1347 = vector.extract_strided_slice %1341 {offsets = [0, 1], sizes = [8, 1], strides = [1, 1]} : vector<8x2xf32> to vector<8x1xf32>
    %1348 = vector.extract_strided_slice %1340 {offsets = [1, 0], sizes = [1, 256], strides = [1, 1]} : vector<2x256xf32> to vector<1x256xf32>
    %1349 = vector.broadcast %1347 : vector<8x1xf32> to vector<8x256xf32>
    %1350 = vector.broadcast %1348 : vector<1x256xf32> to vector<8x256xf32>
    %1351 = arith.mulf %1349, %1350 : vector<8x256xf32>
    %1352 = arith.addf %1346, %1351 : vector<8x256xf32>
    %c240_i32_127 = arith.constant 240 : i32
    %1353 = tpu.dynamic_rotate %527 by %c240_i32_127 dim 1 : vector<2x256xf32>, i32 -> vector<2x256xf32>
    %1354 = vector.extract_strided_slice %24 {offsets = [56, 0], sizes = [8, 2], strides = [1, 1]} : vector<72x2xf32> to vector<8x2xf32>
    %1355 = vector.extract_strided_slice %1354 {offsets = [0, 0], sizes = [8, 1], strides = [1, 1]} : vector<8x2xf32> to vector<8x1xf32>
    %1356 = vector.extract_strided_slice %1353 {offsets = [0, 0], sizes = [1, 256], strides = [1, 1]} : vector<2x256xf32> to vector<1x256xf32>
    %1357 = vector.broadcast %1355 : vector<8x1xf32> to vector<8x256xf32>
    %1358 = vector.broadcast %1356 : vector<1x256xf32> to vector<8x256xf32>
    %1359 = arith.mulf %1357, %1358 : vector<8x256xf32>
    %1360 = vector.extract_strided_slice %1354 {offsets = [0, 1], sizes = [8, 1], strides = [1, 1]} : vector<8x2xf32> to vector<8x1xf32>
    %1361 = vector.extract_strided_slice %1353 {offsets = [1, 0], sizes = [1, 256], strides = [1, 1]} : vector<2x256xf32> to vector<1x256xf32>
    %1362 = vector.broadcast %1360 : vector<8x1xf32> to vector<8x256xf32>
    %1363 = vector.broadcast %1361 : vector<1x256xf32> to vector<8x256xf32>
    %1364 = arith.mulf %1362, %1363 : vector<8x256xf32>
    %1365 = arith.addf %1359, %1364 : vector<8x256xf32>
    %1366 = arith.addf %1352, %1365 : vector<8x256xf32>
    %c240_i32_128 = arith.constant 240 : i32
    %1367 = tpu.dynamic_rotate %805 by %c240_i32_128 dim 1 : vector<2x256xf32>, i32 -> vector<2x256xf32>
    %1368 = vector.extract_strided_slice %25 {offsets = [56, 0], sizes = [8, 2], strides = [1, 1]} : vector<72x2xf32> to vector<8x2xf32>
    %1369 = vector.extract_strided_slice %1368 {offsets = [0, 0], sizes = [8, 1], strides = [1, 1]} : vector<8x2xf32> to vector<8x1xf32>
    %1370 = vector.extract_strided_slice %1367 {offsets = [0, 0], sizes = [1, 256], strides = [1, 1]} : vector<2x256xf32> to vector<1x256xf32>
    %1371 = vector.broadcast %1369 : vector<8x1xf32> to vector<8x256xf32>
    %1372 = vector.broadcast %1370 : vector<1x256xf32> to vector<8x256xf32>
    %1373 = arith.mulf %1371, %1372 : vector<8x256xf32>
    %1374 = vector.extract_strided_slice %1368 {offsets = [0, 1], sizes = [8, 1], strides = [1, 1]} : vector<8x2xf32> to vector<8x1xf32>
    %1375 = vector.extract_strided_slice %1367 {offsets = [1, 0], sizes = [1, 256], strides = [1, 1]} : vector<2x256xf32> to vector<1x256xf32>
    %1376 = vector.broadcast %1374 : vector<8x1xf32> to vector<8x256xf32>
    %1377 = vector.broadcast %1375 : vector<1x256xf32> to vector<8x256xf32>
    %1378 = arith.mulf %1376, %1377 : vector<8x256xf32>
    %1379 = arith.addf %1373, %1378 : vector<8x256xf32>
    %1380 = arith.addf %1366, %1379 : vector<8x256xf32>
    %c240_i32_129 = arith.constant 240 : i32
    %1381 = tpu.dynamic_rotate %931 by %c240_i32_129 dim 1 : vector<2x256xf32>, i32 -> vector<2x256xf32>
    %1382 = vector.extract_strided_slice %26 {offsets = [56, 0], sizes = [8, 2], strides = [1, 1]} : vector<72x2xf32> to vector<8x2xf32>
    %1383 = vector.extract_strided_slice %1382 {offsets = [0, 0], sizes = [8, 1], strides = [1, 1]} : vector<8x2xf32> to vector<8x1xf32>
    %1384 = vector.extract_strided_slice %1381 {offsets = [0, 0], sizes = [1, 256], strides = [1, 1]} : vector<2x256xf32> to vector<1x256xf32>
    %1385 = vector.broadcast %1383 : vector<8x1xf32> to vector<8x256xf32>
    %1386 = vector.broadcast %1384 : vector<1x256xf32> to vector<8x256xf32>
    %1387 = arith.mulf %1385, %1386 : vector<8x256xf32>
    %1388 = vector.extract_strided_slice %1382 {offsets = [0, 1], sizes = [8, 1], strides = [1, 1]} : vector<8x2xf32> to vector<8x1xf32>
    %1389 = vector.extract_strided_slice %1381 {offsets = [1, 0], sizes = [1, 256], strides = [1, 1]} : vector<2x256xf32> to vector<1x256xf32>
    %1390 = vector.broadcast %1388 : vector<8x1xf32> to vector<8x256xf32>
    %1391 = vector.broadcast %1389 : vector<1x256xf32> to vector<8x256xf32>
    %1392 = arith.mulf %1390, %1391 : vector<8x256xf32>
    %1393 = arith.addf %1387, %1392 : vector<8x256xf32>
    %1394 = arith.addf %1380, %1393 : vector<8x256xf32>
    %1395 = vector.extract_strided_slice %0 {offsets = [7, 0], sizes = [1, 256], strides = [1, 1]} : vector<9x256xf32> to vector<1x256xf32>
    %1396 = vector.broadcast %1395 : vector<1x256xf32> to vector<8x256xf32>
    %1397 = arith.mulf %1394, %1396 : vector<8x256xf32>
    %1398 = arith.addf %1339, %1397 : vector<8x256xf32>
    %c239_i32_130 = arith.constant 239 : i32
    %1399 = tpu.dynamic_rotate %249 by %c239_i32_130 dim 1 : vector<2x256xf32>, i32 -> vector<2x256xf32>
    %1400 = vector.extract_strided_slice %23 {offsets = [64, 0], sizes = [8, 2], strides = [1, 1]} : vector<72x2xf32> to vector<8x2xf32>
    %1401 = vector.extract_strided_slice %1400 {offsets = [0, 0], sizes = [8, 1], strides = [1, 1]} : vector<8x2xf32> to vector<8x1xf32>
    %1402 = vector.extract_strided_slice %1399 {offsets = [0, 0], sizes = [1, 256], strides = [1, 1]} : vector<2x256xf32> to vector<1x256xf32>
    %1403 = vector.broadcast %1401 : vector<8x1xf32> to vector<8x256xf32>
    %1404 = vector.broadcast %1402 : vector<1x256xf32> to vector<8x256xf32>
    %1405 = arith.mulf %1403, %1404 : vector<8x256xf32>
    %1406 = vector.extract_strided_slice %1400 {offsets = [0, 1], sizes = [8, 1], strides = [1, 1]} : vector<8x2xf32> to vector<8x1xf32>
    %1407 = vector.extract_strided_slice %1399 {offsets = [1, 0], sizes = [1, 256], strides = [1, 1]} : vector<2x256xf32> to vector<1x256xf32>
    %1408 = vector.broadcast %1406 : vector<8x1xf32> to vector<8x256xf32>
    %1409 = vector.broadcast %1407 : vector<1x256xf32> to vector<8x256xf32>
    %1410 = arith.mulf %1408, %1409 : vector<8x256xf32>
    %1411 = arith.addf %1405, %1410 : vector<8x256xf32>
    %c239_i32_131 = arith.constant 239 : i32
    %1412 = tpu.dynamic_rotate %527 by %c239_i32_131 dim 1 : vector<2x256xf32>, i32 -> vector<2x256xf32>
    %1413 = vector.extract_strided_slice %24 {offsets = [64, 0], sizes = [8, 2], strides = [1, 1]} : vector<72x2xf32> to vector<8x2xf32>
    %1414 = vector.extract_strided_slice %1413 {offsets = [0, 0], sizes = [8, 1], strides = [1, 1]} : vector<8x2xf32> to vector<8x1xf32>
    %1415 = vector.extract_strided_slice %1412 {offsets = [0, 0], sizes = [1, 256], strides = [1, 1]} : vector<2x256xf32> to vector<1x256xf32>
    %1416 = vector.broadcast %1414 : vector<8x1xf32> to vector<8x256xf32>
    %1417 = vector.broadcast %1415 : vector<1x256xf32> to vector<8x256xf32>
    %1418 = arith.mulf %1416, %1417 : vector<8x256xf32>
    %1419 = vector.extract_strided_slice %1413 {offsets = [0, 1], sizes = [8, 1], strides = [1, 1]} : vector<8x2xf32> to vector<8x1xf32>
    %1420 = vector.extract_strided_slice %1412 {offsets = [1, 0], sizes = [1, 256], strides = [1, 1]} : vector<2x256xf32> to vector<1x256xf32>
    %1421 = vector.broadcast %1419 : vector<8x1xf32> to vector<8x256xf32>
    %1422 = vector.broadcast %1420 : vector<1x256xf32> to vector<8x256xf32>
    %1423 = arith.mulf %1421, %1422 : vector<8x256xf32>
    %1424 = arith.addf %1418, %1423 : vector<8x256xf32>
    %1425 = arith.addf %1411, %1424 : vector<8x256xf32>
    %c239_i32_132 = arith.constant 239 : i32
    %1426 = tpu.dynamic_rotate %805 by %c239_i32_132 dim 1 : vector<2x256xf32>, i32 -> vector<2x256xf32>
    %1427 = vector.extract_strided_slice %25 {offsets = [64, 0], sizes = [8, 2], strides = [1, 1]} : vector<72x2xf32> to vector<8x2xf32>
    %1428 = vector.extract_strided_slice %1427 {offsets = [0, 0], sizes = [8, 1], strides = [1, 1]} : vector<8x2xf32> to vector<8x1xf32>
    %1429 = vector.extract_strided_slice %1426 {offsets = [0, 0], sizes = [1, 256], strides = [1, 1]} : vector<2x256xf32> to vector<1x256xf32>
    %1430 = vector.broadcast %1428 : vector<8x1xf32> to vector<8x256xf32>
    %1431 = vector.broadcast %1429 : vector<1x256xf32> to vector<8x256xf32>
    %1432 = arith.mulf %1430, %1431 : vector<8x256xf32>
    %1433 = vector.extract_strided_slice %1427 {offsets = [0, 1], sizes = [8, 1], strides = [1, 1]} : vector<8x2xf32> to vector<8x1xf32>
    %1434 = vector.extract_strided_slice %1426 {offsets = [1, 0], sizes = [1, 256], strides = [1, 1]} : vector<2x256xf32> to vector<1x256xf32>
    %1435 = vector.broadcast %1433 : vector<8x1xf32> to vector<8x256xf32>
    %1436 = vector.broadcast %1434 : vector<1x256xf32> to vector<8x256xf32>
    %1437 = arith.mulf %1435, %1436 : vector<8x256xf32>
    %1438 = arith.addf %1432, %1437 : vector<8x256xf32>
    %1439 = arith.addf %1425, %1438 : vector<8x256xf32>
    %c239_i32_133 = arith.constant 239 : i32
    %1440 = tpu.dynamic_rotate %931 by %c239_i32_133 dim 1 : vector<2x256xf32>, i32 -> vector<2x256xf32>
    %1441 = vector.extract_strided_slice %26 {offsets = [64, 0], sizes = [8, 2], strides = [1, 1]} : vector<72x2xf32> to vector<8x2xf32>
    %1442 = vector.extract_strided_slice %1441 {offsets = [0, 0], sizes = [8, 1], strides = [1, 1]} : vector<8x2xf32> to vector<8x1xf32>
    %1443 = vector.extract_strided_slice %1440 {offsets = [0, 0], sizes = [1, 256], strides = [1, 1]} : vector<2x256xf32> to vector<1x256xf32>
    %1444 = vector.broadcast %1442 : vector<8x1xf32> to vector<8x256xf32>
    %1445 = vector.broadcast %1443 : vector<1x256xf32> to vector<8x256xf32>
    %1446 = arith.mulf %1444, %1445 : vector<8x256xf32>
    %1447 = vector.extract_strided_slice %1441 {offsets = [0, 1], sizes = [8, 1], strides = [1, 1]} : vector<8x2xf32> to vector<8x1xf32>
    %1448 = vector.extract_strided_slice %1440 {offsets = [1, 0], sizes = [1, 256], strides = [1, 1]} : vector<2x256xf32> to vector<1x256xf32>
    %1449 = vector.broadcast %1447 : vector<8x1xf32> to vector<8x256xf32>
    %1450 = vector.broadcast %1448 : vector<1x256xf32> to vector<8x256xf32>
    %1451 = arith.mulf %1449, %1450 : vector<8x256xf32>
    %1452 = arith.addf %1446, %1451 : vector<8x256xf32>
    %1453 = arith.addf %1439, %1452 : vector<8x256xf32>
    %1454 = vector.extract_strided_slice %0 {offsets = [8, 0], sizes = [1, 256], strides = [1, 1]} : vector<9x256xf32> to vector<1x256xf32>
    %1455 = vector.broadcast %1454 : vector<1x256xf32> to vector<8x256xf32>
    %1456 = arith.mulf %1453, %1455 : vector<8x256xf32>
    %1457 = arith.addf %1398, %1456 : vector<8x256xf32>
    %1458 = vector.broadcast %27 : vector<8x1xf32> to vector<8x256xf32>
    %1459 = arith.mulf %1457, %1458 : vector<8x256xf32>
    %1460 = vector.broadcast %28 : vector<8x1xf32> to vector<8x256xf32>
    %1461 = arith.addf %1459, %1460 : vector<8x256xf32>
    %cst_134 = arith.constant 5.000000e-01 : f32
    %1462 = vector.broadcast %cst_134 : f32 to vector<8x256xf32>
    %1463 = arith.mulf %1462, %1461 : vector<8x256xf32>
    %cst_135 = arith.constant 0.707106769 : f32
    %1464 = vector.broadcast %cst_135 : f32 to vector<8x256xf32>
    %1465 = arith.mulf %1461, %1464 : vector<8x256xf32>
    %1466 = math.absf %1465 : vector<8x256xf32>
    %cst_136 = arith.constant 0.327591091 : f32
    %1467 = vector.broadcast %cst_136 : f32 to vector<8x256xf32>
    %1468 = arith.mulf %1467, %1466 : vector<8x256xf32>
    %cst_137 = arith.constant 1.000000e+00 : f32
    %1469 = vector.broadcast %cst_137 : f32 to vector<8x256xf32>
    %1470 = arith.addf %1469, %1468 : vector<8x256xf32>
    %cst_138 = arith.constant 1.000000e+00 : f32
    %1471 = vector.broadcast %cst_138 : f32 to vector<8x256xf32>
    %1472 = arith.divf %1471, %1470 : vector<8x256xf32>
    %cst_139 = arith.constant 1.06140542 : f32
    %1473 = vector.broadcast %cst_139 : f32 to vector<8x256xf32>
    %1474 = arith.mulf %1473, %1472 : vector<8x256xf32>
    %cst_140 = arith.constant -1.45315206 : f32
    %1475 = vector.broadcast %cst_140 : f32 to vector<8x256xf32>
    %1476 = arith.addf %1474, %1475 : vector<8x256xf32>
    %1477 = arith.mulf %1476, %1472 : vector<8x256xf32>
    %cst_141 = arith.constant 1.42141378 : f32
    %1478 = vector.broadcast %cst_141 : f32 to vector<8x256xf32>
    %1479 = arith.addf %1477, %1478 : vector<8x256xf32>
    %1480 = arith.mulf %1479, %1472 : vector<8x256xf32>
    %cst_142 = arith.constant -0.284496725 : f32
    %1481 = vector.broadcast %cst_142 : f32 to vector<8x256xf32>
    %1482 = arith.addf %1480, %1481 : vector<8x256xf32>
    %1483 = arith.mulf %1482, %1472 : vector<8x256xf32>
    %cst_143 = arith.constant 0.254829586 : f32
    %1484 = vector.broadcast %cst_143 : f32 to vector<8x256xf32>
    %1485 = arith.addf %1483, %1484 : vector<8x256xf32>
    %1486 = arith.mulf %1485, %1472 : vector<8x256xf32>
    %cst_144 = arith.constant 0.000000e+00 : f32
    %1487 = vector.broadcast %cst_144 : f32 to vector<8x256xf32>
    %1488 = arith.subf %1487, %1466 : vector<8x256xf32>
    %1489 = arith.mulf %1488, %1466 : vector<8x256xf32>
    %1490 = math.exp %1489 : vector<8x256xf32>
    %1491 = arith.mulf %1486, %1490 : vector<8x256xf32>
    %cst_145 = arith.constant 1.000000e+00 : f32
    %1492 = vector.broadcast %cst_145 : f32 to vector<8x256xf32>
    %1493 = arith.subf %1492, %1491 : vector<8x256xf32>
    %cst_146 = arith.constant 0.000000e+00 : f32
    %1494 = vector.broadcast %cst_146 : f32 to vector<8x256xf32>
    %1495 = arith.cmpf oge, %1465, %1494 : vector<8x256xf32>
    %cst_147 = arith.constant 0.000000e+00 : f32
    %1496 = vector.broadcast %cst_147 : f32 to vector<8x256xf32>
    %1497 = arith.subf %1496, %1493 : vector<8x256xf32>
    %1498 = arith.select %1495, %1493, %1497 : vector<8x256xi1>, vector<8x256xf32>
    %cst_148 = arith.constant 1.000000e+00 : f32
    %1499 = vector.broadcast %cst_148 : f32 to vector<8x256xf32>
    %1500 = arith.addf %1499, %1498 : vector<8x256xf32>
    %1501 = arith.mulf %1463, %1500 : vector<8x256xf32>
    %cst_149 = arith.constant dense<0.000000e+00> : vector<16x256xf32>
    %1502 = tpu.matmul %29, %45, %cst_149 {dimension_numbers = #tpu.dot_dimension_numbers<[1], [0], [0], [1], [0, 0, 1, 1], [], []>} : vector<16x16xf32>, vector<16x256xf32>, vector<16x256xf32> -> vector<16x256xf32>
    %cst_150 = arith.constant dense<0.000000e+00> : vector<16x256xf32>
    %1503 = tpu.matmul %30, %1501, %cst_150 {dimension_numbers = #tpu.dot_dimension_numbers<[1], [0], [0], [1], [0, 0, 1, 1], [], []>} : vector<16x8xf32>, vector<8x256xf32>, vector<16x256xf32> -> vector<16x256xf32>
    %1504 = arith.addf %1502, %1503 : vector<16x256xf32>
    %1505 = vector.broadcast %31 : vector<16x1xf32> to vector<16x256xf32>
    %1506 = arith.mulf %1504, %1505 : vector<16x256xf32>
    %1507 = vector.broadcast %32 : vector<16x1xf32> to vector<16x256xf32>
    %1508 = arith.addf %1506, %1507 : vector<16x256xf32>
    %cst_151 = arith.constant 0.000000e+00 : f32
    %1509 = vector.broadcast %cst_151 : f32 to vector<16x256xf32>
    %1510 = arith.subf %1509, %1508 : vector<16x256xf32>
    %1511 = math.exp %1510 : vector<16x256xf32>
    %cst_152 = arith.constant 1.000000e+00 : f32
    %1512 = vector.broadcast %cst_152 : f32 to vector<16x256xf32>
    %1513 = arith.addf %1512, %1511 : vector<16x256xf32>
    %1514 = tpu.reciprocal %1513 {approx = true} : vector<16x256xf32> -> vector<16x256xf32>
    %1515 = arith.mulf %1508, %1514 : vector<16x256xf32>
    %c0_153 = arith.constant 0 : index
    %c0_154 = arith.constant 0 : index
    %1516 = vector.load %arg35[%c0_153, %c0_154] : memref<16x256xf32, #tpu.memory_space<vmem>>, vector<16x256xf32>
    tpu.vector_store %arg35[%c0_153, %c0_154], %1515 {strides = array<i32>} : memref<16x256xf32, #tpu.memory_space<vmem>>, vector<16x256xf32>,
    return
  }
  func.func @transform_0(%arg0: i32) -> (i32, i32) {
    %c0_i32 = arith.constant 0 : i32
    %c0_i32_0 = arith.constant 0 : i32
    return %c0_i32, %arg0 : i32, i32
  }
  func.func @transform_1(%arg0: i32) -> (i32, i32) {
    %c0_i32 = arith.constant 0 : i32
    %c0_i32_0 = arith.constant 0 : i32
    %c0_i32_1 = arith.constant 0 : i32
    return %c0_i32, %c0_i32_0 : i32, i32
  }
  func.func @transform_2(%arg0: i32) -> (i32, i32) {
    %c0_i32 = arith.constant 0 : i32
    %c0_i32_0 = arith.constant 0 : i32
    %c0_i32_1 = arith.constant 0 : i32
    return %c0_i32, %c0_i32_0 : i32, i32
  }
  func.func @transform_3(%arg0: i32) -> (i32, i32) {
    %c0_i32 = arith.constant 0 : i32
    %c0_i32_0 = arith.constant 0 : i32
    %c0_i32_1 = arith.constant 0 : i32
    return %c0_i32, %c0_i32_0 : i32, i32
  }
  func.func @transform_4(%arg0: i32) -> (i32, i32) {
    %c0_i32 = arith.constant 0 : i32
    %c0_i32_0 = arith.constant 0 : i32
    %c0_i32_1 = arith.constant 0 : i32
    return %c0_i32, %c0_i32_0 : i32, i32
  }
  func.func @transform_5(%arg0: i32) -> (i32, i32) {
    %c0_i32 = arith.constant 0 : i32
    %c0_i32_0 = arith.constant 0 : i32
    %c0_i32_1 = arith.constant 0 : i32
    return %c0_i32, %c0_i32_0 : i32, i32
  }
  func.func @transform_6(%arg0: i32) -> (i32, i32) {
    %c0_i32 = arith.constant 0 : i32
    %c0_i32_0 = arith.constant 0 : i32
    %c0_i32_1 = arith.constant 0 : i32
    return %c0_i32, %c0_i32_0 : i32, i32
  }
  func.func @transform_7(%arg0: i32) -> (i32, i32) {
    %c0_i32 = arith.constant 0 : i32
    %c0_i32_0 = arith.constant 0 : i32
    %c0_i32_1 = arith.constant 0 : i32
    return %c0_i32, %c0_i32_0 : i32, i32
  }
  func.func @transform_8(%arg0: i32) -> (i32, i32) {
    %c0_i32 = arith.constant 0 : i32
    %c0_i32_0 = arith.constant 0 : i32
    %c0_i32_1 = arith.constant 0 : i32
    return %c0_i32, %c0_i32_0 : i32, i32
  }
  func.func @transform_9(%arg0: i32) -> (i32, i32) {
    %c0_i32 = arith.constant 0 : i32
    %c0_i32_0 = arith.constant 0 : i32
    %c0_i32_1 = arith.constant 0 : i32
    return %c0_i32, %c0_i32_0 : i32, i32
  }
  func.func @transform_10(%arg0: i32) -> (i32, i32) {
    %c0_i32 = arith.constant 0 : i32
    %c0_i32_0 = arith.constant 0 : i32
    %c0_i32_1 = arith.constant 0 : i32
    return %c0_i32, %c0_i32_0 : i32, i32
  }
  func.func @transform_11(%arg0: i32) -> (i32, i32) {
    %c0_i32 = arith.constant 0 : i32
    %c0_i32_0 = arith.constant 0 : i32
    %c0_i32_1 = arith.constant 0 : i32
    return %c0_i32, %c0_i32_0 : i32, i32
  }
  func.func @transform_12(%arg0: i32) -> (i32, i32) {
    %c0_i32 = arith.constant 0 : i32
    %c0_i32_0 = arith.constant 0 : i32
    %c0_i32_1 = arith.constant 0 : i32
    return %c0_i32, %c0_i32_0 : i32, i32
  }
  func.func @transform_13(%arg0: i32) -> (i32, i32) {
    %c0_i32 = arith.constant 0 : i32
    %c0_i32_0 = arith.constant 0 : i32
    %c0_i32_1 = arith.constant 0 : i32
    return %c0_i32, %c0_i32_0 : i32, i32
  }
  func.func @transform_14(%arg0: i32) -> (i32, i32) {
    %c0_i32 = arith.constant 0 : i32
    %c0_i32_0 = arith.constant 0 : i32
    %c0_i32_1 = arith.constant 0 : i32
    return %c0_i32, %c0_i32_0 : i32, i32
  }
  func.func @transform_15(%arg0: i32) -> (i32, i32) {
    %c0_i32 = arith.constant 0 : i32
    %c0_i32_0 = arith.constant 0 : i32
    %c0_i32_1 = arith.constant 0 : i32
    return %c0_i32, %c0_i32_0 : i32, i32
  }
  func.func @transform_16(%arg0: i32) -> (i32, i32) {
    %c0_i32 = arith.constant 0 : i32
    %c0_i32_0 = arith.constant 0 : i32
    %c0_i32_1 = arith.constant 0 : i32
    return %c0_i32, %c0_i32_0 : i32, i32
  }
  func.func @transform_17(%arg0: i32) -> (i32, i32) {
    %c0_i32 = arith.constant 0 : i32
    %c0_i32_0 = arith.constant 0 : i32
    %c0_i32_1 = arith.constant 0 : i32
    return %c0_i32, %c0_i32_0 : i32, i32
  }
  func.func @transform_18(%arg0: i32) -> (i32, i32) {
    %c0_i32 = arith.constant 0 : i32
    %c0_i32_0 = arith.constant 0 : i32
    %c0_i32_1 = arith.constant 0 : i32
    return %c0_i32, %c0_i32_0 : i32, i32
  }
  func.func @transform_19(%arg0: i32) -> (i32, i32) {
    %c0_i32 = arith.constant 0 : i32
    %c0_i32_0 = arith.constant 0 : i32
    %c0_i32_1 = arith.constant 0 : i32
    return %c0_i32, %c0_i32_0 : i32, i32
  }
  func.func @transform_20(%arg0: i32) -> (i32, i32) {
    %c0_i32 = arith.constant 0 : i32
    %c0_i32_0 = arith.constant 0 : i32
    %c0_i32_1 = arith.constant 0 : i32
    return %c0_i32, %c0_i32_0 : i32, i32
  }
  func.func @transform_21(%arg0: i32) -> (i32, i32) {
    %c0_i32 = arith.constant 0 : i32
    %c0_i32_0 = arith.constant 0 : i32
    %c0_i32_1 = arith.constant 0 : i32
    return %c0_i32, %c0_i32_0 : i32, i32
  }
  func.func @transform_22(%arg0: i32) -> (i32, i32) {
    %c0_i32 = arith.constant 0 : i32
    %c0_i32_0 = arith.constant 0 : i32
    %c0_i32_1 = arith.constant 0 : i32
    return %c0_i32, %c0_i32_0 : i32, i32
  }
  func.func @transform_23(%arg0: i32) -> (i32, i32) {
    %c0_i32 = arith.constant 0 : i32
    %c0_i32_0 = arith.constant 0 : i32
    %c0_i32_1 = arith.constant 0 : i32
    return %c0_i32, %c0_i32_0 : i32, i32
  }
  func.func @transform_24(%arg0: i32) -> (i32, i32) {
    %c0_i32 = arith.constant 0 : i32
    %c0_i32_0 = arith.constant 0 : i32
    %c0_i32_1 = arith.constant 0 : i32
    return %c0_i32, %c0_i32_0 : i32, i32
  }
  func.func @transform_25(%arg0: i32) -> (i32, i32) {
    %c0_i32 = arith.constant 0 : i32
    %c0_i32_0 = arith.constant 0 : i32
    %c0_i32_1 = arith.constant 0 : i32
    return %c0_i32, %c0_i32_0 : i32, i32
  }
  func.func @transform_26(%arg0: i32) -> (i32, i32) {
    %c0_i32 = arith.constant 0 : i32
    %c0_i32_0 = arith.constant 0 : i32
    %c0_i32_1 = arith.constant 0 : i32
    return %c0_i32, %c0_i32_0 : i32, i32
  }
  func.func @transform_27(%arg0: i32) -> (i32, i32) {
    %c0_i32 = arith.constant 0 : i32
    %c0_i32_0 = arith.constant 0 : i32
    %c0_i32_1 = arith.constant 0 : i32
    return %c0_i32, %c0_i32_0 : i32, i32
  }
  func.func @transform_28(%arg0: i32) -> (i32, i32) {
    %c0_i32 = arith.constant 0 : i32
    %c0_i32_0 = arith.constant 0 : i32
    %c0_i32_1 = arith.constant 0 : i32
    return %c0_i32, %c0_i32_0 : i32, i32
  }
  func.func @transform_29(%arg0: i32) -> (i32, i32) {
    %c0_i32 = arith.constant 0 : i32
    %c0_i32_0 = arith.constant 0 : i32
    %c0_i32_1 = arith.constant 0 : i32
    return %c0_i32, %c0_i32_0 : i32, i32
  }
  func.func @transform_30(%arg0: i32) -> (i32, i32) {
    %c0_i32 = arith.constant 0 : i32
    %c0_i32_0 = arith.constant 0 : i32
    %c0_i32_1 = arith.constant 0 : i32
    return %c0_i32, %c0_i32_0 : i32, i32
  }
  func.func @transform_31(%arg0: i32) -> (i32, i32) {
    %c0_i32 = arith.constant 0 : i32
    %c0_i32_0 = arith.constant 0 : i32
    %c0_i32_1 = arith.constant 0 : i32
    return %c0_i32, %c0_i32_0 : i32, i32
  }
  func.func @transform_32(%arg0: i32) -> (i32, i32) {
    %c0_i32 = arith.constant 0 : i32
    %c0_i32_0 = arith.constant 0 : i32
    %c0_i32_1 = arith.constant 0 : i32
    return %c0_i32, %c0_i32_0 : i32, i32
  }
  func.func @transform_33(%arg0: i32) -> (i32, i32) {
    %c0_i32 = arith.constant 0 : i32
    %c0_i32_0 = arith.constant 0 : i32
    %c0_i32_1 = arith.constant 0 : i32
    return %c0_i32, %c0_i32_0 : i32, i32
  }
  func.func @transform_34(%arg0: i32) -> (i32, i32) {
    %c0_i32 = arith.constant 0 : i32
    %c0_i32_0 = arith.constant 0 : i32
    return %c0_i32, %arg0 : i32, i32
  }
}

</mosaic_0001>

<llo_original>
// kernel: _lambda_.1
$region0: #{_lambda_.1}
  #allocation0 [shape = 'u32[]', space=smem, size = 0x4, offset = 0x4, fixed_abs, tag = 'smem constant byte address 0x4 - core index']
  #allocation1 [shape = 'u32[144,128]{1,0:T(1,128)}', space=vmem, size = 0x12000, scoped, tag = 'internal scratch']
  #allocation2 [shape = 'f32[1,1]{1,0:T(1,128)S(1)}', space=vmem, size = 0x200, scoped, tag = 'scoped memory for _lambda_.1']
  %s0 = inlined_call_operand.smem [shape: u32[35], index: -1, kind: input, shape index: {}]
  %s1 = sld [smem:[%s0]]
  %s2 = scalar_lea.smem %s0, 1
  %s3 = sld [smem:[%s2]]
  %s4 = scalar_lea.smem %s0, 2
  %s5 = sld [smem:[%s4]]
  %s6 = scalar_lea.smem %s0, 3
  %s7 = sld [smem:[%s6]]
  %s8 = scalar_lea.smem %s0, 4
  %s9 = sld [smem:[%s8]]
  %s10 = scalar_lea.smem %s0, 5
  %s11 = sld [smem:[%s10]]
  %s12 = scalar_lea.smem %s0, 6
  %s13 = sld [smem:[%s12]]
  %s14 = scalar_lea.smem %s0, 7
  %s15 = sld [smem:[%s14]]
  %s16 = scalar_lea.smem %s0, 8
  %s17 = sld [smem:[%s16]]
  %s18 = scalar_lea.smem %s0, 9
  %s19 = sld [smem:[%s18]]
  %s20 = scalar_lea.smem %s0, 10
  %s21 = sld [smem:[%s20]]
  %s22 = scalar_lea.smem %s0, 11
  %s23 = sld [smem:[%s22]]
  %s24 = scalar_lea.smem %s0, 12
  %s25 = sld [smem:[%s24]]
  %s26 = scalar_lea.smem %s0, 13
  %s27 = sld [smem:[%s26]]
  %s28 = scalar_lea.smem %s0, 14
  %s29 = sld [smem:[%s28]]
  %s30 = scalar_lea.smem %s0, 15
  %s31 = sld [smem:[%s30]]
  %s32 = scalar_lea.smem %s0, 16
  %s33 = sld [smem:[%s32]]
  %s34 = scalar_lea.smem %s0, 17
  %s35 = sld [smem:[%s34]]
  %s36 = scalar_lea.smem %s0, 18
  %s37 = sld [smem:[%s36]]
  %s38 = scalar_lea.smem %s0, 19
  %s39 = sld [smem:[%s38]]
  %s40 = scalar_lea.smem %s0, 20
  %s41 = sld [smem:[%s40]]
  %s42 = scalar_lea.smem %s0, 21
  %s43 = sld [smem:[%s42]]
  %s44 = scalar_lea.smem %s0, 22
  %s45 = sld [smem:[%s44]]
  %s46 = scalar_lea.smem %s0, 23
  %s47 = sld [smem:[%s46]]
  %s48 = scalar_lea.smem %s0, 24
  %s49 = sld [smem:[%s48]]
  %s50 = scalar_lea.smem %s0, 25
  %s51 = sld [smem:[%s50]]
  %s52 = scalar_lea.smem %s0, 26
  %s53 = sld [smem:[%s52]]
  %s54 = scalar_lea.smem %s0, 27
  %s55 = sld [smem:[%s54]]
  %s56 = scalar_lea.smem %s0, 28
  %s57 = sld [smem:[%s56]]
  %s58 = scalar_lea.smem %s0, 29
  %s59 = sld [smem:[%s58]]
  %s60 = scalar_lea.smem %s0, 30
  %s61 = sld [smem:[%s60]]
  %s62 = scalar_lea.smem %s0, 31
  %s63 = sld [smem:[%s62]]
  %s64 = scalar_lea.smem %s0, 32
  %s65 = sld [smem:[%s64]]
  %s66 = scalar_lea.smem %s0, 33
  %s67 = sld [smem:[%s66]]
  %s68 = scalar_lea.smem %s0, 34
  %s69 = sld [smem:[%s68]]
  %s70 = sld [smem:[#allocation0]]
  $region188: #{_lambda_.1} parent=0
    _
  %s72 = ssub.s32 1, %s70
  %s73 = scalar_select 0, %s72, %s70
  %v74 = vstv %s37
  %75 = vst [vmem:[#allocation2] sm:$0x1] %v74
  $region1: #{_lambda_.1} parent=0
    #allocation3 [shape = 'u8[32768]{0}', space=vmem, size = 0x8000, scoped, tag = 'output window, operand 0']
    loop: start=0, step=1, limit=4
    $region2: #{_lambda_.1} parent=1 // loop_pre_header
      _
    $region3: #{_lambda_.1} parent=1 // loop_header
      %s77 = sphi 0, %s81
      %p78 = scmp.ge.s32.totalorder %s77, 4
      %s87 = sphi 0, %s89
      %s90 = sphi 0, %s87
      %s91 = sphi 0, %s90
      %s107 = sphi 0, %s91
      %s111 = sphi 0, %s111
      %s113 = sphi 0, %s111
      %s114 = sphi 0, %s113
      %s128 = sphi 0, %s114
      %s132 = sphi 0, %s132
      %s134 = sphi 0, %s132
      %s135 = sphi 0, %s134
      %s149 = sphi 0, %s135
      %s153 = sphi 0, %s153
      %s155 = sphi 0, %s153
      %s156 = sphi 0, %s155
      %s170 = sphi 0, %s156
      %s174 = sphi 0, %s174
      %s176 = sphi 0, %s174
      %s177 = sphi 0, %s176
      %s191 = sphi 0, %s177
      %s195 = sphi 0, %s195
      %s197 = sphi 0, %s195
      %s198 = sphi 0, %s197
      %s212 = sphi 0, %s198
      %s216 = sphi 0, %s216
      %s218 = sphi 0, %s216
      %s219 = sphi 0, %s218
      %s233 = sphi 0, %s219
      %s237 = sphi 0, %s237
      %s239 = sphi 0, %s237
      %s240 = sphi 0, %s239
      %s254 = sphi 0, %s240
      %s258 = sphi 0, %s258
      %s260 = sphi 0, %s258
      %s261 = sphi 0, %s260
      %s275 = sphi 0, %s261
      %s279 = sphi 0, %s279
      %s281 = sphi 0, %s279
      %s282 = sphi 0, %s281
      %s296 = sphi 0, %s282
      %s300 = sphi 0, %s300
      %s302 = sphi 0, %s300
      %s303 = sphi 0, %s302
      %s317 = sphi 0, %s303
      %s321 = sphi 0, %s321
      %s323 = sphi 0, %s321
      %s324 = sphi 0, %s323
      %s338 = sphi 0, %s324
      %s342 = sphi 0, %s342
      %s344 = sphi 0, %s342
      %s345 = sphi 0, %s344
      %s359 = sphi 0, %s345
      %s363 = sphi 0, %s363
      %s365 = sphi 0, %s363
      %s366 = sphi 0, %s365
      %s380 = sphi 0, %s366
      %s384 = sphi 0, %s384
      %s386 = sphi 0, %s384
      %s387 = sphi 0, %s386
      %s401 = sphi 0, %s387
      %s405 = sphi 0, %s405
      %s407 = sphi 0, %s405
      %s408 = sphi 0, %s407
      %s422 = sphi 0, %s408
      %s426 = sphi 0, %s426
      %s428 = sphi 0, %s426
      %s429 = sphi 0, %s428
      %s443 = sphi 0, %s429
      %s447 = sphi 0, %s447
      %s449 = sphi 0, %s447
      %s450 = sphi 0, %s449
      %s464 = sphi 0, %s450
      %s468 = sphi 0, %s468
      %s470 = sphi 0, %s468
      %s471 = sphi 0, %s470
      %s485 = sphi 0, %s471
      %s489 = sphi 0, %s489
      %s491 = sphi 0, %s489
      %s492 = sphi 0, %s491
      %s506 = sphi 0, %s492
      %s510 = sphi 0, %s510
      %s512 = sphi 0, %s510
      %s513 = sphi 0, %s512
      %s527 = sphi 0, %s513
      %s531 = sphi 0, %s531
      %s533 = sphi 0, %s531
      %s534 = sphi 0, %s533
      %s548 = sphi 0, %s534
      %s552 = sphi 0, %s552
      %s554 = sphi 0, %s552
      %s555 = sphi 0, %s554
      %s569 = sphi 0, %s555
      %s573 = sphi 0, %s573
      %s575 = sphi 0, %s573
      %s576 = sphi 0, %s575
      %s590 = sphi 0, %s576
      %s594 = sphi 0, %s594
      %s596 = sphi 0, %s594
      %s597 = sphi 0, %s596
      %s611 = sphi 0, %s597
      %s615 = sphi 0, %s615
      %s617 = sphi 0, %s615
      %s618 = sphi 0, %s617
      %s632 = sphi 0, %s618
      %s636 = sphi 0, %s636
      %s638 = sphi 0, %s636
      %s639 = sphi 0, %s638
      %s653 = sphi 0, %s639
      %s657 = sphi 0, %s657
      %s659 = sphi 0, %s657
      %s660 = sphi 0, %s659
      %s674 = sphi 0, %s660
      %s678 = sphi 0, %s678
      %s680 = sphi 0, %s678
      %s681 = sphi 0, %s680
      %s695 = sphi 0, %s681
      %s699 = sphi 0, %s699
      %s701 = sphi 0, %s699
      %s702 = sphi 0, %s701
      %s716 = sphi 0, %s702
      %s720 = sphi 0, %s720
      %s722 = sphi 0, %s720
      %s723 = sphi 0, %s722
      %s737 = sphi 0, %s723
      %s741 = sphi 0, %s741
      %s743 = sphi 0, %s741
      %s744 = sphi 0, %s743
      %s758 = sphi 0, %s744
      %s762 = sphi 0, %s762
      %s764 = sphi 0, %s762
      %s765 = sphi 0, %s764
      %s779 = sphi 0, %s765
      %s783 = sphi 0, %s783
      %s785 = sphi 0, %s783
      %s786 = sphi 0, %s785
      %s800 = sphi 0, %s786
      %s806 = sphi 0, %s808
      %s809 = sphi 0, %s806
      %s810 = sphi 0, %s809
      %s826 = sphi 0, %s810
    $region4: #{_lambda_.1} parent=1 // loop_header_branch
      %80 = sbr.rel (%p78) target = $region8
    $region5: #{_lambda_.1} parent=1 // loop_body
      %s82 = ssub.s32 %s77, 1
      %s83 = ssub.s32 %s77, 2
      %s84 = sadd.s32 %s77, 1
      %s85 = ssub.s32 %s77, %s84
      %p86 = scmp.eq.s32.totalorder %s85, 0
      %s88 = sadd.s32 %s87, 1
      %s89 = scalar_select %p86, %s87, %s88
      %p92 = pneg %p86
      %p93 = scmp.eq.s32.totalorder %s77, 1
      %p94 = por %p92, %p93
      %p95 = scmp.ne.s32.totalorder %s87, %s90
      %p96 = scmp.eq.s32.totalorder %s77, 0
      %p97 = por %p95, %p96
      %p98 = scmp.ne.s32.totalorder %s87, %s90
      %p99 = scmp.eq.s32.totalorder %s82, 1
      %p100 = por %p98, %p99
      %p101 = scmp.ne.s32.totalorder %s90, %s91
      %p102 = scmp.eq.s32.totalorder %s82, 0
      %p103 = por %p101, %p102
      %p104 = scmp.ne.s32.totalorder %s90, %s91
      %p105 = scmp.eq.s32.totalorder %s83, 1
      %p106 = por %p104, %p105
      %p108 = scmp.ne.s32.totalorder %s91, %s107
      %p109 = scmp.eq.s32.totalorder %s83, 0
      %p110 = por %p108, %p109
      %s112 = sadd.s32 %s111, 1
      %p115 = scmp.eq.s32.totalorder %s77, 1
      %p116 = scmp.ne.s32.totalorder %s111, %s113
      %p117 = scmp.eq.s32.totalorder %s77, 0
      %p118 = por %p116, %p117
      %p119 = scmp.ne.s32.totalorder %s111, %s113
      %p120 = scmp.eq.s32.totalorder %s82, 1
      %p121 = por %p119, %p120
      %p122 = scmp.ne.s32.totalorder %s113, %s114
      %p123 = scmp.eq.s32.totalorder %s82, 0
      %p124 = por %p122, %p123
      %p125 = scmp.ne.s32.totalorder %s113, %s114
      %p126 = scmp.eq.s32.totalorder %s83, 1
      %p127 = por %p125, %p126
      %p129 = scmp.ne.s32.totalorder %s114, %s128
      %p130 = scmp.eq.s32.totalorder %s83, 0
      %p131 = por %p129, %p130
      %s133 = sadd.s32 %s132, 1
      %p136 = scmp.eq.s32.totalorder %s77, 1
      %p137 = scmp.ne.s32.totalorder %s132, %s134
      %p138 = scmp.eq.s32.totalorder %s77, 0
      %p139 = por %p137, %p138
      %p140 = scmp.ne.s32.totalorder %s132, %s134
      %p141 = scmp.eq.s32.totalorder %s82, 1
      %p142 = por %p140, %p141
      %p143 = scmp.ne.s32.totalorder %s134, %s135
      %p144 = scmp.eq.s32.totalorder %s82, 0
      %p145 = por %p143, %p144
      %p146 = scmp.ne.s32.totalorder %s134, %s135
      %p147 = scmp.eq.s32.totalorder %s83, 1
      %p148 = por %p146, %p147
      %p150 = scmp.ne.s32.totalorder %s135, %s149
      %p151 = scmp.eq.s32.totalorder %s83, 0
      %p152 = por %p150, %p151
      %s154 = sadd.s32 %s153, 1
      %p157 = scmp.eq.s32.totalorder %s77, 1
      %p158 = scmp.ne.s32.totalorder %s153, %s155
      %p159 = scmp.eq.s32.totalorder %s77, 0
      %p160 = por %p158, %p159
      %p161 = scmp.ne.s32.totalorder %s153, %s155
      %p162 = scmp.eq.s32.totalorder %s82, 1
      %p163 = por %p161, %p162
      %p164 = scmp.ne.s32.totalorder %s155, %s156
      %p165 = scmp.eq.s32.totalorder %s82, 0
      %p166 = por %p164, %p165
      %p167 = scmp.ne.s32.totalorder %s155, %s156
      %p168 = scmp.eq.s32.totalorder %s83, 1
      %p169 = por %p167, %p168
      %p171 = scmp.ne.s32.totalorder %s156, %s170
      %p172 = scmp.eq.s32.totalorder %s83, 0
      %p173 = por %p171, %p172
      %s175 = sadd.s32 %s174, 1
      %p178 = scmp.eq.s32.totalorder %s77, 1
      %p179 = scmp.ne.s32.totalorder %s174, %s176
      %p180 = scmp.eq.s32.totalorder %s77, 0
      %p181 = por %p179, %p180
      %p182 = scmp.ne.s32.totalorder %s174, %s176
      %p183 = scmp.eq.s32.totalorder %s82, 1
      %p184 = por %p182, %p183
      %p185 = scmp.ne.s32.totalorder %s176, %s177
      %p186 = scmp.eq.s32.totalorder %s82, 0
      %p187 = por %p185, %p186
      %p188 = scmp.ne.s32.totalorder %s176, %s177
      %p189 = scmp.eq.s32.totalorder %s83, 1
      %p190 = por %p188, %p189
      %p192 = scmp.ne.s32.totalorder %s177, %s191
      %p193 = scmp.eq.s32.totalorder %s83, 0
      %p194 = por %p192, %p193
      %s196 = sadd.s32 %s195, 1
      %p199 = scmp.eq.s32.totalorder %s77, 1
      %p200 = scmp.ne.s32.totalorder %s195, %s197
      %p201 = scmp.eq.s32.totalorder %s77, 0
      %p202 = por %p200, %p201
      %p203 = scmp.ne.s32.totalorder %s195, %s197
      %p204 = scmp.eq.s32.totalorder %s82, 1
      %p205 = por %p203, %p204
      %p206 = scmp.ne.s32.totalorder %s197, %s198
      %p207 = scmp.eq.s32.totalorder %s82, 0
      %p208 = por %p206, %p207
      %p209 = scmp.ne.s32.totalorder %s197, %s198
      %p210 = scmp.eq.s32.totalorder %s83, 1
      %p211 = por %p209, %p210
      %p213 = scmp.ne.s32.totalorder %s198, %s212
      %p214 = scmp.eq.s32.totalorder %s83, 0
      %p215 = por %p213, %p214
      %s217 = sadd.s32 %s216, 1
      %p220 = scmp.eq.s32.totalorder %s77, 1
      %p221 = scmp.ne.s32.totalorder %s216, %s218
      %p222 = scmp.eq.s32.totalorder %s77, 0
      %p223 = por %p221, %p222
      %p224 = scmp.ne.s32.totalorder %s216, %s218
      %p225 = scmp.eq.s32.totalorder %s82, 1
      %p226 = por %p224, %p225
      %p227 = scmp.ne.s32.totalorder %s218, %s219
      %p228 = scmp.eq.s32.totalorder %s82, 0
      %p229 = por %p227, %p228
      %p230 = scmp.ne.s32.totalorder %s218, %s219
      %p231 = scmp.eq.s32.totalorder %s83, 1
      %p232 = por %p230, %p231
      %p234 = scmp.ne.s32.totalorder %s219, %s233
      %p235 = scmp.eq.s32.totalorder %s83, 0
      %p236 = por %p234, %p235
      %s238 = sadd.s32 %s237, 1
      %p241 = scmp.eq.s32.totalorder %s77, 1
      %p242 = scmp.ne.s32.totalorder %s237, %s239
      %p243 = scmp.eq.s32.totalorder %s77, 0
      %p244 = por %p242, %p243
      %p245 = scmp.ne.s32.totalorder %s237, %s239
      %p246 = scmp.eq.s32.totalorder %s82, 1
      %p247 = por %p245, %p246
      %p248 = scmp.ne.s32.totalorder %s239, %s240
      %p249 = scmp.eq.s32.totalorder %s82, 0
      %p250 = por %p248, %p249
      %p251 = scmp.ne.s32.totalorder %s239, %s240
      %p252 = scmp.eq.s32.totalorder %s83, 1
      %p253 = por %p251, %p252
      %p255 = scmp.ne.s32.totalorder %s240, %s254
      %p256 = scmp.eq.s32.totalorder %s83, 0
      %p257 = por %p255, %p256
      %s259 = sadd.s32 %s258, 1
      %p262 = scmp.eq.s32.totalorder %s77, 1
      %p263 = scmp.ne.s32.totalorder %s258, %s260
      %p264 = scmp.eq.s32.totalorder %s77, 0
      %p265 = por %p263, %p264
      %p266 = scmp.ne.s32.totalorder %s258, %s260
      %p267 = scmp.eq.s32.totalorder %s82, 1
      %p268 = por %p266, %p267
      %p269 = scmp.ne.s32.totalorder %s260, %s261
      %p270 = scmp.eq.s32.totalorder %s82, 0
      %p271 = por %p269, %p270
      %p272 = scmp.ne.s32.totalorder %s260, %s261
      %p273 = scmp.eq.s32.totalorder %s83, 1
      %p274 = por %p272, %p273
      %p276 = scmp.ne.s32.totalorder %s261, %s275
      %p277 = scmp.eq.s32.totalorder %s83, 0
      %p278 = por %p276, %p277
      %s280 = sadd.s32 %s279, 1
      %p283 = scmp.eq.s32.totalorder %s77, 1
      %p284 = scmp.ne.s32.totalorder %s279, %s281
      %p285 = scmp.eq.s32.totalorder %s77, 0
      %p286 = por %p284, %p285
      %p287 = scmp.ne.s32.totalorder %s279, %s281
      %p288 = scmp.eq.s32.totalorder %s82, 1
      %p289 = por %p287, %p288
      %p290 = scmp.ne.s32.totalorder %s281, %s282
      %p291 = scmp.eq.s32.totalorder %s82, 0
      %p292 = por %p290, %p291
      %p293 = scmp.ne.s32.totalorder %s281, %s282
      %p294 = scmp.eq.s32.totalorder %s83, 1
      %p295 = por %p293, %p294
      %p297 = scmp.ne.s32.totalorder %s282, %s296
      %p298 = scmp.eq.s32.totalorder %s83, 0
      %p299 = por %p297, %p298
      %s301 = sadd.s32 %s300, 1
      %p304 = scmp.eq.s32.totalorder %s77, 1
      %p305 = scmp.ne.s32.totalorder %s300, %s302
      %p306 = scmp.eq.s32.totalorder %s77, 0
      %p307 = por %p305, %p306
      %p308 = scmp.ne.s32.totalorder %s300, %s302
      %p309 = scmp.eq.s32.totalorder %s82, 1
      %p310 = por %p308, %p309
      %p311 = scmp.ne.s32.totalorder %s302, %s303
      %p312 = scmp.eq.s32.totalorder %s82, 0
      %p313 = por %p311, %p312
      %p314 = scmp.ne.s32.totalorder %s302, %s303
      %p315 = scmp.eq.s32.totalorder %s83, 1
      %p316 = por %p314, %p315
      %p318 = scmp.ne.s32.totalorder %s303, %s317
      %p319 = scmp.eq.s32.totalorder %s83, 0
      %p320 = por %p318, %p319
      %s322 = sadd.s32 %s321, 1
      %p325 = scmp.eq.s32.totalorder %s77, 1
      %p326 = scmp.ne.s32.totalorder %s321, %s323
      %p327 = scmp.eq.s32.totalorder %s77, 0
      %p328 = por %p326, %p327
      %p329 = scmp.ne.s32.totalorder %s321, %s323
      %p330 = scmp.eq.s32.totalorder %s82, 1
      %p331 = por %p329, %p330
      %p332 = scmp.ne.s32.totalorder %s323, %s324
      %p333 = scmp.eq.s32.totalorder %s82, 0
      %p334 = por %p332, %p333
      %p335 = scmp.ne.s32.totalorder %s323, %s324
      %p336 = scmp.eq.s32.totalorder %s83, 1
      %p337 = por %p335, %p336
      %p339 = scmp.ne.s32.totalorder %s324, %s338
      %p340 = scmp.eq.s32.totalorder %s83, 0
      %p341 = por %p339, %p340
      %s343 = sadd.s32 %s342, 1
      %p346 = scmp.eq.s32.totalorder %s77, 1
      %p347 = scmp.ne.s32.totalorder %s342, %s344
      %p348 = scmp.eq.s32.totalorder %s77, 0
      %p349 = por %p347, %p348
      %p350 = scmp.ne.s32.totalorder %s342, %s344
      %p351 = scmp.eq.s32.totalorder %s82, 1
      %p352 = por %p350, %p351
      %p353 = scmp.ne.s32.totalorder %s344, %s345
      %p354 = scmp.eq.s32.totalorder %s82, 0
      %p355 = por %p353, %p354
      %p356 = scmp.ne.s32.totalorder %s344, %s345
      %p357 = scmp.eq.s32.totalorder %s83, 1
      %p358 = por %p356, %p357
      %p360 = scmp.ne.s32.totalorder %s345, %s359
      %p361 = scmp.eq.s32.totalorder %s83, 0
      %p362 = por %p360, %p361
      %s364 = sadd.s32 %s363, 1
      %p367 = scmp.eq.s32.totalorder %s77, 1
      %p368 = scmp.ne.s32.totalorder %s363, %s365
      %p369 = scmp.eq.s32.totalorder %s77, 0
      %p370 = por %p368, %p369
      %p371 = scmp.ne.s32.totalorder %s363, %s365
      %p372 = scmp.eq.s32.totalorder %s82, 1
      %p373 = por %p371, %p372
      %p374 = scmp.ne.s32.totalorder %s365, %s366
      %p375 = scmp.eq.s32.totalorder %s82, 0
      %p376 = por %p374, %p375
      %p377 = scmp.ne.s32.totalorder %s365, %s366
      %p378 = scmp.eq.s32.totalorder %s83, 1
      %p379 = por %p377, %p378
      %p381 = scmp.ne.s32.totalorder %s366, %s380
      %p382 = scmp.eq.s32.totalorder %s83, 0
      %p383 = por %p381, %p382
      %s385 = sadd.s32 %s384, 1
      %p388 = scmp.eq.s32.totalorder %s77, 1
      %p389 = scmp.ne.s32.totalorder %s384, %s386
      %p390 = scmp.eq.s32.totalorder %s77, 0
      %p391 = por %p389, %p390
      %p392 = scmp.ne.s32.totalorder %s384, %s386
      %p393 = scmp.eq.s32.totalorder %s82, 1
      %p394 = por %p392, %p393
      %p395 = scmp.ne.s32.totalorder %s386, %s387
      %p396 = scmp.eq.s32.totalorder %s82, 0
      %p397 = por %p395, %p396
      %p398 = scmp.ne.s32.totalorder %s386, %s387
      %p399 = scmp.eq.s32.totalorder %s83, 1
      %p400 = por %p398, %p399
      %p402 = scmp.ne.s32.totalorder %s387, %s401
      %p403 = scmp.eq.s32.totalorder %s83, 0
      %p404 = por %p402, %p403
      %s406 = sadd.s32 %s405, 1
      %p409 = scmp.eq.s32.totalorder %s77, 1
      %p410 = scmp.ne.s32.totalorder %s405, %s407
      %p411 = scmp.eq.s32.totalorder %s77, 0
      %p412 = por %p410, %p411
      %p413 = scmp.ne.s32.totalorder %s405, %s407
      %p414 = scmp.eq.s32.totalorder %s82, 1
      %p415 = por %p413, %p414
      %p416 = scmp.ne.s32.totalorder %s407, %s408
      %p417 = scmp.eq.s32.totalorder %s82, 0
      %p418 = por %p416, %p417
      %p419 = scmp.ne.s32.totalorder %s407, %s408
      %p420 = scmp.eq.s32.totalorder %s83, 1
      %p421 = por %p419, %p420
      %p423 = scmp.ne.s32.totalorder %s408, %s422
      %p424 = scmp.eq.s32.totalorder %s83, 0
      %p425 = por %p423, %p424
      %s427 = sadd.s32 %s426, 1
      %p430 = scmp.eq.s32.totalorder %s77, 1
      %p431 = scmp.ne.s32.totalorder %s426, %s428
      %p432 = scmp.eq.s32.totalorder %s77, 0
      %p433 = por %p431, %p432
      %p434 = scmp.ne.s32.totalorder %s426, %s428
      %p435 = scmp.eq.s32.totalorder %s82, 1
      %p436 = por %p434, %p435
      %p437 = scmp.ne.s32.totalorder %s428, %s429
      %p438 = scmp.eq.s32.totalorder %s82, 0
      %p439 = por %p437, %p438
      %p440 = scmp.ne.s32.totalorder %s428, %s429
      %p441 = scmp.eq.s32.totalorder %s83, 1
      %p442 = por %p440, %p441
      %p444 = scmp.ne.s32.totalorder %s429, %s443
      %p445 = scmp.eq.s32.totalorder %s83, 0
      %p446 = por %p444, %p445
      %s448 = sadd.s32 %s447, 1
      %p451 = scmp.eq.s32.totalorder %s77, 1
      %p452 = scmp.ne.s32.totalorder %s447, %s449
      %p453 = scmp.eq.s32.totalorder %s77, 0
      %p454 = por %p452, %p453
      %p455 = scmp.ne.s32.totalorder %s447, %s449
      %p456 = scmp.eq.s32.totalorder %s82, 1
      %p457 = por %p455, %p456
      %p458 = scmp.ne.s32.totalorder %s449, %s450
      %p459 = scmp.eq.s32.totalorder %s82, 0
      %p460 = por %p458, %p459
      %p461 = scmp.ne.s32.totalorder %s449, %s450
      %p462 = scmp.eq.s32.totalorder %s83, 1
      %p463 = por %p461, %p462
      %p465 = scmp.ne.s32.totalorder %s450, %s464
      %p466 = scmp.eq.s32.totalorder %s83, 0
      %p467 = por %p465, %p466
      %s469 = sadd.s32 %s468, 1
      %p472 = scmp.eq.s32.totalorder %s77, 1
      %p473 = scmp.ne.s32.totalorder %s468, %s470
      %p474 = scmp.eq.s32.totalorder %s77, 0
      %p475 = por %p473, %p474
      %p476 = scmp.ne.s32.totalorder %s468, %s470
      %p477 = scmp.eq.s32.totalorder %s82, 1
      %p478 = por %p476, %p477
      %p479 = scmp.ne.s32.totalorder %s470, %s471
      %p480 = scmp.eq.s32.totalorder %s82, 0
      %p481 = por %p479, %p480
      %p482 = scmp.ne.s32.totalorder %s470, %s471
      %p483 = scmp.eq.s32.totalorder %s83, 1
      %p484 = por %p482, %p483
      %p486 = scmp.ne.s32.totalorder %s471, %s485
      %p487 = scmp.eq.s32.totalorder %s83, 0
      %p488 = por %p486, %p487
      %s490 = sadd.s32 %s489, 1
      %p493 = scmp.eq.s32.totalorder %s77, 1
      %p494 = scmp.ne.s32.totalorder %s489, %s491
      %p495 = scmp.eq.s32.totalorder %s77, 0
      %p496 = por %p494, %p495
      %p497 = scmp.ne.s32.totalorder %s489, %s491
      %p498 = scmp.eq.s32.totalorder %s82, 1
      %p499 = por %p497, %p498
      %p500 = scmp.ne.s32.totalorder %s491, %s492
      %p501 = scmp.eq.s32.totalorder %s82, 0
      %p502 = por %p500, %p501
      %p503 = scmp.ne.s32.totalorder %s491, %s492
      %p504 = scmp.eq.s32.totalorder %s83, 1
      %p505 = por %p503, %p504
      %p507 = scmp.ne.s32.totalorder %s492, %s506
      %p508 = scmp.eq.s32.totalorder %s83, 0
      %p509 = por %p507, %p508
      %s511 = sadd.s32 %s510, 1
      %p514 = scmp.eq.s32.totalorder %s77, 1
      %p515 = scmp.ne.s32.totalorder %s510, %s512
      %p516 = scmp.eq.s32.totalorder %s77, 0
      %p517 = por %p515, %p516
      %p518 = scmp.ne.s32.totalorder %s510, %s512
      %p519 = scmp.eq.s32.totalorder %s82, 1
      %p520 = por %p518, %p519
      %p521 = scmp.ne.s32.totalorder %s512, %s513
      %p522 = scmp.eq.s32.totalorder %s82, 0
      %p523 = por %p521, %p522
      %p524 = scmp.ne.s32.totalorder %s512, %s513
      %p525 = scmp.eq.s32.totalorder %s83, 1
      %p526 = por %p524, %p525
      %p528 = scmp.ne.s32.totalorder %s513, %s527
      %p529 = scmp.eq.s32.totalorder %s83, 0
      %p530 = por %p528, %p529
      %s532 = sadd.s32 %s531, 1
      %p535 = scmp.eq.s32.totalorder %s77, 1
      %p536 = scmp.ne.s32.totalorder %s531, %s533
      %p537 = scmp.eq.s32.totalorder %s77, 0
      %p538 = por %p536, %p537
      %p539 = scmp.ne.s32.totalorder %s531, %s533
      %p540 = scmp.eq.s32.totalorder %s82, 1
      %p541 = por %p539, %p540
      %p542 = scmp.ne.s32.totalorder %s533, %s534
      %p543 = scmp.eq.s32.totalorder %s82, 0
      %p544 = por %p542, %p543
      %p545 = scmp.ne.s32.totalorder %s533, %s534
      %p546 = scmp.eq.s32.totalorder %s83, 1
      %p547 = por %p545, %p546
      %p549 = scmp.ne.s32.totalorder %s534, %s548
      %p550 = scmp.eq.s32.totalorder %s83, 0
      %p551 = por %p549, %p550
      %s553 = sadd.s32 %s552, 1
      %p556 = scmp.eq.s32.totalorder %s77, 1
      %p557 = scmp.ne.s32.totalorder %s552, %s554
      %p558 = scmp.eq.s32.totalorder %s77, 0
      %p559 = por %p557, %p558
      %p560 = scmp.ne.s32.totalorder %s552, %s554
      %p561 = scmp.eq.s32.totalorder %s82, 1
      %p562 = por %p560, %p561
      %p563 = scmp.ne.s32.totalorder %s554, %s555
      %p564 = scmp.eq.s32.totalorder %s82, 0
      %p565 = por %p563, %p564
      %p566 = scmp.ne.s32.totalorder %s554, %s555
      %p567 = scmp.eq.s32.totalorder %s83, 1
      %p568 = por %p566, %p567
      %p570 = scmp.ne.s32.totalorder %s555, %s569
      %p571 = scmp.eq.s32.totalorder %s83, 0
      %p572 = por %p570, %p571
      %s574 = sadd.s32 %s573, 1
      %p577 = scmp.eq.s32.totalorder %s77, 1
      %p578 = scmp.ne.s32.totalorder %s573, %s575
      %p579 = scmp.eq.s32.totalorder %s77, 0
      %p580 = por %p578, %p579
      %p581 = scmp.ne.s32.totalorder %s573, %s575
      %p582 = scmp.eq.s32.totalorder %s82, 1
      %p583 = por %p581, %p582
      %p584 = scmp.ne.s32.totalorder %s575, %s576
      %p585 = scmp.eq.s32.totalorder %s82, 0
      %p586 = por %p584, %p585
      %p587 = scmp.ne.s32.totalorder %s575, %s576
      %p588 = scmp.eq.s32.totalorder %s83, 1
      %p589 = por %p587, %p588
      %p591 = scmp.ne.s32.totalorder %s576, %s590
      %p592 = scmp.eq.s32.totalorder %s83, 0
      %p593 = por %p591, %p592
      %s595 = sadd.s32 %s594, 1
      %p598 = scmp.eq.s32.totalorder %s77, 1
      %p599 = scmp.ne.s32.totalorder %s594, %s596
      %p600 = scmp.eq.s32.totalorder %s77, 0
      %p601 = por %p599, %p600
      %p602 = scmp.ne.s32.totalorder %s594, %s596
      %p603 = scmp.eq.s32.totalorder %s82, 1
      %p604 = por %p602, %p603
      %p605 = scmp.ne.s32.totalorder %s596, %s597
      %p606 = scmp.eq.s32.totalorder %s82, 0
      %p607 = por %p605, %p606
      %p608 = scmp.ne.s32.totalorder %s596, %s597
      %p609 = scmp.eq.s32.totalorder %s83, 1
      %p610 = por %p608, %p609
      %p612 = scmp.ne.s32.totalorder %s597, %s611
      %p613 = scmp.eq.s32.totalorder %s83, 0
      %p614 = por %p612, %p613
      %s616 = sadd.s32 %s615, 1
      %p619 = scmp.eq.s32.totalorder %s77, 1
      %p620 = scmp.ne.s32.totalorder %s615, %s617
      %p621 = scmp.eq.s32.totalorder %s77, 0
      %p622 = por %p620, %p621
      %p623 = scmp.ne.s32.totalorder %s615, %s617
      %p624 = scmp.eq.s32.totalorder %s82, 1
      %p625 = por %p623, %p624
      %p626 = scmp.ne.s32.totalorder %s617, %s618
      %p627 = scmp.eq.s32.totalorder %s82, 0
      %p628 = por %p626, %p627
      %p629 = scmp.ne.s32.totalorder %s617, %s618
      %p630 = scmp.eq.s32.totalorder %s83, 1
      %p631 = por %p629, %p630
      %p633 = scmp.ne.s32.totalorder %s618, %s632
      %p634 = scmp.eq.s32.totalorder %s83, 0
      %p635 = por %p633, %p634
      %s637 = sadd.s32 %s636, 1
      %p640 = scmp.eq.s32.totalorder %s77, 1
      %p641 = scmp.ne.s32.totalorder %s636, %s638
      %p642 = scmp.eq.s32.totalorder %s77, 0
      %p643 = por %p641, %p642
      %p644 = scmp.ne.s32.totalorder %s636, %s638
      %p645 = scmp.eq.s32.totalorder %s82, 1
      %p646 = por %p644, %p645
      %p647 = scmp.ne.s32.totalorder %s638, %s639
      %p648 = scmp.eq.s32.totalorder %s82, 0
      %p649 = por %p647, %p648
      %p650 = scmp.ne.s32.totalorder %s638, %s639
      %p651 = scmp.eq.s32.totalorder %s83, 1
      %p652 = por %p650, %p651
      %p654 = scmp.ne.s32.totalorder %s639, %s653
      %p655 = scmp.eq.s32.totalorder %s83, 0
      %p656 = por %p654, %p655
      %s658 = sadd.s32 %s657, 1
      %p661 = scmp.eq.s32.totalorder %s77, 1
      %p662 = scmp.ne.s32.totalorder %s657, %s659
      %p663 = scmp.eq.s32.totalorder %s77, 0
      %p664 = por %p662, %p663
      %p665 = scmp.ne.s32.totalorder %s657, %s659
      %p666 = scmp.eq.s32.totalorder %s82, 1
      %p667 = por %p665, %p666
      %p668 = scmp.ne.s32.totalorder %s659, %s660
      %p669 = scmp.eq.s32.totalorder %s82, 0
      %p670 = por %p668, %p669
      %p671 = scmp.ne.s32.totalorder %s659, %s660
      %p672 = scmp.eq.s32.totalorder %s83, 1
      %p673 = por %p671, %p672
      %p675 = scmp.ne.s32.totalorder %s660, %s674
      %p676 = scmp.eq.s32.totalorder %s83, 0
      %p677 = por %p675, %p676
      %s679 = sadd.s32 %s678, 1
      %p682 = scmp.eq.s32.totalorder %s77, 1
      %p683 = scmp.ne.s32.totalorder %s678, %s680
      %p684 = scmp.eq.s32.totalorder %s77, 0
      %p685 = por %p683, %p684
      %p686 = scmp.ne.s32.totalorder %s678, %s680
      %p687 = scmp.eq.s32.totalorder %s82, 1
      %p688 = por %p686, %p687
      %p689 = scmp.ne.s32.totalorder %s680, %s681
      %p690 = scmp.eq.s32.totalorder %s82, 0
      %p691 = por %p689, %p690
      %p692 = scmp.ne.s32.totalorder %s680, %s681
      %p693 = scmp.eq.s32.totalorder %s83, 1
      %p694 = por %p692, %p693
      %p696 = scmp.ne.s32.totalorder %s681, %s695
      %p697 = scmp.eq.s32.totalorder %s83, 0
      %p698 = por %p696, %p697
      %s700 = sadd.s32 %s699, 1
      %p703 = scmp.eq.s32.totalorder %s77, 1
      %p704 = scmp.ne.s32.totalorder %s699, %s701
      %p705 = scmp.eq.s32.totalorder %s77, 0
      %p706 = por %p704, %p705
      %p707 = scmp.ne.s32.totalorder %s699, %s701
      %p708 = scmp.eq.s32.totalorder %s82, 1
      %p709 = por %p707, %p708
      %p710 = scmp.ne.s32.totalorder %s701, %s702
      %p711 = scmp.eq.s32.totalorder %s82, 0
      %p712 = por %p710, %p711
      %p713 = scmp.ne.s32.totalorder %s701, %s702
      %p714 = scmp.eq.s32.totalorder %s83, 1
      %p715 = por %p713, %p714
      %p717 = scmp.ne.s32.totalorder %s702, %s716
      %p718 = scmp.eq.s32.totalorder %s83, 0
      %p719 = por %p717, %p718
      %s721 = sadd.s32 %s720, 1
      %p724 = scmp.eq.s32.totalorder %s77, 1
      %p725 = scmp.ne.s32.totalorder %s720, %s722
      %p726 = scmp.eq.s32.totalorder %s77, 0
      %p727 = por %p725, %p726
      %p728 = scmp.ne.s32.totalorder %s720, %s722
      %p729 = scmp.eq.s32.totalorder %s82, 1
      %p730 = por %p728, %p729
      %p731 = scmp.ne.s32.totalorder %s722, %s723
      %p732 = scmp.eq.s32.totalorder %s82, 0
      %p733 = por %p731, %p732
      %p734 = scmp.ne.s32.totalorder %s722, %s723
      %p735 = scmp.eq.s32.totalorder %s83, 1
      %p736 = por %p734, %p735
      %p738 = scmp.ne.s32.totalorder %s723, %s737
      %p739 = scmp.eq.s32.totalorder %s83, 0
      %p740 = por %p738, %p739
      %s742 = sadd.s32 %s741, 1
      %p745 = scmp.eq.s32.totalorder %s77, 1
      %p746 = scmp.ne.s32.totalorder %s741, %s743
      %p747 = scmp.eq.s32.totalorder %s77, 0
      %p748 = por %p746, %p747
      %p749 = scmp.ne.s32.totalorder %s741, %s743
      %p750 = scmp.eq.s32.totalorder %s82, 1
      %p751 = por %p749, %p750
      %p752 = scmp.ne.s32.totalorder %s743, %s744
      %p753 = scmp.eq.s32.totalorder %s82, 0
      %p754 = por %p752, %p753
      %p755 = scmp.ne.s32.totalorder %s743, %s744
      %p756 = scmp.eq.s32.totalorder %s83, 1
      %p757 = por %p755, %p756
      %p759 = scmp.ne.s32.totalorder %s744, %s758
      %p760 = scmp.eq.s32.totalorder %s83, 0
      %p761 = por %p759, %p760
      %s763 = sadd.s32 %s762, 1
      %p766 = scmp.eq.s32.totalorder %s77, 1
      %p767 = scmp.ne.s32.totalorder %s762, %s764
      %p768 = scmp.eq.s32.totalorder %s77, 0
      %p769 = por %p767, %p768
      %p770 = scmp.ne.s32.totalorder %s762, %s764
      %p771 = scmp.eq.s32.totalorder %s82, 1
      %p772 = por %p770, %p771
      %p773 = scmp.ne.s32.totalorder %s764, %s765
      %p774 = scmp.eq.s32.totalorder %s82, 0
      %p775 = por %p773, %p774
      %p776 = scmp.ne.s32.totalorder %s764, %s765
      %p777 = scmp.eq.s32.totalorder %s83, 1
      %p778 = por %p776, %p777
      %p780 = scmp.ne.s32.totalorder %s765, %s779
      %p781 = scmp.eq.s32.totalorder %s83, 0
      %p782 = por %p780, %p781
      %s784 = sadd.s32 %s783, 1
      %p787 = scmp.eq.s32.totalorder %s77, 1
      %p788 = scmp.ne.s32.totalorder %s783, %s785
      %p789 = scmp.eq.s32.totalorder %s77, 0
      %p790 = por %p788, %p789
      %p791 = scmp.ne.s32.totalorder %s783, %s785
      %p792 = scmp.eq.s32.totalorder %s82, 1
      %p793 = por %p791, %p792
      %p794 = scmp.ne.s32.totalorder %s785, %s786
      %p795 = scmp.eq.s32.totalorder %s82, 0
      %p796 = por %p794, %p795
      %p797 = scmp.ne.s32.totalorder %s785, %s786
      %p798 = scmp.eq.s32.totalorder %s83, 1
      %p799 = por %p797, %p798
      %p801 = scmp.ne.s32.totalorder %s786, %s800
      %p802 = scmp.eq.s32.totalorder %s83, 0
      %p803 = por %p801, %p802
      %s804 = ssub.s32 %s77, %s84
      %p805 = scmp.eq.s32.totalorder %s804, 0
      %s807 = sadd.s32 %s806, 1
      %s808 = scalar_select %p805, %s806, %s807
      %p811 = pneg %p805
      %p812 = scmp.eq.s32.totalorder %s77, 1
      %p813 = por %p811, %p812
      %p814 = scmp.ne.s32.totalorder %s806, %s809
      %p815 = scmp.eq.s32.totalorder %s77, 0
      %p816 = por %p814, %p815
      %p817 = scmp.ne.s32.totalorder %s806, %s809
      %p818 = scmp.eq.s32.totalorder %s82, 1
      %p819 = por %p817, %p818
      %p820 = scmp.ne.s32.totalorder %s809, %s810
      %p821 = scmp.eq.s32.totalorder %s82, 0
      %p822 = por %p820, %p821
      %p823 = scmp.ne.s32.totalorder %s809, %s810
      %p824 = scmp.eq.s32.totalorder %s83, 1
      %p825 = por %p823, %p824
      %p827 = scmp.ne.s32.totalorder %s810, %s826
      %p828 = scmp.eq.s32.totalorder %s83, 0
      %p829 = por %p827, %p828
      %p830 = scmp.le.s32.totalorder 1, %s77
      %p831 = scmp.lt.s32.totalorder %s77, 3
      %p832 = pnand %p830, %p831
      %p833 = pneg %p832
      // Predicated region
      $region9: #{_lambda_.1} parent=5 // pred_check
        _
      $region10: #{_lambda_.1} parent=5 // pred_check_branch
        %835 = sbr.rel (%p832) target = $region12
      $region11: #{_lambda_.1} parent=5 // pred_region
        %s836 = ssub.s32 %s77, 1
        // Predicated region
        $region13: #{_lambda_.1} parent=11 // pred_check
          %p837 = pneg %p124
        $region14: #{_lambda_.1} parent=11 // pred_check_branch
          %839 = sbr.rel (%p837) target = $region16
        $region15: #{_lambda_.1} parent=11 // pred_region
          _
        $region16: #{_lambda_.1} parent=11 // pred_fallthru
          _
        // Predicated region
        $region17: #{_lambda_.1} parent=11 // pred_check
          %p840 = pneg %p145
        $region18: #{_lambda_.1} parent=11 // pred_check_branch
          %842 = sbr.rel (%p840) target = $region20
        $region19: #{_lambda_.1} parent=11 // pred_region
          _
        $region20: #{_lambda_.1} parent=11 // pred_fallthru
          _
        // Predicated region
        $region21: #{_lambda_.1} parent=11 // pred_check
          %p843 = pneg %p166
        $region22: #{_lambda_.1} parent=11 // pred_check_branch
          %845 = sbr.rel (%p843) target = $region24
        $region23: #{_lambda_.1} parent=11 // pred_region
          _
        $region24: #{_lambda_.1} parent=11 // pred_fallthru
          _
        // Predicated region
        $region25: #{_lambda_.1} parent=11 // pred_check
          %p846 = pneg %p187
        $region26: #{_lambda_.1} parent=11 // pred_check_branch
          %848 = sbr.rel (%p846) target = $region28
        $region27: #{_lambda_.1} parent=11 // pred_region
          _
        $region28: #{_lambda_.1} parent=11 // pred_fallthru
          _
        // Predicated region
        $region29: #{_lambda_.1} parent=11 // pred_check
          %p849 = pneg %p208
        $region30: #{_lambda_.1} parent=11 // pred_check_branch
          %851 = sbr.rel (%p849) target = $region32
        $region31: #{_lambda_.1} parent=11 // pred_region
          _
        $region32: #{_lambda_.1} parent=11 // pred_fallthru
          _
        // Predicated region
        $region33: #{_lambda_.1} parent=11 // pred_check
          %p852 = pneg %p229
        $region34: #{_lambda_.1} parent=11 // pred_check_branch
          %854 = sbr.rel (%p852) target = $region36
        $region35: #{_lambda_.1} parent=11 // pred_region
          _
        $region36: #{_lambda_.1} parent=11 // pred_fallthru
          _
        // Predicated region
        $region37: #{_lambda_.1} parent=11 // pred_check
          %p855 = pneg %p250
        $region38: #{_lambda_.1} parent=11 // pred_check_branch
          %857 = sbr.rel (%p855) target = $region40
        $region39: #{_lambda_.1} parent=11 // pred_region
          _
        $region40: #{_lambda_.1} parent=11 // pred_fallthru
          _
        // Predicated region
        $region41: #{_lambda_.1} parent=11 // pred_check
          %p858 = pneg %p271
        $region42: #{_lambda_.1} parent=11 // pred_check_branch
          %860 = sbr.rel (%p858) target = $region44
        $region43: #{_lambda_.1} parent=11 // pred_region
          _
        $region44: #{_lambda_.1} parent=11 // pred_fallthru
          _
        // Predicated region
        $region45: #{_lambda_.1} parent=11 // pred_check
          %p861 = pneg %p292
        $region46: #{_lambda_.1} parent=11 // pred_check_branch
          %863 = sbr.rel (%p861) target = $region48
        $region47: #{_lambda_.1} parent=11 // pred_region
          _
        $region48: #{_lambda_.1} parent=11 // pred_fallthru
          _
        // Predicated region
        $region49: #{_lambda_.1} parent=11 // pred_check
          %p864 = pneg %p313
        $region50: #{_lambda_.1} parent=11 // pred_check_branch
          %866 = sbr.rel (%p864) target = $region52
        $region51: #{_lambda_.1} parent=11 // pred_region
          _
        $region52: #{_lambda_.1} parent=11 // pred_fallthru
          _
        // Predicated region
        $region53: #{_lambda_.1} parent=11 // pred_check
          %p867 = pneg %p334
        $region54: #{_lambda_.1} parent=11 // pred_check_branch
          %869 = sbr.rel (%p867) target = $region56
        $region55: #{_lambda_.1} parent=11 // pred_region
          _
        $region56: #{_lambda_.1} parent=11 // pred_fallthru
          _
        // Predicated region
        $region57: #{_lambda_.1} parent=11 // pred_check
          %p870 = pneg %p355
        $region58: #{_lambda_.1} parent=11 // pred_check_branch
          %872 = sbr.rel (%p870) target = $region60
        $region59: #{_lambda_.1} parent=11 // pred_region
          _
        $region60: #{_lambda_.1} parent=11 // pred_fallthru
          _
        // Predicated region
        $region61: #{_lambda_.1} parent=11 // pred_check
          %p873 = pneg %p376
        $region62: #{_lambda_.1} parent=11 // pred_check_branch
          %875 = sbr.rel (%p873) target = $region64
        $region63: #{_lambda_.1} parent=11 // pred_region
          _
        $region64: #{_lambda_.1} parent=11 // pred_fallthru
          _
        // Predicated region
        $region65: #{_lambda_.1} parent=11 // pred_check
          %p876 = pneg %p397
        $region66: #{_lambda_.1} parent=11 // pred_check_branch
          %878 = sbr.rel (%p876) target = $region68
        $region67: #{_lambda_.1} parent=11 // pred_region
          _
        $region68: #{_lambda_.1} parent=11 // pred_fallthru
          _
        // Predicated region
        $region69: #{_lambda_.1} parent=11 // pred_check
          %p879 = pneg %p418
        $region70: #{_lambda_.1} parent=11 // pred_check_branch
          %881 = sbr.rel (%p879) target = $region72
        $region71: #{_lambda_.1} parent=11 // pred_region
          _
        $region72: #{_lambda_.1} parent=11 // pred_fallthru
          _
        // Predicated region
        $region73: #{_lambda_.1} parent=11 // pred_check
          %p882 = pneg %p439
        $region74: #{_lambda_.1} parent=11 // pred_check_branch
          %884 = sbr.rel (%p882) target = $region76
        $region75: #{_lambda_.1} parent=11 // pred_region
          _
        $region76: #{_lambda_.1} parent=11 // pred_fallthru
          _
        // Predicated region
        $region77: #{_lambda_.1} parent=11 // pred_check
          %p885 = pneg %p460
        $region78: #{_lambda_.1} parent=11 // pred_check_branch
          %887 = sbr.rel (%p885) target = $region80
        $region79: #{_lambda_.1} parent=11 // pred_region
          _
        $region80: #{_lambda_.1} parent=11 // pred_fallthru
          _
        // Predicated region
        $region81: #{_lambda_.1} parent=11 // pred_check
          %p888 = pneg %p481
        $region82: #{_lambda_.1} parent=11 // pred_check_branch
          %890 = sbr.rel (%p888) target = $region84
        $region83: #{_lambda_.1} parent=11 // pred_region
          _
        $region84: #{_lambda_.1} parent=11 // pred_fallthru
          _
        // Predicated region
        $region85: #{_lambda_.1} parent=11 // pred_check
          %p891 = pneg %p502
        $region86: #{_lambda_.1} parent=11 // pred_check_branch
          %893 = sbr.rel (%p891) target = $region88
        $region87: #{_lambda_.1} parent=11 // pred_region
          _
        $region88: #{_lambda_.1} parent=11 // pred_fallthru
          _
        // Predicated region
        $region89: #{_lambda_.1} parent=11 // pred_check
          %p894 = pneg %p523
        $region90: #{_lambda_.1} parent=11 // pred_check_branch
          %896 = sbr.rel (%p894) target = $region92
        $region91: #{_lambda_.1} parent=11 // pred_region
          _
        $region92: #{_lambda_.1} parent=11 // pred_fallthru
          _
        // Predicated region
        $region93: #{_lambda_.1} parent=11 // pred_check
          %p897 = pneg %p544
        $region94: #{_lambda_.1} parent=11 // pred_check_branch
          %899 = sbr.rel (%p897) target = $region96
        $region95: #{_lambda_.1} parent=11 // pred_region
          _
        $region96: #{_lambda_.1} parent=11 // pred_fallthru
          _
        // Predicated region
        $region97: #{_lambda_.1} parent=11 // pred_check
          %p900 = pneg %p565
        $region98: #{_lambda_.1} parent=11 // pred_check_branch
          %902 = sbr.rel (%p900) target = $region100
        $region99: #{_lambda_.1} parent=11 // pred_region
          _
        $region100: #{_lambda_.1} parent=11 // pred_fallthru
          _
        // Predicated region
        $region101: #{_lambda_.1} parent=11 // pred_check
          %p903 = pneg %p586
        $region102: #{_lambda_.1} parent=11 // pred_check_branch
          %905 = sbr.rel (%p903) target = $region104
        $region103: #{_lambda_.1} parent=11 // pred_region
          _
        $region104: #{_lambda_.1} parent=11 // pred_fallthru
          _
        // Predicated region
        $region105: #{_lambda_.1} parent=11 // pred_check
          %p906 = pneg %p607
        $region106: #{_lambda_.1} parent=11 // pred_check_branch
          %908 = sbr.rel (%p906) target = $region108
        $region107: #{_lambda_.1} parent=11 // pred_region
          _
        $region108: #{_lambda_.1} parent=11 // pred_fallthru
          _
        // Predicated region
        $region109: #{_lambda_.1} parent=11 // pred_check
          %p909 = pneg %p628
        $region110: #{_lambda_.1} parent=11 // pred_check_branch
          %911 = sbr.rel (%p909) target = $region112
        $region111: #{_lambda_.1} parent=11 // pred_region
          _
        $region112: #{_lambda_.1} parent=11 // pred_fallthru
          _
        // Predicated region
        $region113: #{_lambda_.1} parent=11 // pred_check
          %p912 = pneg %p649
        $region114: #{_lambda_.1} parent=11 // pred_check_branch
          %914 = sbr.rel (%p912) target = $region116
        $region115: #{_lambda_.1} parent=11 // pred_region
          _
        $region116: #{_lambda_.1} parent=11 // pred_fallthru
          _
        // Predicated region
        $region117: #{_lambda_.1} parent=11 // pred_check
          %p915 = pneg %p670
        $region118: #{_lambda_.1} parent=11 // pred_check_branch
          %917 = sbr.rel (%p915) target = $region120
        $region119: #{_lambda_.1} parent=11 // pred_region
          _
        $region120: #{_lambda_.1} parent=11 // pred_fallthru
          _
        // Predicated region
        $region121: #{_lambda_.1} parent=11 // pred_check
          %p918 = pneg %p691
        $region122: #{_lambda_.1} parent=11 // pred_check_branch
          %920 = sbr.rel (%p918) target = $region124
        $region123: #{_lambda_.1} parent=11 // pred_region
          _
        $region124: #{_lambda_.1} parent=11 // pred_fallthru
          _
        // Predicated region
        $region125: #{_lambda_.1} parent=11 // pred_check
          %p921 = pneg %p712
        $region126: #{_lambda_.1} parent=11 // pred_check_branch
          %923 = sbr.rel (%p921) target = $region128
        $region127: #{_lambda_.1} parent=11 // pred_region
          _
        $region128: #{_lambda_.1} parent=11 // pred_fallthru
          _
        // Predicated region
        $region129: #{_lambda_.1} parent=11 // pred_check
          %p924 = pneg %p733
        $region130: #{_lambda_.1} parent=11 // pred_check_branch
          %926 = sbr.rel (%p924) target = $region132
        $region131: #{_lambda_.1} parent=11 // pred_region
          _
        $region132: #{_lambda_.1} parent=11 // pred_fallthru
          _
        // Predicated region
        $region133: #{_lambda_.1} parent=11 // pred_check
          %p927 = pneg %p754
        $region134: #{_lambda_.1} parent=11 // pred_check_branch
          %929 = sbr.rel (%p927) target = $region136
        $region135: #{_lambda_.1} parent=11 // pred_region
          _
        $region136: #{_lambda_.1} parent=11 // pred_fallthru
          _
        // Predicated region
        $region137: #{_lambda_.1} parent=11 // pred_check
          %p930 = pneg %p775
        $region138: #{_lambda_.1} parent=11 // pred_check_branch
          %932 = sbr.rel (%p930) target = $region140
        $region139: #{_lambda_.1} parent=11 // pred_region
          _
        $region140: #{_lambda_.1} parent=11 // pred_fallthru
          _
        // Predicated region
        $region141: #{_lambda_.1} parent=11 // pred_check
          %p933 = pneg %p796
        $region142: #{_lambda_.1} parent=11 // pred_check_branch
          %935 = sbr.rel (%p933) target = $region144
        $region143: #{_lambda_.1} parent=11 // pred_region
          _
        $region144: #{_lambda_.1} parent=11 // pred_fallthru
          _
      $region12: #{_lambda_.1} parent=5 // pred_fallthru
        _
      %p936 = scmp.lt.s32.totalorder %s77, 2
      // Predicated region
      $region145: #{_lambda_.1} parent=5 // pred_check
        %p937 = pneg %p936
      $region146: #{_lambda_.1} parent=5 // pred_check_branch
        %939 = sbr.rel (%p937) target = $region148
      $region147: #{_lambda_.1} parent=5 // pred_region
        // Predicated region
        $region149: #{_lambda_.1} parent=147 // pred_check
          %p940 = pneg %p97
        $region150: #{_lambda_.1} parent=147 // pred_check_branch
          %942 = sbr.rel (%p940) target = $region152
        $region151: #{_lambda_.1} parent=147 // pred_region
          %s943 = smul.u32 2, %s77
          %p944 = scmp.lt.s32.totalorder %s943, 3
          %s945 = scalar_select %p944, %s943, 3
          %s946 = smul.addr %s945, 8
          %s947 = scalar_lea.vmem %s1, %s946
          %s948 = smul.u32 2, %s77
        $region152: #{_lambda_.1} parent=147 // pred_fallthru
          _
      $region148: #{_lambda_.1} parent=5 // pred_fallthru
        _
      %p949 = scmp.le.s32.totalorder 1, %s77
      %p950 = scmp.lt.s32.totalorder %s77, 3
      %p951 = pnand %p949, %p950
      %p952 = pneg %p951
      // Predicated region
      $region153: #{_lambda_.1} parent=5 // pred_check
        _
      $region154: #{_lambda_.1} parent=5 // pred_check_branch
        %954 = sbr.rel (%p951) target = $region156
      $region155: #{_lambda_.1} parent=5 // pred_region
        %s955 = ssub.s32 %s77, 1
        %s956 = smul.u32 2, %s82
        %p957 = scmp.lt.s32.totalorder %s956, 3
        %s958 = scalar_select %p957, %s956, 3
        %s959 = smul.addr %s958, 8
        %s960 = scalar_lea.vmem %s1, %s959
        %p961 = pneg %p103
        %p962 = pneg %p100
        %p963 = pneg %p124
        %p964 = pneg %p121
        %p965 = pneg %p145
        %p966 = pneg %p142
        %p967 = pneg %p166
        %p968 = pneg %p163
        %p969 = pneg %p187
        %p970 = pneg %p184
        %p971 = pneg %p208
        %p972 = pneg %p205
        %p973 = pneg %p229
        %p974 = pneg %p226
        %p975 = pneg %p250
        %p976 = pneg %p247
        %p977 = pneg %p271
        %p978 = pneg %p268
        %p979 = pneg %p292
        %p980 = pneg %p289
        %p981 = pneg %p313
        %p982 = pneg %p310
        %p983 = pneg %p334
        %p984 = pneg %p331
        %p985 = pneg %p355
        %p986 = pneg %p352
        %p987 = pneg %p376
        %p988 = pneg %p373
        %p989 = pneg %p397
        %p990 = pneg %p394
        %p991 = pneg %p418
        %p992 = pneg %p415
        %p993 = pneg %p439
        %p994 = pneg %p436
        %p995 = pneg %p460
        %p996 = pneg %p457
        %p997 = pneg %p481
        %p998 = pneg %p478
        %p999 = pneg %p502
        %p1000 = pneg %p499
        %p1001 = pneg %p523
        %p1002 = pneg %p520
        %p1003 = pneg %p544
        %p1004 = pneg %p541
        %p1005 = pneg %p565
        %p1006 = pneg %p562
        %p1007 = pneg %p586
        %p1008 = pneg %p583
        %p1009 = pneg %p607
        %p1010 = pneg %p604
        %p1011 = pneg %p628
        %p1012 = pneg %p625
        %p1013 = pneg %p649
        %p1014 = pneg %p646
        %p1015 = pneg %p670
        %p1016 = pneg %p667
        %p1017 = pneg %p691
        %p1018 = pneg %p688
        %p1019 = pneg %p712
        %p1020 = pneg %p709
        %p1021 = pneg %p733
        %p1022 = pneg %p730
        %p1023 = pneg %p754
        %p1024 = pneg %p751
        %p1025 = pneg %p775
        %p1026 = pneg %p772
        %p1027 = pneg %p796
        %p1028 = pneg %p793
        %p1029 = pneg %p822
        %p1030 = pneg %p819
        %s1031 = sand.u32 %s809, 1
        %s1032 = sand.u32 %s809, 1
        %s1033 = smul.addr %s1032, 32
        %s1034 = scalar_lea.vmem [#allocation3], %s1033
        %s1035 = smul.u32 2, %s82
        %p1036 = scmp.lt.s32.totalorder %s1035, 3
        %s1037 = scalar_select %p1036, %s1035, 3
        %s1038 = smul.addr %s1037, 8
        %s1039 = scalar_lea.vmem %s1, %s1038
        %s1040 = smul.u32 2, %s82
        %s1041 = smul.u32 2, %s82
        %v1042 = vld [vmem:[%s3] sm:$0xff]
        %v1043 = vld [vmem:[%s3 + $0x8] sm:$0xff]
        %v1044 = vld [vmem:[%s3 + $0x10] sm:$0x1]
        %v1045 = vld [vmem:[%s3 + $0x18] sm:$0x1]
        %v1046 = vld [vmem:[%s5] sm:$0xff]
        %v1047 = vld [vmem:[%s5 + $0x8] sm:$0xff]
        %v1048 = vld [vmem:[%s5 + $0x10] sm:$0x1]
        %v1049 = vld [vmem:[%s5 + $0x18] sm:$0x1]
        %v1050 = vld [vmem:[%s7] sm:$0xff]
        %v1051 = vld [vmem:[%s7 + $0x8] sm:$0xff]
        %v1052 = vld [vmem:[%s7 + $0x10] sm:$0x1]
        %v1053 = vld [vmem:[%s7 + $0x18] sm:$0x1]
        %v1054 = vld [vmem:[%s9] sm:$0xff]
        %v1055 = vld [vmem:[%s9 + $0x8] sm:$0xff]
        %v1056 = vld [vmem:[%s11] sm:$0xff]
        %v1057 = vld [vmem:[%s11 + $0x8] sm:$0xff]
        %v1058 = vld [vmem:[%s13] sm:$0xff]
        %v1059 = vld [vmem:[%s13 + $0x8] sm:$0xff]
        %v1060 = vld [vmem:[%s15] sm:$0xff]
        %v1061 = vld [vmem:[%s17] sm:$0xff]
        %v1062 = vld [vmem:[%s19] sm:$0xff]
        %v1063 = vld [vmem:[%s19 + $0x8] sm:$0xff]
        %v1064 = vld [vmem:[%s19 + $0x10] sm:$0x3]
        %v1065 = vld [vmem:[%s21] sm:$0x3]
        %v1066 = vld [vmem:[%s23] sm:$0xff]
        %v1067 = vld [vmem:[%s23 + $0x8] sm:$0xff]
        %v1068 = vld [vmem:[%s23 + $0x10] sm:$0x3]
        %v1069 = vld [vmem:[%s25] sm:$0xff]
        %v1070 = vld [vmem:[%s25 + $0x8] sm:$0xff]
        %v1071 = vld [vmem:[%s25 + $0x10] sm:$0x3]
        %v1072 = vld [vmem:[%s27] sm:$0x3]
        %v1073 = vld [vmem:[%s29] sm:$0xff]
        %v1074 = vld [vmem:[%s29 + $0x8] sm:$0xff]
        %v1075 = vld [vmem:[%s29 + $0x10] sm:$0x3]
        %v1076 = vld [vmem:[%s31] sm:$0xff]
        %v1077 = vld [vmem:[%s31 + $0x8] sm:$0xff]
        %v1078 = vld [vmem:[%s31 + $0x10] sm:$0x3]
        %v1079 = vld [vmem:[%s33] sm:$0x3]
        %v1080 = vld [vmem:[%s35] sm:$0x1]
        %v1081 = vld [vmem:[#allocation2] sm:$0x1]
        %v1082 = vld [vmem:[%s39] sm:$0x3]
        %v1083 = vld [vmem:[%s41] sm:$0x3]
        %v1084 = vld [vmem:[%s43] sm:$0x3]
        %v1085 = vld [vmem:[%s45] sm:$0x3]
        %v1086 = vld [vmem:[%s47] sm:$0x3]
        %v1087 = vld [vmem:[%s49] sm:$0xff]
        %v1088 = vld [vmem:[%s49 + $0x8] sm:$0xff]
        %v1089 = vld [vmem:[%s49 + $0x10] sm:$0xff]
        %v1090 = vld [vmem:[%s49 + $0x18] sm:$0xff]
        %v1091 = vld [vmem:[%s49 + $0x20] sm:$0xff]
        %v1092 = vld [vmem:[%s49 + $0x28] sm:$0xff]
        %v1093 = vld [vmem:[%s49 + $0x30] sm:$0xff]
        %v1094 = vld [vmem:[%s49 + $0x38] sm:$0xff]
        %v1095 = vld [vmem:[%s49 + $0x40] sm:$0xff]
        %v1096 = vld [vmem:[%s51] sm:$0xff]
        %v1097 = vld [vmem:[%s51 + $0x8] sm:$0xff]
        %v1098 = vld [vmem:[%s51 + $0x10] sm:$0xff]
        %v1099 = vld [vmem:[%s51 + $0x18] sm:$0xff]
        %v1100 = vld [vmem:[%s51 + $0x20] sm:$0xff]
        %v1101 = vld [vmem:[%s51 + $0x28] sm:$0xff]
        %v1102 = vld [vmem:[%s51 + $0x30] sm:$0xff]
        %v1103 = vld [vmem:[%s51 + $0x38] sm:$0xff]
        %v1104 = vld [vmem:[%s51 + $0x40] sm:$0xff]
        %v1105 = vld [vmem:[%s53] sm:$0xff]
        %v1106 = vld [vmem:[%s53 + $0x8] sm:$0xff]
        %v1107 = vld [vmem:[%s53 + $0x10] sm:$0xff]
        %v1108 = vld [vmem:[%s53 + $0x18] sm:$0xff]
        %v1109 = vld [vmem:[%s53 + $0x20] sm:$0xff]
        %v1110 = vld [vmem:[%s53 + $0x28] sm:$0xff]
        %v1111 = vld [vmem:[%s53 + $0x30] sm:$0xff]
        %v1112 = vld [vmem:[%s53 + $0x38] sm:$0xff]
        %v1113 = vld [vmem:[%s53 + $0x40] sm:$0xff]
        %v1114 = vld [vmem:[%s55] sm:$0xff]
        %v1115 = vld [vmem:[%s55 + $0x8] sm:$0xff]
        %v1116 = vld [vmem:[%s55 + $0x10] sm:$0xff]
        %v1117 = vld [vmem:[%s55 + $0x18] sm:$0xff]
        %v1118 = vld [vmem:[%s55 + $0x20] sm:$0xff]
        %v1119 = vld [vmem:[%s55 + $0x28] sm:$0xff]
        %v1120 = vld [vmem:[%s55 + $0x30] sm:$0xff]
        %v1121 = vld [vmem:[%s55 + $0x38] sm:$0xff]
        %v1122 = vld [vmem:[%s55 + $0x40] sm:$0xff]
        %v1123 = vld [vmem:[%s57] sm:$0xff]
        %v1124 = vld [vmem:[%s59] sm:$0xff]
        %v1125 = vld [vmem:[%s61] sm:$0xff]
        %v1126 = vld [vmem:[%s61 + $0x8] sm:$0xff]
        %v1127 = vld [vmem:[%s63] sm:$0xff]
        %v1128 = vld [vmem:[%s63 + $0x8] sm:$0xff]
        %v1129 = vld [vmem:[%s65] sm:$0xff]
        %v1130 = vld [vmem:[%s65 + $0x8] sm:$0xff]
        %v1131 = vld [vmem:[%s67] sm:$0xff]
        %v1132 = vld [vmem:[%s67 + $0x8] sm:$0xff]
        %v1133 = vld [vmem:[%s1039] sm:$0xff]
        %v1134 = vld [vmem:[%s1039 + $0x8] sm:$0xff]
        %vm1135 = vcmask 64512
        %v1137 = vsel %vm1135, %v1054, 0
        %v1140 = vsel %vm1135, %v1055, 0
        %1142 = vmatprep.subr.mxu0 %v1134
        %1143 = vmatpush1.msra.mxu0 %v1133
        %1144 = vmatprep.subr.mxu0 0.0
        %1145 = vmatpush1.msra.mxu0 0.0
        %1146 = vmatprep.subr.mxu0 0.0
        %1147 = vmatpush1.msra.mxu0 0.0
        %1148 = vmatprep.subr.mxu0 0.0
        %1149 = vmatpush1.msra.mxu0 0.0
        %1150 = vmatprep.subr.mxu0 0.0
        %1151 = vmatpush1.msra.mxu0 0.0
        %1152 = vmatprep.subr.mxu0 0.0
        %1153 = vmatpush1.msra.mxu0 0.0
        %1154 = vmatprep.subr.mxu0 0.0
        %1155 = vmatpush1.msra.mxu0 0.0
        %1156 = vmatprep.subr.mxu0 0.0
        %1157 = vmatpush1.msra.mxu0 0.0
        %1158 = vmatprep.subr.mxu0 0.0
        %1159 = vmatpush1.msra.mxu0 0.0
        %1160 = vmatprep.subr.mxu0 0.0
        %1161 = vmatpush1.msra.mxu0 0.0
        %1162 = vmatprep.subr.mxu0 0.0
        %1163 = vmatpush1.msra.mxu0 0.0
        %1164 = vmatprep.subr.mxu0 0.0
        %1165 = vmatpush1.msra.mxu0 0.0
        %1166 = vmatprep.subr.mxu0 0.0
        %1167 = vmatpush1.msra.mxu0 0.0
        %1168 = vmatprep.subr.mxu0 0.0
        %1169 = vmatpush1.msra.mxu0 0.0
        %1170 = vmatprep.subr.mxu0 0.0
        %1171 = vmatpush1.msra.mxu0 0.0
        %1172 = vmatprep.subr.mxu0 0.0
        %1173 = vmatpush1.msra.mxu0 0.0
        %1174 = vmatprep.subr.mxu0 0.0
        %1175 = vmatpush1.msra.mxu0 0.0
        %1176 = vmatprep.subr.mxu0 0.0
        %1177 = vmatpush1.msra.mxu0 0.0
        %1178 = vmatprep.subr.mxu0 0.0
        %1179 = vmatpush1.msra.mxu0 0.0
        %1180 = vmatprep.subr.mxu0 0.0
        %1181 = vmatpush1.msra.mxu0 0.0
        %1182 = vmatprep.subr.mxu0 0.0
        %1183 = vmatpush1.msra.mxu0 0.0
        %1184 = vmatprep.subr.mxu0 0.0
        %1185 = vmatpush1.msra.mxu0 0.0
        %1186 = vmatprep.subr.mxu0 0.0
        %1187 = vmatpush1.msra.mxu0 0.0
        %1188 = vmatprep.subr.mxu0 0.0
        %1189 = vmatpush1.msra.mxu0 0.0
        %1190 = vmatprep.subr.mxu0 0.0
        %1191 = vmatpush1.msra.mxu0 0.0
        %1192 = vmatprep.subr.mxu0 0.0
        %1193 = vmatpush1.msra.mxu0 0.0
        %1194 = vmatprep.subr.mxu0 0.0
        %1195 = vmatpush1.msra.mxu0 0.0
        %1196 = vmatprep.subr.mxu0 0.0
        %1197 = vmatpush1.msra.mxu0 0.0
        %1198 = vmatprep.subr.mxu0 0.0
        %1199 = vmatpush1.msra.mxu0 0.0
        %1200 = vmatprep.subr.mxu0 0.0
        %1201 = vmatpush1.msra.mxu0 0.0
        %1202 = vmatprep.subr.mxu0 0.0
        %1203 = vmatpush1.msra.mxu0 0.0
        %1204 = vmatprep.subr.mxu0 0.0
        %1205 = vmatpush1.msra.mxu0 0.0
        %1206 = vmatprep.mubr.f32.mxu0 0.0
        %1207 = vmatmul.mubr.f32.gmra.mrb[0].mxu0 %v1137
        %v1208 = vpop.f32.mrb[0].mxu0
        %v1209 = vadd.f32 0.0, %v1208
        %v1210 = vpop.f32.mrb[0].mxu0
        %v1211 = vadd.f32 0.0, %v1210
        %1212 = vmatprep.mubr.f32.mxu0 0.0
        %1213 = vmatmul.mubr.f32.gmra.mrb[0].mxu0 %v1140
        %v1214 = vpop.f32.mrb[0].mxu0
        %v1215 = vadd.f32 0.0, %v1214
        %v1216 = vpop.f32.mrb[0].mxu0
        %v1217 = vadd.f32 0.0, %v1216
        %1218 = vdwg.mxu0
        %1220 = vset.pattern.permute.xlu0 0
        %1221 = vperm.xlu0 %1220, %v1056
        %v1222 = vpop.permute.xlu0 %1221
        %1225 = vset.pattern.permute.xlu0 0
        %1226 = vperm.xlu0 %1225, %v1057
        %v1227 = vpop.permute.xlu0 %1226
        %v1229 = vmul.f32 %v1209, %v1222
        %v1230 = vmul.f32 %v1211, %v1222
        %v1231 = vmul.f32 %v1215, %v1227
        %v1232 = vmul.f32 %v1217, %v1227
        %1234 = vset.pattern.permute.xlu0 0
        %1235 = vperm.xlu0 %1234, %v1058
        %v1236 = vpop.permute.xlu0 %1235
        %1239 = vset.pattern.permute.xlu0 0
        %1240 = vperm.xlu0 %1239, %v1059
        %v1241 = vpop.permute.xlu0 %1240
        %v1243 = vadd.f32 %v1229, %v1236
        %v1244 = vadd.f32 %v1230, %v1236
        %v1245 = vadd.f32 %v1231, %v1241
        %v1246 = vadd.f32 %v1232, %v1241
        %v1247 = vsub.f32 0.0, %v1243
        %v1248 = vsub.f32 0.0, %v1244
        %v1249 = vsub.f32 0.0, %v1245
        %v1250 = vsub.f32 0.0, %v1246
        %v1251 = vmul.f32 %v1247, 1.442695
        %v1252 = vpow.pop %v1251
        %v1253 = vmul.f32 %v1248, 1.442695
        %v1254 = vpow.pop %v1253
        %v1255 = vmul.f32 %v1249, 1.442695
        %v1256 = vpow.pop %v1255
        %v1257 = vmul.f32 %v1250, 1.442695
        %v1258 = vpow.pop %v1257
        %v1259 = vadd.f32 %v1252, 1.0
        %v1260 = vadd.f32 %v1254, 1.0
        %v1261 = vadd.f32 %v1256, 1.0
        %v1262 = vadd.f32 %v1258, 1.0
        %v1263 = vrcp.pop %v1259
        %v1264 = vrcp.pop %v1260
        %v1265 = vrcp.pop %v1261
        %v1266 = vrcp.pop %v1262
        %v1267 = vmul.f32 %v1243, %v1263
        %v1268 = vmul.f32 %v1244, %v1264
        %v1269 = vmul.f32 %v1245, %v1265
        %v1270 = vmul.f32 %v1246, %v1266
        %v1273 = vrot.slane %v1269, 1
        %v1274 = vrot.slane %v1270, 1
        %v1277 = vadd.f32 %v1269, %v1273
        %v1278 = vadd.f32 %v1270, %v1274
        %v1279 = vrot.slane %v1269, 2
        %v1280 = vrot.slane %v1270, 2
        %v1283 = vadd.f32 %v1277, %v1279
        %v1284 = vadd.f32 %v1278, %v1280
        %v1285 = vrot.slane %v1269, 3
        %v1286 = vrot.slane %v1270, 3
        %v1289 = vadd.f32 %v1283, %v1285
        %v1290 = vadd.f32 %v1284, %v1286
        %v1291 = vrot.slane %v1269, 4
        %v1292 = vrot.slane %v1270, 4
        %v1295 = vadd.f32 %v1289, %v1291
        %v1296 = vadd.f32 %v1290, %v1292
        %v1297 = vrot.slane %v1269, 5
        %v1298 = vrot.slane %v1270, 5
        %v1301 = vadd.f32 %v1295, %v1297
        %v1302 = vadd.f32 %v1296, %v1298
        %v1303 = vrot.slane %v1269, 6
        %v1304 = vrot.slane %v1270, 6
        %v1307 = vadd.f32 %v1301, %v1303
        %v1308 = vadd.f32 %v1302, %v1304
        %v1309 = vrot.slane %v1269, 7
        %v1310 = vrot.slane %v1270, 7
        %v1313 = vadd.f32 %v1307, %v1309
        %v1314 = vadd.f32 %v1308, %v1310
        %v1315 = vmul.f32 %v1313, 0.125
        %v1316 = vmul.f32 %v1314, 0.125
        %v1317 = vlaneseq
        %v1318 = vshrl.u32 %v1317, 7
        %v1319 = vsub.s32 0, %v1318
        %v1320 = vrot.slane %v1315, %v1319
        %v1321 = vlaneseq
        %v1322 = vshrl.u32 %v1321, 7
        %v1323 = vsub.s32 0, %v1322
        %v1324 = vrot.slane %v1316, %v1323
        %v1325 = vsub.f32 %v1269, %v1320
        %v1326 = vsub.f32 %v1270, %v1324
        %v1327 = vmul.f32 %v1325, %v1325
        %v1328 = vmul.f32 %v1326, %v1326
        %v1331 = vrot.slane %v1327, 1
        %v1332 = vrot.slane %v1328, 1
        %v1335 = vadd.f32 %v1327, %v1331
        %v1336 = vadd.f32 %v1328, %v1332
        %v1337 = vrot.slane %v1327, 2
        %v1338 = vrot.slane %v1328, 2
        %v1341 = vadd.f32 %v1335, %v1337
        %v1342 = vadd.f32 %v1336, %v1338
        %v1343 = vrot.slane %v1327, 3
        %v1344 = vrot.slane %v1328, 3
        %v1347 = vadd.f32 %v1341, %v1343
        %v1348 = vadd.f32 %v1342, %v1344
        %v1349 = vrot.slane %v1327, 4
        %v1350 = vrot.slane %v1328, 4
        %v1353 = vadd.f32 %v1347, %v1349
        %v1354 = vadd.f32 %v1348, %v1350
        %v1355 = vrot.slane %v1327, 5
        %v1356 = vrot.slane %v1328, 5
        %v1359 = vadd.f32 %v1353, %v1355
        %v1360 = vadd.f32 %v1354, %v1356
        %v1361 = vrot.slane %v1327, 6
        %v1362 = vrot.slane %v1328, 6
        %v1365 = vadd.f32 %v1359, %v1361
        %v1366 = vadd.f32 %v1360, %v1362
        %v1367 = vrot.slane %v1327, 7
        %v1368 = vrot.slane %v1328, 7
        %v1371 = vadd.f32 %v1365, %v1367
        %v1372 = vadd.f32 %v1366, %v1368
        %v1373 = vmul.f32 %v1371, 0.125
        %v1374 = vmul.f32 %v1372, 0.125
        %v1375 = vadd.f32 %v1373, 1e-05
        %v1376 = vadd.f32 %v1374, 1e-05
        %v1377 = vrsqrt.pop %v1375
        %v1378 = vrsqrt.pop %v1376
        %v1379 = vlaneseq
        %v1380 = vshrl.u32 %v1379, 7
        %v1381 = vsub.s32 0, %v1380
        %v1382 = vrot.slane %v1377, %v1381
        %v1383 = vlaneseq
        %v1384 = vshrl.u32 %v1383, 7
        %v1385 = vsub.s32 0, %v1384
        %v1386 = vrot.slane %v1378, %v1385
        %v1387 = vmul.f32 %v1325, %v1382
        %v1388 = vmul.f32 %v1326, %v1386
        %1390 = vset.pattern.permute.xlu0 0
        %1391 = vperm.xlu0 %1390, %v1060
        %v1392 = vpop.permute.xlu0 %1391
        %v1394 = vmul.f32 %v1387, %v1392
        %v1395 = vmul.f32 %v1388, %v1392
        %1397 = vset.pattern.permute.xlu0 0
        %1398 = vperm.xlu0 %1397, %v1061
        %v1399 = vpop.permute.xlu0 %1398
        %v1401 = vadd.f32 %v1394, %v1399
        %v1402 = vadd.f32 %v1395, %v1399
        %1403 = vrot.lane.b32.xlu0 %v1401, 17
        %v1404 = vpop.permute.xlu0 %1403
        %1405 = vrot.lane.b32.xlu0 %v1402, 17
        %v1406 = vpop.permute.xlu0 %1405
        %v1407 = vlaneseq
        %v1408 = vand.u32 %v1407, 127
        %vm1409 = vcmp.lt.s32.totalorder %v1408, 17
        %v1410 = vsel %vm1409, %v1404, %v1406
        %v1411 = vsel %vm1409, %v1406, %v1404
        %1413 = vset.pattern.permute.xlu0 0
        %1414 = vperm.xlu0 %1413, %v1062
        %v1415 = vpop.permute.xlu0 %1414
        %v1417 = vlaneseq
        %v1418 = vshrl.u32 %v1417, 7
        %v1419 = vsub.s32 0, %v1418
        %v1420 = vrot.slane %v1411, %v1419
        %v1421 = vlaneseq
        %v1422 = vshrl.u32 %v1421, 7
        %v1423 = vsub.s32 0, %v1422
        %v1424 = vrot.slane %v1410, %v1423
        %v1425 = vmul.f32 %v1415, %v1420
        %v1426 = vmul.f32 %v1415, %v1424
        %1427 = vset.pattern.permute.xlu0 1
        %1428 = vperm.xlu0 %1427, %v1062
        %v1429 = vpop.permute.xlu0 %1428
        %v1431 = vlaneseq
        %v1432 = vshrl.u32 %v1431, 7
        %v1433 = vsub.s32 1, %v1432
        %v1434 = vrot.slane %v1411, %v1433
        %v1435 = vlaneseq
        %v1436 = vshrl.u32 %v1435, 7
        %v1437 = vsub.s32 1, %v1436
        %v1438 = vrot.slane %v1410, %v1437
        %v1439 = vmul.f32 %v1429, %v1434
        %v1440 = vmul.f32 %v1429, %v1438
        %v1441 = vadd.f32 %v1425, %v1439
        %v1442 = vadd.f32 %v1426, %v1440
        %v1443 = vlaneseq
        %v1444 = vshrl.u32 %v1443, 7
        %v1445 = vsub.s32 0, %v1444
        %v1446 = vrot.slane %v1042, %v1445
        %v1447 = vlaneseq
        %v1448 = vshrl.u32 %v1447, 7
        %v1449 = vsub.s32 0, %v1448
        %v1450 = vrot.slane %v1043, %v1449
        %v1451 = vmul.f32 %v1441, %v1446
        %v1452 = vmul.f32 %v1442, %v1450
        %1453 = vrot.lane.b32.xlu0 %v1401, 16
        %v1454 = vpop.permute.xlu0 %1453
        %1455 = vrot.lane.b32.xlu0 %v1402, 16
        %v1456 = vpop.permute.xlu0 %1455
        %vm1457 = vcmp.lt.s32.totalorder %v1408, 16
        %v1458 = vsel %vm1457, %v1454, %v1456
        %v1459 = vsel %vm1457, %v1456, %v1454
        %v1460 = vlaneseq
        %v1461 = vshrl.u32 %v1460, 7
        %v1462 = vsub.s32 0, %v1461
        %v1463 = vrot.slane %v1459, %v1462
        %v1464 = vlaneseq
        %v1465 = vshrl.u32 %v1464, 7
        %v1466 = vsub.s32 0, %v1465
        %v1467 = vrot.slane %v1458, %v1466
        %v1468 = vmul.f32 %v1415, %v1463
        %v1469 = vmul.f32 %v1415, %v1467
        %v1470 = vlaneseq
        %v1471 = vshrl.u32 %v1470, 7
        %v1472 = vsub.s32 1, %v1471
        %v1473 = vrot.slane %v1459, %v1472
        %v1474 = vlaneseq
        %v1475 = vshrl.u32 %v1474, 7
        %v1476 = vsub.s32 1, %v1475
        %v1477 = vrot.slane %v1458, %v1476
        %v1478 = vmul.f32 %v1429, %v1473
        %v1479 = vmul.f32 %v1429, %v1477
        %v1480 = vadd.f32 %v1468, %v1478
        %v1481 = vadd.f32 %v1469, %v1479
        %v1482 = vlaneseq
        %v1483 = vshrl.u32 %v1482, 7
        %v1484 = vsub.s32 1, %v1483
        %v1485 = vrot.slane %v1042, %v1484
        %v1486 = vlaneseq
        %v1487 = vshrl.u32 %v1486, 7
        %v1488 = vsub.s32 1, %v1487
        %v1489 = vrot.slane %v1043, %v1488
        %v1490 = vmul.f32 %v1480, %v1485
        %v1491 = vmul.f32 %v1481, %v1489
        %v1494 = vrot.slane %v1490, 2
        %v1495 = vrot.slane %v1491, 2
        %v1498 = vadd.f32 %v1451, %v1494
        %v1499 = vadd.f32 %v1452, %v1495
        %1500 = vrot.lane.b32.xlu0 %v1401, 15
        %v1501 = vpop.permute.xlu0 %1500
        %1502 = vrot.lane.b32.xlu0 %v1402, 15
        %v1503 = vpop.permute.xlu0 %1502
        %vm1504 = vcmp.lt.s32.totalorder %v1408, 15
        %v1505 = vsel %vm1504, %v1501, %v1503
        %v1506 = vsel %vm1504, %v1503, %v1501
        %v1507 = vlaneseq
        %v1508 = vshrl.u32 %v1507, 7
        %v1509 = vsub.s32 0, %v1508
        %v1510 = vrot.slane %v1506, %v1509
        %v1511 = vlaneseq
        %v1512 = vshrl.u32 %v1511, 7
        %v1513 = vsub.s32 0, %v1512
        %v1514 = vrot.slane %v1505, %v1513
        %v1515 = vmul.f32 %v1415, %v1510
        %v1516 = vmul.f32 %v1415, %v1514
        %v1517 = vlaneseq
        %v1518 = vshrl.u32 %v1517, 7
        %v1519 = vsub.s32 1, %v1518
        %v1520 = vrot.slane %v1506, %v1519
        %v1521 = vlaneseq
        %v1522 = vshrl.u32 %v1521, 7
        %v1523 = vsub.s32 1, %v1522
        %v1524 = vrot.slane %v1505, %v1523
        %v1525 = vmul.f32 %v1429, %v1520
        %v1526 = vmul.f32 %v1429, %v1524
        %v1527 = vadd.f32 %v1515, %v1525
        %v1528 = vadd.f32 %v1516, %v1526
        %v1529 = vlaneseq
        %v1530 = vshrl.u32 %v1529, 7
        %v1531 = vsub.s32 2, %v1530
        %v1532 = vrot.slane %v1042, %v1531
        %v1533 = vlaneseq
        %v1534 = vshrl.u32 %v1533, 7
        %v1535 = vsub.s32 2, %v1534
        %v1536 = vrot.slane %v1043, %v1535
        %v1537 = vmul.f32 %v1527, %v1532
        %v1538 = vmul.f32 %v1528, %v1536
        %v1541 = vrot.slane %v1537, 4
        %v1542 = vrot.slane %v1538, 4
        %v1545 = vadd.f32 %v1498, %v1541
        %v1546 = vadd.f32 %v1499, %v1542
        %1547 = vrot.lane.b32.xlu0 %v1401, 1
        %v1548 = vpop.permute.xlu0 %1547
        %1549 = vrot.lane.b32.xlu0 %v1402, 1
        %v1550 = vpop.permute.xlu0 %1549
        %vm1551 = vcmp.lt.s32.totalorder %v1408, 1
        %v1552 = vsel %vm1551, %v1548, %v1550
        %v1553 = vsel %vm1551, %v1550, %v1548
        %v1554 = vlaneseq
        %v1555 = vshrl.u32 %v1554, 7
        %v1556 = vsub.s32 0, %v1555
        %v1557 = vrot.slane %v1553, %v1556
        %v1558 = vlaneseq
        %v1559 = vshrl.u32 %v1558, 7
        %v1560 = vsub.s32 0, %v1559
        %v1561 = vrot.slane %v1552, %v1560
        %v1562 = vmul.f32 %v1415, %v1557
        %v1563 = vmul.f32 %v1415, %v1561
        %v1564 = vlaneseq
        %v1565 = vshrl.u32 %v1564, 7
        %v1566 = vsub.s32 1, %v1565
        %v1567 = vrot.slane %v1553, %v1566
        %v1568 = vlaneseq
        %v1569 = vshrl.u32 %v1568, 7
        %v1570 = vsub.s32 1, %v1569
        %v1571 = vrot.slane %v1552, %v1570
        %v1572 = vmul.f32 %v1429, %v1567
        %v1573 = vmul.f32 %v1429, %v1571
        %v1574 = vadd.f32 %v1562, %v1572
        %v1575 = vadd.f32 %v1563, %v1573
        %v1576 = vlaneseq
        %v1577 = vshrl.u32 %v1576, 7
        %v1578 = vsub.s32 3, %v1577
        %v1579 = vrot.slane %v1042, %v1578
        %v1580 = vlaneseq
        %v1581 = vshrl.u32 %v1580, 7
        %v1582 = vsub.s32 3, %v1581
        %v1583 = vrot.slane %v1043, %v1582
        %v1584 = vmul.f32 %v1574, %v1579
        %v1585 = vmul.f32 %v1575, %v1583
        %v1588 = vrot.slane %v1584, 6
        %v1589 = vrot.slane %v1585, 6
        %v1592 = vadd.f32 %v1545, %v1588
        %v1593 = vadd.f32 %v1546, %v1589
        %1595 = vset.pattern.permute.xlu0 0
        %1596 = vperm.xlu0 %1595, %v1063
        %v1597 = vpop.permute.xlu0 %1596
        %v1599 = vlaneseq
        %v1600 = vshrl.u32 %v1599, 7
        %v1601 = vsub.s32 0, %v1600
        %v1602 = vrot.slane %v1401, %v1601
        %v1603 = vlaneseq
        %v1604 = vshrl.u32 %v1603, 7
        %v1605 = vsub.s32 0, %v1604
        %v1606 = vrot.slane %v1402, %v1605
        %v1607 = vmul.f32 %v1597, %v1602
        %v1608 = vmul.f32 %v1597, %v1606
        %1609 = vset.pattern.permute.xlu0 1
        %1610 = vperm.xlu0 %1609, %v1063
        %v1611 = vpop.permute.xlu0 %1610
        %v1613 = vlaneseq
        %v1614 = vshrl.u32 %v1613, 7
        %v1615 = vsub.s32 1, %v1614
        %v1616 = vrot.slane %v1401, %v1615
        %v1617 = vlaneseq
        %v1618 = vshrl.u32 %v1617, 7
        %v1619 = vsub.s32 1, %v1618
        %v1620 = vrot.slane %v1402, %v1619
        %v1621 = vmul.f32 %v1611, %v1616
        %v1622 = vmul.f32 %v1611, %v1620
        %v1623 = vadd.f32 %v1607, %v1621
        %v1624 = vadd.f32 %v1608, %v1622
        %v1625 = vlaneseq
        %v1626 = vshrl.u32 %v1625, 7
        %v1627 = vsub.s32 4, %v1626
        %v1628 = vrot.slane %v1042, %v1627
        %v1629 = vlaneseq
        %v1630 = vshrl.u32 %v1629, 7
        %v1631 = vsub.s32 4, %v1630
        %v1632 = vrot.slane %v1043, %v1631
        %v1633 = vmul.f32 %v1623, %v1628
        %v1634 = vmul.f32 %v1624, %v1632
        %v1635 = vadd.f32 %v1592, %v1633
        %v1636 = vadd.f32 %v1593, %v1634
        %1637 = vrot.lane.b32.xlu0 %v1401, 127
        %v1638 = vpop.permute.xlu0 %1637
        %1639 = vrot.lane.b32.xlu0 %v1402, 127
        %v1640 = vpop.permute.xlu0 %1639
        %vm1641 = vcmp.lt.s32.totalorder %v1408, 127
        %v1642 = vsel %vm1641, %v1638, %v1640
        %v1643 = vsel %vm1641, %v1640, %v1638
        %v1644 = vlaneseq
        %v1645 = vshrl.u32 %v1644, 7
        %v1646 = vsub.s32 0, %v1645
        %v1647 = vrot.slane %v1642, %v1646
        %v1648 = vlaneseq
        %v1649 = vshrl.u32 %v1648, 7
        %v1650 = vsub.s32 0, %v1649
        %v1651 = vrot.slane %v1643, %v1650
        %v1652 = vmul.f32 %v1597, %v1647
        %v1653 = vmul.f32 %v1597, %v1651
        %v1654 = vlaneseq
        %v1655 = vshrl.u32 %v1654, 7
        %v1656 = vsub.s32 1, %v1655
        %v1657 = vrot.slane %v1642, %v1656
        %v1658 = vlaneseq
        %v1659 = vshrl.u32 %v1658, 7
        %v1660 = vsub.s32 1, %v1659
        %v1661 = vrot.slane %v1643, %v1660
        %v1662 = vmul.f32 %v1611, %v1657
        %v1663 = vmul.f32 %v1611, %v1661
        %v1664 = vadd.f32 %v1652, %v1662
        %v1665 = vadd.f32 %v1653, %v1663
        %v1666 = vlaneseq
        %v1667 = vshrl.u32 %v1666, 7
        %v1668 = vsub.s32 5, %v1667
        %v1669 = vrot.slane %v1042, %v1668
        %v1670 = vlaneseq
        %v1671 = vshrl.u32 %v1670, 7
        %v1672 = vsub.s32 5, %v1671
        %v1673 = vrot.slane %v1043, %v1672
        %v1674 = vmul.f32 %v1664, %v1669
        %v1675 = vmul.f32 %v1665, %v1673
        %v1678 = vrot.slane %v1674, 2
        %v1679 = vrot.slane %v1675, 2
        %v1682 = vadd.f32 %v1635, %v1678
        %v1683 = vadd.f32 %v1636, %v1679
        %1684 = vrot.lane.b32.xlu0 %v1401, 113
        %v1685 = vpop.permute.xlu0 %1684
        %1686 = vrot.lane.b32.xlu0 %v1402, 113
        %v1687 = vpop.permute.xlu0 %1686
        %vm1688 = vcmp.lt.s32.totalorder %v1408, 113
        %v1689 = vsel %vm1688, %v1685, %v1687
        %v1690 = vsel %vm1688, %v1687, %v1685
        %v1691 = vlaneseq
        %v1692 = vshrl.u32 %v1691, 7
        %v1693 = vsub.s32 0, %v1692
        %v1694 = vrot.slane %v1689, %v1693
        %v1695 = vlaneseq
        %v1696 = vshrl.u32 %v1695, 7
        %v1697 = vsub.s32 0, %v1696
        %v1698 = vrot.slane %v1690, %v1697
        %v1699 = vmul.f32 %v1597, %v1694
        %v1700 = vmul.f32 %v1597, %v1698
        %v1701 = vlaneseq
        %v1702 = vshrl.u32 %v1701, 7
        %v1703 = vsub.s32 1, %v1702
        %v1704 = vrot.slane %v1689, %v1703
        %v1705 = vlaneseq
        %v1706 = vshrl.u32 %v1705, 7
        %v1707 = vsub.s32 1, %v1706
        %v1708 = vrot.slane %v1690, %v1707
        %v1709 = vmul.f32 %v1611, %v1704
        %v1710 = vmul.f32 %v1611, %v1708
        %v1711 = vadd.f32 %v1699, %v1709
        %v1712 = vadd.f32 %v1700, %v1710
        %v1713 = vlaneseq
        %v1714 = vshrl.u32 %v1713, 7
        %v1715 = vsub.s32 6, %v1714
        %v1716 = vrot.slane %v1042, %v1715
        %v1717 = vlaneseq
        %v1718 = vshrl.u32 %v1717, 7
        %v1719 = vsub.s32 6, %v1718
        %v1720 = vrot.slane %v1043, %v1719
        %v1721 = vmul.f32 %v1711, %v1716
        %v1722 = vmul.f32 %v1712, %v1720
        %v1725 = vrot.slane %v1721, 4
        %v1726 = vrot.slane %v1722, 4
        %v1729 = vadd.f32 %v1682, %v1725
        %v1730 = vadd.f32 %v1683, %v1726
        %1731 = vrot.lane.b32.xlu0 %v1401, 112
        %v1732 = vpop.permute.xlu0 %1731
        %1733 = vrot.lane.b32.xlu0 %v1402, 112
        %v1734 = vpop.permute.xlu0 %1733
        %vm1735 = vcmp.lt.s32.totalorder %v1408, 112
        %v1736 = vsel %vm1735, %v1732, %v1734
        %v1737 = vsel %vm1735, %v1734, %v1732
        %v1738 = vlaneseq
        %v1739 = vshrl.u32 %v1738, 7
        %v1740 = vsub.s32 0, %v1739
        %v1741 = vrot.slane %v1736, %v1740
        %v1742 = vlaneseq
        %v1743 = vshrl.u32 %v1742, 7
        %v1744 = vsub.s32 0, %v1743
        %v1745 = vrot.slane %v1737, %v1744
        %v1746 = vmul.f32 %v1597, %v1741
        %v1747 = vmul.f32 %v1597, %v1745
        %v1748 = vlaneseq
        %v1749 = vshrl.u32 %v1748, 7
        %v1750 = vsub.s32 1, %v1749
        %v1751 = vrot.slane %v1736, %v1750
        %v1752 = vlaneseq
        %v1753 = vshrl.u32 %v1752, 7
        %v1754 = vsub.s32 1, %v1753
        %v1755 = vrot.slane %v1737, %v1754
        %v1756 = vmul.f32 %v1611, %v1751
        %v1757 = vmul.f32 %v1611, %v1755
        %v1758 = vadd.f32 %v1746, %v1756
        %v1759 = vadd.f32 %v1747, %v1757
        %v1760 = vlaneseq
        %v1761 = vshrl.u32 %v1760, 7
        %v1762 = vsub.s32 7, %v1761
        %v1763 = vrot.slane %v1042, %v1762
        %v1764 = vlaneseq
        %v1765 = vshrl.u32 %v1764, 7
        %v1766 = vsub.s32 7, %v1765
        %v1767 = vrot.slane %v1043, %v1766
        %v1768 = vmul.f32 %v1758, %v1763
        %v1769 = vmul.f32 %v1759, %v1767
        %v1772 = vrot.slane %v1768, 6
        %v1773 = vrot.slane %v1769, 6
        %v1776 = vadd.f32 %v1729, %v1772
        %v1777 = vadd.f32 %v1730, %v1773
        %1778 = vrot.lane.b32.xlu0 %v1401, 111
        %v1779 = vpop.permute.xlu0 %1778
        %1780 = vrot.lane.b32.xlu0 %v1402, 111
        %v1781 = vpop.permute.xlu0 %1780
        %vm1782 = vcmp.lt.s32.totalorder %v1408, 111
        %v1783 = vsel %vm1782, %v1779, %v1781
        %v1784 = vsel %vm1782, %v1781, %v1779
        %1786 = vset.pattern.permute.xlu0 0
        %1787 = vperm.xlu0 %1786, %v1064
        %v1788 = vpop.permute.xlu0 %1787
        %v1790 = vlaneseq
        %v1791 = vshrl.u32 %v1790, 7
        %v1792 = vsub.s32 0, %v1791
        %v1793 = vrot.slane %v1783, %v1792
        %v1794 = vlaneseq
        %v1795 = vshrl.u32 %v1794, 7
        %v1796 = vsub.s32 0, %v1795
        %v1797 = vrot.slane %v1784, %v1796
        %v1798 = vmul.f32 %v1788, %v1793
        %v1799 = vmul.f32 %v1788, %v1797
        %1800 = vset.pattern.permute.xlu0 1
        %1801 = vperm.xlu0 %1800, %v1064
        %v1802 = vpop.permute.xlu0 %1801
        %v1804 = vlaneseq
        %v1805 = vshrl.u32 %v1804, 7
        %v1806 = vsub.s32 1, %v1805
        %v1807 = vrot.slane %v1783, %v1806
        %v1808 = vlaneseq
        %v1809 = vshrl.u32 %v1808, 7
        %v1810 = vsub.s32 1, %v1809
        %v1811 = vrot.slane %v1784, %v1810
        %v1812 = vmul.f32 %v1802, %v1807
        %v1813 = vmul.f32 %v1802, %v1811
        %v1814 = vadd.f32 %v1798, %v1812
        %v1815 = vadd.f32 %v1799, %v1813
        %v1816 = vlaneseq
        %v1817 = vshrl.u32 %v1816, 7
        %v1818 = vsub.s32 0, %v1817
        %v1819 = vrot.slane %v1044, %v1818
        %v1820 = vlaneseq
        %v1821 = vshrl.u32 %v1820, 7
        %v1822 = vsub.s32 0, %v1821
        %v1823 = vrot.slane %v1045, %v1822
        %v1824 = vmul.f32 %v1814, %v1819
        %v1825 = vmul.f32 %v1815, %v1823
        %v1826 = vadd.f32 %v1776, %v1824
        %v1827 = vadd.f32 %v1777, %v1825
        %1829 = vset.pattern.permute.xlu0 0
        %1830 = vperm.xlu0 %1829, %v1065
        %v1831 = vpop.permute.xlu0 %1830
        %v1833 = vadd.f32 %v1826, %v1831
        %v1834 = vadd.f32 %v1827, %v1831
        %1835 = vrot.lane.b32.xlu0 %v1833, 51
        %v1836 = vpop.permute.xlu0 %1835
        %1837 = vrot.lane.b32.xlu0 %v1834, 51
        %v1838 = vpop.permute.xlu0 %1837
        %vm1839 = vcmp.lt.s32.totalorder %v1408, 51
        %v1840 = vsel %vm1839, %v1836, %v1838
        %v1841 = vsel %vm1839, %v1838, %v1836
        %1843 = vset.pattern.permute.xlu0 0
        %1844 = vperm.xlu0 %1843, %v1066
        %v1845 = vpop.permute.xlu0 %1844
        %v1847 = vlaneseq
        %v1848 = vshrl.u32 %v1847, 7
        %v1849 = vsub.s32 0, %v1848
        %v1850 = vrot.slane %v1841, %v1849
        %v1851 = vlaneseq
        %v1852 = vshrl.u32 %v1851, 7
        %v1853 = vsub.s32 0, %v1852
        %v1854 = vrot.slane %v1840, %v1853
        %v1855 = vmul.f32 %v1845, %v1850
        %v1856 = vmul.f32 %v1845, %v1854
        %1857 = vset.pattern.permute.xlu0 1
        %1858 = vperm.xlu0 %1857, %v1066
        %v1859 = vpop.permute.xlu0 %1858
        %v1861 = vlaneseq
        %v1862 = vshrl.u32 %v1861, 7
        %v1863 = vsub.s32 1, %v1862
        %v1864 = vrot.slane %v1841, %v1863
        %v1865 = vlaneseq
        %v1866 = vshrl.u32 %v1865, 7
        %v1867 = vsub.s32 1, %v1866
        %v1868 = vrot.slane %v1840, %v1867
        %v1869 = vmul.f32 %v1859, %v1864
        %v1870 = vmul.f32 %v1859, %v1868
        %v1871 = vadd.f32 %v1855, %v1869
        %v1872 = vadd.f32 %v1856, %v1870
        %v1875 = vrot.slane %v1401, 2
        %v1876 = vrot.slane %v1402, 2
        %1879 = vrot.lane.b32.xlu0 %v1875, 51
        %v1880 = vpop.permute.xlu0 %1879
        %1881 = vrot.lane.b32.xlu0 %v1876, 51
        %v1882 = vpop.permute.xlu0 %1881
        %v1883 = vsel %vm1839, %v1880, %v1882
        %v1884 = vsel %vm1839, %v1882, %v1880
        %1886 = vset.pattern.permute.xlu0 0
        %1887 = vperm.xlu0 %1886, %v1069
        %v1888 = vpop.permute.xlu0 %1887
        %v1890 = vlaneseq
        %v1891 = vshrl.u32 %v1890, 7
        %v1892 = vsub.s32 0, %v1891
        %v1893 = vrot.slane %v1884, %v1892
        %v1894 = vlaneseq
        %v1895 = vshrl.u32 %v1894, 7
        %v1896 = vsub.s32 0, %v1895
        %v1897 = vrot.slane %v1883, %v1896
        %v1898 = vmul.f32 %v1888, %v1893
        %v1899 = vmul.f32 %v1888, %v1897
        %1900 = vset.pattern.permute.xlu0 1
        %1901 = vperm.xlu0 %1900, %v1069
        %v1902 = vpop.permute.xlu0 %1901
        %v1904 = vlaneseq
        %v1905 = vshrl.u32 %v1904, 7
        %v1906 = vsub.s32 1, %v1905
        %v1907 = vrot.slane %v1884, %v1906
        %v1908 = vlaneseq
        %v1909 = vshrl.u32 %v1908, 7
        %v1910 = vsub.s32 1, %v1909
        %v1911 = vrot.slane %v1883, %v1910
        %v1912 = vmul.f32 %v1902, %v1907
        %v1913 = vmul.f32 %v1902, %v1911
        %v1914 = vadd.f32 %v1898, %v1912
        %v1915 = vadd.f32 %v1899, %v1913
        %v1916 = vadd.f32 %v1871, %v1914
        %v1917 = vadd.f32 %v1872, %v1915
        %v1918 = vlaneseq
        %v1919 = vshrl.u32 %v1918, 7
        %v1920 = vsub.s32 0, %v1919
        %v1921 = vrot.slane %v1046, %v1920
        %v1922 = vlaneseq
        %v1923 = vshrl.u32 %v1922, 7
        %v1924 = vsub.s32 0, %v1923
        %v1925 = vrot.slane %v1047, %v1924
        %v1926 = vmul.f32 %v1916, %v1921
        %v1927 = vmul.f32 %v1917, %v1925
        %1928 = vrot.lane.b32.xlu0 %v1833, 48
        %v1929 = vpop.permute.xlu0 %1928
        %1930 = vrot.lane.b32.xlu0 %v1834, 48
        %v1931 = vpop.permute.xlu0 %1930
        %vm1932 = vcmp.lt.s32.totalorder %v1408, 48
        %v1933 = vsel %vm1932, %v1929, %v1931
        %v1934 = vsel %vm1932, %v1931, %v1929
        %v1935 = vlaneseq
        %v1936 = vshrl.u32 %v1935, 7
        %v1937 = vsub.s32 0, %v1936
        %v1938 = vrot.slane %v1934, %v1937
        %v1939 = vlaneseq
        %v1940 = vshrl.u32 %v1939, 7
        %v1941 = vsub.s32 0, %v1940
        %v1942 = vrot.slane %v1933, %v1941
        %v1943 = vmul.f32 %v1845, %v1938
        %v1944 = vmul.f32 %v1845, %v1942
        %v1945 = vlaneseq
        %v1946 = vshrl.u32 %v1945, 7
        %v1947 = vsub.s32 1, %v1946
        %v1948 = vrot.slane %v1934, %v1947
        %v1949 = vlaneseq
        %v1950 = vshrl.u32 %v1949, 7
        %v1951 = vsub.s32 1, %v1950
        %v1952 = vrot.slane %v1933, %v1951
        %v1953 = vmul.f32 %v1859, %v1948
        %v1954 = vmul.f32 %v1859, %v1952
        %v1955 = vadd.f32 %v1943, %v1953
        %v1956 = vadd.f32 %v1944, %v1954
        %1957 = vrot.lane.b32.xlu0 %v1875, 48
        %v1958 = vpop.permute.xlu0 %1957
        %1959 = vrot.lane.b32.xlu0 %v1876, 48
        %v1960 = vpop.permute.xlu0 %1959
        %v1961 = vsel %vm1932, %v1958, %v1960
        %v1962 = vsel %vm1932, %v1960, %v1958
        %v1963 = vlaneseq
        %v1964 = vshrl.u32 %v1963, 7
        %v1965 = vsub.s32 0, %v1964
        %v1966 = vrot.slane %v1962, %v1965
        %v1967 = vlaneseq
        %v1968 = vshrl.u32 %v1967, 7
        %v1969 = vsub.s32 0, %v1968
        %v1970 = vrot.slane %v1961, %v1969
        %v1971 = vmul.f32 %v1888, %v1966
        %v1972 = vmul.f32 %v1888, %v1970
        %v1973 = vlaneseq
        %v1974 = vshrl.u32 %v1973, 7
        %v1975 = vsub.s32 1, %v1974
        %v1976 = vrot.slane %v1962, %v1975
        %v1977 = vlaneseq
        %v1978 = vshrl.u32 %v1977, 7
        %v1979 = vsub.s32 1, %v1978
        %v1980 = vrot.slane %v1961, %v1979
        %v1981 = vmul.f32 %v1902, %v1976
        %v1982 = vmul.f32 %v1902, %v1980
        %v1983 = vadd.f32 %v1971, %v1981
        %v1984 = vadd.f32 %v1972, %v1982
        %v1985 = vadd.f32 %v1955, %v1983
        %v1986 = vadd.f32 %v1956, %v1984
        %v1987 = vlaneseq
        %v1988 = vshrl.u32 %v1987, 7
        %v1989 = vsub.s32 1, %v1988
        %v1990 = vrot.slane %v1046, %v1989
        %v1991 = vlaneseq
        %v1992 = vshrl.u32 %v1991, 7
        %v1993 = vsub.s32 1, %v1992
        %v1994 = vrot.slane %v1047, %v1993
        %v1995 = vmul.f32 %v1985, %v1990
        %v1996 = vmul.f32 %v1986, %v1994
        %v1999 = vrot.slane %v1995, 2
        %v2000 = vrot.slane %v1996, 2
        %v2003 = vadd.f32 %v1926, %v1999
        %v2004 = vadd.f32 %v1927, %v2000
        %2005 = vrot.lane.b32.xlu0 %v1833, 45
        %v2006 = vpop.permute.xlu0 %2005
        %2007 = vrot.lane.b32.xlu0 %v1834, 45
        %v2008 = vpop.permute.xlu0 %2007
        %vm2009 = vcmp.lt.s32.totalorder %v1408, 45
        %v2010 = vsel %vm2009, %v2006, %v2008
        %v2011 = vsel %vm2009, %v2008, %v2006
        %v2012 = vlaneseq
        %v2013 = vshrl.u32 %v2012, 7
        %v2014 = vsub.s32 0, %v2013
        %v2015 = vrot.slane %v2011, %v2014
        %v2016 = vlaneseq
        %v2017 = vshrl.u32 %v2016, 7
        %v2018 = vsub.s32 0, %v2017
        %v2019 = vrot.slane %v2010, %v2018
        %v2020 = vmul.f32 %v1845, %v2015
        %v2021 = vmul.f32 %v1845, %v2019
        %v2022 = vlaneseq
        %v2023 = vshrl.u32 %v2022, 7
        %v2024 = vsub.s32 1, %v2023
        %v2025 = vrot.slane %v2011, %v2024
        %v2026 = vlaneseq
        %v2027 = vshrl.u32 %v2026, 7
        %v2028 = vsub.s32 1, %v2027
        %v2029 = vrot.slane %v2010, %v2028
        %v2030 = vmul.f32 %v1859, %v2025
        %v2031 = vmul.f32 %v1859, %v2029
        %v2032 = vadd.f32 %v2020, %v2030
        %v2033 = vadd.f32 %v2021, %v2031
        %2034 = vrot.lane.b32.xlu0 %v1875, 45
        %v2035 = vpop.permute.xlu0 %2034
        %2036 = vrot.lane.b32.xlu0 %v1876, 45
        %v2037 = vpop.permute.xlu0 %2036
        %v2038 = vsel %vm2009, %v2035, %v2037
        %v2039 = vsel %vm2009, %v2037, %v2035
        %v2040 = vlaneseq
        %v2041 = vshrl.u32 %v2040, 7
        %v2042 = vsub.s32 0, %v2041
        %v2043 = vrot.slane %v2039, %v2042
        %v2044 = vlaneseq
        %v2045 = vshrl.u32 %v2044, 7
        %v2046 = vsub.s32 0, %v2045
        %v2047 = vrot.slane %v2038, %v2046
        %v2048 = vmul.f32 %v1888, %v2043
        %v2049 = vmul.f32 %v1888, %v2047
        %v2050 = vlaneseq
        %v2051 = vshrl.u32 %v2050, 7
        %v2052 = vsub.s32 1, %v2051
        %v2053 = vrot.slane %v2039, %v2052
        %v2054 = vlaneseq
        %v2055 = vshrl.u32 %v2054, 7
        %v2056 = vsub.s32 1, %v2055
        %v2057 = vrot.slane %v2038, %v2056
        %v2058 = vmul.f32 %v1902, %v2053
        %v2059 = vmul.f32 %v1902, %v2057
        %v2060 = vadd.f32 %v2048, %v2058
        %v2061 = vadd.f32 %v2049, %v2059
        %v2062 = vadd.f32 %v2032, %v2060
        %v2063 = vadd.f32 %v2033, %v2061
        %v2064 = vlaneseq
        %v2065 = vshrl.u32 %v2064, 7
        %v2066 = vsub.s32 2, %v2065
        %v2067 = vrot.slane %v1046, %v2066
        %v2068 = vlaneseq
        %v2069 = vshrl.u32 %v2068, 7
        %v2070 = vsub.s32 2, %v2069
        %v2071 = vrot.slane %v1047, %v2070
        %v2072 = vmul.f32 %v2062, %v2067
        %v2073 = vmul.f32 %v2063, %v2071
        %v2076 = vrot.slane %v2072, 4
        %v2077 = vrot.slane %v2073, 4
        %v2080 = vadd.f32 %v2003, %v2076
        %v2081 = vadd.f32 %v2004, %v2077
        %2082 = vrot.lane.b32.xlu0 %v1833, 3
        %v2083 = vpop.permute.xlu0 %2082
        %2084 = vrot.lane.b32.xlu0 %v1834, 3
        %v2085 = vpop.permute.xlu0 %2084
        %vm2086 = vcmp.lt.s32.totalorder %v1408, 3
        %v2087 = vsel %vm2086, %v2083, %v2085
        %v2088 = vsel %vm2086, %v2085, %v2083
        %v2089 = vlaneseq
        %v2090 = vshrl.u32 %v2089, 7
        %v2091 = vsub.s32 0, %v2090
        %v2092 = vrot.slane %v2088, %v2091
        %v2093 = vlaneseq
        %v2094 = vshrl.u32 %v2093, 7
        %v2095 = vsub.s32 0, %v2094
        %v2096 = vrot.slane %v2087, %v2095
        %v2097 = vmul.f32 %v1845, %v2092
        %v2098 = vmul.f32 %v1845, %v2096
        %v2099 = vlaneseq
        %v2100 = vshrl.u32 %v2099, 7
        %v2101 = vsub.s32 1, %v2100
        %v2102 = vrot.slane %v2088, %v2101
        %v2103 = vlaneseq
        %v2104 = vshrl.u32 %v2103, 7
        %v2105 = vsub.s32 1, %v2104
        %v2106 = vrot.slane %v2087, %v2105
        %v2107 = vmul.f32 %v1859, %v2102
        %v2108 = vmul.f32 %v1859, %v2106
        %v2109 = vadd.f32 %v2097, %v2107
        %v2110 = vadd.f32 %v2098, %v2108
        %2111 = vrot.lane.b32.xlu0 %v1875, 3
        %v2112 = vpop.permute.xlu0 %2111
        %2113 = vrot.lane.b32.xlu0 %v1876, 3
        %v2114 = vpop.permute.xlu0 %2113
        %v2115 = vsel %vm2086, %v2112, %v2114
        %v2116 = vsel %vm2086, %v2114, %v2112
        %v2117 = vlaneseq
        %v2118 = vshrl.u32 %v2117, 7
        %v2119 = vsub.s32 0, %v2118
        %v2120 = vrot.slane %v2116, %v2119
        %v2121 = vlaneseq
        %v2122 = vshrl.u32 %v2121, 7
        %v2123 = vsub.s32 0, %v2122
        %v2124 = vrot.slane %v2115, %v2123
        %v2125 = vmul.f32 %v1888, %v2120
        %v2126 = vmul.f32 %v1888, %v2124
        %v2127 = vlaneseq
        %v2128 = vshrl.u32 %v2127, 7
        %v2129 = vsub.s32 1, %v2128
        %v2130 = vrot.slane %v2116, %v2129
        %v2131 = vlaneseq
        %v2132 = vshrl.u32 %v2131, 7
        %v2133 = vsub.s32 1, %v2132
        %v2134 = vrot.slane %v2115, %v2133
        %v2135 = vmul.f32 %v1902, %v2130
        %v2136 = vmul.f32 %v1902, %v2134
        %v2137 = vadd.f32 %v2125, %v2135
        %v2138 = vadd.f32 %v2126, %v2136
        %v2139 = vadd.f32 %v2109, %v2137
        %v2140 = vadd.f32 %v2110, %v2138
        %v2141 = vlaneseq
        %v2142 = vshrl.u32 %v2141, 7
        %v2143 = vsub.s32 3, %v2142
        %v2144 = vrot.slane %v1046, %v2143
        %v2145 = vlaneseq
        %v2146 = vshrl.u32 %v2145, 7
        %v2147 = vsub.s32 3, %v2146
        %v2148 = vrot.slane %v1047, %v2147
        %v2149 = vmul.f32 %v2139, %v2144
        %v2150 = vmul.f32 %v2140, %v2148
        %v2153 = vrot.slane %v2149, 6
        %v2154 = vrot.slane %v2150, 6
        %v2157 = vadd.f32 %v2080, %v2153
        %v2158 = vadd.f32 %v2081, %v2154
        %2160 = vset.pattern.permute.xlu0 0
        %2161 = vperm.xlu0 %2160, %v1067
        %v2162 = vpop.permute.xlu0 %2161
        %v2164 = vlaneseq
        %v2165 = vshrl.u32 %v2164, 7
        %v2166 = vsub.s32 0, %v2165
        %v2167 = vrot.slane %v1833, %v2166
        %v2168 = vlaneseq
        %v2169 = vshrl.u32 %v2168, 7
        %v2170 = vsub.s32 0, %v2169
        %v2171 = vrot.slane %v1834, %v2170
        %v2172 = vmul.f32 %v2162, %v2167
        %v2173 = vmul.f32 %v2162, %v2171
        %2174 = vset.pattern.permute.xlu0 1
        %2175 = vperm.xlu0 %2174, %v1067
        %v2176 = vpop.permute.xlu0 %2175
        %v2178 = vlaneseq
        %v2179 = vshrl.u32 %v2178, 7
        %v2180 = vsub.s32 1, %v2179
        %v2181 = vrot.slane %v1833, %v2180
        %v2182 = vlaneseq
        %v2183 = vshrl.u32 %v2182, 7
        %v2184 = vsub.s32 1, %v2183
        %v2185 = vrot.slane %v1834, %v2184
        %v2186 = vmul.f32 %v2176, %v2181
        %v2187 = vmul.f32 %v2176, %v2185
        %v2188 = vadd.f32 %v2172, %v2186
        %v2189 = vadd.f32 %v2173, %v2187
        %2191 = vset.pattern.permute.xlu0 0
        %2192 = vperm.xlu0 %2191, %v1070
        %v2193 = vpop.permute.xlu0 %2192
        %v2195 = vlaneseq
        %v2196 = vshrl.u32 %v2195, 7
        %v2197 = vsub.s32 2, %v2196
        %v2198 = vrot.slane %v1401, %v2197
        %v2199 = vlaneseq
        %v2200 = vshrl.u32 %v2199, 7
        %v2201 = vsub.s32 2, %v2200
        %v2202 = vrot.slane %v1402, %v2201
        %v2203 = vmul.f32 %v2193, %v2198
        %v2204 = vmul.f32 %v2193, %v2202
        %2205 = vset.pattern.permute.xlu0 1
        %2206 = vperm.xlu0 %2205, %v1070
        %v2207 = vpop.permute.xlu0 %2206
        %v2209 = vlaneseq
        %v2210 = vshrl.u32 %v2209, 7
        %v2211 = vsub.s32 3, %v2210
        %v2212 = vrot.slane %v1401, %v2211
        %v2213 = vlaneseq
        %v2214 = vshrl.u32 %v2213, 7
        %v2215 = vsub.s32 3, %v2214
        %v2216 = vrot.slane %v1402, %v2215
        %v2217 = vmul.f32 %v2207, %v2212
        %v2218 = vmul.f32 %v2207, %v2216
        %v2219 = vadd.f32 %v2203, %v2217
        %v2220 = vadd.f32 %v2204, %v2218
        %v2221 = vadd.f32 %v2188, %v2219
        %v2222 = vadd.f32 %v2189, %v2220
        %v2223 = vlaneseq
        %v2224 = vshrl.u32 %v2223, 7
        %v2225 = vsub.s32 4, %v2224
        %v2226 = vrot.slane %v1046, %v2225
        %v2227 = vlaneseq
        %v2228 = vshrl.u32 %v2227, 7
        %v2229 = vsub.s32 4, %v2228
        %v2230 = vrot.slane %v1047, %v2229
        %v2231 = vmul.f32 %v2221, %v2226
        %v2232 = vmul.f32 %v2222, %v2230
        %v2233 = vadd.f32 %v2157, %v2231
        %v2234 = vadd.f32 %v2158, %v2232
        %2235 = vrot.lane.b32.xlu0 %v1833, 125
        %v2236 = vpop.permute.xlu0 %2235
        %2237 = vrot.lane.b32.xlu0 %v1834, 125
        %v2238 = vpop.permute.xlu0 %2237
        %vm2239 = vcmp.lt.s32.totalorder %v1408, 125
        %v2240 = vsel %vm2239, %v2236, %v2238
        %v2241 = vsel %vm2239, %v2238, %v2236
        %v2242 = vlaneseq
        %v2243 = vshrl.u32 %v2242, 7
        %v2244 = vsub.s32 0, %v2243
        %v2245 = vrot.slane %v2240, %v2244
        %v2246 = vlaneseq
        %v2247 = vshrl.u32 %v2246, 7
        %v2248 = vsub.s32 0, %v2247
        %v2249 = vrot.slane %v2241, %v2248
        %v2250 = vmul.f32 %v2162, %v2245
        %v2251 = vmul.f32 %v2162, %v2249
        %v2252 = vlaneseq
        %v2253 = vshrl.u32 %v2252, 7
        %v2254 = vsub.s32 1, %v2253
        %v2255 = vrot.slane %v2240, %v2254
        %v2256 = vlaneseq
        %v2257 = vshrl.u32 %v2256, 7
        %v2258 = vsub.s32 1, %v2257
        %v2259 = vrot.slane %v2241, %v2258
        %v2260 = vmul.f32 %v2176, %v2255
        %v2261 = vmul.f32 %v2176, %v2259
        %v2262 = vadd.f32 %v2250, %v2260
        %v2263 = vadd.f32 %v2251, %v2261
        %2264 = vrot.lane.b32.xlu0 %v1875, 125
        %v2265 = vpop.permute.xlu0 %2264
        %2266 = vrot.lane.b32.xlu0 %v1876, 125
        %v2267 = vpop.permute.xlu0 %2266
        %v2268 = vsel %vm2239, %v2265, %v2267
        %v2269 = vsel %vm2239, %v2267, %v2265
        %v2270 = vlaneseq
        %v2271 = vshrl.u32 %v2270, 7
        %v2272 = vsub.s32 0, %v2271
        %v2273 = vrot.slane %v2268, %v2272
        %v2274 = vlaneseq
        %v2275 = vshrl.u32 %v2274, 7
        %v2276 = vsub.s32 0, %v2275
        %v2277 = vrot.slane %v2269, %v2276
        %v2278 = vmul.f32 %v2193, %v2273
        %v2279 = vmul.f32 %v2193, %v2277
        %v2280 = vlaneseq
        %v2281 = vshrl.u32 %v2280, 7
        %v2282 = vsub.s32 1, %v2281
        %v2283 = vrot.slane %v2268, %v2282
        %v2284 = vlaneseq
        %v2285 = vshrl.u32 %v2284, 7
        %v2286 = vsub.s32 1, %v2285
        %v2287 = vrot.slane %v2269, %v2286
        %v2288 = vmul.f32 %v2207, %v2283
        %v2289 = vmul.f32 %v2207, %v2287
        %v2290 = vadd.f32 %v2278, %v2288
        %v2291 = vadd.f32 %v2279, %v2289
        %v2292 = vadd.f32 %v2262, %v2290
        %v2293 = vadd.f32 %v2263, %v2291
        %v2294 = vlaneseq
        %v2295 = vshrl.u32 %v2294, 7
        %v2296 = vsub.s32 5, %v2295
        %v2297 = vrot.slane %v1046, %v2296
        %v2298 = vlaneseq
        %v2299 = vshrl.u32 %v2298, 7
        %v2300 = vsub.s32 5, %v2299
        %v2301 = vrot.slane %v1047, %v2300
        %v2302 = vmul.f32 %v2292, %v2297
        %v2303 = vmul.f32 %v2293, %v2301
        %v2306 = vrot.slane %v2302, 2
        %v2307 = vrot.slane %v2303, 2
        %v2310 = vadd.f32 %v2233, %v2306
        %v2311 = vadd.f32 %v2234, %v2307
        %2312 = vrot.lane.b32.xlu0 %v1833, 83
        %v2313 = vpop.permute.xlu0 %2312
        %2314 = vrot.lane.b32.xlu0 %v1834, 83
        %v2315 = vpop.permute.xlu0 %2314
        %vm2316 = vcmp.lt.s32.totalorder %v1408, 83
        %v2317 = vsel %vm2316, %v2313, %v2315
        %v2318 = vsel %vm2316, %v2315, %v2313
        %v2319 = vlaneseq
        %v2320 = vshrl.u32 %v2319, 7
        %v2321 = vsub.s32 0, %v2320
        %v2322 = vrot.slane %v2317, %v2321
        %v2323 = vlaneseq
        %v2324 = vshrl.u32 %v2323, 7
        %v2325 = vsub.s32 0, %v2324
        %v2326 = vrot.slane %v2318, %v2325
        %v2327 = vmul.f32 %v2162, %v2322
        %v2328 = vmul.f32 %v2162, %v2326
        %v2329 = vlaneseq
        %v2330 = vshrl.u32 %v2329, 7
        %v2331 = vsub.s32 1, %v2330
        %v2332 = vrot.slane %v2317, %v2331
        %v2333 = vlaneseq
        %v2334 = vshrl.u32 %v2333, 7
        %v2335 = vsub.s32 1, %v2334
        %v2336 = vrot.slane %v2318, %v2335
        %v2337 = vmul.f32 %v2176, %v2332
        %v2338 = vmul.f32 %v2176, %v2336
        %v2339 = vadd.f32 %v2327, %v2337
        %v2340 = vadd.f32 %v2328, %v2338
        %2341 = vrot.lane.b32.xlu0 %v1875, 83
        %v2342 = vpop.permute.xlu0 %2341
        %2343 = vrot.lane.b32.xlu0 %v1876, 83
        %v2344 = vpop.permute.xlu0 %2343
        %v2345 = vsel %vm2316, %v2342, %v2344
        %v2346 = vsel %vm2316, %v2344, %v2342
        %v2347 = vlaneseq
        %v2348 = vshrl.u32 %v2347, 7
        %v2349 = vsub.s32 0, %v2348
        %v2350 = vrot.slane %v2345, %v2349
        %v2351 = vlaneseq
        %v2352 = vshrl.u32 %v2351, 7
        %v2353 = vsub.s32 0, %v2352
        %v2354 = vrot.slane %v2346, %v2353
        %v2355 = vmul.f32 %v2193, %v2350
        %v2356 = vmul.f32 %v2193, %v2354
        %v2357 = vlaneseq
        %v2358 = vshrl.u32 %v2357, 7
        %v2359 = vsub.s32 1, %v2358
        %v2360 = vrot.slane %v2345, %v2359
        %v2361 = vlaneseq
        %v2362 = vshrl.u32 %v2361, 7
        %v2363 = vsub.s32 1, %v2362
        %v2364 = vrot.slane %v2346, %v2363
        %v2365 = vmul.f32 %v2207, %v2360
        %v2366 = vmul.f32 %v2207, %v2364
        %v2367 = vadd.f32 %v2355, %v2365
        %v2368 = vadd.f32 %v2356, %v2366
        %v2369 = vadd.f32 %v2339, %v2367
        %v2370 = vadd.f32 %v2340, %v2368
        %v2371 = vlaneseq
        %v2372 = vshrl.u32 %v2371, 7
        %v2373 = vsub.s32 6, %v2372
        %v2374 = vrot.slane %v1046, %v2373
        %v2375 = vlaneseq
        %v2376 = vshrl.u32 %v2375, 7
        %v2377 = vsub.s32 6, %v2376
        %v2378 = vrot.slane %v1047, %v2377
        %v2379 = vmul.f32 %v2369, %v2374
        %v2380 = vmul.f32 %v2370, %v2378
        %v2383 = vrot.slane %v2379, 4
        %v2384 = vrot.slane %v2380, 4
        %v2387 = vadd.f32 %v2310, %v2383
        %v2388 = vadd.f32 %v2311, %v2384
        %2389 = vrot.lane.b32.xlu0 %v1833, 80
        %v2390 = vpop.permute.xlu0 %2389
        %2391 = vrot.lane.b32.xlu0 %v1834, 80
        %v2392 = vpop.permute.xlu0 %2391
        %vm2393 = vcmp.lt.s32.totalorder %v1408, 80
        %v2394 = vsel %vm2393, %v2390, %v2392
        %v2395 = vsel %vm2393, %v2392, %v2390
        %v2396 = vlaneseq
        %v2397 = vshrl.u32 %v2396, 7
        %v2398 = vsub.s32 0, %v2397
        %v2399 = vrot.slane %v2394, %v2398
        %v2400 = vlaneseq
        %v2401 = vshrl.u32 %v2400, 7
        %v2402 = vsub.s32 0, %v2401
        %v2403 = vrot.slane %v2395, %v2402
        %v2404 = vmul.f32 %v2162, %v2399
        %v2405 = vmul.f32 %v2162, %v2403
        %v2406 = vlaneseq
        %v2407 = vshrl.u32 %v2406, 7
        %v2408 = vsub.s32 1, %v2407
        %v2409 = vrot.slane %v2394, %v2408
        %v2410 = vlaneseq
        %v2411 = vshrl.u32 %v2410, 7
        %v2412 = vsub.s32 1, %v2411
        %v2413 = vrot.slane %v2395, %v2412
        %v2414 = vmul.f32 %v2176, %v2409
        %v2415 = vmul.f32 %v2176, %v2413
        %v2416 = vadd.f32 %v2404, %v2414
        %v2417 = vadd.f32 %v2405, %v2415
        %2418 = vrot.lane.b32.xlu0 %v1875, 80
        %v2419 = vpop.permute.xlu0 %2418
        %2420 = vrot.lane.b32.xlu0 %v1876, 80
        %v2421 = vpop.permute.xlu0 %2420
        %v2422 = vsel %vm2393, %v2419, %v2421
        %v2423 = vsel %vm2393, %v2421, %v2419
        %v2424 = vlaneseq
        %v2425 = vshrl.u32 %v2424, 7
        %v2426 = vsub.s32 0, %v2425
        %v2427 = vrot.slane %v2422, %v2426
        %v2428 = vlaneseq
        %v2429 = vshrl.u32 %v2428, 7
        %v2430 = vsub.s32 0, %v2429
        %v2431 = vrot.slane %v2423, %v2430
        %v2432 = vmul.f32 %v2193, %v2427
        %v2433 = vmul.f32 %v2193, %v2431
        %v2434 = vlaneseq
        %v2435 = vshrl.u32 %v2434, 7
        %v2436 = vsub.s32 1, %v2435
        %v2437 = vrot.slane %v2422, %v2436
        %v2438 = vlaneseq
        %v2439 = vshrl.u32 %v2438, 7
        %v2440 = vsub.s32 1, %v2439
        %v2441 = vrot.slane %v2423, %v2440
        %v2442 = vmul.f32 %v2207, %v2437
        %v2443 = vmul.f32 %v2207, %v2441
        %v2444 = vadd.f32 %v2432, %v2442
        %v2445 = vadd.f32 %v2433, %v2443
        %v2446 = vadd.f32 %v2416, %v2444
        %v2447 = vadd.f32 %v2417, %v2445
        %v2448 = vlaneseq
        %v2449 = vshrl.u32 %v2448, 7
        %v2450 = vsub.s32 7, %v2449
        %v2451 = vrot.slane %v1046, %v2450
        %v2452 = vlaneseq
        %v2453 = vshrl.u32 %v2452, 7
        %v2454 = vsub.s32 7, %v2453
        %v2455 = vrot.slane %v1047, %v2454
        %v2456 = vmul.f32 %v2446, %v2451
        %v2457 = vmul.f32 %v2447, %v2455
        %v2460 = vrot.slane %v2456, 6
        %v2461 = vrot.slane %v2457, 6
        %v2464 = vadd.f32 %v2387, %v2460
        %v2465 = vadd.f32 %v2388, %v2461
        %2466 = vrot.lane.b32.xlu0 %v1833, 77
        %v2467 = vpop.permute.xlu0 %2466
        %2468 = vrot.lane.b32.xlu0 %v1834, 77
        %v2469 = vpop.permute.xlu0 %2468
        %vm2470 = vcmp.lt.s32.totalorder %v1408, 77
        %v2471 = vsel %vm2470, %v2467, %v2469
        %v2472 = vsel %vm2470, %v2469, %v2467
        %2474 = vset.pattern.permute.xlu0 0
        %2475 = vperm.xlu0 %2474, %v1068
        %v2476 = vpop.permute.xlu0 %2475
        %v2478 = vlaneseq
        %v2479 = vshrl.u32 %v2478, 7
        %v2480 = vsub.s32 0, %v2479
        %v2481 = vrot.slane %v2471, %v2480
        %v2482 = vlaneseq
        %v2483 = vshrl.u32 %v2482, 7
        %v2484 = vsub.s32 0, %v2483
        %v2485 = vrot.slane %v2472, %v2484
        %v2486 = vmul.f32 %v2476, %v2481
        %v2487 = vmul.f32 %v2476, %v2485
        %2488 = vset.pattern.permute.xlu0 1
        %2489 = vperm.xlu0 %2488, %v1068
        %v2490 = vpop.permute.xlu0 %2489
        %v2492 = vlaneseq
        %v2493 = vshrl.u32 %v2492, 7
        %v2494 = vsub.s32 1, %v2493
        %v2495 = vrot.slane %v2471, %v2494
        %v2496 = vlaneseq
        %v2497 = vshrl.u32 %v2496, 7
        %v2498 = vsub.s32 1, %v2497
        %v2499 = vrot.slane %v2472, %v2498
        %v2500 = vmul.f32 %v2490, %v2495
        %v2501 = vmul.f32 %v2490, %v2499
        %v2502 = vadd.f32 %v2486, %v2500
        %v2503 = vadd.f32 %v2487, %v2501
        %2504 = vrot.lane.b32.xlu0 %v1875, 77
        %v2505 = vpop.permute.xlu0 %2504
        %2506 = vrot.lane.b32.xlu0 %v1876, 77
        %v2507 = vpop.permute.xlu0 %2506
        %v2508 = vsel %vm2470, %v2505, %v2507
        %v2509 = vsel %vm2470, %v2507, %v2505
        %2511 = vset.pattern.permute.xlu0 0
        %2512 = vperm.xlu0 %2511, %v1071
        %v2513 = vpop.permute.xlu0 %2512
        %v2515 = vlaneseq
        %v2516 = vshrl.u32 %v2515, 7
        %v2517 = vsub.s32 0, %v2516
        %v2518 = vrot.slane %v2508, %v2517
        %v2519 = vlaneseq
        %v2520 = vshrl.u32 %v2519, 7
        %v2521 = vsub.s32 0, %v2520
        %v2522 = vrot.slane %v2509, %v2521
        %v2523 = vmul.f32 %v2513, %v2518
        %v2524 = vmul.f32 %v2513, %v2522
        %2525 = vset.pattern.permute.xlu0 1
        %2526 = vperm.xlu0 %2525, %v1071
        %v2527 = vpop.permute.xlu0 %2526
        %v2529 = vlaneseq
        %v2530 = vshrl.u32 %v2529, 7
        %v2531 = vsub.s32 1, %v2530
        %v2532 = vrot.slane %v2508, %v2531
        %v2533 = vlaneseq
        %v2534 = vshrl.u32 %v2533, 7
        %v2535 = vsub.s32 1, %v2534
        %v2536 = vrot.slane %v2509, %v2535
        %v2537 = vmul.f32 %v2527, %v2532
        %v2538 = vmul.f32 %v2527, %v2536
        %v2539 = vadd.f32 %v2523, %v2537
        %v2540 = vadd.f32 %v2524, %v2538
        %v2541 = vadd.f32 %v2502, %v2539
        %v2542 = vadd.f32 %v2503, %v2540
        %v2543 = vlaneseq
        %v2544 = vshrl.u32 %v2543, 7
        %v2545 = vsub.s32 0, %v2544
        %v2546 = vrot.slane %v1048, %v2545
        %v2547 = vlaneseq
        %v2548 = vshrl.u32 %v2547, 7
        %v2549 = vsub.s32 0, %v2548
        %v2550 = vrot.slane %v1049, %v2549
        %v2551 = vmul.f32 %v2541, %v2546
        %v2552 = vmul.f32 %v2542, %v2550
        %v2553 = vadd.f32 %v2464, %v2551
        %v2554 = vadd.f32 %v2465, %v2552
        %2556 = vset.pattern.permute.xlu0 0
        %2557 = vperm.xlu0 %2556, %v1072
        %v2558 = vpop.permute.xlu0 %2557
        %v2560 = vadd.f32 %v2553, %v2558
        %v2561 = vadd.f32 %v2554, %v2558
        %2562 = vrot.lane.b32.xlu0 %v2560, 85
        %v2563 = vpop.permute.xlu0 %2562
        %2564 = vrot.lane.b32.xlu0 %v2561, 85
        %v2565 = vpop.permute.xlu0 %2564
        %vm2566 = vcmp.lt.s32.totalorder %v1408, 85
        %v2567 = vsel %vm2566, %v2563, %v2565
        %v2568 = vsel %vm2566, %v2565, %v2563
        %2570 = vset.pattern.permute.xlu0 0
        %2571 = vperm.xlu0 %2570, %v1073
        %v2572 = vpop.permute.xlu0 %2571
        %v2574 = vlaneseq
        %v2575 = vshrl.u32 %v2574, 7
        %v2576 = vsub.s32 0, %v2575
        %v2577 = vrot.slane %v2568, %v2576
        %v2578 = vlaneseq
        %v2579 = vshrl.u32 %v2578, 7
        %v2580 = vsub.s32 0, %v2579
        %v2581 = vrot.slane %v2567, %v2580
        %v2582 = vmul.f32 %v2572, %v2577
        %v2583 = vmul.f32 %v2572, %v2581
        %2584 = vset.pattern.permute.xlu0 1
        %2585 = vperm.xlu0 %2584, %v1073
        %v2586 = vpop.permute.xlu0 %2585
        %v2588 = vlaneseq
        %v2589 = vshrl.u32 %v2588, 7
        %v2590 = vsub.s32 1, %v2589
        %v2591 = vrot.slane %v2568, %v2590
        %v2592 = vlaneseq
        %v2593 = vshrl.u32 %v2592, 7
        %v2594 = vsub.s32 1, %v2593
        %v2595 = vrot.slane %v2567, %v2594
        %v2596 = vmul.f32 %v2586, %v2591
        %v2597 = vmul.f32 %v2586, %v2595
        %v2598 = vadd.f32 %v2582, %v2596
        %v2599 = vadd.f32 %v2583, %v2597
        %v2600 = vrot.slane %v1401, 4
        %v2601 = vrot.slane %v1402, 4
        %2604 = vrot.lane.b32.xlu0 %v2600, 85
        %v2605 = vpop.permute.xlu0 %2604
        %2606 = vrot.lane.b32.xlu0 %v2601, 85
        %v2607 = vpop.permute.xlu0 %2606
        %v2608 = vsel %vm2566, %v2605, %v2607
        %v2609 = vsel %vm2566, %v2607, %v2605
        %2611 = vset.pattern.permute.xlu0 0
        %2612 = vperm.xlu0 %2611, %v1076
        %v2613 = vpop.permute.xlu0 %2612
        %v2615 = vlaneseq
        %v2616 = vshrl.u32 %v2615, 7
        %v2617 = vsub.s32 0, %v2616
        %v2618 = vrot.slane %v2609, %v2617
        %v2619 = vlaneseq
        %v2620 = vshrl.u32 %v2619, 7
        %v2621 = vsub.s32 0, %v2620
        %v2622 = vrot.slane %v2608, %v2621
        %v2623 = vmul.f32 %v2613, %v2618
        %v2624 = vmul.f32 %v2613, %v2622
        %2625 = vset.pattern.permute.xlu0 1
        %2626 = vperm.xlu0 %2625, %v1076
        %v2627 = vpop.permute.xlu0 %2626
        %v2629 = vlaneseq
        %v2630 = vshrl.u32 %v2629, 7
        %v2631 = vsub.s32 1, %v2630
        %v2632 = vrot.slane %v2609, %v2631
        %v2633 = vlaneseq
        %v2634 = vshrl.u32 %v2633, 7
        %v2635 = vsub.s32 1, %v2634
        %v2636 = vrot.slane %v2608, %v2635
        %v2637 = vmul.f32 %v2627, %v2632
        %v2638 = vmul.f32 %v2627, %v2636
        %v2639 = vadd.f32 %v2623, %v2637
        %v2640 = vadd.f32 %v2624, %v2638
        %v2641 = vadd.f32 %v2598, %v2639
        %v2642 = vadd.f32 %v2599, %v2640
        %v2643 = vlaneseq
        %v2644 = vshrl.u32 %v2643, 7
        %v2645 = vsub.s32 0, %v2644
        %v2646 = vrot.slane %v1050, %v2645
        %v2647 = vlaneseq
        %v2648 = vshrl.u32 %v2647, 7
        %v2649 = vsub.s32 0, %v2648
        %v2650 = vrot.slane %v1051, %v2649
        %v2651 = vmul.f32 %v2641, %v2646
        %v2652 = vmul.f32 %v2642, %v2650
        %2653 = vrot.lane.b32.xlu0 %v2560, 80
        %v2654 = vpop.permute.xlu0 %2653
        %2655 = vrot.lane.b32.xlu0 %v2561, 80
        %v2656 = vpop.permute.xlu0 %2655
        %v2657 = vsel %vm2393, %v2654, %v2656
        %v2658 = vsel %vm2393, %v2656, %v2654
        %v2659 = vlaneseq
        %v2660 = vshrl.u32 %v2659, 7
        %v2661 = vsub.s32 0, %v2660
        %v2662 = vrot.slane %v2658, %v2661
        %v2663 = vlaneseq
        %v2664 = vshrl.u32 %v2663, 7
        %v2665 = vsub.s32 0, %v2664
        %v2666 = vrot.slane %v2657, %v2665
        %v2667 = vmul.f32 %v2572, %v2662
        %v2668 = vmul.f32 %v2572, %v2666
        %v2669 = vlaneseq
        %v2670 = vshrl.u32 %v2669, 7
        %v2671 = vsub.s32 1, %v2670
        %v2672 = vrot.slane %v2658, %v2671
        %v2673 = vlaneseq
        %v2674 = vshrl.u32 %v2673, 7
        %v2675 = vsub.s32 1, %v2674
        %v2676 = vrot.slane %v2657, %v2675
        %v2677 = vmul.f32 %v2586, %v2672
        %v2678 = vmul.f32 %v2586, %v2676
        %v2679 = vadd.f32 %v2667, %v2677
        %v2680 = vadd.f32 %v2668, %v2678
        %2681 = vrot.lane.b32.xlu0 %v2600, 80
        %v2682 = vpop.permute.xlu0 %2681
        %2683 = vrot.lane.b32.xlu0 %v2601, 80
        %v2684 = vpop.permute.xlu0 %2683
        %v2685 = vsel %vm2393, %v2682, %v2684
        %v2686 = vsel %vm2393, %v2684, %v2682
        %v2687 = vlaneseq
        %v2688 = vshrl.u32 %v2687, 7
        %v2689 = vsub.s32 0, %v2688
        %v2690 = vrot.slane %v2686, %v2689
        %v2691 = vlaneseq
        %v2692 = vshrl.u32 %v2691, 7
        %v2693 = vsub.s32 0, %v2692
        %v2694 = vrot.slane %v2685, %v2693
        %v2695 = vmul.f32 %v2613, %v2690
        %v2696 = vmul.f32 %v2613, %v2694
        %v2697 = vlaneseq
        %v2698 = vshrl.u32 %v2697, 7
        %v2699 = vsub.s32 1, %v2698
        %v2700 = vrot.slane %v2686, %v2699
        %v2701 = vlaneseq
        %v2702 = vshrl.u32 %v2701, 7
        %v2703 = vsub.s32 1, %v2702
        %v2704 = vrot.slane %v2685, %v2703
        %v2705 = vmul.f32 %v2627, %v2700
        %v2706 = vmul.f32 %v2627, %v2704
        %v2707 = vadd.f32 %v2695, %v2705
        %v2708 = vadd.f32 %v2696, %v2706
        %v2709 = vadd.f32 %v2679, %v2707
        %v2710 = vadd.f32 %v2680, %v2708
        %v2711 = vlaneseq
        %v2712 = vshrl.u32 %v2711, 7
        %v2713 = vsub.s32 1, %v2712
        %v2714 = vrot.slane %v1050, %v2713
        %v2715 = vlaneseq
        %v2716 = vshrl.u32 %v2715, 7
        %v2717 = vsub.s32 1, %v2716
        %v2718 = vrot.slane %v1051, %v2717
        %v2719 = vmul.f32 %v2709, %v2714
        %v2720 = vmul.f32 %v2710, %v2718
        %v2723 = vrot.slane %v2719, 2
        %v2724 = vrot.slane %v2720, 2
        %v2727 = vadd.f32 %v2651, %v2723
        %v2728 = vadd.f32 %v2652, %v2724
        %2729 = vrot.lane.b32.xlu0 %v2560, 75
        %v2730 = vpop.permute.xlu0 %2729
        %2731 = vrot.lane.b32.xlu0 %v2561, 75
        %v2732 = vpop.permute.xlu0 %2731
        %vm2733 = vcmp.lt.s32.totalorder %v1408, 75
        %v2734 = vsel %vm2733, %v2730, %v2732
        %v2735 = vsel %vm2733, %v2732, %v2730
        %v2736 = vlaneseq
        %v2737 = vshrl.u32 %v2736, 7
        %v2738 = vsub.s32 0, %v2737
        %v2739 = vrot.slane %v2735, %v2738
        %v2740 = vlaneseq
        %v2741 = vshrl.u32 %v2740, 7
        %v2742 = vsub.s32 0, %v2741
        %v2743 = vrot.slane %v2734, %v2742
        %v2744 = vmul.f32 %v2572, %v2739
        %v2745 = vmul.f32 %v2572, %v2743
        %v2746 = vlaneseq
        %v2747 = vshrl.u32 %v2746, 7
        %v2748 = vsub.s32 1, %v2747
        %v2749 = vrot.slane %v2735, %v2748
        %v2750 = vlaneseq
        %v2751 = vshrl.u32 %v2750, 7
        %v2752 = vsub.s32 1, %v2751
        %v2753 = vrot.slane %v2734, %v2752
        %v2754 = vmul.f32 %v2586, %v2749
        %v2755 = vmul.f32 %v2586, %v2753
        %v2756 = vadd.f32 %v2744, %v2754
        %v2757 = vadd.f32 %v2745, %v2755
        %2758 = vrot.lane.b32.xlu0 %v2600, 75
        %v2759 = vpop.permute.xlu0 %2758
        %2760 = vrot.lane.b32.xlu0 %v2601, 75
        %v2761 = vpop.permute.xlu0 %2760
        %v2762 = vsel %vm2733, %v2759, %v2761
        %v2763 = vsel %vm2733, %v2761, %v2759
        %v2764 = vlaneseq
        %v2765 = vshrl.u32 %v2764, 7
        %v2766 = vsub.s32 0, %v2765
        %v2767 = vrot.slane %v2763, %v2766
        %v2768 = vlaneseq
        %v2769 = vshrl.u32 %v2768, 7
        %v2770 = vsub.s32 0, %v2769
        %v2771 = vrot.slane %v2762, %v2770
        %v2772 = vmul.f32 %v2613, %v2767
        %v2773 = vmul.f32 %v2613, %v2771
        %v2774 = vlaneseq
        %v2775 = vshrl.u32 %v2774, 7
        %v2776 = vsub.s32 1, %v2775
        %v2777 = vrot.slane %v2763, %v2776
        %v2778 = vlaneseq
        %v2779 = vshrl.u32 %v2778, 7
        %v2780 = vsub.s32 1, %v2779
        %v2781 = vrot.slane %v2762, %v2780
        %v2782 = vmul.f32 %v2627, %v2777
        %v2783 = vmul.f32 %v2627, %v2781
        %v2784 = vadd.f32 %v2772, %v2782
        %v2785 = vadd.f32 %v2773, %v2783
        %v2786 = vadd.f32 %v2756, %v2784
        %v2787 = vadd.f32 %v2757, %v2785
        %v2788 = vlaneseq
        %v2789 = vshrl.u32 %v2788, 7
        %v2790 = vsub.s32 2, %v2789
        %v2791 = vrot.slane %v1050, %v2790
        %v2792 = vlaneseq
        %v2793 = vshrl.u32 %v2792, 7
        %v2794 = vsub.s32 2, %v2793
        %v2795 = vrot.slane %v1051, %v2794
        %v2796 = vmul.f32 %v2786, %v2791
        %v2797 = vmul.f32 %v2787, %v2795
        %v2800 = vrot.slane %v2796, 4
        %v2801 = vrot.slane %v2797, 4
        %v2804 = vadd.f32 %v2727, %v2800
        %v2805 = vadd.f32 %v2728, %v2801
        %2806 = vrot.lane.b32.xlu0 %v2560, 5
        %v2807 = vpop.permute.xlu0 %2806
        %2808 = vrot.lane.b32.xlu0 %v2561, 5
        %v2809 = vpop.permute.xlu0 %2808
        %vm2810 = vcmp.lt.s32.totalorder %v1408, 5
        %v2811 = vsel %vm2810, %v2807, %v2809
        %v2812 = vsel %vm2810, %v2809, %v2807
        %v2813 = vlaneseq
        %v2814 = vshrl.u32 %v2813, 7
        %v2815 = vsub.s32 0, %v2814
        %v2816 = vrot.slane %v2812, %v2815
        %v2817 = vlaneseq
        %v2818 = vshrl.u32 %v2817, 7
        %v2819 = vsub.s32 0, %v2818
        %v2820 = vrot.slane %v2811, %v2819
        %v2821 = vmul.f32 %v2572, %v2816
        %v2822 = vmul.f32 %v2572, %v2820
        %v2823 = vlaneseq
        %v2824 = vshrl.u32 %v2823, 7
        %v2825 = vsub.s32 1, %v2824
        %v2826 = vrot.slane %v2812, %v2825
        %v2827 = vlaneseq
        %v2828 = vshrl.u32 %v2827, 7
        %v2829 = vsub.s32 1, %v2828
        %v2830 = vrot.slane %v2811, %v2829
        %v2831 = vmul.f32 %v2586, %v2826
        %v2832 = vmul.f32 %v2586, %v2830
        %v2833 = vadd.f32 %v2821, %v2831
        %v2834 = vadd.f32 %v2822, %v2832
        %2835 = vrot.lane.b32.xlu0 %v2600, 5
        %v2836 = vpop.permute.xlu0 %2835
        %2837 = vrot.lane.b32.xlu0 %v2601, 5
        %v2838 = vpop.permute.xlu0 %2837
        %v2839 = vsel %vm2810, %v2836, %v2838
        %v2840 = vsel %vm2810, %v2838, %v2836
        %v2841 = vlaneseq
        %v2842 = vshrl.u32 %v2841, 7
        %v2843 = vsub.s32 0, %v2842
        %v2844 = vrot.slane %v2840, %v2843
        %v2845 = vlaneseq
        %v2846 = vshrl.u32 %v2845, 7
        %v2847 = vsub.s32 0, %v2846
        %v2848 = vrot.slane %v2839, %v2847
        %v2849 = vmul.f32 %v2613, %v2844
        %v2850 = vmul.f32 %v2613, %v2848
        %v2851 = vlaneseq
        %v2852 = vshrl.u32 %v2851, 7
        %v2853 = vsub.s32 1, %v2852
        %v2854 = vrot.slane %v2840, %v2853
        %v2855 = vlaneseq
        %v2856 = vshrl.u32 %v2855, 7
        %v2857 = vsub.s32 1, %v2856
        %v2858 = vrot.slane %v2839, %v2857
        %v2859 = vmul.f32 %v2627, %v2854
        %v2860 = vmul.f32 %v2627, %v2858
        %v2861 = vadd.f32 %v2849, %v2859
        %v2862 = vadd.f32 %v2850, %v2860
        %v2863 = vadd.f32 %v2833, %v2861
        %v2864 = vadd.f32 %v2834, %v2862
        %v2865 = vlaneseq
        %v2866 = vshrl.u32 %v2865, 7
        %v2867 = vsub.s32 3, %v2866
        %v2868 = vrot.slane %v1050, %v2867
        %v2869 = vlaneseq
        %v2870 = vshrl.u32 %v2869, 7
        %v2871 = vsub.s32 3, %v2870
        %v2872 = vrot.slane %v1051, %v2871
        %v2873 = vmul.f32 %v2863, %v2868
        %v2874 = vmul.f32 %v2864, %v2872
        %v2877 = vrot.slane %v2873, 6
        %v2878 = vrot.slane %v2874, 6
        %v2881 = vadd.f32 %v2804, %v2877
        %v2882 = vadd.f32 %v2805, %v2878
        %2884 = vset.pattern.permute.xlu0 0
        %2885 = vperm.xlu0 %2884, %v1074
        %v2886 = vpop.permute.xlu0 %2885
        %v2888 = vlaneseq
        %v2889 = vshrl.u32 %v2888, 7
        %v2890 = vsub.s32 0, %v2889
        %v2891 = vrot.slane %v2560, %v2890
        %v2892 = vlaneseq
        %v2893 = vshrl.u32 %v2892, 7
        %v2894 = vsub.s32 0, %v2893
        %v2895 = vrot.slane %v2561, %v2894
        %v2896 = vmul.f32 %v2886, %v2891
        %v2897 = vmul.f32 %v2886, %v2895
        %2898 = vset.pattern.permute.xlu0 1
        %2899 = vperm.xlu0 %2898, %v1074
        %v2900 = vpop.permute.xlu0 %2899
        %v2902 = vlaneseq
        %v2903 = vshrl.u32 %v2902, 7
        %v2904 = vsub.s32 1, %v2903
        %v2905 = vrot.slane %v2560, %v2904
        %v2906 = vlaneseq
        %v2907 = vshrl.u32 %v2906, 7
        %v2908 = vsub.s32 1, %v2907
        %v2909 = vrot.slane %v2561, %v2908
        %v2910 = vmul.f32 %v2900, %v2905
        %v2911 = vmul.f32 %v2900, %v2909
        %v2912 = vadd.f32 %v2896, %v2910
        %v2913 = vadd.f32 %v2897, %v2911
        %2915 = vset.pattern.permute.xlu0 0
        %2916 = vperm.xlu0 %2915, %v1077
        %v2917 = vpop.permute.xlu0 %2916
        %v2919 = vlaneseq
        %v2920 = vshrl.u32 %v2919, 7
        %v2921 = vsub.s32 4, %v2920
        %v2922 = vrot.slane %v1401, %v2921
        %v2923 = vlaneseq
        %v2924 = vshrl.u32 %v2923, 7
        %v2925 = vsub.s32 4, %v2924
        %v2926 = vrot.slane %v1402, %v2925
        %v2927 = vmul.f32 %v2917, %v2922
        %v2928 = vmul.f32 %v2917, %v2926
        %2929 = vset.pattern.permute.xlu0 1
        %2930 = vperm.xlu0 %2929, %v1077
        %v2931 = vpop.permute.xlu0 %2930
        %v2933 = vlaneseq
        %v2934 = vshrl.u32 %v2933, 7
        %v2935 = vsub.s32 5, %v2934
        %v2936 = vrot.slane %v1401, %v2935
        %v2937 = vlaneseq
        %v2938 = vshrl.u32 %v2937, 7
        %v2939 = vsub.s32 5, %v2938
        %v2940 = vrot.slane %v1402, %v2939
        %v2941 = vmul.f32 %v2931, %v2936
        %v2942 = vmul.f32 %v2931, %v2940
        %v2943 = vadd.f32 %v2927, %v2941
        %v2944 = vadd.f32 %v2928, %v2942
        %v2945 = vadd.f32 %v2912, %v2943
        %v2946 = vadd.f32 %v2913, %v2944
        %v2947 = vlaneseq
        %v2948 = vshrl.u32 %v2947, 7
        %v2949 = vsub.s32 4, %v2948
        %v2950 = vrot.slane %v1050, %v2949
        %v2951 = vlaneseq
        %v2952 = vshrl.u32 %v2951, 7
        %v2953 = vsub.s32 4, %v2952
        %v2954 = vrot.slane %v1051, %v2953
        %v2955 = vmul.f32 %v2945, %v2950
        %v2956 = vmul.f32 %v2946, %v2954
        %v2957 = vadd.f32 %v2881, %v2955
        %v2958 = vadd.f32 %v2882, %v2956
        %2959 = vrot.lane.b32.xlu0 %v2560, 123
        %v2960 = vpop.permute.xlu0 %2959
        %2961 = vrot.lane.b32.xlu0 %v2561, 123
        %v2962 = vpop.permute.xlu0 %2961
        %vm2963 = vcmp.lt.s32.totalorder %v1408, 123
        %v2964 = vsel %vm2963, %v2960, %v2962
        %v2965 = vsel %vm2963, %v2962, %v2960
        %v2966 = vlaneseq
        %v2967 = vshrl.u32 %v2966, 7
        %v2968 = vsub.s32 0, %v2967
        %v2969 = vrot.slane %v2964, %v2968
        %v2970 = vlaneseq
        %v2971 = vshrl.u32 %v2970, 7
        %v2972 = vsub.s32 0, %v2971
        %v2973 = vrot.slane %v2965, %v2972
        %v2974 = vmul.f32 %v2886, %v2969
        %v2975 = vmul.f32 %v2886, %v2973
        %v2976 = vlaneseq
        %v2977 = vshrl.u32 %v2976, 7
        %v2978 = vsub.s32 1, %v2977
        %v2979 = vrot.slane %v2964, %v2978
        %v2980 = vlaneseq
        %v2981 = vshrl.u32 %v2980, 7
        %v2982 = vsub.s32 1, %v2981
        %v2983 = vrot.slane %v2965, %v2982
        %v2984 = vmul.f32 %v2900, %v2979
        %v2985 = vmul.f32 %v2900, %v2983
        %v2986 = vadd.f32 %v2974, %v2984
        %v2987 = vadd.f32 %v2975, %v2985
        %2988 = vrot.lane.b32.xlu0 %v2600, 123
        %v2989 = vpop.permute.xlu0 %2988
        %2990 = vrot.lane.b32.xlu0 %v2601, 123
        %v2991 = vpop.permute.xlu0 %2990
        %v2992 = vsel %vm2963, %v2989, %v2991
        %v2993 = vsel %vm2963, %v2991, %v2989
        %v2994 = vlaneseq
        %v2995 = vshrl.u32 %v2994, 7
        %v2996 = vsub.s32 0, %v2995
        %v2997 = vrot.slane %v2992, %v2996
        %v2998 = vlaneseq
        %v2999 = vshrl.u32 %v2998, 7
        %v3000 = vsub.s32 0, %v2999
        %v3001 = vrot.slane %v2993, %v3000
        %v3002 = vmul.f32 %v2917, %v2997
        %v3003 = vmul.f32 %v2917, %v3001
        %v3004 = vlaneseq
        %v3005 = vshrl.u32 %v3004, 7
        %v3006 = vsub.s32 1, %v3005
        %v3007 = vrot.slane %v2992, %v3006
        %v3008 = vlaneseq
        %v3009 = vshrl.u32 %v3008, 7
        %v3010 = vsub.s32 1, %v3009
        %v3011 = vrot.slane %v2993, %v3010
        %v3012 = vmul.f32 %v2931, %v3007
        %v3013 = vmul.f32 %v2931, %v3011
        %v3014 = vadd.f32 %v3002, %v3012
        %v3015 = vadd.f32 %v3003, %v3013
        %v3016 = vadd.f32 %v2986, %v3014
        %v3017 = vadd.f32 %v2987, %v3015
        %v3018 = vlaneseq
        %v3019 = vshrl.u32 %v3018, 7
        %v3020 = vsub.s32 5, %v3019
        %v3021 = vrot.slane %v1050, %v3020
        %v3022 = vlaneseq
        %v3023 = vshrl.u32 %v3022, 7
        %v3024 = vsub.s32 5, %v3023
        %v3025 = vrot.slane %v1051, %v3024
        %v3026 = vmul.f32 %v3016, %v3021
        %v3027 = vmul.f32 %v3017, %v3025
        %v3030 = vrot.slane %v3026, 2
        %v3031 = vrot.slane %v3027, 2
        %v3034 = vadd.f32 %v2957, %v3030
        %v3035 = vadd.f32 %v2958, %v3031
        %3036 = vrot.lane.b32.xlu0 %v2560, 53
        %v3037 = vpop.permute.xlu0 %3036
        %3038 = vrot.lane.b32.xlu0 %v2561, 53
        %v3039 = vpop.permute.xlu0 %3038
        %vm3040 = vcmp.lt.s32.totalorder %v1408, 53
        %v3041 = vsel %vm3040, %v3037, %v3039
        %v3042 = vsel %vm3040, %v3039, %v3037
        %v3043 = vlaneseq
        %v3044 = vshrl.u32 %v3043, 7
        %v3045 = vsub.s32 0, %v3044
        %v3046 = vrot.slane %v3041, %v3045
        %v3047 = vlaneseq
        %v3048 = vshrl.u32 %v3047, 7
        %v3049 = vsub.s32 0, %v3048
        %v3050 = vrot.slane %v3042, %v3049
        %v3051 = vmul.f32 %v2886, %v3046
        %v3052 = vmul.f32 %v2886, %v3050
        %v3053 = vlaneseq
        %v3054 = vshrl.u32 %v3053, 7
        %v3055 = vsub.s32 1, %v3054
        %v3056 = vrot.slane %v3041, %v3055
        %v3057 = vlaneseq
        %v3058 = vshrl.u32 %v3057, 7
        %v3059 = vsub.s32 1, %v3058
        %v3060 = vrot.slane %v3042, %v3059
        %v3061 = vmul.f32 %v2900, %v3056
        %v3062 = vmul.f32 %v2900, %v3060
        %v3063 = vadd.f32 %v3051, %v3061
        %v3064 = vadd.f32 %v3052, %v3062
        %3065 = vrot.lane.b32.xlu0 %v2600, 53
        %v3066 = vpop.permute.xlu0 %3065
        %3067 = vrot.lane.b32.xlu0 %v2601, 53
        %v3068 = vpop.permute.xlu0 %3067
        %v3069 = vsel %vm3040, %v3066, %v3068
        %v3070 = vsel %vm3040, %v3068, %v3066
        %v3071 = vlaneseq
        %v3072 = vshrl.u32 %v3071, 7
        %v3073 = vsub.s32 0, %v3072
        %v3074 = vrot.slane %v3069, %v3073
        %v3075 = vlaneseq
        %v3076 = vshrl.u32 %v3075, 7
        %v3077 = vsub.s32 0, %v3076
        %v3078 = vrot.slane %v3070, %v3077
        %v3079 = vmul.f32 %v2917, %v3074
        %v3080 = vmul.f32 %v2917, %v3078
        %v3081 = vlaneseq
        %v3082 = vshrl.u32 %v3081, 7
        %v3083 = vsub.s32 1, %v3082
        %v3084 = vrot.slane %v3069, %v3083
        %v3085 = vlaneseq
        %v3086 = vshrl.u32 %v3085, 7
        %v3087 = vsub.s32 1, %v3086
        %v3088 = vrot.slane %v3070, %v3087
        %v3089 = vmul.f32 %v2931, %v3084
        %v3090 = vmul.f32 %v2931, %v3088
        %v3091 = vadd.f32 %v3079, %v3089
        %v3092 = vadd.f32 %v3080, %v3090
        %v3093 = vadd.f32 %v3063, %v3091
        %v3094 = vadd.f32 %v3064, %v3092
        %v3095 = vlaneseq
        %v3096 = vshrl.u32 %v3095, 7
        %v3097 = vsub.s32 6, %v3096
        %v3098 = vrot.slane %v1050, %v3097
        %v3099 = vlaneseq
        %v3100 = vshrl.u32 %v3099, 7
        %v3101 = vsub.s32 6, %v3100
        %v3102 = vrot.slane %v1051, %v3101
        %v3103 = vmul.f32 %v3093, %v3098
        %v3104 = vmul.f32 %v3094, %v3102
        %v3107 = vrot.slane %v3103, 4
        %v3108 = vrot.slane %v3104, 4
        %v3111 = vadd.f32 %v3034, %v3107
        %v3112 = vadd.f32 %v3035, %v3108
        %3113 = vrot.lane.b32.xlu0 %v2560, 48
        %v3114 = vpop.permute.xlu0 %3113
        %3115 = vrot.lane.b32.xlu0 %v2561, 48
        %v3116 = vpop.permute.xlu0 %3115
        %v3117 = vsel %vm1932, %v3114, %v3116
        %v3118 = vsel %vm1932, %v3116, %v3114
        %v3119 = vlaneseq
        %v3120 = vshrl.u32 %v3119, 7
        %v3121 = vsub.s32 0, %v3120
        %v3122 = vrot.slane %v3117, %v3121
        %v3123 = vlaneseq
        %v3124 = vshrl.u32 %v3123, 7
        %v3125 = vsub.s32 0, %v3124
        %v3126 = vrot.slane %v3118, %v3125
        %v3127 = vmul.f32 %v2886, %v3122
        %v3128 = vmul.f32 %v2886, %v3126
        %v3129 = vlaneseq
        %v3130 = vshrl.u32 %v3129, 7
        %v3131 = vsub.s32 1, %v3130
        %v3132 = vrot.slane %v3117, %v3131
        %v3133 = vlaneseq
        %v3134 = vshrl.u32 %v3133, 7
        %v3135 = vsub.s32 1, %v3134
        %v3136 = vrot.slane %v3118, %v3135
        %v3137 = vmul.f32 %v2900, %v3132
        %v3138 = vmul.f32 %v2900, %v3136
        %v3139 = vadd.f32 %v3127, %v3137
        %v3140 = vadd.f32 %v3128, %v3138
        %3141 = vrot.lane.b32.xlu0 %v2600, 48
        %v3142 = vpop.permute.xlu0 %3141
        %3143 = vrot.lane.b32.xlu0 %v2601, 48
        %v3144 = vpop.permute.xlu0 %3143
        %v3145 = vsel %vm1932, %v3142, %v3144
        %v3146 = vsel %vm1932, %v3144, %v3142
        %v3147 = vlaneseq
        %v3148 = vshrl.u32 %v3147, 7
        %v3149 = vsub.s32 0, %v3148
        %v3150 = vrot.slane %v3145, %v3149
        %v3151 = vlaneseq
        %v3152 = vshrl.u32 %v3151, 7
        %v3153 = vsub.s32 0, %v3152
        %v3154 = vrot.slane %v3146, %v3153
        %v3155 = vmul.f32 %v2917, %v3150
        %v3156 = vmul.f32 %v2917, %v3154
        %v3157 = vlaneseq
        %v3158 = vshrl.u32 %v3157, 7
        %v3159 = vsub.s32 1, %v3158
        %v3160 = vrot.slane %v3145, %v3159
        %v3161 = vlaneseq
        %v3162 = vshrl.u32 %v3161, 7
        %v3163 = vsub.s32 1, %v3162
        %v3164 = vrot.slane %v3146, %v3163
        %v3165 = vmul.f32 %v2931, %v3160
        %v3166 = vmul.f32 %v2931, %v3164
        %v3167 = vadd.f32 %v3155, %v3165
        %v3168 = vadd.f32 %v3156, %v3166
        %v3169 = vadd.f32 %v3139, %v3167
        %v3170 = vadd.f32 %v3140, %v3168
        %v3171 = vlaneseq
        %v3172 = vshrl.u32 %v3171, 7
        %v3173 = vsub.s32 7, %v3172
        %v3174 = vrot.slane %v1050, %v3173
        %v3175 = vlaneseq
        %v3176 = vshrl.u32 %v3175, 7
        %v3177 = vsub.s32 7, %v3176
        %v3178 = vrot.slane %v1051, %v3177
        %v3179 = vmul.f32 %v3169, %v3174
        %v3180 = vmul.f32 %v3170, %v3178
        %v3183 = vrot.slane %v3179, 6
        %v3184 = vrot.slane %v3180, 6
        %v3187 = vadd.f32 %v3111, %v3183
        %v3188 = vadd.f32 %v3112, %v3184
        %3189 = vrot.lane.b32.xlu0 %v2560, 43
        %v3190 = vpop.permute.xlu0 %3189
        %3191 = vrot.lane.b32.xlu0 %v2561, 43
        %v3192 = vpop.permute.xlu0 %3191
        %vm3193 = vcmp.lt.s32.totalorder %v1408, 43
        %v3194 = vsel %vm3193, %v3190, %v3192
        %v3195 = vsel %vm3193, %v3192, %v3190
        %3197 = vset.pattern.permute.xlu0 0
        %3198 = vperm.xlu0 %3197, %v1075
        %v3199 = vpop.permute.xlu0 %3198
        %v3201 = vlaneseq
        %v3202 = vshrl.u32 %v3201, 7
        %v3203 = vsub.s32 0, %v3202
        %v3204 = vrot.slane %v3194, %v3203
        %v3205 = vlaneseq
        %v3206 = vshrl.u32 %v3205, 7
        %v3207 = vsub.s32 0, %v3206
        %v3208 = vrot.slane %v3195, %v3207
        %v3209 = vmul.f32 %v3199, %v3204
        %v3210 = vmul.f32 %v3199, %v3208
        %3211 = vset.pattern.permute.xlu0 1
        %3212 = vperm.xlu0 %3211, %v1075
        %v3213 = vpop.permute.xlu0 %3212
        %v3215 = vlaneseq
        %v3216 = vshrl.u32 %v3215, 7
        %v3217 = vsub.s32 1, %v3216
        %v3218 = vrot.slane %v3194, %v3217
        %v3219 = vlaneseq
        %v3220 = vshrl.u32 %v3219, 7
        %v3221 = vsub.s32 1, %v3220
        %v3222 = vrot.slane %v3195, %v3221
        %v3223 = vmul.f32 %v3213, %v3218
        %v3224 = vmul.f32 %v3213, %v3222
        %v3225 = vadd.f32 %v3209, %v3223
        %v3226 = vadd.f32 %v3210, %v3224
        %3227 = vrot.lane.b32.xlu0 %v2600, 43
        %v3228 = vpop.permute.xlu0 %3227
        %3229 = vrot.lane.b32.xlu0 %v2601, 43
        %v3230 = vpop.permute.xlu0 %3229
        %v3231 = vsel %vm3193, %v3228, %v3230
        %v3232 = vsel %vm3193, %v3230, %v3228
        %3234 = vset.pattern.permute.xlu0 0
        %3235 = vperm.xlu0 %3234, %v1078
        %v3236 = vpop.permute.xlu0 %3235
        %v3238 = vlaneseq
        %v3239 = vshrl.u32 %v3238, 7
        %v3240 = vsub.s32 0, %v3239
        %v3241 = vrot.slane %v3231, %v3240
        %v3242 = vlaneseq
        %v3243 = vshrl.u32 %v3242, 7
        %v3244 = vsub.s32 0, %v3243
        %v3245 = vrot.slane %v3232, %v3244
        %v3246 = vmul.f32 %v3236, %v3241
        %v3247 = vmul.f32 %v3236, %v3245
        %3248 = vset.pattern.permute.xlu0 1
        %3249 = vperm.xlu0 %3248, %v1078
        %v3250 = vpop.permute.xlu0 %3249
        %v3252 = vlaneseq
        %v3253 = vshrl.u32 %v3252, 7
        %v3254 = vsub.s32 1, %v3253
        %v3255 = vrot.slane %v3231, %v3254
        %v3256 = vlaneseq
        %v3257 = vshrl.u32 %v3256, 7
        %v3258 = vsub.s32 1, %v3257
        %v3259 = vrot.slane %v3232, %v3258
        %v3260 = vmul.f32 %v3250, %v3255
        %v3261 = vmul.f32 %v3250, %v3259
        %v3262 = vadd.f32 %v3246, %v3260
        %v3263 = vadd.f32 %v3247, %v3261
        %v3264 = vadd.f32 %v3225, %v3262
        %v3265 = vadd.f32 %v3226, %v3263
        %v3266 = vlaneseq
        %v3267 = vshrl.u32 %v3266, 7
        %v3268 = vsub.s32 0, %v3267
        %v3269 = vrot.slane %v1052, %v3268
        %v3270 = vlaneseq
        %v3271 = vshrl.u32 %v3270, 7
        %v3272 = vsub.s32 0, %v3271
        %v3273 = vrot.slane %v1053, %v3272
        %v3274 = vmul.f32 %v3264, %v3269
        %v3275 = vmul.f32 %v3265, %v3273
        %v3276 = vadd.f32 %v3187, %v3274
        %v3277 = vadd.f32 %v3188, %v3275
        %3279 = vset.pattern.permute.xlu0 0
        %3280 = vperm.xlu0 %3279, %v1079
        %v3281 = vpop.permute.xlu0 %3280
        %v3283 = vadd.f32 %v3276, %v3281
        %v3284 = vadd.f32 %v3277, %v3281
        %3286 = vset.pattern.permute.xlu0 0
        %3287 = vperm.xlu0 %3286, %v1080
        %v3288 = vpop.permute.xlu0 %3287
        %v3290 = vlaneseq
        %v3291 = vshrl.u32 %v3290, 7
        %v3292 = vsub.s32 0, %v3291
        %v3293 = vrot.slane %v3288, %v3292
        %v3294 = vmul.f32 %v3293, %v1401
        %v3295 = vmul.f32 %v3293, %v1402
        %3296 = vset.pattern.permute.xlu0 1
        %3297 = vperm.xlu0 %3296, %v1080
        %v3298 = vpop.permute.xlu0 %3297
        %v3300 = vlaneseq
        %v3301 = vshrl.u32 %v3300, 7
        %v3302 = vsub.s32 0, %v3301
        %v3303 = vrot.slane %v3298, %v3302
        %v3304 = vmul.f32 %v3303, %v1401
        %v3305 = vmul.f32 %v3303, %v1402
        %v3308 = vrot.slane %v3304, 1
        %v3309 = vrot.slane %v3305, 1
        %v3312 = vadd.f32 %v3294, %v3308
        %v3313 = vadd.f32 %v3295, %v3309
        %3315 = vset.pattern.permute.xlu0 0
        %3316 = vperm.xlu0 %3315, %v1081
        %v3317 = vpop.permute.xlu0 %3316
        %v3319 = vlaneseq
        %v3320 = vshrl.u32 %v3319, 7
        %v3321 = vsub.s32 0, %v3320
        %v3322 = vrot.slane %v3317, %v3321
        %v3323 = vadd.f32 %v3312, %v3322
        %v3324 = vadd.f32 %v3313, %v3322
        %v3325 = vsub.f32 0.0, %v3323
        %v3326 = vsub.f32 0.0, %v3324
        %v3327 = vmul.f32 %v3325, 1.442695
        %v3328 = vpow.pop %v3327
        %v3329 = vmul.f32 %v3326, 1.442695
        %v3330 = vpow.pop %v3329
        %v3331 = vadd.f32 %v3328, 1.0
        %v3332 = vadd.f32 %v3330, 1.0
        %v3333 = vrcp.pop %v3331
        %v3334 = vrcp.pop %v3332
        %v3335 = vmul.f32 %v3283, %v1819
        %v3336 = vmul.f32 %v3284, %v1823
        %vm3337 = vcmask 1041408
        %v3338 = vsel %vm3337, %v3335, 0.0
        %v3339 = vsel %vm3337, %v3336, 0.0
        %v3340 = vadd.f32 %v3338, %v3339
        %3341 = vadd.xlane.f32.xlu0 %v3340
        %v3342 = vpop.xlane.xlu0 %3341
        %v3343 = vmul.f32 %v1082, %v3342
        %v3344 = vmul.f32 %v3283, %v1763
        %v3345 = vmul.f32 %v3284, %v1767
        %v3346 = vsel %vm3337, %v3344, 0.0
        %v3347 = vsel %vm3337, %v3345, 0.0
        %v3348 = vadd.f32 %v3346, %v3347
        %3349 = vadd.xlane.f32.xlu0 %v3348
        %v3350 = vpop.xlane.xlu0 %3349
        %v3351 = vmul.f32 %v1082, %v3350
        %3353 = vrot.lane.b32.xlu0 %v3351, 127
        %v3354 = vpop.permute.xlu0 %3353
        %v3356 = vadd.f32 %v3343, %v3354
        %v3357 = vmul.f32 %v3283, %v1716
        %v3358 = vmul.f32 %v3284, %v1720
        %v3359 = vsel %vm3337, %v3357, 0.0
        %v3360 = vsel %vm3337, %v3358, 0.0
        %v3361 = vadd.f32 %v3359, %v3360
        %3362 = vadd.xlane.f32.xlu0 %v3361
        %v3363 = vpop.xlane.xlu0 %3362
        %v3364 = vmul.f32 %v1082, %v3363
        %3366 = vrot.lane.b32.xlu0 %v3364, 126
        %v3367 = vpop.permute.xlu0 %3366
        %v3369 = vadd.f32 %v3356, %v3367
        %v3370 = vmul.f32 %v3283, %v1669
        %v3371 = vmul.f32 %v3284, %v1673
        %v3372 = vsel %vm3337, %v3370, 0.0
        %v3373 = vsel %vm3337, %v3371, 0.0
        %v3374 = vadd.f32 %v3372, %v3373
        %3375 = vadd.xlane.f32.xlu0 %v3374
        %v3376 = vpop.xlane.xlu0 %3375
        %v3377 = vmul.f32 %v1082, %v3376
        %3379 = vrot.lane.b32.xlu0 %v3377, 125
        %v3380 = vpop.permute.xlu0 %3379
        %v3382 = vadd.f32 %v3369, %v3380
        %v3383 = vmul.f32 %v3283, %v1628
        %v3384 = vmul.f32 %v3284, %v1632
        %v3385 = vsel %vm3337, %v3383, 0.0
        %v3386 = vsel %vm3337, %v3384, 0.0
        %v3387 = vadd.f32 %v3385, %v3386
        %3388 = vadd.xlane.f32.xlu0 %v3387
        %v3389 = vpop.xlane.xlu0 %3388
        %v3390 = vmul.f32 %v1082, %v3389
        %3392 = vrot.lane.b32.xlu0 %v3390, 124
        %v3393 = vpop.permute.xlu0 %3392
        %v3395 = vadd.f32 %v3382, %v3393
        %v3396 = vmul.f32 %v3283, %v1579
        %v3397 = vmul.f32 %v3284, %v1583
        %v3398 = vsel %vm3337, %v3396, 0.0
        %v3399 = vsel %vm3337, %v3397, 0.0
        %v3400 = vadd.f32 %v3398, %v3399
        %3401 = vadd.xlane.f32.xlu0 %v3400
        %v3402 = vpop.xlane.xlu0 %3401
        %v3403 = vmul.f32 %v1082, %v3402
        %3405 = vrot.lane.b32.xlu0 %v3403, 123
        %v3406 = vpop.permute.xlu0 %3405
        %v3408 = vadd.f32 %v3395, %v3406
        %v3409 = vmul.f32 %v3283, %v1532
        %v3410 = vmul.f32 %v3284, %v1536
        %v3411 = vsel %vm3337, %v3409, 0.0
        %v3412 = vsel %vm3337, %v3410, 0.0
        %v3413 = vadd.f32 %v3411, %v3412
        %3414 = vadd.xlane.f32.xlu0 %v3413
        %v3415 = vpop.xlane.xlu0 %3414
        %v3416 = vmul.f32 %v1082, %v3415
        %3418 = vrot.lane.b32.xlu0 %v3416, 122
        %v3419 = vpop.permute.xlu0 %3418
        %v3421 = vadd.f32 %v3408, %v3419
        %v3422 = vmul.f32 %v3283, %v1485
        %v3423 = vmul.f32 %v3284, %v1489
        %v3424 = vsel %vm3337, %v3422, 0.0
        %v3425 = vsel %vm3337, %v3423, 0.0
        %v3426 = vadd.f32 %v3424, %v3425
        %3427 = vadd.xlane.f32.xlu0 %v3426
        %v3428 = vpop.xlane.xlu0 %3427
        %v3429 = vmul.f32 %v1082, %v3428
        %3431 = vrot.lane.b32.xlu0 %v3429, 121
        %v3432 = vpop.permute.xlu0 %3431
        %v3434 = vadd.f32 %v3421, %v3432
        %v3435 = vmul.f32 %v3283, %v1446
        %v3436 = vmul.f32 %v3284, %v1450
        %v3437 = vsel %vm3337, %v3435, 0.0
        %v3438 = vsel %vm3337, %v3436, 0.0
        %v3439 = vadd.f32 %v3437, %v3438
        %3440 = vadd.xlane.f32.xlu0 %v3439
        %v3441 = vpop.xlane.xlu0 %3440
        %v3442 = vmul.f32 %v1082, %v3441
        %3444 = vrot.lane.b32.xlu0 %v3442, 120
        %v3445 = vpop.permute.xlu0 %3444
        %v3447 = vadd.f32 %v3434, %v3445
        %v3448 = vmul.f32 %v3447, 0.00390625
        %v3449 = vadd.f32 %v3448, %v1083
        %v3450 = vsub.f32 0.0, %v3449
        %v3451 = vmul.f32 %v3450, 1.442695
        %v3452 = vpow.pop %v3451
        %v3453 = vadd.f32 %v3452, 1.0
        %v3454 = vrcp.pop %v3453
        %v3455 = vlaneseq
        %v3456 = vshrl.u32 %v3455, 7
        %v3457 = vsub.s32 6, %v3456
        %v3458 = vrot.slane %v3333, %v3457
        %v3459 = vlaneseq
        %v3460 = vshrl.u32 %v3459, 7
        %v3461 = vsub.s32 6, %v3460
        %v3462 = vrot.slane %v3334, %v3461
        %v3463 = vmul.f32 %v3458, %v3283
        %v3464 = vmul.f32 %v3462, %v3284
        %3466 = vset.pattern.permute.xlu0 0
        %3467 = vperm.xlu0 %3466, %v3454
        %v3468 = vpop.permute.xlu0 %3467
        %v3470 = vrot.slane %v1401, 6
        %v3471 = vrot.slane %v1402, 6
        %v3474 = vmul.f32 %v3468, %v3470
        %v3475 = vmul.f32 %v3468, %v3471
        %3477 = vset.pattern.permute.xlu0 0
        %3478 = vperm.xlu0 %3477, %v1084
        %v3479 = vpop.permute.xlu0 %3478
        %v3481 = vlaneseq
        %v3482 = vshrl.u32 %v3481, 7
        %v3483 = vsub.s32 0, %v3482
        %v3484 = vrot.slane %v3463, %v3483
        %v3485 = vlaneseq
        %v3486 = vshrl.u32 %v3485, 7
        %v3487 = vsub.s32 0, %v3486
        %v3488 = vrot.slane %v3464, %v3487
        %v3489 = vmul.f32 %v3479, %v3484
        %v3490 = vmul.f32 %v3479, %v3488
        %3491 = vset.pattern.permute.xlu0 1
        %3492 = vperm.xlu0 %3491, %v1084
        %v3493 = vpop.permute.xlu0 %3492
        %v3495 = vlaneseq
        %v3496 = vshrl.u32 %v3495, 7
        %v3497 = vsub.s32 1, %v3496
        %v3498 = vrot.slane %v3463, %v3497
        %v3499 = vlaneseq
        %v3500 = vshrl.u32 %v3499, 7
        %v3501 = vsub.s32 1, %v3500
        %v3502 = vrot.slane %v3464, %v3501
        %v3503 = vmul.f32 %v3493, %v3498
        %v3504 = vmul.f32 %v3493, %v3502
        %v3505 = vadd.f32 %v3489, %v3503
        %v3506 = vadd.f32 %v3490, %v3504
        %3508 = vset.pattern.permute.xlu0 0
        %3509 = vperm.xlu0 %3508, %v1085
        %v3510 = vpop.permute.xlu0 %3509
        %v3512 = vlaneseq
        %v3513 = vshrl.u32 %v3512, 7
        %v3514 = vsub.s32 0, %v3513
        %v3515 = vrot.slane %v3474, %v3514
        %v3516 = vlaneseq
        %v3517 = vshrl.u32 %v3516, 7
        %v3518 = vsub.s32 0, %v3517
        %v3519 = vrot.slane %v3475, %v3518
        %v3520 = vmul.f32 %v3510, %v3515
        %v3521 = vmul.f32 %v3510, %v3519
        %3522 = vset.pattern.permute.xlu0 1
        %3523 = vperm.xlu0 %3522, %v1085
        %v3524 = vpop.permute.xlu0 %3523
        %v3526 = vlaneseq
        %v3527 = vshrl.u32 %v3526, 7
        %v3528 = vsub.s32 1, %v3527
        %v3529 = vrot.slane %v3474, %v3528
        %v3530 = vlaneseq
        %v3531 = vshrl.u32 %v3530, 7
        %v3532 = vsub.s32 1, %v3531
        %v3533 = vrot.slane %v3475, %v3532
        %v3534 = vmul.f32 %v3524, %v3529
        %v3535 = vmul.f32 %v3524, %v3533
        %v3536 = vadd.f32 %v3520, %v3534
        %v3537 = vadd.f32 %v3521, %v3535
        %v3538 = vadd.f32 %v3505, %v3536
        %v3539 = vadd.f32 %v3506, %v3537
        %3541 = vset.pattern.permute.xlu0 0
        %3542 = vperm.xlu0 %3541, %v1086
        %v3543 = vpop.permute.xlu0 %3542
        %v3545 = vadd.f32 %v3538, %v3543
        %v3546 = vadd.f32 %v3539, %v3543
        %3547 = vrot.lane.b32.xlu0 %v1833, 17
        %v3548 = vpop.permute.xlu0 %3547
        %3549 = vrot.lane.b32.xlu0 %v1834, 17
        %v3550 = vpop.permute.xlu0 %3549
        %v3551 = vsel %vm1409, %v3548, %v3550
        %v3552 = vsel %vm1409, %v3550, %v3548
        %3554 = vset.pattern.permute.xlu0 0
        %3555 = vperm.xlu0 %3554, %v1087
        %v3556 = vpop.permute.xlu0 %3555
        %v3558 = vlaneseq
        %v3559 = vshrl.u32 %v3558, 7
        %v3560 = vsub.s32 0, %v3559
        %v3561 = vrot.slane %v3552, %v3560
        %v3562 = vlaneseq
        %v3563 = vshrl.u32 %v3562, 7
        %v3564 = vsub.s32 0, %v3563
        %v3565 = vrot.slane %v3551, %v3564
        %v3566 = vmul.f32 %v3556, %v3561
        %v3567 = vmul.f32 %v3556, %v3565
        %3568 = vset.pattern.permute.xlu0 1
        %3569 = vperm.xlu0 %3568, %v1087
        %v3570 = vpop.permute.xlu0 %3569
        %v3572 = vlaneseq
        %v3573 = vshrl.u32 %v3572, 7
        %v3574 = vsub.s32 1, %v3573
        %v3575 = vrot.slane %v3552, %v3574
        %v3576 = vlaneseq
        %v3577 = vshrl.u32 %v3576, 7
        %v3578 = vsub.s32 1, %v3577
        %v3579 = vrot.slane %v3551, %v3578
        %v3580 = vmul.f32 %v3570, %v3575
        %v3581 = vmul.f32 %v3570, %v3579
        %v3582 = vadd.f32 %v3566, %v3580
        %v3583 = vadd.f32 %v3567, %v3581
        %3584 = vrot.lane.b32.xlu0 %v2560, 17
        %v3585 = vpop.permute.xlu0 %3584
        %3586 = vrot.lane.b32.xlu0 %v2561, 17
        %v3587 = vpop.permute.xlu0 %3586
        %v3588 = vsel %vm1409, %v3585, %v3587
        %v3589 = vsel %vm1409, %v3587, %v3585
        %3591 = vset.pattern.permute.xlu0 0
        %3592 = vperm.xlu0 %3591, %v1096
        %v3593 = vpop.permute.xlu0 %3592
        %v3595 = vlaneseq
        %v3596 = vshrl.u32 %v3595, 7
        %v3597 = vsub.s32 0, %v3596
        %v3598 = vrot.slane %v3589, %v3597
        %v3599 = vlaneseq
        %v3600 = vshrl.u32 %v3599, 7
        %v3601 = vsub.s32 0, %v3600
        %v3602 = vrot.slane %v3588, %v3601
        %v3603 = vmul.f32 %v3593, %v3598
        %v3604 = vmul.f32 %v3593, %v3602
        %3605 = vset.pattern.permute.xlu0 1
        %3606 = vperm.xlu0 %3605, %v1096
        %v3607 = vpop.permute.xlu0 %3606
        %v3609 = vlaneseq
        %v3610 = vshrl.u32 %v3609, 7
        %v3611 = vsub.s32 1, %v3610
        %v3612 = vrot.slane %v3589, %v3611
        %v3613 = vlaneseq
        %v3614 = vshrl.u32 %v3613, 7
        %v3615 = vsub.s32 1, %v3614
        %v3616 = vrot.slane %v3588, %v3615
        %v3617 = vmul.f32 %v3607, %v3612
        %v3618 = vmul.f32 %v3607, %v3616
        %v3619 = vadd.f32 %v3603, %v3617
        %v3620 = vadd.f32 %v3604, %v3618
        %v3621 = vadd.f32 %v3582, %v3619
        %v3622 = vadd.f32 %v3583, %v3620
        %3623 = vrot.lane.b32.xlu0 %v3283, 17
        %v3624 = vpop.permute.xlu0 %3623
        %3625 = vrot.lane.b32.xlu0 %v3284, 17
        %v3626 = vpop.permute.xlu0 %3625
        %v3627 = vsel %vm1409, %v3624, %v3626
        %v3628 = vsel %vm1409, %v3626, %v3624
        %3630 = vset.pattern.permute.xlu0 0
        %3631 = vperm.xlu0 %3630, %v1105
        %v3632 = vpop.permute.xlu0 %3631
        %v3634 = vlaneseq
        %v3635 = vshrl.u32 %v3634, 7
        %v3636 = vsub.s32 0, %v3635
        %v3637 = vrot.slane %v3628, %v3636
        %v3638 = vlaneseq
        %v3639 = vshrl.u32 %v3638, 7
        %v3640 = vsub.s32 0, %v3639
        %v3641 = vrot.slane %v3627, %v3640
        %v3642 = vmul.f32 %v3632, %v3637
        %v3643 = vmul.f32 %v3632, %v3641
        %3644 = vset.pattern.permute.xlu0 1
        %3645 = vperm.xlu0 %3644, %v1105
        %v3646 = vpop.permute.xlu0 %3645
        %v3648 = vlaneseq
        %v3649 = vshrl.u32 %v3648, 7
        %v3650 = vsub.s32 1, %v3649
        %v3651 = vrot.slane %v3628, %v3650
        %v3652 = vlaneseq
        %v3653 = vshrl.u32 %v3652, 7
        %v3654 = vsub.s32 1, %v3653
        %v3655 = vrot.slane %v3627, %v3654
        %v3656 = vmul.f32 %v3646, %v3651
        %v3657 = vmul.f32 %v3646, %v3655
        %v3658 = vadd.f32 %v3642, %v3656
        %v3659 = vadd.f32 %v3643, %v3657
        %v3660 = vadd.f32 %v3621, %v3658
        %v3661 = vadd.f32 %v3622, %v3659
        %3662 = vrot.lane.b32.xlu0 %v3545, 17
        %v3663 = vpop.permute.xlu0 %3662
        %3664 = vrot.lane.b32.xlu0 %v3546, 17
        %v3665 = vpop.permute.xlu0 %3664
        %v3666 = vsel %vm1409, %v3663, %v3665
        %v3667 = vsel %vm1409, %v3665, %v3663
        %3669 = vset.pattern.permute.xlu0 0
        %3670 = vperm.xlu0 %3669, %v1114
        %v3671 = vpop.permute.xlu0 %3670
        %v3673 = vlaneseq
        %v3674 = vshrl.u32 %v3673, 7
        %v3675 = vsub.s32 0, %v3674
        %v3676 = vrot.slane %v3667, %v3675
        %v3677 = vlaneseq
        %v3678 = vshrl.u32 %v3677, 7
        %v3679 = vsub.s32 0, %v3678
        %v3680 = vrot.slane %v3666, %v3679
        %v3681 = vmul.f32 %v3671, %v3676
        %v3682 = vmul.f32 %v3671, %v3680
        %3683 = vset.pattern.permute.xlu0 1
        %3684 = vperm.xlu0 %3683, %v1114
        %v3685 = vpop.permute.xlu0 %3684
        %v3687 = vlaneseq
        %v3688 = vshrl.u32 %v3687, 7
        %v3689 = vsub.s32 1, %v3688
        %v3690 = vrot.slane %v3667, %v3689
        %v3691 = vlaneseq
        %v3692 = vshrl.u32 %v3691, 7
        %v3693 = vsub.s32 1, %v3692
        %v3694 = vrot.slane %v3666, %v3693
        %v3695 = vmul.f32 %v3685, %v3690
        %v3696 = vmul.f32 %v3685, %v3694
        %v3697 = vadd.f32 %v3681, %v3695
        %v3698 = vadd.f32 %v3682, %v3696
        %v3699 = vadd.f32 %v3660, %v3697
        %v3700 = vadd.f32 %v3661, %v3698
        %v3701 = vmul.f32 %v3699, %v1446
        %v3702 = vmul.f32 %v3700, %v1450
        %3703 = vrot.lane.b32.xlu0 %v1833, 16
        %v3704 = vpop.permute.xlu0 %3703
        %3705 = vrot.lane.b32.xlu0 %v1834, 16
        %v3706 = vpop.permute.xlu0 %3705
        %v3707 = vsel %vm1457, %v3704, %v3706
        %v3708 = vsel %vm1457, %v3706, %v3704
        %3710 = vset.pattern.permute.xlu0 0
        %3711 = vperm.xlu0 %3710, %v1088
        %v3712 = vpop.permute.xlu0 %3711
        %v3714 = vlaneseq
        %v3715 = vshrl.u32 %v3714, 7
        %v3716 = vsub.s32 0, %v3715
        %v3717 = vrot.slane %v3708, %v3716
        %v3718 = vlaneseq
        %v3719 = vshrl.u32 %v3718, 7
        %v3720 = vsub.s32 0, %v3719
        %v3721 = vrot.slane %v3707, %v3720
        %v3722 = vmul.f32 %v3712, %v3717
        %v3723 = vmul.f32 %v3712, %v3721
        %3724 = vset.pattern.permute.xlu0 1
        %3725 = vperm.xlu0 %3724, %v1088
        %v3726 = vpop.permute.xlu0 %3725
        %v3728 = vlaneseq
        %v3729 = vshrl.u32 %v3728, 7
        %v3730 = vsub.s32 1, %v3729
        %v3731 = vrot.slane %v3708, %v3730
        %v3732 = vlaneseq
        %v3733 = vshrl.u32 %v3732, 7
        %v3734 = vsub.s32 1, %v3733
        %v3735 = vrot.slane %v3707, %v3734
        %v3736 = vmul.f32 %v3726, %v3731
        %v3737 = vmul.f32 %v3726, %v3735
        %v3738 = vadd.f32 %v3722, %v3736
        %v3739 = vadd.f32 %v3723, %v3737
        %3740 = vrot.lane.b32.xlu0 %v2560, 16
        %v3741 = vpop.permute.xlu0 %3740
        %3742 = vrot.lane.b32.xlu0 %v2561, 16
        %v3743 = vpop.permute.xlu0 %3742
        %v3744 = vsel %vm1457, %v3741, %v3743
        %v3745 = vsel %vm1457, %v3743, %v3741
        %3747 = vset.pattern.permute.xlu0 0
        %3748 = vperm.xlu0 %3747, %v1097
        %v3749 = vpop.permute.xlu0 %3748
        %v3751 = vlaneseq
        %v3752 = vshrl.u32 %v3751, 7
        %v3753 = vsub.s32 0, %v3752
        %v3754 = vrot.slane %v3745, %v3753
        %v3755 = vlaneseq
        %v3756 = vshrl.u32 %v3755, 7
        %v3757 = vsub.s32 0, %v3756
        %v3758 = vrot.slane %v3744, %v3757
        %v3759 = vmul.f32 %v3749, %v3754
        %v3760 = vmul.f32 %v3749, %v3758
        %3761 = vset.pattern.permute.xlu0 1
        %3762 = vperm.xlu0 %3761, %v1097
        %v3763 = vpop.permute.xlu0 %3762
        %v3765 = vlaneseq
        %v3766 = vshrl.u32 %v3765, 7
        %v3767 = vsub.s32 1, %v3766
        %v3768 = vrot.slane %v3745, %v3767
        %v3769 = vlaneseq
        %v3770 = vshrl.u32 %v3769, 7
        %v3771 = vsub.s32 1, %v3770
        %v3772 = vrot.slane %v3744, %v3771
        %v3773 = vmul.f32 %v3763, %v3768
        %v3774 = vmul.f32 %v3763, %v3772
        %v3775 = vadd.f32 %v3759, %v3773
        %v3776 = vadd.f32 %v3760, %v3774
        %v3777 = vadd.f32 %v3738, %v3775
        %v3778 = vadd.f32 %v3739, %v3776
        %3779 = vrot.lane.b32.xlu0 %v3283, 16
        %v3780 = vpop.permute.xlu0 %3779
        %3781 = vrot.lane.b32.xlu0 %v3284, 16
        %v3782 = vpop.permute.xlu0 %3781
        %v3783 = vsel %vm1457, %v3780, %v3782
        %v3784 = vsel %vm1457, %v3782, %v3780
        %3786 = vset.pattern.permute.xlu0 0
        %3787 = vperm.xlu0 %3786, %v1106
        %v3788 = vpop.permute.xlu0 %3787
        %v3790 = vlaneseq
        %v3791 = vshrl.u32 %v3790, 7
        %v3792 = vsub.s32 0, %v3791
        %v3793 = vrot.slane %v3784, %v3792
        %v3794 = vlaneseq
        %v3795 = vshrl.u32 %v3794, 7
        %v3796 = vsub.s32 0, %v3795
        %v3797 = vrot.slane %v3783, %v3796
        %v3798 = vmul.f32 %v3788, %v3793
        %v3799 = vmul.f32 %v3788, %v3797
        %3800 = vset.pattern.permute.xlu0 1
        %3801 = vperm.xlu0 %3800, %v1106
        %v3802 = vpop.permute.xlu0 %3801
        %v3804 = vlaneseq
        %v3805 = vshrl.u32 %v3804, 7
        %v3806 = vsub.s32 1, %v3805
        %v3807 = vrot.slane %v3784, %v3806
        %v3808 = vlaneseq
        %v3809 = vshrl.u32 %v3808, 7
        %v3810 = vsub.s32 1, %v3809
        %v3811 = vrot.slane %v3783, %v3810
        %v3812 = vmul.f32 %v3802, %v3807
        %v3813 = vmul.f32 %v3802, %v3811
        %v3814 = vadd.f32 %v3798, %v3812
        %v3815 = vadd.f32 %v3799, %v3813
        %v3816 = vadd.f32 %v3777, %v3814
        %v3817 = vadd.f32 %v3778, %v3815
        %3818 = vrot.lane.b32.xlu0 %v3545, 16
        %v3819 = vpop.permute.xlu0 %3818
        %3820 = vrot.lane.b32.xlu0 %v3546, 16
        %v3821 = vpop.permute.xlu0 %3820
        %v3822 = vsel %vm1457, %v3819, %v3821
        %v3823 = vsel %vm1457, %v3821, %v3819
        %3825 = vset.pattern.permute.xlu0 0
        %3826 = vperm.xlu0 %3825, %v1115
        %v3827 = vpop.permute.xlu0 %3826
        %v3829 = vlaneseq
        %v3830 = vshrl.u32 %v3829, 7
        %v3831 = vsub.s32 0, %v3830
        %v3832 = vrot.slane %v3823, %v3831
        %v3833 = vlaneseq
        %v3834 = vshrl.u32 %v3833, 7
        %v3835 = vsub.s32 0, %v3834
        %v3836 = vrot.slane %v3822, %v3835
        %v3837 = vmul.f32 %v3827, %v3832
        %v3838 = vmul.f32 %v3827, %v3836
        %3839 = vset.pattern.permute.xlu0 1
        %3840 = vperm.xlu0 %3839, %v1115
        %v3841 = vpop.permute.xlu0 %3840
        %v3843 = vlaneseq
        %v3844 = vshrl.u32 %v3843, 7
        %v3845 = vsub.s32 1, %v3844
        %v3846 = vrot.slane %v3823, %v3845
        %v3847 = vlaneseq
        %v3848 = vshrl.u32 %v3847, 7
        %v3849 = vsub.s32 1, %v3848
        %v3850 = vrot.slane %v3822, %v3849
        %v3851 = vmul.f32 %v3841, %v3846
        %v3852 = vmul.f32 %v3841, %v3850
        %v3853 = vadd.f32 %v3837, %v3851
        %v3854 = vadd.f32 %v3838, %v3852
        %v3855 = vadd.f32 %v3816, %v3853
        %v3856 = vadd.f32 %v3817, %v3854
        %v3857 = vmul.f32 %v3855, %v1485
        %v3858 = vmul.f32 %v3856, %v1489
        %v3859 = vadd.f32 %v3701, %v3857
        %v3860 = vadd.f32 %v3702, %v3858
        %3861 = vrot.lane.b32.xlu0 %v1833, 15
        %v3862 = vpop.permute.xlu0 %3861
        %3863 = vrot.lane.b32.xlu0 %v1834, 15
        %v3864 = vpop.permute.xlu0 %3863
        %v3865 = vsel %vm1504, %v3862, %v3864
        %v3866 = vsel %vm1504, %v3864, %v3862
        %3868 = vset.pattern.permute.xlu0 0
        %3869 = vperm.xlu0 %3868, %v1089
        %v3870 = vpop.permute.xlu0 %3869
        %v3872 = vlaneseq
        %v3873 = vshrl.u32 %v3872, 7
        %v3874 = vsub.s32 0, %v3873
        %v3875 = vrot.slane %v3866, %v3874
        %v3876 = vlaneseq
        %v3877 = vshrl.u32 %v3876, 7
        %v3878 = vsub.s32 0, %v3877
        %v3879 = vrot.slane %v3865, %v3878
        %v3880 = vmul.f32 %v3870, %v3875
        %v3881 = vmul.f32 %v3870, %v3879
        %3882 = vset.pattern.permute.xlu0 1
        %3883 = vperm.xlu0 %3882, %v1089
        %v3884 = vpop.permute.xlu0 %3883
        %v3886 = vlaneseq
        %v3887 = vshrl.u32 %v3886, 7
        %v3888 = vsub.s32 1, %v3887
        %v3889 = vrot.slane %v3866, %v3888
        %v3890 = vlaneseq
        %v3891 = vshrl.u32 %v3890, 7
        %v3892 = vsub.s32 1, %v3891
        %v3893 = vrot.slane %v3865, %v3892
        %v3894 = vmul.f32 %v3884, %v3889
        %v3895 = vmul.f32 %v3884, %v3893
        %v3896 = vadd.f32 %v3880, %v3894
        %v3897 = vadd.f32 %v3881, %v3895
        %3898 = vrot.lane.b32.xlu0 %v2560, 15
        %v3899 = vpop.permute.xlu0 %3898
        %3900 = vrot.lane.b32.xlu0 %v2561, 15
        %v3901 = vpop.permute.xlu0 %3900
        %v3902 = vsel %vm1504, %v3899, %v3901
        %v3903 = vsel %vm1504, %v3901, %v3899
        %3905 = vset.pattern.permute.xlu0 0
        %3906 = vperm.xlu0 %3905, %v1098
        %v3907 = vpop.permute.xlu0 %3906
        %v3909 = vlaneseq
        %v3910 = vshrl.u32 %v3909, 7
        %v3911 = vsub.s32 0, %v3910
        %v3912 = vrot.slane %v3903, %v3911
        %v3913 = vlaneseq
        %v3914 = vshrl.u32 %v3913, 7
        %v3915 = vsub.s32 0, %v3914
        %v3916 = vrot.slane %v3902, %v3915
        %v3917 = vmul.f32 %v3907, %v3912
        %v3918 = vmul.f32 %v3907, %v3916
        %3919 = vset.pattern.permute.xlu0 1
        %3920 = vperm.xlu0 %3919, %v1098
        %v3921 = vpop.permute.xlu0 %3920
        %v3923 = vlaneseq
        %v3924 = vshrl.u32 %v3923, 7
        %v3925 = vsub.s32 1, %v3924
        %v3926 = vrot.slane %v3903, %v3925
        %v3927 = vlaneseq
        %v3928 = vshrl.u32 %v3927, 7
        %v3929 = vsub.s32 1, %v3928
        %v3930 = vrot.slane %v3902, %v3929
        %v3931 = vmul.f32 %v3921, %v3926
        %v3932 = vmul.f32 %v3921, %v3930
        %v3933 = vadd.f32 %v3917, %v3931
        %v3934 = vadd.f32 %v3918, %v3932
        %v3935 = vadd.f32 %v3896, %v3933
        %v3936 = vadd.f32 %v3897, %v3934
        %3937 = vrot.lane.b32.xlu0 %v3283, 15
        %v3938 = vpop.permute.xlu0 %3937
        %3939 = vrot.lane.b32.xlu0 %v3284, 15
        %v3940 = vpop.permute.xlu0 %3939
        %v3941 = vsel %vm1504, %v3938, %v3940
        %v3942 = vsel %vm1504, %v3940, %v3938
        %3944 = vset.pattern.permute.xlu0 0
        %3945 = vperm.xlu0 %3944, %v1107
        %v3946 = vpop.permute.xlu0 %3945
        %v3948 = vlaneseq
        %v3949 = vshrl.u32 %v3948, 7
        %v3950 = vsub.s32 0, %v3949
        %v3951 = vrot.slane %v3942, %v3950
        %v3952 = vlaneseq
        %v3953 = vshrl.u32 %v3952, 7
        %v3954 = vsub.s32 0, %v3953
        %v3955 = vrot.slane %v3941, %v3954
        %v3956 = vmul.f32 %v3946, %v3951
        %v3957 = vmul.f32 %v3946, %v3955
        %3958 = vset.pattern.permute.xlu0 1
        %3959 = vperm.xlu0 %3958, %v1107
        %v3960 = vpop.permute.xlu0 %3959
        %v3962 = vlaneseq
        %v3963 = vshrl.u32 %v3962, 7
        %v3964 = vsub.s32 1, %v3963
        %v3965 = vrot.slane %v3942, %v3964
        %v3966 = vlaneseq
        %v3967 = vshrl.u32 %v3966, 7
        %v3968 = vsub.s32 1, %v3967
        %v3969 = vrot.slane %v3941, %v3968
        %v3970 = vmul.f32 %v3960, %v3965
        %v3971 = vmul.f32 %v3960, %v3969
        %v3972 = vadd.f32 %v3956, %v3970
        %v3973 = vadd.f32 %v3957, %v3971
        %v3974 = vadd.f32 %v3935, %v3972
        %v3975 = vadd.f32 %v3936, %v3973
        %3976 = vrot.lane.b32.xlu0 %v3545, 15
        %v3977 = vpop.permute.xlu0 %3976
        %3978 = vrot.lane.b32.xlu0 %v3546, 15
        %v3979 = vpop.permute.xlu0 %3978
        %v3980 = vsel %vm1504, %v3977, %v3979
        %v3981 = vsel %vm1504, %v3979, %v3977
        %3983 = vset.pattern.permute.xlu0 0
        %3984 = vperm.xlu0 %3983, %v1116
        %v3985 = vpop.permute.xlu0 %3984
        %v3987 = vlaneseq
        %v3988 = vshrl.u32 %v3987, 7
        %v3989 = vsub.s32 0, %v3988
        %v3990 = vrot.slane %v3981, %v3989
        %v3991 = vlaneseq
        %v3992 = vshrl.u32 %v3991, 7
        %v3993 = vsub.s32 0, %v3992
        %v3994 = vrot.slane %v3980, %v3993
        %v3995 = vmul.f32 %v3985, %v3990
        %v3996 = vmul.f32 %v3985, %v3994
        %3997 = vset.pattern.permute.xlu0 1
        %3998 = vperm.xlu0 %3997, %v1116
        %v3999 = vpop.permute.xlu0 %3998
        %v4001 = vlaneseq
        %v4002 = vshrl.u32 %v4001, 7
        %v4003 = vsub.s32 1, %v4002
        %v4004 = vrot.slane %v3981, %v4003
        %v4005 = vlaneseq
        %v4006 = vshrl.u32 %v4005, 7
        %v4007 = vsub.s32 1, %v4006
        %v4008 = vrot.slane %v3980, %v4007
        %v4009 = vmul.f32 %v3999, %v4004
        %v4010 = vmul.f32 %v3999, %v4008
        %v4011 = vadd.f32 %v3995, %v4009
        %v4012 = vadd.f32 %v3996, %v4010
        %v4013 = vadd.f32 %v3974, %v4011
        %v4014 = vadd.f32 %v3975, %v4012
        %v4015 = vmul.f32 %v4013, %v1532
        %v4016 = vmul.f32 %v4014, %v1536
        %v4017 = vadd.f32 %v3859, %v4015
        %v4018 = vadd.f32 %v3860, %v4016
        %4019 = vrot.lane.b32.xlu0 %v1833, 1
        %v4020 = vpop.permute.xlu0 %4019
        %4021 = vrot.lane.b32.xlu0 %v1834, 1
        %v4022 = vpop.permute.xlu0 %4021
        %v4023 = vsel %vm1551, %v4020, %v4022
        %v4024 = vsel %vm1551, %v4022, %v4020
        %4026 = vset.pattern.permute.xlu0 0
        %4027 = vperm.xlu0 %4026, %v1090
        %v4028 = vpop.permute.xlu0 %4027
        %v4030 = vlaneseq
        %v4031 = vshrl.u32 %v4030, 7
        %v4032 = vsub.s32 0, %v4031
        %v4033 = vrot.slane %v4024, %v4032
        %v4034 = vlaneseq
        %v4035 = vshrl.u32 %v4034, 7
        %v4036 = vsub.s32 0, %v4035
        %v4037 = vrot.slane %v4023, %v4036
        %v4038 = vmul.f32 %v4028, %v4033
        %v4039 = vmul.f32 %v4028, %v4037
        %4040 = vset.pattern.permute.xlu0 1
        %4041 = vperm.xlu0 %4040, %v1090
        %v4042 = vpop.permute.xlu0 %4041
        %v4044 = vlaneseq
        %v4045 = vshrl.u32 %v4044, 7
        %v4046 = vsub.s32 1, %v4045
        %v4047 = vrot.slane %v4024, %v4046
        %v4048 = vlaneseq
        %v4049 = vshrl.u32 %v4048, 7
        %v4050 = vsub.s32 1, %v4049
        %v4051 = vrot.slane %v4023, %v4050
        %v4052 = vmul.f32 %v4042, %v4047
        %v4053 = vmul.f32 %v4042, %v4051
        %v4054 = vadd.f32 %v4038, %v4052
        %v4055 = vadd.f32 %v4039, %v4053
        %4056 = vrot.lane.b32.xlu0 %v2560, 1
        %v4057 = vpop.permute.xlu0 %4056
        %4058 = vrot.lane.b32.xlu0 %v2561, 1
        %v4059 = vpop.permute.xlu0 %4058
        %v4060 = vsel %vm1551, %v4057, %v4059
        %v4061 = vsel %vm1551, %v4059, %v4057
        %4063 = vset.pattern.permute.xlu0 0
        %4064 = vperm.xlu0 %4063, %v1099
        %v4065 = vpop.permute.xlu0 %4064
        %v4067 = vlaneseq
        %v4068 = vshrl.u32 %v4067, 7
        %v4069 = vsub.s32 0, %v4068
        %v4070 = vrot.slane %v4061, %v4069
        %v4071 = vlaneseq
        %v4072 = vshrl.u32 %v4071, 7
        %v4073 = vsub.s32 0, %v4072
        %v4074 = vrot.slane %v4060, %v4073
        %v4075 = vmul.f32 %v4065, %v4070
        %v4076 = vmul.f32 %v4065, %v4074
        %4077 = vset.pattern.permute.xlu0 1
        %4078 = vperm.xlu0 %4077, %v1099
        %v4079 = vpop.permute.xlu0 %4078
        %v4081 = vlaneseq
        %v4082 = vshrl.u32 %v4081, 7
        %v4083 = vsub.s32 1, %v4082
        %v4084 = vrot.slane %v4061, %v4083
        %v4085 = vlaneseq
        %v4086 = vshrl.u32 %v4085, 7
        %v4087 = vsub.s32 1, %v4086
        %v4088 = vrot.slane %v4060, %v4087
        %v4089 = vmul.f32 %v4079, %v4084
        %v4090 = vmul.f32 %v4079, %v4088
        %v4091 = vadd.f32 %v4075, %v4089
        %v4092 = vadd.f32 %v4076, %v4090
        %v4093 = vadd.f32 %v4054, %v4091
        %v4094 = vadd.f32 %v4055, %v4092
        %4095 = vrot.lane.b32.xlu0 %v3283, 1
        %v4096 = vpop.permute.xlu0 %4095
        %4097 = vrot.lane.b32.xlu0 %v3284, 1
        %v4098 = vpop.permute.xlu0 %4097
        %v4099 = vsel %vm1551, %v4096, %v4098
        %v4100 = vsel %vm1551, %v4098, %v4096
        %4102 = vset.pattern.permute.xlu0 0
        %4103 = vperm.xlu0 %4102, %v1108
        %v4104 = vpop.permute.xlu0 %4103
        %v4106 = vlaneseq
        %v4107 = vshrl.u32 %v4106, 7
        %v4108 = vsub.s32 0, %v4107
        %v4109 = vrot.slane %v4100, %v4108
        %v4110 = vlaneseq
        %v4111 = vshrl.u32 %v4110, 7
        %v4112 = vsub.s32 0, %v4111
        %v4113 = vrot.slane %v4099, %v4112
        %v4114 = vmul.f32 %v4104, %v4109
        %v4115 = vmul.f32 %v4104, %v4113
        %4116 = vset.pattern.permute.xlu0 1
        %4117 = vperm.xlu0 %4116, %v1108
        %v4118 = vpop.permute.xlu0 %4117
        %v4120 = vlaneseq
        %v4121 = vshrl.u32 %v4120, 7
        %v4122 = vsub.s32 1, %v4121
        %v4123 = vrot.slane %v4100, %v4122
        %v4124 = vlaneseq
        %v4125 = vshrl.u32 %v4124, 7
        %v4126 = vsub.s32 1, %v4125
        %v4127 = vrot.slane %v4099, %v4126
        %v4128 = vmul.f32 %v4118, %v4123
        %v4129 = vmul.f32 %v4118, %v4127
        %v4130 = vadd.f32 %v4114, %v4128
        %v4131 = vadd.f32 %v4115, %v4129
        %v4132 = vadd.f32 %v4093, %v4130
        %v4133 = vadd.f32 %v4094, %v4131
        %4134 = vrot.lane.b32.xlu0 %v3545, 1
        %v4135 = vpop.permute.xlu0 %4134
        %4136 = vrot.lane.b32.xlu0 %v3546, 1
        %v4137 = vpop.permute.xlu0 %4136
        %v4138 = vsel %vm1551, %v4135, %v4137
        %v4139 = vsel %vm1551, %v4137, %v4135
        %4141 = vset.pattern.permute.xlu0 0
        %4142 = vperm.xlu0 %4141, %v1117
        %v4143 = vpop.permute.xlu0 %4142
        %v4145 = vlaneseq
        %v4146 = vshrl.u32 %v4145, 7
        %v4147 = vsub.s32 0, %v4146
        %v4148 = vrot.slane %v4139, %v4147
        %v4149 = vlaneseq
        %v4150 = vshrl.u32 %v4149, 7
        %v4151 = vsub.s32 0, %v4150
        %v4152 = vrot.slane %v4138, %v4151
        %v4153 = vmul.f32 %v4143, %v4148
        %v4154 = vmul.f32 %v4143, %v4152
        %4155 = vset.pattern.permute.xlu0 1
        %4156 = vperm.xlu0 %4155, %v1117
        %v4157 = vpop.permute.xlu0 %4156
        %v4159 = vlaneseq
        %v4160 = vshrl.u32 %v4159, 7
        %v4161 = vsub.s32 1, %v4160
        %v4162 = vrot.slane %v4139, %v4161
        %v4163 = vlaneseq
        %v4164 = vshrl.u32 %v4163, 7
        %v4165 = vsub.s32 1, %v4164
        %v4166 = vrot.slane %v4138, %v4165
        %v4167 = vmul.f32 %v4157, %v4162
        %v4168 = vmul.f32 %v4157, %v4166
        %v4169 = vadd.f32 %v4153, %v4167
        %v4170 = vadd.f32 %v4154, %v4168
        %v4171 = vadd.f32 %v4132, %v4169
        %v4172 = vadd.f32 %v4133, %v4170
        %v4173 = vmul.f32 %v4171, %v1579
        %v4174 = vmul.f32 %v4172, %v1583
        %v4175 = vadd.f32 %v4017, %v4173
        %v4176 = vadd.f32 %v4018, %v4174
        %4178 = vset.pattern.permute.xlu0 0
        %4179 = vperm.xlu0 %4178, %v1091
        %v4180 = vpop.permute.xlu0 %4179
        %v4182 = vmul.f32 %v4180, %v2167
        %v4183 = vmul.f32 %v4180, %v2171
        %4184 = vset.pattern.permute.xlu0 1
        %4185 = vperm.xlu0 %4184, %v1091
        %v4186 = vpop.permute.xlu0 %4185
        %v4188 = vmul.f32 %v4186, %v2181
        %v4189 = vmul.f32 %v4186, %v2185
        %v4190 = vadd.f32 %v4182, %v4188
        %v4191 = vadd.f32 %v4183, %v4189
        %4193 = vset.pattern.permute.xlu0 0
        %4194 = vperm.xlu0 %4193, %v1100
        %v4195 = vpop.permute.xlu0 %4194
        %v4197 = vmul.f32 %v4195, %v2891
        %v4198 = vmul.f32 %v4195, %v2895
        %4199 = vset.pattern.permute.xlu0 1
        %4200 = vperm.xlu0 %4199, %v1100
        %v4201 = vpop.permute.xlu0 %4200
        %v4203 = vmul.f32 %v4201, %v2905
        %v4204 = vmul.f32 %v4201, %v2909
        %v4205 = vadd.f32 %v4197, %v4203
        %v4206 = vadd.f32 %v4198, %v4204
        %v4207 = vadd.f32 %v4190, %v4205
        %v4208 = vadd.f32 %v4191, %v4206
        %4210 = vset.pattern.permute.xlu0 0
        %4211 = vperm.xlu0 %4210, %v1109
        %v4212 = vpop.permute.xlu0 %4211
        %v4214 = vlaneseq
        %v4215 = vshrl.u32 %v4214, 7
        %v4216 = vsub.s32 0, %v4215
        %v4217 = vrot.slane %v3283, %v4216
        %v4218 = vlaneseq
        %v4219 = vshrl.u32 %v4218, 7
        %v4220 = vsub.s32 0, %v4219
        %v4221 = vrot.slane %v3284, %v4220
        %v4222 = vmul.f32 %v4212, %v4217
        %v4223 = vmul.f32 %v4212, %v4221
        %4224 = vset.pattern.permute.xlu0 1
        %4225 = vperm.xlu0 %4224, %v1109
        %v4226 = vpop.permute.xlu0 %4225
        %v4228 = vlaneseq
        %v4229 = vshrl.u32 %v4228, 7
        %v4230 = vsub.s32 1, %v4229
        %v4231 = vrot.slane %v3283, %v4230
        %v4232 = vlaneseq
        %v4233 = vshrl.u32 %v4232, 7
        %v4234 = vsub.s32 1, %v4233
        %v4235 = vrot.slane %v3284, %v4234
        %v4236 = vmul.f32 %v4226, %v4231
        %v4237 = vmul.f32 %v4226, %v4235
        %v4238 = vadd.f32 %v4222, %v4236
        %v4239 = vadd.f32 %v4223, %v4237
        %v4240 = vadd.f32 %v4207, %v4238
        %v4241 = vadd.f32 %v4208, %v4239
        %4243 = vset.pattern.permute.xlu0 0
        %4244 = vperm.xlu0 %4243, %v1118
        %v4245 = vpop.permute.xlu0 %4244
        %v4247 = vlaneseq
        %v4248 = vshrl.u32 %v4247, 7
        %v4249 = vsub.s32 0, %v4248
        %v4250 = vrot.slane %v3545, %v4249
        %v4251 = vlaneseq
        %v4252 = vshrl.u32 %v4251, 7
        %v4253 = vsub.s32 0, %v4252
        %v4254 = vrot.slane %v3546, %v4253
        %v4255 = vmul.f32 %v4245, %v4250
        %v4256 = vmul.f32 %v4245, %v4254
        %4257 = vset.pattern.permute.xlu0 1
        %4258 = vperm.xlu0 %4257, %v1118
        %v4259 = vpop.permute.xlu0 %4258
        %v4261 = vlaneseq
        %v4262 = vshrl.u32 %v4261, 7
        %v4263 = vsub.s32 1, %v4262
        %v4264 = vrot.slane %v3545, %v4263
        %v4265 = vlaneseq
        %v4266 = vshrl.u32 %v4265, 7
        %v4267 = vsub.s32 1, %v4266
        %v4268 = vrot.slane %v3546, %v4267
        %v4269 = vmul.f32 %v4259, %v4264
        %v4270 = vmul.f32 %v4259, %v4268
        %v4271 = vadd.f32 %v4255, %v4269
        %v4272 = vadd.f32 %v4256, %v4270
        %v4273 = vadd.f32 %v4240, %v4271
        %v4274 = vadd.f32 %v4241, %v4272
        %v4275 = vmul.f32 %v4273, %v1628
        %v4276 = vmul.f32 %v4274, %v1632
        %v4277 = vadd.f32 %v4175, %v4275
        %v4278 = vadd.f32 %v4176, %v4276
        %4279 = vrot.lane.b32.xlu0 %v1833, 127
        %v4280 = vpop.permute.xlu0 %4279
        %4281 = vrot.lane.b32.xlu0 %v1834, 127
        %v4282 = vpop.permute.xlu0 %4281
        %v4283 = vsel %vm1641, %v4280, %v4282
        %v4284 = vsel %vm1641, %v4282, %v4280
        %4286 = vset.pattern.permute.xlu0 0
        %4287 = vperm.xlu0 %4286, %v1092
        %v4288 = vpop.permute.xlu0 %4287
        %v4290 = vlaneseq
        %v4291 = vshrl.u32 %v4290, 7
        %v4292 = vsub.s32 0, %v4291
        %v4293 = vrot.slane %v4283, %v4292
        %v4294 = vlaneseq
        %v4295 = vshrl.u32 %v4294, 7
        %v4296 = vsub.s32 0, %v4295
        %v4297 = vrot.slane %v4284, %v4296
        %v4298 = vmul.f32 %v4288, %v4293
        %v4299 = vmul.f32 %v4288, %v4297
        %4300 = vset.pattern.permute.xlu0 1
        %4301 = vperm.xlu0 %4300, %v1092
        %v4302 = vpop.permute.xlu0 %4301
        %v4304 = vlaneseq
        %v4305 = vshrl.u32 %v4304, 7
        %v4306 = vsub.s32 1, %v4305
        %v4307 = vrot.slane %v4283, %v4306
        %v4308 = vlaneseq
        %v4309 = vshrl.u32 %v4308, 7
        %v4310 = vsub.s32 1, %v4309
        %v4311 = vrot.slane %v4284, %v4310
        %v4312 = vmul.f32 %v4302, %v4307
        %v4313 = vmul.f32 %v4302, %v4311
        %v4314 = vadd.f32 %v4298, %v4312
        %v4315 = vadd.f32 %v4299, %v4313
        %4316 = vrot.lane.b32.xlu0 %v2560, 127
        %v4317 = vpop.permute.xlu0 %4316
        %4318 = vrot.lane.b32.xlu0 %v2561, 127
        %v4319 = vpop.permute.xlu0 %4318
        %v4320 = vsel %vm1641, %v4317, %v4319
        %v4321 = vsel %vm1641, %v4319, %v4317
        %4323 = vset.pattern.permute.xlu0 0
        %4324 = vperm.xlu0 %4323, %v1101
        %v4325 = vpop.permute.xlu0 %4324
        %v4327 = vlaneseq
        %v4328 = vshrl.u32 %v4327, 7
        %v4329 = vsub.s32 0, %v4328
        %v4330 = vrot.slane %v4320, %v4329
        %v4331 = vlaneseq
        %v4332 = vshrl.u32 %v4331, 7
        %v4333 = vsub.s32 0, %v4332
        %v4334 = vrot.slane %v4321, %v4333
        %v4335 = vmul.f32 %v4325, %v4330
        %v4336 = vmul.f32 %v4325, %v4334
        %4337 = vset.pattern.permute.xlu0 1
        %4338 = vperm.xlu0 %4337, %v1101
        %v4339 = vpop.permute.xlu0 %4338
        %v4341 = vlaneseq
        %v4342 = vshrl.u32 %v4341, 7
        %v4343 = vsub.s32 1, %v4342
        %v4344 = vrot.slane %v4320, %v4343
        %v4345 = vlaneseq
        %v4346 = vshrl.u32 %v4345, 7
        %v4347 = vsub.s32 1, %v4346
        %v4348 = vrot.slane %v4321, %v4347
        %v4349 = vmul.f32 %v4339, %v4344
        %v4350 = vmul.f32 %v4339, %v4348
        %v4351 = vadd.f32 %v4335, %v4349
        %v4352 = vadd.f32 %v4336, %v4350
        %v4353 = vadd.f32 %v4314, %v4351
        %v4354 = vadd.f32 %v4315, %v4352
        %4355 = vrot.lane.b32.xlu0 %v3283, 127
        %v4356 = vpop.permute.xlu0 %4355
        %4357 = vrot.lane.b32.xlu0 %v3284, 127
        %v4358 = vpop.permute.xlu0 %4357
        %v4359 = vsel %vm1641, %v4356, %v4358
        %v4360 = vsel %vm1641, %v4358, %v4356
        %4362 = vset.pattern.permute.xlu0 0
        %4363 = vperm.xlu0 %4362, %v1110
        %v4364 = vpop.permute.xlu0 %4363
        %v4366 = vlaneseq
        %v4367 = vshrl.u32 %v4366, 7
        %v4368 = vsub.s32 0, %v4367
        %v4369 = vrot.slane %v4359, %v4368
        %v4370 = vlaneseq
        %v4371 = vshrl.u32 %v4370, 7
        %v4372 = vsub.s32 0, %v4371
        %v4373 = vrot.slane %v4360, %v4372
        %v4374 = vmul.f32 %v4364, %v4369
        %v4375 = vmul.f32 %v4364, %v4373
        %4376 = vset.pattern.permute.xlu0 1
        %4377 = vperm.xlu0 %4376, %v1110
        %v4378 = vpop.permute.xlu0 %4377
        %v4380 = vlaneseq
        %v4381 = vshrl.u32 %v4380, 7
        %v4382 = vsub.s32 1, %v4381
        %v4383 = vrot.slane %v4359, %v4382
        %v4384 = vlaneseq
        %v4385 = vshrl.u32 %v4384, 7
        %v4386 = vsub.s32 1, %v4385
        %v4387 = vrot.slane %v4360, %v4386
        %v4388 = vmul.f32 %v4378, %v4383
        %v4389 = vmul.f32 %v4378, %v4387
        %v4390 = vadd.f32 %v4374, %v4388
        %v4391 = vadd.f32 %v4375, %v4389
        %v4392 = vadd.f32 %v4353, %v4390
        %v4393 = vadd.f32 %v4354, %v4391
        %4394 = vrot.lane.b32.xlu0 %v3545, 127
        %v4395 = vpop.permute.xlu0 %4394
        %4396 = vrot.lane.b32.xlu0 %v3546, 127
        %v4397 = vpop.permute.xlu0 %4396
        %v4398 = vsel %vm1641, %v4395, %v4397
        %v4399 = vsel %vm1641, %v4397, %v4395
        %4401 = vset.pattern.permute.xlu0 0
        %4402 = vperm.xlu0 %4401, %v1119
        %v4403 = vpop.permute.xlu0 %4402
        %v4405 = vlaneseq
        %v4406 = vshrl.u32 %v4405, 7
        %v4407 = vsub.s32 0, %v4406
        %v4408 = vrot.slane %v4398, %v4407
        %v4409 = vlaneseq
        %v4410 = vshrl.u32 %v4409, 7
        %v4411 = vsub.s32 0, %v4410
        %v4412 = vrot.slane %v4399, %v4411
        %v4413 = vmul.f32 %v4403, %v4408
        %v4414 = vmul.f32 %v4403, %v4412
        %4415 = vset.pattern.permute.xlu0 1
        %4416 = vperm.xlu0 %4415, %v1119
        %v4417 = vpop.permute.xlu0 %4416
        %v4419 = vlaneseq
        %v4420 = vshrl.u32 %v4419, 7
        %v4421 = vsub.s32 1, %v4420
        %v4422 = vrot.slane %v4398, %v4421
        %v4423 = vlaneseq
        %v4424 = vshrl.u32 %v4423, 7
        %v4425 = vsub.s32 1, %v4424
        %v4426 = vrot.slane %v4399, %v4425
        %v4427 = vmul.f32 %v4417, %v4422
        %v4428 = vmul.f32 %v4417, %v4426
        %v4429 = vadd.f32 %v4413, %v4427
        %v4430 = vadd.f32 %v4414, %v4428
        %v4431 = vadd.f32 %v4392, %v4429
        %v4432 = vadd.f32 %v4393, %v4430
        %v4433 = vmul.f32 %v4431, %v1669
        %v4434 = vmul.f32 %v4432, %v1673
        %v4435 = vadd.f32 %v4277, %v4433
        %v4436 = vadd.f32 %v4278, %v4434
        %4437 = vrot.lane.b32.xlu0 %v1833, 113
        %v4438 = vpop.permute.xlu0 %4437
        %4439 = vrot.lane.b32.xlu0 %v1834, 113
        %v4440 = vpop.permute.xlu0 %4439
        %v4441 = vsel %vm1688, %v4438, %v4440
        %v4442 = vsel %vm1688, %v4440, %v4438
        %4444 = vset.pattern.permute.xlu0 0
        %4445 = vperm.xlu0 %4444, %v1093
        %v4446 = vpop.permute.xlu0 %4445
        %v4448 = vlaneseq
        %v4449 = vshrl.u32 %v4448, 7
        %v4450 = vsub.s32 0, %v4449
        %v4451 = vrot.slane %v4441, %v4450
        %v4452 = vlaneseq
        %v4453 = vshrl.u32 %v4452, 7
        %v4454 = vsub.s32 0, %v4453
        %v4455 = vrot.slane %v4442, %v4454
        %v4456 = vmul.f32 %v4446, %v4451
        %v4457 = vmul.f32 %v4446, %v4455
        %4458 = vset.pattern.permute.xlu0 1
        %4459 = vperm.xlu0 %4458, %v1093
        %v4460 = vpop.permute.xlu0 %4459
        %v4462 = vlaneseq
        %v4463 = vshrl.u32 %v4462, 7
        %v4464 = vsub.s32 1, %v4463
        %v4465 = vrot.slane %v4441, %v4464
        %v4466 = vlaneseq
        %v4467 = vshrl.u32 %v4466, 7
        %v4468 = vsub.s32 1, %v4467
        %v4469 = vrot.slane %v4442, %v4468
        %v4470 = vmul.f32 %v4460, %v4465
        %v4471 = vmul.f32 %v4460, %v4469
        %v4472 = vadd.f32 %v4456, %v4470
        %v4473 = vadd.f32 %v4457, %v4471
        %4474 = vrot.lane.b32.xlu0 %v2560, 113
        %v4475 = vpop.permute.xlu0 %4474
        %4476 = vrot.lane.b32.xlu0 %v2561, 113
        %v4477 = vpop.permute.xlu0 %4476
        %v4478 = vsel %vm1688, %v4475, %v4477
        %v4479 = vsel %vm1688, %v4477, %v4475
        %4481 = vset.pattern.permute.xlu0 0
        %4482 = vperm.xlu0 %4481, %v1102
        %v4483 = vpop.permute.xlu0 %4482
        %v4485 = vlaneseq
        %v4486 = vshrl.u32 %v4485, 7
        %v4487 = vsub.s32 0, %v4486
        %v4488 = vrot.slane %v4478, %v4487
        %v4489 = vlaneseq
        %v4490 = vshrl.u32 %v4489, 7
        %v4491 = vsub.s32 0, %v4490
        %v4492 = vrot.slane %v4479, %v4491
        %v4493 = vmul.f32 %v4483, %v4488
        %v4494 = vmul.f32 %v4483, %v4492
        %4495 = vset.pattern.permute.xlu0 1
        %4496 = vperm.xlu0 %4495, %v1102
        %v4497 = vpop.permute.xlu0 %4496
        %v4499 = vlaneseq
        %v4500 = vshrl.u32 %v4499, 7
        %v4501 = vsub.s32 1, %v4500
        %v4502 = vrot.slane %v4478, %v4501
        %v4503 = vlaneseq
        %v4504 = vshrl.u32 %v4503, 7
        %v4505 = vsub.s32 1, %v4504
        %v4506 = vrot.slane %v4479, %v4505
        %v4507 = vmul.f32 %v4497, %v4502
        %v4508 = vmul.f32 %v4497, %v4506
        %v4509 = vadd.f32 %v4493, %v4507
        %v4510 = vadd.f32 %v4494, %v4508
        %v4511 = vadd.f32 %v4472, %v4509
        %v4512 = vadd.f32 %v4473, %v4510
        %4513 = vrot.lane.b32.xlu0 %v3283, 113
        %v4514 = vpop.permute.xlu0 %4513
        %4515 = vrot.lane.b32.xlu0 %v3284, 113
        %v4516 = vpop.permute.xlu0 %4515
        %v4517 = vsel %vm1688, %v4514, %v4516
        %v4518 = vsel %vm1688, %v4516, %v4514
        %4520 = vset.pattern.permute.xlu0 0
        %4521 = vperm.xlu0 %4520, %v1111
        %v4522 = vpop.permute.xlu0 %4521
        %v4524 = vlaneseq
        %v4525 = vshrl.u32 %v4524, 7
        %v4526 = vsub.s32 0, %v4525
        %v4527 = vrot.slane %v4517, %v4526
        %v4528 = vlaneseq
        %v4529 = vshrl.u32 %v4528, 7
        %v4530 = vsub.s32 0, %v4529
        %v4531 = vrot.slane %v4518, %v4530
        %v4532 = vmul.f32 %v4522, %v4527
        %v4533 = vmul.f32 %v4522, %v4531
        %4534 = vset.pattern.permute.xlu0 1
        %4535 = vperm.xlu0 %4534, %v1111
        %v4536 = vpop.permute.xlu0 %4535
        %v4538 = vlaneseq
        %v4539 = vshrl.u32 %v4538, 7
        %v4540 = vsub.s32 1, %v4539
        %v4541 = vrot.slane %v4517, %v4540
        %v4542 = vlaneseq
        %v4543 = vshrl.u32 %v4542, 7
        %v4544 = vsub.s32 1, %v4543
        %v4545 = vrot.slane %v4518, %v4544
        %v4546 = vmul.f32 %v4536, %v4541
        %v4547 = vmul.f32 %v4536, %v4545
        %v4548 = vadd.f32 %v4532, %v4546
        %v4549 = vadd.f32 %v4533, %v4547
        %v4550 = vadd.f32 %v4511, %v4548
        %v4551 = vadd.f32 %v4512, %v4549
        %4552 = vrot.lane.b32.xlu0 %v3545, 113
        %v4553 = vpop.permute.xlu0 %4552
        %4554 = vrot.lane.b32.xlu0 %v3546, 113
        %v4555 = vpop.permute.xlu0 %4554
        %v4556 = vsel %vm1688, %v4553, %v4555
        %v4557 = vsel %vm1688, %v4555, %v4553
        %4559 = vset.pattern.permute.xlu0 0
        %4560 = vperm.xlu0 %4559, %v1120
        %v4561 = vpop.permute.xlu0 %4560
        %v4563 = vlaneseq
        %v4564 = vshrl.u32 %v4563, 7
        %v4565 = vsub.s32 0, %v4564
        %v4566 = vrot.slane %v4556, %v4565
        %v4567 = vlaneseq
        %v4568 = vshrl.u32 %v4567, 7
        %v4569 = vsub.s32 0, %v4568
        %v4570 = vrot.slane %v4557, %v4569
        %v4571 = vmul.f32 %v4561, %v4566
        %v4572 = vmul.f32 %v4561, %v4570
        %4573 = vset.pattern.permute.xlu0 1
        %4574 = vperm.xlu0 %4573, %v1120
        %v4575 = vpop.permute.xlu0 %4574
        %v4577 = vlaneseq
        %v4578 = vshrl.u32 %v4577, 7
        %v4579 = vsub.s32 1, %v4578
        %v4580 = vrot.slane %v4556, %v4579
        %v4581 = vlaneseq
        %v4582 = vshrl.u32 %v4581, 7
        %v4583 = vsub.s32 1, %v4582
        %v4584 = vrot.slane %v4557, %v4583
        %v4585 = vmul.f32 %v4575, %v4580
        %v4586 = vmul.f32 %v4575, %v4584
        %v4587 = vadd.f32 %v4571, %v4585
        %v4588 = vadd.f32 %v4572, %v4586
        %v4589 = vadd.f32 %v4550, %v4587
        %v4590 = vadd.f32 %v4551, %v4588
        %v4591 = vmul.f32 %v4589, %v1716
        %v4592 = vmul.f32 %v4590, %v1720
        %v4593 = vadd.f32 %v4435, %v4591
        %v4594 = vadd.f32 %v4436, %v4592
        %4595 = vrot.lane.b32.xlu0 %v1833, 112
        %v4596 = vpop.permute.xlu0 %4595
        %4597 = vrot.lane.b32.xlu0 %v1834, 112
        %v4598 = vpop.permute.xlu0 %4597
        %v4599 = vsel %vm1735, %v4596, %v4598
        %v4600 = vsel %vm1735, %v4598, %v4596
        %4602 = vset.pattern.permute.xlu0 0
        %4603 = vperm.xlu0 %4602, %v1094
        %v4604 = vpop.permute.xlu0 %4603
        %v4606 = vlaneseq
        %v4607 = vshrl.u32 %v4606, 7
        %v4608 = vsub.s32 0, %v4607
        %v4609 = vrot.slane %v4599, %v4608
        %v4610 = vlaneseq
        %v4611 = vshrl.u32 %v4610, 7
        %v4612 = vsub.s32 0, %v4611
        %v4613 = vrot.slane %v4600, %v4612
        %v4614 = vmul.f32 %v4604, %v4609
        %v4615 = vmul.f32 %v4604, %v4613
        %4616 = vset.pattern.permute.xlu0 1
        %4617 = vperm.xlu0 %4616, %v1094
        %v4618 = vpop.permute.xlu0 %4617
        %v4620 = vlaneseq
        %v4621 = vshrl.u32 %v4620, 7
        %v4622 = vsub.s32 1, %v4621
        %v4623 = vrot.slane %v4599, %v4622
        %v4624 = vlaneseq
        %v4625 = vshrl.u32 %v4624, 7
        %v4626 = vsub.s32 1, %v4625
        %v4627 = vrot.slane %v4600, %v4626
        %v4628 = vmul.f32 %v4618, %v4623
        %v4629 = vmul.f32 %v4618, %v4627
        %v4630 = vadd.f32 %v4614, %v4628
        %v4631 = vadd.f32 %v4615, %v4629
        %4632 = vrot.lane.b32.xlu0 %v2560, 112
        %v4633 = vpop.permute.xlu0 %4632
        %4634 = vrot.lane.b32.xlu0 %v2561, 112
        %v4635 = vpop.permute.xlu0 %4634
        %v4636 = vsel %vm1735, %v4633, %v4635
        %v4637 = vsel %vm1735, %v4635, %v4633
        %4639 = vset.pattern.permute.xlu0 0
        %4640 = vperm.xlu0 %4639, %v1103
        %v4641 = vpop.permute.xlu0 %4640
        %v4643 = vlaneseq
        %v4644 = vshrl.u32 %v4643, 7
        %v4645 = vsub.s32 0, %v4644
        %v4646 = vrot.slane %v4636, %v4645
        %v4647 = vlaneseq
        %v4648 = vshrl.u32 %v4647, 7
        %v4649 = vsub.s32 0, %v4648
        %v4650 = vrot.slane %v4637, %v4649
        %v4651 = vmul.f32 %v4641, %v4646
        %v4652 = vmul.f32 %v4641, %v4650
        %4653 = vset.pattern.permute.xlu0 1
        %4654 = vperm.xlu0 %4653, %v1103
        %v4655 = vpop.permute.xlu0 %4654
        %v4657 = vlaneseq
        %v4658 = vshrl.u32 %v4657, 7
        %v4659 = vsub.s32 1, %v4658
        %v4660 = vrot.slane %v4636, %v4659
        %v4661 = vlaneseq
        %v4662 = vshrl.u32 %v4661, 7
        %v4663 = vsub.s32 1, %v4662
        %v4664 = vrot.slane %v4637, %v4663
        %v4665 = vmul.f32 %v4655, %v4660
        %v4666 = vmul.f32 %v4655, %v4664
        %v4667 = vadd.f32 %v4651, %v4665
        %v4668 = vadd.f32 %v4652, %v4666
        %v4669 = vadd.f32 %v4630, %v4667
        %v4670 = vadd.f32 %v4631, %v4668
        %4671 = vrot.lane.b32.xlu0 %v3283, 112
        %v4672 = vpop.permute.xlu0 %4671
        %4673 = vrot.lane.b32.xlu0 %v3284, 112
        %v4674 = vpop.permute.xlu0 %4673
        %v4675 = vsel %vm1735, %v4672, %v4674
        %v4676 = vsel %vm1735, %v4674, %v4672
        %4678 = vset.pattern.permute.xlu0 0
        %4679 = vperm.xlu0 %4678, %v1112
        %v4680 = vpop.permute.xlu0 %4679
        %v4682 = vlaneseq
        %v4683 = vshrl.u32 %v4682, 7
        %v4684 = vsub.s32 0, %v4683
        %v4685 = vrot.slane %v4675, %v4684
        %v4686 = vlaneseq
        %v4687 = vshrl.u32 %v4686, 7
        %v4688 = vsub.s32 0, %v4687
        %v4689 = vrot.slane %v4676, %v4688
        %v4690 = vmul.f32 %v4680, %v4685
        %v4691 = vmul.f32 %v4680, %v4689
        %4692 = vset.pattern.permute.xlu0 1
        %4693 = vperm.xlu0 %4692, %v1112
        %v4694 = vpop.permute.xlu0 %4693
        %v4696 = vlaneseq
        %v4697 = vshrl.u32 %v4696, 7
        %v4698 = vsub.s32 1, %v4697
        %v4699 = vrot.slane %v4675, %v4698
        %v4700 = vlaneseq
        %v4701 = vshrl.u32 %v4700, 7
        %v4702 = vsub.s32 1, %v4701
        %v4703 = vrot.slane %v4676, %v4702
        %v4704 = vmul.f32 %v4694, %v4699
        %v4705 = vmul.f32 %v4694, %v4703
        %v4706 = vadd.f32 %v4690, %v4704
        %v4707 = vadd.f32 %v4691, %v4705
        %v4708 = vadd.f32 %v4669, %v4706
        %v4709 = vadd.f32 %v4670, %v4707
        %4710 = vrot.lane.b32.xlu0 %v3545, 112
        %v4711 = vpop.permute.xlu0 %4710
        %4712 = vrot.lane.b32.xlu0 %v3546, 112
        %v4713 = vpop.permute.xlu0 %4712
        %v4714 = vsel %vm1735, %v4711, %v4713
        %v4715 = vsel %vm1735, %v4713, %v4711
        %4717 = vset.pattern.permute.xlu0 0
        %4718 = vperm.xlu0 %4717, %v1121
        %v4719 = vpop.permute.xlu0 %4718
        %v4721 = vlaneseq
        %v4722 = vshrl.u32 %v4721, 7
        %v4723 = vsub.s32 0, %v4722
        %v4724 = vrot.slane %v4714, %v4723
        %v4725 = vlaneseq
        %v4726 = vshrl.u32 %v4725, 7
        %v4727 = vsub.s32 0, %v4726
        %v4728 = vrot.slane %v4715, %v4727
        %v4729 = vmul.f32 %v4719, %v4724
        %v4730 = vmul.f32 %v4719, %v4728
        %4731 = vset.pattern.permute.xlu0 1
        %4732 = vperm.xlu0 %4731, %v1121
        %v4733 = vpop.permute.xlu0 %4732
        %v4735 = vlaneseq
        %v4736 = vshrl.u32 %v4735, 7
        %v4737 = vsub.s32 1, %v4736
        %v4738 = vrot.slane %v4714, %v4737
        %v4739 = vlaneseq
        %v4740 = vshrl.u32 %v4739, 7
        %v4741 = vsub.s32 1, %v4740
        %v4742 = vrot.slane %v4715, %v4741
        %v4743 = vmul.f32 %v4733, %v4738
        %v4744 = vmul.f32 %v4733, %v4742
        %v4745 = vadd.f32 %v4729, %v4743
        %v4746 = vadd.f32 %v4730, %v4744
        %v4747 = vadd.f32 %v4708, %v4745
        %v4748 = vadd.f32 %v4709, %v4746
        %v4749 = vmul.f32 %v4747, %v1763
        %v4750 = vmul.f32 %v4748, %v1767
        %v4751 = vadd.f32 %v4593, %v4749
        %v4752 = vadd.f32 %v4594, %v4750
        %4753 = vrot.lane.b32.xlu0 %v1833, 111
        %v4754 = vpop.permute.xlu0 %4753
        %4755 = vrot.lane.b32.xlu0 %v1834, 111
        %v4756 = vpop.permute.xlu0 %4755
        %v4757 = vsel %vm1782, %v4754, %v4756
        %v4758 = vsel %vm1782, %v4756, %v4754
        %4760 = vset.pattern.permute.xlu0 0
        %4761 = vperm.xlu0 %4760, %v1095
        %v4762 = vpop.permute.xlu0 %4761
        %v4764 = vlaneseq
        %v4765 = vshrl.u32 %v4764, 7
        %v4766 = vsub.s32 0, %v4765
        %v4767 = vrot.slane %v4757, %v4766
        %v4768 = vlaneseq
        %v4769 = vshrl.u32 %v4768, 7
        %v4770 = vsub.s32 0, %v4769
        %v4771 = vrot.slane %v4758, %v4770
        %v4772 = vmul.f32 %v4762, %v4767
        %v4773 = vmul.f32 %v4762, %v4771
        %4774 = vset.pattern.permute.xlu0 1
        %4775 = vperm.xlu0 %4774, %v1095
        %v4776 = vpop.permute.xlu0 %4775
        %v4778 = vlaneseq
        %v4779 = vshrl.u32 %v4778, 7
        %v4780 = vsub.s32 1, %v4779
        %v4781 = vrot.slane %v4757, %v4780
        %v4782 = vlaneseq
        %v4783 = vshrl.u32 %v4782, 7
        %v4784 = vsub.s32 1, %v4783
        %v4785 = vrot.slane %v4758, %v4784
        %v4786 = vmul.f32 %v4776, %v4781
        %v4787 = vmul.f32 %v4776, %v4785
        %v4788 = vadd.f32 %v4772, %v4786
        %v4789 = vadd.f32 %v4773, %v4787
        %4790 = vrot.lane.b32.xlu0 %v2560, 111
        %v4791 = vpop.permute.xlu0 %4790
        %4792 = vrot.lane.b32.xlu0 %v2561, 111
        %v4793 = vpop.permute.xlu0 %4792
        %v4794 = vsel %vm1782, %v4791, %v4793
        %v4795 = vsel %vm1782, %v4793, %v4791
        %4797 = vset.pattern.permute.xlu0 0
        %4798 = vperm.xlu0 %4797, %v1104
        %v4799 = vpop.permute.xlu0 %4798
        %v4801 = vlaneseq
        %v4802 = vshrl.u32 %v4801, 7
        %v4803 = vsub.s32 0, %v4802
        %v4804 = vrot.slane %v4794, %v4803
        %v4805 = vlaneseq
        %v4806 = vshrl.u32 %v4805, 7
        %v4807 = vsub.s32 0, %v4806
        %v4808 = vrot.slane %v4795, %v4807
        %v4809 = vmul.f32 %v4799, %v4804
        %v4810 = vmul.f32 %v4799, %v4808
        %4811 = vset.pattern.permute.xlu0 1
        %4812 = vperm.xlu0 %4811, %v1104
        %v4813 = vpop.permute.xlu0 %4812
        %v4815 = vlaneseq
        %v4816 = vshrl.u32 %v4815, 7
        %v4817 = vsub.s32 1, %v4816
        %v4818 = vrot.slane %v4794, %v4817
        %v4819 = vlaneseq
        %v4820 = vshrl.u32 %v4819, 7
        %v4821 = vsub.s32 1, %v4820
        %v4822 = vrot.slane %v4795, %v4821
        %v4823 = vmul.f32 %v4813, %v4818
        %v4824 = vmul.f32 %v4813, %v4822
        %v4825 = vadd.f32 %v4809, %v4823
        %v4826 = vadd.f32 %v4810, %v4824
        %v4827 = vadd.f32 %v4788, %v4825
        %v4828 = vadd.f32 %v4789, %v4826
        %4829 = vrot.lane.b32.xlu0 %v3283, 111
        %v4830 = vpop.permute.xlu0 %4829
        %4831 = vrot.lane.b32.xlu0 %v3284, 111
        %v4832 = vpop.permute.xlu0 %4831
        %v4833 = vsel %vm1782, %v4830, %v4832
        %v4834 = vsel %vm1782, %v4832, %v4830
        %4836 = vset.pattern.permute.xlu0 0
        %4837 = vperm.xlu0 %4836, %v1113
        %v4838 = vpop.permute.xlu0 %4837
        %v4840 = vlaneseq
        %v4841 = vshrl.u32 %v4840, 7
        %v4842 = vsub.s32 0, %v4841
        %v4843 = vrot.slane %v4833, %v4842
        %v4844 = vlaneseq
        %v4845 = vshrl.u32 %v4844, 7
        %v4846 = vsub.s32 0, %v4845
        %v4847 = vrot.slane %v4834, %v4846
        %v4848 = vmul.f32 %v4838, %v4843
        %v4849 = vmul.f32 %v4838, %v4847
        %4850 = vset.pattern.permute.xlu0 1
        %4851 = vperm.xlu0 %4850, %v1113
        %v4852 = vpop.permute.xlu0 %4851
        %v4854 = vlaneseq
        %v4855 = vshrl.u32 %v4854, 7
        %v4856 = vsub.s32 1, %v4855
        %v4857 = vrot.slane %v4833, %v4856
        %v4858 = vlaneseq
        %v4859 = vshrl.u32 %v4858, 7
        %v4860 = vsub.s32 1, %v4859
        %v4861 = vrot.slane %v4834, %v4860
        %v4862 = vmul.f32 %v4852, %v4857
        %v4863 = vmul.f32 %v4852, %v4861
        %v4864 = vadd.f32 %v4848, %v4862
        %v4865 = vadd.f32 %v4849, %v4863
        %v4866 = vadd.f32 %v4827, %v4864
        %v4867 = vadd.f32 %v4828, %v4865
        %4868 = vrot.lane.b32.xlu0 %v3545, 111
        %v4869 = vpop.permute.xlu0 %4868
        %4870 = vrot.lane.b32.xlu0 %v3546, 111
        %v4871 = vpop.permute.xlu0 %4870
        %v4872 = vsel %vm1782, %v4869, %v4871
        %v4873 = vsel %vm1782, %v4871, %v4869
        %4875 = vset.pattern.permute.xlu0 0
        %4876 = vperm.xlu0 %4875, %v1122
        %v4877 = vpop.permute.xlu0 %4876
        %v4879 = vlaneseq
        %v4880 = vshrl.u32 %v4879, 7
        %v4881 = vsub.s32 0, %v4880
        %v4882 = vrot.slane %v4872, %v4881
        %v4883 = vlaneseq
        %v4884 = vshrl.u32 %v4883, 7
        %v4885 = vsub.s32 0, %v4884
        %v4886 = vrot.slane %v4873, %v4885
        %v4887 = vmul.f32 %v4877, %v4882
        %v4888 = vmul.f32 %v4877, %v4886
        %4889 = vset.pattern.permute.xlu0 1
        %4890 = vperm.xlu0 %4889, %v1122
        %v4891 = vpop.permute.xlu0 %4890
        %v4893 = vlaneseq
        %v4894 = vshrl.u32 %v4893, 7
        %v4895 = vsub.s32 1, %v4894
        %v4896 = vrot.slane %v4872, %v4895
        %v4897 = vlaneseq
        %v4898 = vshrl.u32 %v4897, 7
        %v4899 = vsub.s32 1, %v4898
        %v4900 = vrot.slane %v4873, %v4899
        %v4901 = vmul.f32 %v4891, %v4896
        %v4902 = vmul.f32 %v4891, %v4900
        %v4903 = vadd.f32 %v4887, %v4901
        %v4904 = vadd.f32 %v4888, %v4902
        %v4905 = vadd.f32 %v4866, %v4903
        %v4906 = vadd.f32 %v4867, %v4904
        %v4907 = vmul.f32 %v4905, %v1819
        %v4908 = vmul.f32 %v4906, %v1823
        %v4909 = vadd.f32 %v4751, %v4907
        %v4910 = vadd.f32 %v4752, %v4908
        %4912 = vset.pattern.permute.xlu0 0
        %4913 = vperm.xlu0 %4912, %v1123
        %v4914 = vpop.permute.xlu0 %4913
        %v4916 = vmul.f32 %v4909, %v4914
        %v4917 = vmul.f32 %v4910, %v4914
        %4919 = vset.pattern.permute.xlu0 0
        %4920 = vperm.xlu0 %4919, %v1124
        %v4921 = vpop.permute.xlu0 %4920
        %v4923 = vadd.f32 %v4916, %v4921
        %v4924 = vadd.f32 %v4917, %v4921
        %v4925 = vmul.f32 %v4923, 0.5
        %v4926 = vmul.f32 %v4924, 0.5
        %v4927 = vmul.f32 %v4923, 0.70710677
        %v4928 = vmul.f32 %v4924, 0.70710677
        %v4929 = vand.u32 2147483647, %v4927
        %v4930 = vand.u32 2147483647, %v4928
        %v4931 = vmul.f32 %v4929, 0.3275911
        %v4932 = vmul.f32 %v4930, 0.3275911
        %v4933 = vadd.f32 %v4931, 1.0
        %v4934 = vadd.f32 %v4932, 1.0
        %v4935 = vrcp.pop %v4933
        %v4936 = vmul.f32 1.0, %v4935
        %v4937 = vrcp.pop %v4934
        %v4938 = vmul.f32 1.0, %v4937
        %v4939 = vmul.f32 %v4936, 1.0614054
        %v4940 = vmul.f32 %v4938, 1.0614054
        %v4941 = vadd.f32 %v4939, -1.4531521
        %v4942 = vadd.f32 %v4940, -1.4531521
        %v4943 = vmul.f32 %v4941, %v4936
        %v4944 = vmul.f32 %v4942, %v4938
        %v4945 = vadd.f32 %v4943, 1.4214138
        %v4946 = vadd.f32 %v4944, 1.4214138
        %v4947 = vmul.f32 %v4945, %v4936
        %v4948 = vmul.f32 %v4946, %v4938
        %v4949 = vadd.f32 %v4947, -0.28449672
        %v4950 = vadd.f32 %v4948, -0.28449672
        %v4951 = vmul.f32 %v4949, %v4936
        %v4952 = vmul.f32 %v4950, %v4938
        %v4953 = vadd.f32 %v4951, 0.2548296
        %v4954 = vadd.f32 %v4952, 0.2548296
        %v4955 = vmul.f32 %v4953, %v4936
        %v4956 = vmul.f32 %v4954, %v4938
        %v4957 = vsub.f32 0.0, %v4929
        %v4958 = vsub.f32 0.0, %v4930
        %v4959 = vmul.f32 %v4957, %v4929
        %v4960 = vmul.f32 %v4958, %v4930
        %v4961 = vmul.f32 %v4959, 1.442695
        %v4962 = vpow.pop %v4961
        %v4963 = vmul.f32 %v4960, 1.442695
        %v4964 = vpow.pop %v4963
        %v4965 = vmul.f32 %v4955, %v4962
        %v4966 = vmul.f32 %v4956, %v4964
        %v4967 = vsub.f32 1.0, %v4965
        %v4968 = vsub.f32 1.0, %v4966
        %vm4969 = vcmp.ge.f32.partialorder %v4927, 0.0
        %vm4970 = vcmp.ge.f32.partialorder %v4928, 0.0
        %v4971 = vsub.f32 0.0, %v4967
        %v4972 = vsub.f32 0.0, %v4968
        %v4973 = vsel %vm4969, %v4967, %v4971
        %v4974 = vsel %vm4970, %v4968, %v4972
        %v4975 = vadd.f32 %v4973, 1.0
        %v4976 = vadd.f32 %v4974, 1.0
        %v4977 = vmul.f32 %v4925, %v4975
        %v4978 = vmul.f32 %v4926, %v4976
        %v4980 = vsel %vm1135, %v1127, 0
        %v4983 = vsel %vm1135, %v1128, 0
        %4985 = vmatprep.subr.mxu0 %v4978
        %4986 = vmatpush1.msra.mxu0 %v4977
        %4987 = vmatprep.subr.mxu0 0.0
        %4988 = vmatpush1.msra.mxu0 0.0
        %4989 = vmatprep.subr.mxu0 0.0
        %4990 = vmatpush1.msra.mxu0 0.0
        %4991 = vmatprep.subr.mxu0 0.0
        %4992 = vmatpush1.msra.mxu0 0.0
        %4993 = vmatprep.subr.mxu0 0.0
        %4994 = vmatpush1.msra.mxu0 0.0
        %4995 = vmatprep.subr.mxu0 0.0
        %4996 = vmatpush1.msra.mxu0 0.0
        %4997 = vmatprep.subr.mxu0 0.0
        %4998 = vmatpush1.msra.mxu0 0.0
        %4999 = vmatprep.subr.mxu0 0.0
        %5000 = vmatpush1.msra.mxu0 0.0
        %5001 = vmatprep.subr.mxu0 0.0
        %5002 = vmatpush1.msra.mxu0 0.0
        %5003 = vmatprep.subr.mxu0 0.0
        %5004 = vmatpush1.msra.mxu0 0.0
        %5005 = vmatprep.subr.mxu0 0.0
        %5006 = vmatpush1.msra.mxu0 0.0
        %5007 = vmatprep.subr.mxu0 0.0
        %5008 = vmatpush1.msra.mxu0 0.0
        %5009 = vmatprep.subr.mxu0 0.0
        %5010 = vmatpush1.msra.mxu0 0.0
        %5011 = vmatprep.subr.mxu0 0.0
        %5012 = vmatpush1.msra.mxu0 0.0
        %5013 = vmatprep.subr.mxu0 0.0
        %5014 = vmatpush1.msra.mxu0 0.0
        %5015 = vmatprep.subr.mxu0 0.0
        %5016 = vmatpush1.msra.mxu0 0.0
        %5017 = vmatprep.subr.mxu0 0.0
        %5018 = vmatpush1.msra.mxu0 0.0
        %5019 = vmatprep.subr.mxu0 0.0
        %5020 = vmatpush1.msra.mxu0 0.0
        %5021 = vmatprep.subr.mxu0 0.0
        %5022 = vmatpush1.msra.mxu0 0.0
        %5023 = vmatprep.subr.mxu0 0.0
        %5024 = vmatpush1.msra.mxu0 0.0
        %5025 = vmatprep.subr.mxu0 0.0
        %5026 = vmatpush1.msra.mxu0 0.0
        %5027 = vmatprep.subr.mxu0 0.0
        %5028 = vmatpush1.msra.mxu0 0.0
        %5029 = vmatprep.subr.mxu0 0.0
        %5030 = vmatpush1.msra.mxu0 0.0
        %5031 = vmatprep.subr.mxu0 0.0
        %5032 = vmatpush1.msra.mxu0 0.0
        %5033 = vmatprep.subr.mxu0 0.0
        %5034 = vmatpush1.msra.mxu0 0.0
        %5035 = vmatprep.subr.mxu0 0.0
        %5036 = vmatpush1.msra.mxu0 0.0
        %5037 = vmatprep.subr.mxu0 0.0
        %5038 = vmatpush1.msra.mxu0 0.0
        %5039 = vmatprep.subr.mxu0 0.0
        %5040 = vmatpush1.msra.mxu0 0.0
        %5041 = vmatprep.subr.mxu0 0.0
        %5042 = vmatpush1.msra.mxu0 0.0
        %5043 = vmatprep.subr.mxu0 0.0
        %5044 = vmatpush1.msra.mxu0 0.0
        %5045 = vmatprep.subr.mxu0 0.0
        %5046 = vmatpush1.msra.mxu0 0.0
        %5047 = vmatprep.subr.mxu0 0.0
        %5048 = vmatpush1.msra.mxu0 0.0
        %5049 = vmatprep.mubr.f32.mxu0 0.0
        %5050 = vmatmul.mubr.f32.gmra.mrb[0].mxu0 %v4980
        %v5051 = vpop.f32.mrb[0].mxu0
        %v5052 = vadd.f32 0.0, %v5051
        %v5053 = vpop.f32.mrb[0].mxu0
        %v5054 = vadd.f32 0.0, %v5053
        %5055 = vmatprep.mubr.f32.mxu0 0.0
        %5056 = vmatmul.mubr.f32.gmra.mrb[0].mxu0 %v4983
        %v5057 = vpop.f32.mrb[0].mxu0
        %v5058 = vadd.f32 0.0, %v5057
        %v5059 = vpop.f32.mrb[0].mxu0
        %v5060 = vadd.f32 0.0, %v5059
        %5061 = vdwg.mxu0
        %vm5062 = vcmask 130048
        %v5064 = vsel %vm5062, %v1125, 0
        %v5067 = vsel %vm5062, %v1126, 0
        %5069 = vmatprep.subr.mxu0 %v1268
        %5070 = vmatpush1.msra.mxu0 %v1267
        %5071 = vmatprep.subr.mxu0 %v1270
        %5072 = vmatpush1.msra.mxu0 %v1269
        %5073 = vmatprep.subr.mxu0 0.0
        %5074 = vmatpush1.msra.mxu0 0.0
        %5075 = vmatprep.subr.mxu0 0.0
        %5076 = vmatpush1.msra.mxu0 0.0
        %5077 = vmatprep.subr.mxu0 0.0
        %5078 = vmatpush1.msra.mxu0 0.0
        %5079 = vmatprep.subr.mxu0 0.0
        %5080 = vmatpush1.msra.mxu0 0.0
        %5081 = vmatprep.subr.mxu0 0.0
        %5082 = vmatpush1.msra.mxu0 0.0
        %5083 = vmatprep.subr.mxu0 0.0
        %5084 = vmatpush1.msra.mxu0 0.0
        %5085 = vmatprep.subr.mxu0 0.0
        %5086 = vmatpush1.msra.mxu0 0.0
        %5087 = vmatprep.subr.mxu0 0.0
        %5088 = vmatpush1.msra.mxu0 0.0
        %5089 = vmatprep.subr.mxu0 0.0
        %5090 = vmatpush1.msra.mxu0 0.0
        %5091 = vmatprep.subr.mxu0 0.0
        %5092 = vmatpush1.msra.mxu0 0.0
        %5093 = vmatprep.subr.mxu0 0.0
        %5094 = vmatpush1.msra.mxu0 0.0
        %5095 = vmatprep.subr.mxu0 0.0
        %5096 = vmatpush1.msra.mxu0 0.0
        %5097 = vmatprep.subr.mxu0 0.0
        %5098 = vmatpush1.msra.mxu0 0.0
        %5099 = vmatprep.subr.mxu0 0.0
        %5100 = vmatpush1.msra.mxu0 0.0
        %5101 = vmatprep.subr.mxu0 0.0
        %5102 = vmatpush1.msra.mxu0 0.0
        %5103 = vmatprep.subr.mxu0 0.0
        %5104 = vmatpush1.msra.mxu0 0.0
        %5105 = vmatprep.subr.mxu0 0.0
        %5106 = vmatpush1.msra.mxu0 0.0
        %5107 = vmatprep.subr.mxu0 0.0
        %5108 = vmatpush1.msra.mxu0 0.0
        %5109 = vmatprep.subr.mxu0 0.0
        %5110 = vmatpush1.msra.mxu0 0.0
        %5111 = vmatprep.subr.mxu0 0.0
        %5112 = vmatpush1.msra.mxu0 0.0
        %5113 = vmatprep.subr.mxu0 0.0
        %5114 = vmatpush1.msra.mxu0 0.0
        %5115 = vmatprep.subr.mxu0 0.0
        %5116 = vmatpush1.msra.mxu0 0.0
        %5117 = vmatprep.subr.mxu0 0.0
        %5118 = vmatpush1.msra.mxu0 0.0
        %5119 = vmatprep.subr.mxu0 0.0
        %5120 = vmatpush1.msra.mxu0 0.0
        %5121 = vmatprep.subr.mxu0 0.0
        %5122 = vmatpush1.msra.mxu0 0.0
        %5123 = vmatprep.subr.mxu0 0.0
        %5124 = vmatpush1.msra.mxu0 0.0
        %5125 = vmatprep.subr.mxu0 0.0
        %5126 = vmatpush1.msra.mxu0 0.0
        %5127 = vmatprep.subr.mxu0 0.0
        %5128 = vmatpush1.msra.mxu0 0.0
        %5129 = vmatprep.subr.mxu0 0.0
        %5130 = vmatpush1.msra.mxu0 0.0
        %5131 = vmatprep.subr.mxu0 0.0
        %5132 = vmatpush1.msra.mxu0 0.0
        %5133 = vmatprep.mubr.f32.mxu0 0.0
        %5134 = vmatmul.mubr.f32.gmra.mrb[0].mxu0 %v5064
        %v5135 = vpop.f32.mrb[0].mxu0
        %v5136 = vadd.f32 %v5052, %v5135
        %v5137 = vpop.f32.mrb[0].mxu0
        %v5138 = vadd.f32 %v5054, %v5137
        %5139 = vmatprep.mubr.f32.mxu0 0.0
        %5140 = vmatmul.mubr.f32.gmra.mrb[0].mxu0 %v5067
        %v5141 = vpop.f32.mrb[0].mxu0
        %v5142 = vadd.f32 %v5058, %v5141
        %v5143 = vpop.f32.mrb[0].mxu0
        %v5144 = vadd.f32 %v5060, %v5143
        %5145 = vdwg.mxu0
        %5147 = vset.pattern.permute.xlu0 0
        %5148 = vperm.xlu0 %5147, %v1129
        %v5149 = vpop.permute.xlu0 %5148
        %5152 = vset.pattern.permute.xlu0 0
        %5153 = vperm.xlu0 %5152, %v1130
        %v5154 = vpop.permute.xlu0 %5153
        %v5156 = vmul.f32 %v5136, %v5149
        %v5157 = vmul.f32 %v5138, %v5149
        %v5158 = vmul.f32 %v5142, %v5154
        %v5159 = vmul.f32 %v5144, %v5154
        %5161 = vset.pattern.permute.xlu0 0
        %5162 = vperm.xlu0 %5161, %v1131
        %v5163 = vpop.permute.xlu0 %5162
        %5166 = vset.pattern.permute.xlu0 0
        %5167 = vperm.xlu0 %5166, %v1132
        %v5168 = vpop.permute.xlu0 %5167
        %v5170 = vadd.f32 %v5156, %v5163
        %v5171 = vadd.f32 %v5157, %v5163
        %v5172 = vadd.f32 %v5158, %v5168
        %v5173 = vadd.f32 %v5159, %v5168
        %v5174 = vsub.f32 0.0, %v5170
        %v5175 = vsub.f32 0.0, %v5171
        %v5176 = vsub.f32 0.0, %v5172
        %v5177 = vsub.f32 0.0, %v5173
        %v5178 = vmul.f32 %v5174, 1.442695
        %v5179 = vpow.pop %v5178
        %v5180 = vmul.f32 %v5175, 1.442695
        %v5181 = vpow.pop %v5180
        %v5182 = vmul.f32 %v5176, 1.442695
        %v5183 = vpow.pop %v5182
        %v5184 = vmul.f32 %v5177, 1.442695
        %v5185 = vpow.pop %v5184
        %v5186 = vadd.f32 %v5179, 1.0
        %v5187 = vadd.f32 %v5181, 1.0
        %v5188 = vadd.f32 %v5183, 1.0
        %v5189 = vadd.f32 %v5185, 1.0
        %v5190 = vrcp.pop %v5186
        %v5191 = vrcp.pop %v5187
        %v5192 = vrcp.pop %v5188
        %v5193 = vrcp.pop %v5189
        %v5194 = vmul.f32 %v5170, %v5190
        %v5195 = vmul.f32 %v5171, %v5191
        %v5196 = vmul.f32 %v5172, %v5192
        %v5197 = vmul.f32 %v5173, %v5193
        %5198 = vst [vmem:[%s1034] sm:$0xff] %v5194
        %5199 = vst [vmem:[%s1034 + $0x8] sm:$0xff] %v5195
        %5200 = vst [vmem:[%s1034 + $0x10] sm:$0xff] %v5196
        %5201 = vst [vmem:[%s1034 + $0x18] sm:$0xff] %v5197
        %s5202 = sand.u32 %s809, 1
        %s5203 = sand.u32 %s809, 1
        %s5204 = smul.addr %s5203, 32
        %s5205 = scalar_lea.vmem [#allocation3], %s5204
        // Predicated region
        $region157: #{_lambda_.1} parent=155 // pred_check
          %p5206 = pneg %p819
        $region158: #{_lambda_.1} parent=155 // pred_check_branch
          %5208 = sbr.rel (%p5206) target = $region160
        $region159: #{_lambda_.1} parent=155 // pred_region
          %s5209 = smul.u32 2, %s82
          %s5210 = smul.addr %s5209, 8
          %s5211 = scalar_lea.vmem %s69, %s5210
          // Predicated region
          $region161: #{_lambda_.1} parent=159 // pred_check
            _
          $region162: #{_lambda_.1} parent=159 // pred_check_branch
            %5213 = sbr.rel (0) target = $region164
          $region163: #{_lambda_.1} parent=159 // pred_region
            // Predicated region
            $region165: #{_lambda_.1} parent=163 // pred_check
              _
            $region166: #{_lambda_.1} parent=163 // pred_check_branch
              %5215 = sbr.rel (0) target = $region168
            $region167: #{_lambda_.1} parent=163 // pred_region
              loop: start=0, step=1, limit=1
              $region169: #{_lambda_.1} parent=167 // loop_pre_header
                _
              $region170: #{_lambda_.1} parent=167 // loop_header
                %s5217 = sphi 0, %s5221
                %p5218 = scmp.ge.s32.totalorder %s5217, 1
                %s5222 = sphi %s5205, %s5205
                %s5223 = sphi %s5211, %s5211
              $region171: #{_lambda_.1} parent=167 // loop_header_branch
                %5220 = sbr.rel (%p5218) target = $region175
              $region172: #{_lambda_.1} parent=167 // loop_body
                %v5224 = vld [vmem:[%s5222] sm:$0xff]
                %5225 = vst [vmem:[%s5223] sm:$0xff] %v5224
                %v5226 = vld [vmem:[%s5222 + $0x8] sm:$0xff]
                %5227 = vst [vmem:[%s5223 + $0x8] sm:$0xff] %v5226
                %v5228 = vld [vmem:[%s5222 + $0x10] sm:$0xff]
                %5229 = vst [vmem:[%s5223 + $0x20] sm:$0xff] %v5228
                %v5230 = vld [vmem:[%s5222 + $0x18] sm:$0xff]
                %5231 = vst [vmem:[%s5223 + $0x28] sm:$0xff] %v5230
              $region173: #{_lambda_.1} parent=167 // loop_footer
                %s5221 = sadd.s32 1, %s5217
              $region174: #{_lambda_.1} parent=167 // loop_footer_branch
                %5216 = sbr.rel target = $region170
              $region175: #{_lambda_.1} parent=167 // loop_exit
                _
            $region168: #{_lambda_.1} parent=163 // pred_fallthru
              _
            // Predicated region
            $region176: #{_lambda_.1} parent=163 // pred_check
              _
            $region177: #{_lambda_.1} parent=163 // pred_check_branch
              %5233 = sbr.rel target = $region179
            $region178: #{_lambda_.1} parent=163 // pred_region
              _
            $region179: #{_lambda_.1} parent=163 // pred_fallthru
              _
          $region164: #{_lambda_.1} parent=159 // pred_fallthru
            _
          %5234 = vnop
        $region160: #{_lambda_.1} parent=155 // pred_fallthru
          _
      $region156: #{_lambda_.1} parent=5 // pred_fallthru
        _
      %p5235 = scmp.le.s32.totalorder 2, %s77
      // Predicated region
      $region180: #{_lambda_.1} parent=5 // pred_check
        %p5236 = pneg %p5235
      $region181: #{_lambda_.1} parent=5 // pred_check_branch
        %5238 = sbr.rel (%p5236) target = $region183
      $region182: #{_lambda_.1} parent=5 // pred_region
        %s5239 = ssub.s32 %s77, 2
        // Predicated region
        $region184: #{_lambda_.1} parent=182 // pred_check
          %p5240 = pneg %p825
        $region185: #{_lambda_.1} parent=182 // pred_check_branch
          %5242 = sbr.rel (%p5240) target = $region187
        $region186: #{_lambda_.1} parent=182 // pred_region
          %s5243 = sand.u32 %s810, 1
          %s5244 = sand.u32 %s810, 1
          %s5245 = smul.addr %s5244, 32
          %s5246 = scalar_lea.vmem [#allocation3], %s5245
        $region187: #{_lambda_.1} parent=182 // pred_fallthru
          _
      $region183: #{_lambda_.1} parent=5 // pred_fallthru
        _
    $region6: #{_lambda_.1} parent=1 // loop_footer
      %s81 = sadd.s32 1, %s77
    $region7: #{_lambda_.1} parent=1 // loop_footer_branch
      %76 = sbr.rel target = $region3
    $region8: #{_lambda_.1} parent=1 // loop_exit
      _

</llo_original>
